<compile_context>
chip_gen: v6e
topology: v6e:2x2x1
jax: 0.10.0
libtpu: 0.0.40
codegen_flags: <defaults>
</compile_context>

<pallas_src>
import numpy as np
import jax
import jax.numpy as jnp
from jax.experimental import pallas as pl
from jax.experimental.pallas import tpu as pltpu

_EPS = 1e-5
_MIX_GROUP = 8           # batches whose hw rows share one block-diagonal mixer matmul (8*6=48)
_PREC = jax.lax.Precision.HIGHEST   # reference only


def seqnet_mix_kernel(xu_ref, cw_ref, amat_ref, w1_ref, w2_ref, mixp_ref,
                      rfold_ref, wct_ref, bcf_ref, o_ref):
    """Grid = (batch tiles [parallel], channel chunks [arbitrary, innermost]).

    xu_ref   : (Bt*hw, w*inDims)      bf16  unfolded input windows for Bt batches
    cw_ref   : (w*inDims, tc)         bf16  conv weight chunk (output channels k*tc:(k+1)*tc)
    amat_ref : (G*hw, G*hw)           f32   block-diag "mean over hw" matrix (kron(I_G, 1/hw))
    w1_ref   : (depth, G*hw, G*hw)    f32   mixer Linear1 weights, block-diag over G batches
    w2_ref   : (depth, G*hw, G*hw)    f32   mixer Linear2 weights, block-diag over G batches
    mixp_ref : (depth, G*hw, 4)       f32   packed [ln_gamma, ln_beta, b1, b2] column params
    rfold_ref: (G, G*hw)              f32   row_proj+mean fold: kron(I_G, wr_mean)
    wct_ref  : (tc, outDims)          bf16  channel_proj weight (wc.T) row chunk
    bcf_ref  : (1, outDims)           f32   folded bias: sum(wr_mean)*(wc@conv_b + bc) + mean(br)
    o_ref    : (Bt, outDims)          f32   output accumulator (resident across channel chunks)
    """
    k = pl.program_id(1)
    depth = w1_ref.shape[0]
    rows_g = amat_ref.shape[0]            # G * hw rows per mixer group
    G = rfold_ref.shape[0]                # batches per mixer group
    n_groups = xu_ref.shape[0] // rows_g  # Bt // G

    # ---- Conv1d for this channel chunk: ONE deep-K bf16 MXU matmul over all Bt*hw rows ----
    # Conv bias is folded into bcf in the wrapper (it cancels in LayerNorm centering and
    # passes linearly through residual -> channel_proj -> row_proj -> mean), so no add here.
    s_full = jnp.dot(xu_ref[...], cw_ref[...], preferred_element_type=jnp.float32)

    # ---- resident (Bt, outDims) accumulator: init once with the folded bias ----
    @pl.when(k == 0)
    def _():
        o_ref[...] = jnp.broadcast_to(bcf_ref[...], o_ref.shape)

    # Hoist loop-invariant mixer parameters (loaded once, reused for every batch sub-group).
    amat = amat_ref[...]
    rfold = rfold_ref[...]
    mp = mixp_ref[...]
    w1 = [w1_ref[d] for d in range(depth)]
    w2 = [w2_ref[d] for d in range(depth)]
    lng = [mp[d, :, 0:1] for d in range(depth)]
    lnb = [mp[d, :, 1:2] for d in range(depth)]
    b1 = [mp[d, :, 2:3] for d in range(depth)]
    b2 = [mp[d, :, 3:4] for d in range(depth)]

    # ---- FeatureMixer x depth on fixed-size (G*hw)-row groups (mixer cost linear in Bt) ----
    for g in range(n_groups):
        s = s_full[g * rows_g:(g + 1) * rows_g, :]            # 48-row, sublane-aligned slice
        for d in range(depth):
            # LayerNorm over hw via the block-diagonal mean matrix (default precision).
            mu = jnp.dot(amat, s, preferred_element_type=jnp.float32)
            cen = s - mu
            var = jnp.dot(amat, cen * cen, preferred_element_type=jnp.float32)
            xn = cen * jax.lax.rsqrt(var + _EPS) * lng[d] + lnb[d]
            h = jnp.maximum(jnp.dot(w1[d], xn, preferred_element_type=jnp.float32) + b1[d], 0.0)
            s = s + jnp.dot(w2[d], h, preferred_element_type=jnp.float32) + b2[d]

        # row_proj + final mean folded to one (G, G*hw) matmul -> (G, tc), then the
        # channel_proj contribution of this channel chunk (bf16 MXU, f32 accumulation).
        v = jnp.dot(rfold, s, preferred_element_type=jnp.float32)            # (G, tc)
        contrib = jnp.dot(v.astype(jnp.bfloat16), wct_ref[...],
                          preferred_element_type=jnp.float32)                # (G, outDims)
        o_ref[g * G:(g + 1) * G, :] += contrib


def seqnet_mix_forward(x, p, *, batch_tile=32, chan_tile=256, vmem_limit_bytes=None):
    B, seqL, inDims = x.shape
    outDims, _, w = p["conv_w"].shape
    hw = seqL - w + 1
    depth = p["w1"].shape[0]
    assert hw == p["wr"].shape[1], "seqL - w + 1 must equal hw (= in_h*in_w = 6)"

    Bt = min(batch_tile, B)
    assert B % Bt == 0 and Bt % _MIX_GROUP == 0, \
        "batch tile must divide B and be a multiple of 8 (sublane alignment + mixer grouping)"
    tc = min(chan_tile, outDims)
    assert outDims % tc == 0 and tc % 128 == 0, "channel chunk must be a lane-dense divisor"

    G = _MIX_GROUP
    f32, bf16 = jnp.float32, jnp.bfloat16

    # ---- wrapper-side glue: unfold input, reshape/fold weights (all exact algebra) ----
    # xu[b*hw + t, k*inDims + ci] = x[b, t+k, ci]
    xu = jnp.stack([x[:, kk:kk + hw, :] for kk in range(w)], axis=2)       # (B, hw, w, inDims)
    xu = xu.reshape(B * hw, w * inDims).astype(bf16)

    # cw2[k*inDims + ci, o] = conv_w[o, ci, k]
    cw2 = jnp.transpose(p["conv_w"], (2, 1, 0)).reshape(w * inDims, outDims).astype(bf16)

    # Block-diagonal mixer weights over a FIXED group of G=8 batches (decoupled from Bt).
    eye_g = jnp.eye(G, dtype=f32)
    amat = jnp.kron(eye_g, jnp.full((hw, hw), 1.0 / hw, f32))              # (G*hw, G*hw)
    w1_big = jax.vmap(lambda m: jnp.kron(eye_g, m))(p["w1"].astype(f32))   # (depth, G*hw, G*hw)
    w2_big = jax.vmap(lambda m: jnp.kron(eye_g, m))(p["w2"].astype(f32))
    # Packed per-depth column params [ln_gamma, ln_beta, b1, b2] -> one operand, one DMA.
    mixp = jnp.stack([jnp.tile(p["ln_g"], (1, G)),
                      jnp.tile(p["ln_b"], (1, G)),
                      jnp.tile(p["b1"], (1, G)),
                      jnp.tile(p["b2"], (1, G))], axis=2).astype(f32)      # (depth, G*hw, 4)

    # row_proj + mean(-1) folded to wr_mean; commuted in front of channel_proj.
    wr_mean = jnp.mean(p["wr"], axis=0)                                    # (hw,)
    rfold = jnp.kron(eye_g, wr_mean[None, :]).astype(f32)                  # (G, G*hw)
    wct = p["wc"].T.astype(bf16)                                           # (outDims_in, outDims_out)
    # Conv bias folded here too: out_bias = sum(wr_mean) * (wc @ conv_b + bc) + mean(br).
    bcf = (jnp.sum(wr_mean) * (p["wc"] @ p["conv_b"] + p["bc"])
           + jnp.mean(p["br"]))[None, :].astype(f32)                       # (1, outDims)

    grid = (B // Bt, outDims // tc)   # batch axis parallel, channel-chunk axis last/arbitrary

    # Advisory cost estimate so XLA schedules around the custom call.
    flops = int(2 * B * hw * (w * inDims) * outDims        # conv
                + 2 * B * outDims * outDims                # channel proj (hw folded to 1 row)
                + 8 * B * depth * hw * hw * outDims)       # mixer (ideal per-batch cost)
    transcendentals = int(B * depth * outDims)             # LayerNorm rsqrt
    bytes_accessed = int(xu.size * 2 + B * outDims * 4
                         + (cw2.size + wct.size) * 2 * grid[0])

    cparams = dict(dimension_semantics=("parallel", "arbitrary"))
    if vmem_limit_bytes is not None:
        cparams["vmem_limit_bytes"] = int(vmem_limit_bytes)

    out = pl.pallas_call(
        seqnet_mix_kernel,
        out_shape=jax.ShapeDtypeStruct((B, outDims), jnp.float32),
        grid_spec=pltpu.PrefetchScalarGridSpec(
            num_scalar_prefetch=0,
            grid=grid,
            in_specs=[
                pl.BlockSpec((Bt * hw, w * inDims), lambda g, k: (g, 0)),        # xu
                pl.BlockSpec((w * inDims, tc), lambda g, k: (0, k)),             # conv W chunk
                pl.BlockSpec((G * hw, G * hw), lambda g, k: (0, 0)),             # mean matrix
                pl.BlockSpec((depth, G * hw, G * hw), lambda g, k: (0, 0, 0)),   # mixer W1
                pl.BlockSpec((depth, G * hw, G * hw), lambda g, k: (0, 0, 0)),   # mixer W2
                pl.BlockSpec((depth, G * hw, 4), lambda g, k: (0, 0, 0)),        # packed LN/bias
                pl.BlockSpec((G, G * hw), lambda g, k: (0, 0)),                  # row fold
                pl.BlockSpec((tc, outDims), lambda g, k: (k, 0)),                # wc.T row chunk
                pl.BlockSpec((1, outDims), lambda g, k: (0, 0)),                 # folded bias
            ],
            out_specs=pl.BlockSpec((Bt, outDims), lambda g, k: (g, 0)),
        ),
        compiler_params=pltpu.CompilerParams(**cparams),
        cost_estimate=pl.CostEstimate(flops=flops, transcendentals=transcendentals,
                                      bytes_accessed=bytes_accessed),
    )(xu, cw2, amat, w1_big, w2_big, mixp, rfold, wct, bcf)
    return out


def init_params(key, inDims, outDims, w=5, depth=4, hw=6, out_rows=10):
    ks = jax.random.split(key, 8)
    std = 0.02
    return {
        "conv_w": jax.random.normal(ks[0], (outDims, inDims, w), jnp.float32) * std,
        "conv_b": jax.random.normal(ks[1], (outDims,), jnp.float32) * std,
        "ln_g": jnp.ones((depth, hw), jnp.float32),
        "ln_b": jnp.zeros((depth, hw), jnp.float32),
        "w1": jax.random.normal(ks[2], (depth, hw, hw), jnp.float32) * std,
        "b1": jnp.zeros((depth, hw), jnp.float32),        # nn.init.zeros_ on mixer biases
        "w2": jax.random.normal(ks[3], (depth, hw, hw), jnp.float32) * std,
        "b2": jnp.zeros((depth, hw), jnp.float32),
        "wc": jax.random.normal(ks[4], (outDims, outDims), jnp.float32) * std,
        "bc": jax.random.normal(ks[5], (outDims,), jnp.float32) * std,
        "wr": jax.random.normal(ks[6], (out_rows, hw), jnp.float32) * std,
        "br": jax.random.normal(ks[7], (out_rows,), jnp.float32) * std,
    }


def ref_forward(x, p):
    """Pure-JAX mirror of the PyTorch forward (NCL conv layout), for validation."""
    xt = jnp.transpose(x, (0, 2, 1))                     # [B, inDims, seqL]
    w = p["conv_w"].shape[2]
    seqL = x.shape[1]
    hw = seqL - w + 1
    cols = [jnp.einsum("bck,ock->bo", xt[:, :, t:t + w], p["conv_w"], precision=_PREC)
            for t in range(hw)]
    s = jnp.stack(cols, axis=-1) + p["conv_b"][None, :, None]   # [B, outDims, hw]
    for d in range(p["w1"].shape[0]):
        mu = jnp.mean(s, axis=-1, keepdims=True)
        var = jnp.mean((s - mu) ** 2, axis=-1, keepdims=True)
        xn = (s - mu) / jnp.sqrt(var + _EPS) * p["ln_g"][d] + p["ln_b"][d]
        h = jax.nn.relu(jnp.einsum("bcl,hl->bch", xn, p["w1"][d], precision=_PREC) + p["b1"][d])
        s = s + jnp.einsum("bch,oh->bco", h, p["w2"][d], precision=_PREC) + p["b2"][d]
    c = jnp.einsum("bcl,oc->blo", s, p["wc"], precision=_PREC) + p["bc"]     # [B, hw, outDims]
    r = jnp.einsum("blo,jl->boj", c, p["wr"], precision=_PREC) + p["br"]     # [B, outDims, rows]
    return jnp.mean(r, axis=-1)                                              # [B, outDims]


if __name__ == "__main__":
    # Small shapes consistent with the module: seqL=10, w=5 -> hw=6 (MixVPR's in_h*in_w).
    # B=32 with Bt=16 gives 2 "parallel" batch steps (both TCs busy on v7x) and exercises the
    # Bt/8=2 mixer sub-group loop; outDims=512 with tc=256 gives 2 "arbitrary" channel chunks,
    # exercising the resident-output accumulation path.  NOTE: don't tune on these toy shapes
    # (4 grid steps); the weight-streaming roofline only applies at the intended 4096 scale.
    B, seqL, inDims, outDims = 32, 10, 32, 512
    w, depth, hw, out_rows = 5, 4, 6, 10

    key = jax.random.PRNGKey(0)
    kx, kp = jax.random.split(key)
    x = jax.random.normal(kx, (B, seqL, inDims), dtype=jnp.float32)
    params = init_params(kp, inDims, outDims, w=w, depth=depth, hw=hw, out_rows=out_rows)

    out = seqnet_mix_forward(x, params, batch_tile=16, chan_tile=256)
    out = jax.block_until_ready(out)

    assert out.shape == (B, outDims)
    assert bool(jnp.all(jnp.isfinite(out)))
    ref = ref_forward(x, params)
    # Tolerance accommodates the bf16 operands on the conv / channel_proj matmuls and the
    # default-precision mixer matmuls.
    np.testing.assert_allclose(np.asarray(out), np.asarray(ref), rtol=3e-2, atol=2e-3)
    print("KERNEL_OK")
</pallas_src>

<mosaic_0001>
module attributes {stable_mosaic.version = 11 : i64} {
  func.func @seqnet_mix_kernel(%arg0: i32, %arg1: i32, %arg2: memref<96x160xbf16, #tpu.memory_space<vmem>>, %arg3: memref<160x256xbf16, #tpu.memory_space<vmem>>, %arg4: memref<48x48xf32, #tpu.memory_space<vmem>>, %arg5: memref<4x48x48xf32, #tpu.memory_space<vmem>>, %arg6: memref<4x48x48xf32, #tpu.memory_space<vmem>>, %arg7: memref<4x48x4xf32, #tpu.memory_space<vmem>>, %arg8: memref<8x48xf32, #tpu.memory_space<vmem>>, %arg9: memref<256x512xbf16, #tpu.memory_space<vmem>>, %arg10: memref<1x512xf32, #tpu.memory_space<vmem>>, %arg11: memref<16x512xf32, #tpu.memory_space<vmem>>) attributes {dimension_semantics = [#tpu.dimension_semantics<parallel>, #tpu.dimension_semantics<arbitrary>], iteration_bounds = array<i64: 2, 2>, scalar_prefetch = 0 : i64, scratch_operands = 0 : i64, tpu.core_type = #tpu.core_type<tc>, window_params = [{transform_indices = @transform_0, window_bounds = array<i64: 96, 160>}, {transform_indices = @transform_1, window_bounds = array<i64: 160, 256>}, {pipeline_mode = #tpu.pipeline_mode<synchronous>, transform_indices = @transform_2, window_bounds = array<i64: 48, 48>}, {pipeline_mode = #tpu.pipeline_mode<synchronous>, transform_indices = @transform_3, window_bounds = array<i64: 4, 48, 48>}, {pipeline_mode = #tpu.pipeline_mode<synchronous>, transform_indices = @transform_4, window_bounds = array<i64: 4, 48, 48>}, {pipeline_mode = #tpu.pipeline_mode<synchronous>, transform_indices = @transform_5, window_bounds = array<i64: 4, 48, 4>}, {pipeline_mode = #tpu.pipeline_mode<synchronous>, transform_indices = @transform_6, window_bounds = array<i64: 8, 48>}, {transform_indices = @transform_7, window_bounds = array<i64: 256, 512>}, {pipeline_mode = #tpu.pipeline_mode<synchronous>, transform_indices = @transform_8, window_bounds = array<i64: 1, 512>}, {transform_indices = @transform_9, window_bounds = array<i64: 16, 512>}]} {
    %c0 = arith.constant 0 : index
    %c0_0 = arith.constant 0 : index
    %0 = vector.load %arg2[%c0, %c0_0] : memref<96x160xbf16, #tpu.memory_space<vmem>>, vector<96x160xbf16>
    %c0_1 = arith.constant 0 : index
    %c0_2 = arith.constant 0 : index
    %1 = vector.load %arg3[%c0_1, %c0_2] : memref<160x256xbf16, #tpu.memory_space<vmem>>, vector<160x256xbf16>
    %cst = arith.constant dense<0.000000e+00> : vector<96x256xf32>
    %2 = tpu.matmul %0, %1, %cst {dimension_numbers = #tpu.dot_dimension_numbers<[1], [0], [0], [1], [0, 0, 1, 1], [], []>} : vector<96x160xbf16>, vector<160x256xbf16>, vector<96x256xf32> -> vector<96x256xf32>
    %c0_i32 = arith.constant 0 : i32
    %3 = arith.cmpi eq, %arg1, %c0_i32 : i32
    %4 = arith.extui %3 : i1 to i32
    %c0_i32_3 = arith.constant 0 : i32
    %5 = arith.cmpi ne, %4, %c0_i32_3 : i32
    scf.if %5 {
      %c0_95 = arith.constant 0 : index
      %c0_96 = arith.constant 0 : index
      %241 = vector.load %arg10[%c0_95, %c0_96] : memref<1x512xf32, #tpu.memory_space<vmem>>, vector<1x512xf32>
      %242 = vector.shape_cast %241 : vector<1x512xf32> to vector<1x512xf32>
      %243 = vector.broadcast %242 : vector<1x512xf32> to vector<16x512xf32>
      %c0_97 = arith.constant 0 : index
      %c0_98 = arith.constant 0 : index
      %244 = vector.load %arg11[%c0_97, %c0_98] : memref<16x512xf32, #tpu.memory_space<vmem>>, vector<16x512xf32>
      tpu.vector_store %arg11[%c0_97, %c0_98], %243 {strides = array<i32>} : memref<16x512xf32, #tpu.memory_space<vmem>>, vector<16x512xf32>,
    } else {
    }
    %c0_4 = arith.constant 0 : index
    %c0_5 = arith.constant 0 : index
    %6 = vector.load %arg4[%c0_4, %c0_5] : memref<48x48xf32, #tpu.memory_space<vmem>>, vector<48x48xf32>
    %c0_6 = arith.constant 0 : index
    %c0_7 = arith.constant 0 : index
    %7 = vector.load %arg8[%c0_6, %c0_7] : memref<8x48xf32, #tpu.memory_space<vmem>>, vector<8x48xf32>
    %c0_8 = arith.constant 0 : index
    %c0_9 = arith.constant 0 : index
    %c0_10 = arith.constant 0 : index
    %8 = vector.load %arg7[%c0_8, %c0_9, %c0_10] : memref<4x48x4xf32, #tpu.memory_space<vmem>>, vector<4x48x4xf32>
    %c0_11 = arith.constant 0 : index
    %c0_12 = arith.constant 0 : index
    %c0_13 = arith.constant 0 : index
    %9 = vector.load %arg5[%c0_11, %c0_12, %c0_13] : memref<4x48x48xf32, #tpu.memory_space<vmem>>, vector<1x48x48xf32>
    %10 = vector.shape_cast %9 : vector<1x48x48xf32> to vector<48x48xf32>
    %c1 = arith.constant 1 : index
    %c0_14 = arith.constant 0 : index
    %c0_15 = arith.constant 0 : index
    %11 = vector.load %arg5[%c1, %c0_14, %c0_15] : memref<4x48x48xf32, #tpu.memory_space<vmem>>, vector<1x48x48xf32>
    %12 = vector.shape_cast %11 : vector<1x48x48xf32> to vector<48x48xf32>
    %c2 = arith.constant 2 : index
    %c0_16 = arith.constant 0 : index
    %c0_17 = arith.constant 0 : index
    %13 = vector.load %arg5[%c2, %c0_16, %c0_17] : memref<4x48x48xf32, #tpu.memory_space<vmem>>, vector<1x48x48xf32>
    %14 = vector.shape_cast %13 : vector<1x48x48xf32> to vector<48x48xf32>
    %c3 = arith.constant 3 : index
    %c0_18 = arith.constant 0 : index
    %c0_19 = arith.constant 0 : index
    %15 = vector.load %arg5[%c3, %c0_18, %c0_19] : memref<4x48x48xf32, #tpu.memory_space<vmem>>, vector<1x48x48xf32>
    %16 = vector.shape_cast %15 : vector<1x48x48xf32> to vector<48x48xf32>
    %c0_20 = arith.constant 0 : index
    %c0_21 = arith.constant 0 : index
    %c0_22 = arith.constant 0 : index
    %17 = vector.load %arg6[%c0_20, %c0_21, %c0_22] : memref<4x48x48xf32, #tpu.memory_space<vmem>>, vector<1x48x48xf32>
    %18 = vector.shape_cast %17 : vector<1x48x48xf32> to vector<48x48xf32>
    %c1_23 = arith.constant 1 : index
    %c0_24 = arith.constant 0 : index
    %c0_25 = arith.constant 0 : index
    %19 = vector.load %arg6[%c1_23, %c0_24, %c0_25] : memref<4x48x48xf32, #tpu.memory_space<vmem>>, vector<1x48x48xf32>
    %20 = vector.shape_cast %19 : vector<1x48x48xf32> to vector<48x48xf32>
    %c2_26 = arith.constant 2 : index
    %c0_27 = arith.constant 0 : index
    %c0_28 = arith.constant 0 : index
    %21 = vector.load %arg6[%c2_26, %c0_27, %c0_28] : memref<4x48x48xf32, #tpu.memory_space<vmem>>, vector<1x48x48xf32>
    %22 = vector.shape_cast %21 : vector<1x48x48xf32> to vector<48x48xf32>
    %c3_29 = arith.constant 3 : index
    %c0_30 = arith.constant 0 : index
    %c0_31 = arith.constant 0 : index
    %23 = vector.load %arg6[%c3_29, %c0_30, %c0_31] : memref<4x48x48xf32, #tpu.memory_space<vmem>>, vector<1x48x48xf32>
    %24 = vector.shape_cast %23 : vector<1x48x48xf32> to vector<48x48xf32>
    %25 = vector.extract_strided_slice %8 {offsets = [0, 0, 0], sizes = [1, 48, 1], strides = [1, 1, 1]} : vector<4x48x4xf32> to vector<1x48x1xf32>
    %26 = vector.shape_cast %25 : vector<1x48x1xf32> to vector<48x1xf32>
    %27 = vector.extract_strided_slice %8 {offsets = [1, 0, 0], sizes = [1, 48, 1], strides = [1, 1, 1]} : vector<4x48x4xf32> to vector<1x48x1xf32>
    %28 = vector.shape_cast %27 : vector<1x48x1xf32> to vector<48x1xf32>
    %29 = vector.extract_strided_slice %8 {offsets = [2, 0, 0], sizes = [1, 48, 1], strides = [1, 1, 1]} : vector<4x48x4xf32> to vector<1x48x1xf32>
    %30 = vector.shape_cast %29 : vector<1x48x1xf32> to vector<48x1xf32>
    %31 = vector.extract_strided_slice %8 {offsets = [3, 0, 0], sizes = [1, 48, 1], strides = [1, 1, 1]} : vector<4x48x4xf32> to vector<1x48x1xf32>
    %32 = vector.shape_cast %31 : vector<1x48x1xf32> to vector<48x1xf32>
    %33 = vector.extract_strided_slice %8 {offsets = [0, 0, 1], sizes = [1, 48, 1], strides = [1, 1, 1]} : vector<4x48x4xf32> to vector<1x48x1xf32>
    %34 = vector.shape_cast %33 : vector<1x48x1xf32> to vector<48x1xf32>
    %35 = vector.extract_strided_slice %8 {offsets = [1, 0, 1], sizes = [1, 48, 1], strides = [1, 1, 1]} : vector<4x48x4xf32> to vector<1x48x1xf32>
    %36 = vector.shape_cast %35 : vector<1x48x1xf32> to vector<48x1xf32>
    %37 = vector.extract_strided_slice %8 {offsets = [2, 0, 1], sizes = [1, 48, 1], strides = [1, 1, 1]} : vector<4x48x4xf32> to vector<1x48x1xf32>
    %38 = vector.shape_cast %37 : vector<1x48x1xf32> to vector<48x1xf32>
    %39 = vector.extract_strided_slice %8 {offsets = [3, 0, 1], sizes = [1, 48, 1], strides = [1, 1, 1]} : vector<4x48x4xf32> to vector<1x48x1xf32>
    %40 = vector.shape_cast %39 : vector<1x48x1xf32> to vector<48x1xf32>
    %41 = vector.extract_strided_slice %8 {offsets = [0, 0, 2], sizes = [1, 48, 1], strides = [1, 1, 1]} : vector<4x48x4xf32> to vector<1x48x1xf32>
    %42 = vector.shape_cast %41 : vector<1x48x1xf32> to vector<48x1xf32>
    %43 = vector.extract_strided_slice %8 {offsets = [1, 0, 2], sizes = [1, 48, 1], strides = [1, 1, 1]} : vector<4x48x4xf32> to vector<1x48x1xf32>
    %44 = vector.shape_cast %43 : vector<1x48x1xf32> to vector<48x1xf32>
    %45 = vector.extract_strided_slice %8 {offsets = [2, 0, 2], sizes = [1, 48, 1], strides = [1, 1, 1]} : vector<4x48x4xf32> to vector<1x48x1xf32>
    %46 = vector.shape_cast %45 : vector<1x48x1xf32> to vector<48x1xf32>
    %47 = vector.extract_strided_slice %8 {offsets = [3, 0, 2], sizes = [1, 48, 1], strides = [1, 1, 1]} : vector<4x48x4xf32> to vector<1x48x1xf32>
    %48 = vector.shape_cast %47 : vector<1x48x1xf32> to vector<48x1xf32>
    %49 = vector.extract_strided_slice %8 {offsets = [0, 0, 3], sizes = [1, 48, 1], strides = [1, 1, 1]} : vector<4x48x4xf32> to vector<1x48x1xf32>
    %50 = vector.shape_cast %49 : vector<1x48x1xf32> to vector<48x1xf32>
    %51 = vector.extract_strided_slice %8 {offsets = [1, 0, 3], sizes = [1, 48, 1], strides = [1, 1, 1]} : vector<4x48x4xf32> to vector<1x48x1xf32>
    %52 = vector.shape_cast %51 : vector<1x48x1xf32> to vector<48x1xf32>
    %53 = vector.extract_strided_slice %8 {offsets = [2, 0, 3], sizes = [1, 48, 1], strides = [1, 1, 1]} : vector<4x48x4xf32> to vector<1x48x1xf32>
    %54 = vector.shape_cast %53 : vector<1x48x1xf32> to vector<48x1xf32>
    %55 = vector.extract_strided_slice %8 {offsets = [3, 0, 3], sizes = [1, 48, 1], strides = [1, 1, 1]} : vector<4x48x4xf32> to vector<1x48x1xf32>
    %56 = vector.shape_cast %55 : vector<1x48x1xf32> to vector<48x1xf32>
    %57 = vector.extract_strided_slice %2 {offsets = [0, 0], sizes = [48, 256], strides = [1, 1]} : vector<96x256xf32> to vector<48x256xf32>
    %cst_32 = arith.constant dense<0.000000e+00> : vector<48x256xf32>
    %58 = tpu.matmul %6, %57, %cst_32 {dimension_numbers = #tpu.dot_dimension_numbers<[1], [0], [0], [1], [0, 0, 1, 1], [], []>} : vector<48x48xf32>, vector<48x256xf32>, vector<48x256xf32> -> vector<48x256xf32>
    %59 = arith.subf %57, %58 : vector<48x256xf32>
    %60 = arith.mulf %59, %59 : vector<48x256xf32>
    %cst_33 = arith.constant dense<0.000000e+00> : vector<48x256xf32>
    %61 = tpu.matmul %6, %60, %cst_33 {dimension_numbers = #tpu.dot_dimension_numbers<[1], [0], [0], [1], [0, 0, 1, 1], [], []>} : vector<48x48xf32>, vector<48x256xf32>, vector<48x256xf32> -> vector<48x256xf32>
    %cst_34 = arith.constant 9.99999974E-6 : f32
    %62 = vector.broadcast %cst_34 : f32 to vector<48x256xf32>
    %63 = arith.addf %61, %62 : vector<48x256xf32>
    %64 = math.rsqrt %63 : vector<48x256xf32>
    %65 = arith.mulf %59, %64 : vector<48x256xf32>
    %66 = vector.broadcast %26 : vector<48x1xf32> to vector<48x256xf32>
    %67 = arith.mulf %65, %66 : vector<48x256xf32>
    %68 = vector.broadcast %34 : vector<48x1xf32> to vector<48x256xf32>
    %69 = arith.addf %67, %68 : vector<48x256xf32>
    %cst_35 = arith.constant dense<0.000000e+00> : vector<48x256xf32>
    %70 = tpu.matmul %10, %69, %cst_35 {dimension_numbers = #tpu.dot_dimension_numbers<[1], [0], [0], [1], [0, 0, 1, 1], [], []>} : vector<48x48xf32>, vector<48x256xf32>, vector<48x256xf32> -> vector<48x256xf32>
    %71 = vector.broadcast %42 : vector<48x1xf32> to vector<48x256xf32>
    %72 = arith.addf %70, %71 : vector<48x256xf32>
    %cst_36 = arith.constant 0.000000e+00 : f32
    %73 = vector.broadcast %cst_36 : f32 to vector<48x256xf32>
    %74 = arith.maximumf %72, %73 : vector<48x256xf32>
    %cst_37 = arith.constant dense<0.000000e+00> : vector<48x256xf32>
    %75 = tpu.matmul %18, %74, %cst_37 {dimension_numbers = #tpu.dot_dimension_numbers<[1], [0], [0], [1], [0, 0, 1, 1], [], []>} : vector<48x48xf32>, vector<48x256xf32>, vector<48x256xf32> -> vector<48x256xf32>
    %76 = arith.addf %57, %75 : vector<48x256xf32>
    %77 = vector.broadcast %50 : vector<48x1xf32> to vector<48x256xf32>
    %78 = arith.addf %76, %77 : vector<48x256xf32>
    %cst_38 = arith.constant dense<0.000000e+00> : vector<48x256xf32>
    %79 = tpu.matmul %6, %78, %cst_38 {dimension_numbers = #tpu.dot_dimension_numbers<[1], [0], [0], [1], [0, 0, 1, 1], [], []>} : vector<48x48xf32>, vector<48x256xf32>, vector<48x256xf32> -> vector<48x256xf32>
    %80 = arith.subf %78, %79 : vector<48x256xf32>
    %81 = arith.mulf %80, %80 : vector<48x256xf32>
    %cst_39 = arith.constant dense<0.000000e+00> : vector<48x256xf32>
    %82 = tpu.matmul %6, %81, %cst_39 {dimension_numbers = #tpu.dot_dimension_numbers<[1], [0], [0], [1], [0, 0, 1, 1], [], []>} : vector<48x48xf32>, vector<48x256xf32>, vector<48x256xf32> -> vector<48x256xf32>
    %cst_40 = arith.constant 9.99999974E-6 : f32
    %83 = vector.broadcast %cst_40 : f32 to vector<48x256xf32>
    %84 = arith.addf %82, %83 : vector<48x256xf32>
    %85 = math.rsqrt %84 : vector<48x256xf32>
    %86 = arith.mulf %80, %85 : vector<48x256xf32>
    %87 = vector.broadcast %28 : vector<48x1xf32> to vector<48x256xf32>
    %88 = arith.mulf %86, %87 : vector<48x256xf32>
    %89 = vector.broadcast %36 : vector<48x1xf32> to vector<48x256xf32>
    %90 = arith.addf %88, %89 : vector<48x256xf32>
    %cst_41 = arith.constant dense<0.000000e+00> : vector<48x256xf32>
    %91 = tpu.matmul %12, %90, %cst_41 {dimension_numbers = #tpu.dot_dimension_numbers<[1], [0], [0], [1], [0, 0, 1, 1], [], []>} : vector<48x48xf32>, vector<48x256xf32>, vector<48x256xf32> -> vector<48x256xf32>
    %92 = vector.broadcast %44 : vector<48x1xf32> to vector<48x256xf32>
    %93 = arith.addf %91, %92 : vector<48x256xf32>
    %cst_42 = arith.constant 0.000000e+00 : f32
    %94 = vector.broadcast %cst_42 : f32 to vector<48x256xf32>
    %95 = arith.maximumf %93, %94 : vector<48x256xf32>
    %cst_43 = arith.constant dense<0.000000e+00> : vector<48x256xf32>
    %96 = tpu.matmul %20, %95, %cst_43 {dimension_numbers = #tpu.dot_dimension_numbers<[1], [0], [0], [1], [0, 0, 1, 1], [], []>} : vector<48x48xf32>, vector<48x256xf32>, vector<48x256xf32> -> vector<48x256xf32>
    %97 = arith.addf %78, %96 : vector<48x256xf32>
    %98 = vector.broadcast %52 : vector<48x1xf32> to vector<48x256xf32>
    %99 = arith.addf %97, %98 : vector<48x256xf32>
    %cst_44 = arith.constant dense<0.000000e+00> : vector<48x256xf32>
    %100 = tpu.matmul %6, %99, %cst_44 {dimension_numbers = #tpu.dot_dimension_numbers<[1], [0], [0], [1], [0, 0, 1, 1], [], []>} : vector<48x48xf32>, vector<48x256xf32>, vector<48x256xf32> -> vector<48x256xf32>
    %101 = arith.subf %99, %100 : vector<48x256xf32>
    %102 = arith.mulf %101, %101 : vector<48x256xf32>
    %cst_45 = arith.constant dense<0.000000e+00> : vector<48x256xf32>
    %103 = tpu.matmul %6, %102, %cst_45 {dimension_numbers = #tpu.dot_dimension_numbers<[1], [0], [0], [1], [0, 0, 1, 1], [], []>} : vector<48x48xf32>, vector<48x256xf32>, vector<48x256xf32> -> vector<48x256xf32>
    %cst_46 = arith.constant 9.99999974E-6 : f32
    %104 = vector.broadcast %cst_46 : f32 to vector<48x256xf32>
    %105 = arith.addf %103, %104 : vector<48x256xf32>
    %106 = math.rsqrt %105 : vector<48x256xf32>
    %107 = arith.mulf %101, %106 : vector<48x256xf32>
    %108 = vector.broadcast %30 : vector<48x1xf32> to vector<48x256xf32>
    %109 = arith.mulf %107, %108 : vector<48x256xf32>
    %110 = vector.broadcast %38 : vector<48x1xf32> to vector<48x256xf32>
    %111 = arith.addf %109, %110 : vector<48x256xf32>
    %cst_47 = arith.constant dense<0.000000e+00> : vector<48x256xf32>
    %112 = tpu.matmul %14, %111, %cst_47 {dimension_numbers = #tpu.dot_dimension_numbers<[1], [0], [0], [1], [0, 0, 1, 1], [], []>} : vector<48x48xf32>, vector<48x256xf32>, vector<48x256xf32> -> vector<48x256xf32>
    %113 = vector.broadcast %46 : vector<48x1xf32> to vector<48x256xf32>
    %114 = arith.addf %112, %113 : vector<48x256xf32>
    %cst_48 = arith.constant 0.000000e+00 : f32
    %115 = vector.broadcast %cst_48 : f32 to vector<48x256xf32>
    %116 = arith.maximumf %114, %115 : vector<48x256xf32>
    %cst_49 = arith.constant dense<0.000000e+00> : vector<48x256xf32>
    %117 = tpu.matmul %22, %116, %cst_49 {dimension_numbers = #tpu.dot_dimension_numbers<[1], [0], [0], [1], [0, 0, 1, 1], [], []>} : vector<48x48xf32>, vector<48x256xf32>, vector<48x256xf32> -> vector<48x256xf32>
    %118 = arith.addf %99, %117 : vector<48x256xf32>
    %119 = vector.broadcast %54 : vector<48x1xf32> to vector<48x256xf32>
    %120 = arith.addf %118, %119 : vector<48x256xf32>
    %cst_50 = arith.constant dense<0.000000e+00> : vector<48x256xf32>
    %121 = tpu.matmul %6, %120, %cst_50 {dimension_numbers = #tpu.dot_dimension_numbers<[1], [0], [0], [1], [0, 0, 1, 1], [], []>} : vector<48x48xf32>, vector<48x256xf32>, vector<48x256xf32> -> vector<48x256xf32>
    %122 = arith.subf %120, %121 : vector<48x256xf32>
    %123 = arith.mulf %122, %122 : vector<48x256xf32>
    %cst_51 = arith.constant dense<0.000000e+00> : vector<48x256xf32>
    %124 = tpu.matmul %6, %123, %cst_51 {dimension_numbers = #tpu.dot_dimension_numbers<[1], [0], [0], [1], [0, 0, 1, 1], [], []>} : vector<48x48xf32>, vector<48x256xf32>, vector<48x256xf32> -> vector<48x256xf32>
    %cst_52 = arith.constant 9.99999974E-6 : f32
    %125 = vector.broadcast %cst_52 : f32 to vector<48x256xf32>
    %126 = arith.addf %124, %125 : vector<48x256xf32>
    %127 = math.rsqrt %126 : vector<48x256xf32>
    %128 = arith.mulf %122, %127 : vector<48x256xf32>
    %129 = vector.broadcast %32 : vector<48x1xf32> to vector<48x256xf32>
    %130 = arith.mulf %128, %129 : vector<48x256xf32>
    %131 = vector.broadcast %40 : vector<48x1xf32> to vector<48x256xf32>
    %132 = arith.addf %130, %131 : vector<48x256xf32>
    %cst_53 = arith.constant dense<0.000000e+00> : vector<48x256xf32>
    %133 = tpu.matmul %16, %132, %cst_53 {dimension_numbers = #tpu.dot_dimension_numbers<[1], [0], [0], [1], [0, 0, 1, 1], [], []>} : vector<48x48xf32>, vector<48x256xf32>, vector<48x256xf32> -> vector<48x256xf32>
    %134 = vector.broadcast %48 : vector<48x1xf32> to vector<48x256xf32>
    %135 = arith.addf %133, %134 : vector<48x256xf32>
    %cst_54 = arith.constant 0.000000e+00 : f32
    %136 = vector.broadcast %cst_54 : f32 to vector<48x256xf32>
    %137 = arith.maximumf %135, %136 : vector<48x256xf32>
    %cst_55 = arith.constant dense<0.000000e+00> : vector<48x256xf32>
    %138 = tpu.matmul %24, %137, %cst_55 {dimension_numbers = #tpu.dot_dimension_numbers<[1], [0], [0], [1], [0, 0, 1, 1], [], []>} : vector<48x48xf32>, vector<48x256xf32>, vector<48x256xf32> -> vector<48x256xf32>
    %139 = arith.addf %120, %138 : vector<48x256xf32>
    %140 = vector.broadcast %56 : vector<48x1xf32> to vector<48x256xf32>
    %141 = arith.addf %139, %140 : vector<48x256xf32>
    %cst_56 = arith.constant dense<0.000000e+00> : vector<8x256xf32>
    %142 = tpu.matmul %7, %141, %cst_56 {dimension_numbers = #tpu.dot_dimension_numbers<[1], [0], [0], [1], [0, 0, 1, 1], [], []>} : vector<8x48xf32>, vector<48x256xf32>, vector<8x256xf32> -> vector<8x256xf32>
    %143 = arith.truncf %142 : vector<8x256xf32> to vector<8x256xbf16>
    %c0_57 = arith.constant 0 : index
    %c0_58 = arith.constant 0 : index
    %144 = vector.load %arg9[%c0_57, %c0_58] : memref<256x512xbf16, #tpu.memory_space<vmem>>, vector<256x512xbf16>
    %cst_59 = arith.constant dense<0.000000e+00> : vector<8x512xf32>
    %145 = tpu.matmul %143, %144, %cst_59 {dimension_numbers = #tpu.dot_dimension_numbers<[1], [0], [0], [1], [0, 0, 1, 1], [], []>} : vector<8x256xbf16>, vector<256x512xbf16>, vector<8x512xf32> -> vector<8x512xf32>
    %c0_60 = arith.constant 0 : index
    %c0_61 = arith.constant 0 : index
    %146 = vector.load %arg11[%c0_60, %c0_61] : memref<16x512xf32, #tpu.memory_space<vmem>>, vector<8x512xf32>
    %147 = arith.addf %146, %145 : vector<8x512xf32>
    %c0_62 = arith.constant 0 : index
    %c0_63 = arith.constant 0 : index
    %148 = vector.load %arg11[%c0_62, %c0_63] : memref<16x512xf32, #tpu.memory_space<vmem>>, vector<8x512xf32>
    tpu.vector_store %arg11[%c0_62, %c0_63], %147 {strides = array<i32>} : memref<16x512xf32, #tpu.memory_space<vmem>>, vector<8x512xf32>,
    %149 = vector.extract_strided_slice %2 {offsets = [48, 0], sizes = [48, 256], strides = [1, 1]} : vector<96x256xf32> to vector<48x256xf32>
    %cst_64 = arith.constant dense<0.000000e+00> : vector<48x256xf32>
    %150 = tpu.matmul %6, %149, %cst_64 {dimension_numbers = #tpu.dot_dimension_numbers<[1], [0], [0], [1], [0, 0, 1, 1], [], []>} : vector<48x48xf32>, vector<48x256xf32>, vector<48x256xf32> -> vector<48x256xf32>
    %151 = arith.subf %149, %150 : vector<48x256xf32>
    %152 = arith.mulf %151, %151 : vector<48x256xf32>
    %cst_65 = arith.constant dense<0.000000e+00> : vector<48x256xf32>
    %153 = tpu.matmul %6, %152, %cst_65 {dimension_numbers = #tpu.dot_dimension_numbers<[1], [0], [0], [1], [0, 0, 1, 1], [], []>} : vector<48x48xf32>, vector<48x256xf32>, vector<48x256xf32> -> vector<48x256xf32>
    %cst_66 = arith.constant 9.99999974E-6 : f32
    %154 = vector.broadcast %cst_66 : f32 to vector<48x256xf32>
    %155 = arith.addf %153, %154 : vector<48x256xf32>
    %156 = math.rsqrt %155 : vector<48x256xf32>
    %157 = arith.mulf %151, %156 : vector<48x256xf32>
    %158 = vector.broadcast %26 : vector<48x1xf32> to vector<48x256xf32>
    %159 = arith.mulf %157, %158 : vector<48x256xf32>
    %160 = vector.broadcast %34 : vector<48x1xf32> to vector<48x256xf32>
    %161 = arith.addf %159, %160 : vector<48x256xf32>
    %cst_67 = arith.constant dense<0.000000e+00> : vector<48x256xf32>
    %162 = tpu.matmul %10, %161, %cst_67 {dimension_numbers = #tpu.dot_dimension_numbers<[1], [0], [0], [1], [0, 0, 1, 1], [], []>} : vector<48x48xf32>, vector<48x256xf32>, vector<48x256xf32> -> vector<48x256xf32>
    %163 = vector.broadcast %42 : vector<48x1xf32> to vector<48x256xf32>
    %164 = arith.addf %162, %163 : vector<48x256xf32>
    %cst_68 = arith.constant 0.000000e+00 : f32
    %165 = vector.broadcast %cst_68 : f32 to vector<48x256xf32>
    %166 = arith.maximumf %164, %165 : vector<48x256xf32>
    %cst_69 = arith.constant dense<0.000000e+00> : vector<48x256xf32>
    %167 = tpu.matmul %18, %166, %cst_69 {dimension_numbers = #tpu.dot_dimension_numbers<[1], [0], [0], [1], [0, 0, 1, 1], [], []>} : vector<48x48xf32>, vector<48x256xf32>, vector<48x256xf32> -> vector<48x256xf32>
    %168 = arith.addf %149, %167 : vector<48x256xf32>
    %169 = vector.broadcast %50 : vector<48x1xf32> to vector<48x256xf32>
    %170 = arith.addf %168, %169 : vector<48x256xf32>
    %cst_70 = arith.constant dense<0.000000e+00> : vector<48x256xf32>
    %171 = tpu.matmul %6, %170, %cst_70 {dimension_numbers = #tpu.dot_dimension_numbers<[1], [0], [0], [1], [0, 0, 1, 1], [], []>} : vector<48x48xf32>, vector<48x256xf32>, vector<48x256xf32> -> vector<48x256xf32>
    %172 = arith.subf %170, %171 : vector<48x256xf32>
    %173 = arith.mulf %172, %172 : vector<48x256xf32>
    %cst_71 = arith.constant dense<0.000000e+00> : vector<48x256xf32>
    %174 = tpu.matmul %6, %173, %cst_71 {dimension_numbers = #tpu.dot_dimension_numbers<[1], [0], [0], [1], [0, 0, 1, 1], [], []>} : vector<48x48xf32>, vector<48x256xf32>, vector<48x256xf32> -> vector<48x256xf32>
    %cst_72 = arith.constant 9.99999974E-6 : f32
    %175 = vector.broadcast %cst_72 : f32 to vector<48x256xf32>
    %176 = arith.addf %174, %175 : vector<48x256xf32>
    %177 = math.rsqrt %176 : vector<48x256xf32>
    %178 = arith.mulf %172, %177 : vector<48x256xf32>
    %179 = vector.broadcast %28 : vector<48x1xf32> to vector<48x256xf32>
    %180 = arith.mulf %178, %179 : vector<48x256xf32>
    %181 = vector.broadcast %36 : vector<48x1xf32> to vector<48x256xf32>
    %182 = arith.addf %180, %181 : vector<48x256xf32>
    %cst_73 = arith.constant dense<0.000000e+00> : vector<48x256xf32>
    %183 = tpu.matmul %12, %182, %cst_73 {dimension_numbers = #tpu.dot_dimension_numbers<[1], [0], [0], [1], [0, 0, 1, 1], [], []>} : vector<48x48xf32>, vector<48x256xf32>, vector<48x256xf32> -> vector<48x256xf32>
    %184 = vector.broadcast %44 : vector<48x1xf32> to vector<48x256xf32>
    %185 = arith.addf %183, %184 : vector<48x256xf32>
    %cst_74 = arith.constant 0.000000e+00 : f32
    %186 = vector.broadcast %cst_74 : f32 to vector<48x256xf32>
    %187 = arith.maximumf %185, %186 : vector<48x256xf32>
    %cst_75 = arith.constant dense<0.000000e+00> : vector<48x256xf32>
    %188 = tpu.matmul %20, %187, %cst_75 {dimension_numbers = #tpu.dot_dimension_numbers<[1], [0], [0], [1], [0, 0, 1, 1], [], []>} : vector<48x48xf32>, vector<48x256xf32>, vector<48x256xf32> -> vector<48x256xf32>
    %189 = arith.addf %170, %188 : vector<48x256xf32>
    %190 = vector.broadcast %52 : vector<48x1xf32> to vector<48x256xf32>
    %191 = arith.addf %189, %190 : vector<48x256xf32>
    %cst_76 = arith.constant dense<0.000000e+00> : vector<48x256xf32>
    %192 = tpu.matmul %6, %191, %cst_76 {dimension_numbers = #tpu.dot_dimension_numbers<[1], [0], [0], [1], [0, 0, 1, 1], [], []>} : vector<48x48xf32>, vector<48x256xf32>, vector<48x256xf32> -> vector<48x256xf32>
    %193 = arith.subf %191, %192 : vector<48x256xf32>
    %194 = arith.mulf %193, %193 : vector<48x256xf32>
    %cst_77 = arith.constant dense<0.000000e+00> : vector<48x256xf32>
    %195 = tpu.matmul %6, %194, %cst_77 {dimension_numbers = #tpu.dot_dimension_numbers<[1], [0], [0], [1], [0, 0, 1, 1], [], []>} : vector<48x48xf32>, vector<48x256xf32>, vector<48x256xf32> -> vector<48x256xf32>
    %cst_78 = arith.constant 9.99999974E-6 : f32
    %196 = vector.broadcast %cst_78 : f32 to vector<48x256xf32>
    %197 = arith.addf %195, %196 : vector<48x256xf32>
    %198 = math.rsqrt %197 : vector<48x256xf32>
    %199 = arith.mulf %193, %198 : vector<48x256xf32>
    %200 = vector.broadcast %30 : vector<48x1xf32> to vector<48x256xf32>
    %201 = arith.mulf %199, %200 : vector<48x256xf32>
    %202 = vector.broadcast %38 : vector<48x1xf32> to vector<48x256xf32>
    %203 = arith.addf %201, %202 : vector<48x256xf32>
    %cst_79 = arith.constant dense<0.000000e+00> : vector<48x256xf32>
    %204 = tpu.matmul %14, %203, %cst_79 {dimension_numbers = #tpu.dot_dimension_numbers<[1], [0], [0], [1], [0, 0, 1, 1], [], []>} : vector<48x48xf32>, vector<48x256xf32>, vector<48x256xf32> -> vector<48x256xf32>
    %205 = vector.broadcast %46 : vector<48x1xf32> to vector<48x256xf32>
    %206 = arith.addf %204, %205 : vector<48x256xf32>
    %cst_80 = arith.constant 0.000000e+00 : f32
    %207 = vector.broadcast %cst_80 : f32 to vector<48x256xf32>
    %208 = arith.maximumf %206, %207 : vector<48x256xf32>
    %cst_81 = arith.constant dense<0.000000e+00> : vector<48x256xf32>
    %209 = tpu.matmul %22, %208, %cst_81 {dimension_numbers = #tpu.dot_dimension_numbers<[1], [0], [0], [1], [0, 0, 1, 1], [], []>} : vector<48x48xf32>, vector<48x256xf32>, vector<48x256xf32> -> vector<48x256xf32>
    %210 = arith.addf %191, %209 : vector<48x256xf32>
    %211 = vector.broadcast %54 : vector<48x1xf32> to vector<48x256xf32>
    %212 = arith.addf %210, %211 : vector<48x256xf32>
    %cst_82 = arith.constant dense<0.000000e+00> : vector<48x256xf32>
    %213 = tpu.matmul %6, %212, %cst_82 {dimension_numbers = #tpu.dot_dimension_numbers<[1], [0], [0], [1], [0, 0, 1, 1], [], []>} : vector<48x48xf32>, vector<48x256xf32>, vector<48x256xf32> -> vector<48x256xf32>
    %214 = arith.subf %212, %213 : vector<48x256xf32>
    %215 = arith.mulf %214, %214 : vector<48x256xf32>
    %cst_83 = arith.constant dense<0.000000e+00> : vector<48x256xf32>
    %216 = tpu.matmul %6, %215, %cst_83 {dimension_numbers = #tpu.dot_dimension_numbers<[1], [0], [0], [1], [0, 0, 1, 1], [], []>} : vector<48x48xf32>, vector<48x256xf32>, vector<48x256xf32> -> vector<48x256xf32>
    %cst_84 = arith.constant 9.99999974E-6 : f32
    %217 = vector.broadcast %cst_84 : f32 to vector<48x256xf32>
    %218 = arith.addf %216, %217 : vector<48x256xf32>
    %219 = math.rsqrt %218 : vector<48x256xf32>
    %220 = arith.mulf %214, %219 : vector<48x256xf32>
    %221 = vector.broadcast %32 : vector<48x1xf32> to vector<48x256xf32>
    %222 = arith.mulf %220, %221 : vector<48x256xf32>
    %223 = vector.broadcast %40 : vector<48x1xf32> to vector<48x256xf32>
    %224 = arith.addf %222, %223 : vector<48x256xf32>
    %cst_85 = arith.constant dense<0.000000e+00> : vector<48x256xf32>
    %225 = tpu.matmul %16, %224, %cst_85 {dimension_numbers = #tpu.dot_dimension_numbers<[1], [0], [0], [1], [0, 0, 1, 1], [], []>} : vector<48x48xf32>, vector<48x256xf32>, vector<48x256xf32> -> vector<48x256xf32>
    %226 = vector.broadcast %48 : vector<48x1xf32> to vector<48x256xf32>
    %227 = arith.addf %225, %226 : vector<48x256xf32>
    %cst_86 = arith.constant 0.000000e+00 : f32
    %228 = vector.broadcast %cst_86 : f32 to vector<48x256xf32>
    %229 = arith.maximumf %227, %228 : vector<48x256xf32>
    %cst_87 = arith.constant dense<0.000000e+00> : vector<48x256xf32>
    %230 = tpu.matmul %24, %229, %cst_87 {dimension_numbers = #tpu.dot_dimension_numbers<[1], [0], [0], [1], [0, 0, 1, 1], [], []>} : vector<48x48xf32>, vector<48x256xf32>, vector<48x256xf32> -> vector<48x256xf32>
    %231 = arith.addf %212, %230 : vector<48x256xf32>
    %232 = vector.broadcast %56 : vector<48x1xf32> to vector<48x256xf32>
    %233 = arith.addf %231, %232 : vector<48x256xf32>
    %cst_88 = arith.constant dense<0.000000e+00> : vector<8x256xf32>
    %234 = tpu.matmul %7, %233, %cst_88 {dimension_numbers = #tpu.dot_dimension_numbers<[1], [0], [0], [1], [0, 0, 1, 1], [], []>} : vector<8x48xf32>, vector<48x256xf32>, vector<8x256xf32> -> vector<8x256xf32>
    %235 = arith.truncf %234 : vector<8x256xf32> to vector<8x256xbf16>
    %c0_89 = arith.constant 0 : index
    %c0_90 = arith.constant 0 : index
    %236 = vector.load %arg9[%c0_89, %c0_90] : memref<256x512xbf16, #tpu.memory_space<vmem>>, vector<256x512xbf16>
    %cst_91 = arith.constant dense<0.000000e+00> : vector<8x512xf32>
    %237 = tpu.matmul %235, %236, %cst_91 {dimension_numbers = #tpu.dot_dimension_numbers<[1], [0], [0], [1], [0, 0, 1, 1], [], []>} : vector<8x256xbf16>, vector<256x512xbf16>, vector<8x512xf32> -> vector<8x512xf32>
    %c8 = arith.constant 8 : index
    %c0_92 = arith.constant 0 : index
    %238 = vector.load %arg11[%c8, %c0_92] : memref<16x512xf32, #tpu.memory_space<vmem>>, vector<8x512xf32>
    %239 = arith.addf %238, %237 : vector<8x512xf32>
    %c8_93 = arith.constant 8 : index
    %c0_94 = arith.constant 0 : index
    %240 = vector.load %arg11[%c8_93, %c0_94] : memref<16x512xf32, #tpu.memory_space<vmem>>, vector<8x512xf32>
    tpu.vector_store %arg11[%c8_93, %c0_94], %239 {strides = array<i32>} : memref<16x512xf32, #tpu.memory_space<vmem>>, vector<8x512xf32>,
    return
  }
  func.func @transform_0(%arg0: i32, %arg1: i32) -> (i32, i32) {
    %c0_i32 = arith.constant 0 : i32
    %c0_i32_0 = arith.constant 0 : i32
    return %arg0, %c0_i32 : i32, i32
  }
  func.func @transform_1(%arg0: i32, %arg1: i32) -> (i32, i32) {
    %c0_i32 = arith.constant 0 : i32
    %c0_i32_0 = arith.constant 0 : i32
    return %c0_i32, %arg1 : i32, i32
  }
  func.func @transform_2(%arg0: i32, %arg1: i32) -> (i32, i32) {
    %c0_i32 = arith.constant 0 : i32
    %c0_i32_0 = arith.constant 0 : i32
    %c0_i32_1 = arith.constant 0 : i32
    return %c0_i32, %c0_i32_0 : i32, i32
  }
  func.func @transform_3(%arg0: i32, %arg1: i32) -> (i32, i32, i32) {
    %c0_i32 = arith.constant 0 : i32
    %c0_i32_0 = arith.constant 0 : i32
    %c0_i32_1 = arith.constant 0 : i32
    %c0_i32_2 = arith.constant 0 : i32
    return %c0_i32, %c0_i32_0, %c0_i32_1 : i32, i32, i32
  }
  func.func @transform_4(%arg0: i32, %arg1: i32) -> (i32, i32, i32) {
    %c0_i32 = arith.constant 0 : i32
    %c0_i32_0 = arith.constant 0 : i32
    %c0_i32_1 = arith.constant 0 : i32
    %c0_i32_2 = arith.constant 0 : i32
    return %c0_i32, %c0_i32_0, %c0_i32_1 : i32, i32, i32
  }
  func.func @transform_5(%arg0: i32, %arg1: i32) -> (i32, i32, i32) {
    %c0_i32 = arith.constant 0 : i32
    %c0_i32_0 = arith.constant 0 : i32
    %c0_i32_1 = arith.constant 0 : i32
    %c0_i32_2 = arith.constant 0 : i32
    return %c0_i32, %c0_i32_0, %c0_i32_1 : i32, i32, i32
  }
  func.func @transform_6(%arg0: i32, %arg1: i32) -> (i32, i32) {
    %c0_i32 = arith.constant 0 : i32
    %c0_i32_0 = arith.constant 0 : i32
    %c0_i32_1 = arith.constant 0 : i32
    return %c0_i32, %c0_i32_0 : i32, i32
  }
  func.func @transform_7(%arg0: i32, %arg1: i32) -> (i32, i32) {
    %c0_i32 = arith.constant 0 : i32
    %c0_i32_0 = arith.constant 0 : i32
    return %arg1, %c0_i32 : i32, i32
  }
  func.func @transform_8(%arg0: i32, %arg1: i32) -> (i32, i32) {
    %c0_i32 = arith.constant 0 : i32
    %c0_i32_0 = arith.constant 0 : i32
    %c0_i32_1 = arith.constant 0 : i32
    return %c0_i32, %c0_i32_0 : i32, i32
  }
  func.func @transform_9(%arg0: i32, %arg1: i32) -> (i32, i32) {
    %c0_i32 = arith.constant 0 : i32
    %c0_i32_0 = arith.constant 0 : i32
    return %arg0, %c0_i32 : i32, i32
  }
}

</mosaic_0001>

<llo_original>
// kernel: tpu_custom_call.1
$region0: #{tpu_custom_call.1}
  #allocation0 [shape = 'u32[]', space=smem, size = 0x4, offset = 0x4, fixed_abs, tag = 'smem constant byte address 0x4 - core index']
  #allocation1 [shape = 'u32[144,128]{1,0:T(1,128)}', space=vmem, size = 0x12000, scoped, tag = 'internal scratch']
  %s0 = inlined_call_operand.vmem [shape: bf16[192,160], index: 0, kind: input, shape index: {}]
  %s1 = inlined_call_operand.vmem [shape: bf16[160,512], index: 1, kind: input, shape index: {}]
  %s2 = inlined_call_operand.vmem [shape: f32[48,48], index: 2, kind: input, shape index: {}]
  %s3 = inlined_call_operand.vmem [shape: f32[4,48,48], index: 3, kind: input, shape index: {}]
  %s4 = inlined_call_operand.hbm [shape: f32[4,48,48], index: 4, kind: input, shape index: {}]
  %s5 = inlined_call_operand.vmem [shape: f32[4,48,4], index: 5, kind: input, shape index: {}]
  %s6 = inlined_call_operand.hbm [shape: f32[8,48], index: 6, kind: input, shape index: {}]
  %s7 = inlined_call_operand.hbm [shape: bf16[512,512], index: 7, kind: input, shape index: {}]
  %s8 = inlined_call_operand.vmem [shape: f32[1,512], index: 8, kind: input, shape index: {}]
  %s9 = inlined_call_operand.hbm [shape: f32[32,512], index: 9, kind: output, shape index: {}]
  %s10 = sld [smem:[#allocation0]]
  $region123: #{tpu_custom_call.1} parent=0
    _
  %s12 = ssub.s32 1, %s10
  %s13 = scalar_select 0, %s12, %s10
  $region1: #{tpu_custom_call.1} parent=0
    #allocation2 [shape = 'u8[163840]{0}', space=vmem, size = 0x28000, scoped, tag = 'input window, operand 1']
    #allocation3 [shape = 'u8[98304]{0}', space=vmem, size = 0x18000, scoped, tag = 'input window, operand 4, single buffered']
    #allocation4 [shape = 's32[2]{0}', space=sflag, size = 0x8, scoped, tag = 'scoped memory for tpu_custom_call.1']
    #allocation5 [shape = 's32[2]{0}', space=sflag, size = 0x8, scoped, tag = 'scoped memory for tpu_custom_call.1']
    #allocation6 [shape = 'u8[4096]{0}', space=vmem, size = 0x1000, scoped, tag = 'input window, operand 6, single buffered']
    #allocation7 [shape = 's32[1]{0}', space=sflag, size = 0x4, scoped, tag = 'scoped memory for tpu_custom_call.1']
    #allocation8 [shape = 'u8[524288]{0}', space=vmem, size = 0x80000, scoped, tag = 'input window, operand 7']
    #allocation9 [shape = 'u8[65536]{0}', space=vmem, size = 0x10000, scoped, tag = 'output window, operand 0']
    %14 = vsyncpa [#allocation4], 0
    %15 = vsyncpa [#allocation7], 0
    %16 = vsyncpa [#allocation5], 0
    %s17 = scalar_lea.sflag [#allocation5], 1
    %18 = vsyncpa %s17, 0
    loop: start=0, step=1, limit=6
    $region2: #{tpu_custom_call.1} parent=1 // loop_pre_header
      _
    $region3: #{tpu_custom_call.1} parent=1 // loop_header
      %s20 = sphi 0, %s24
      %p21 = scmp.ge.s32.totalorder %s20, 6
      %s27 = sphi 0, %s39
      %s28 = sphi 0, %s35
      %s29 = sphi 0, %s27
      %s30 = sphi 0, %s28
      %s31 = sphi 0, %s29
      %s32 = sphi 0, %s30
      %s42 = sphi 0, %s44
      %s45 = sphi 0, %s42
      %s46 = sphi 0, %s45
      %s62 = sphi 0, %s46
      %s68 = sphi 0, %s70
      %s71 = sphi 0, %s68
      %s72 = sphi 0, %s71
      %s88 = sphi 0, %s72
      %s92 = sphi 0, %s92
      %s94 = sphi 0, %s92
      %s95 = sphi 0, %s94
      %s109 = sphi 0, %s95
      %s113 = sphi 0, %s113
      %s115 = sphi 0, %s113
      %s116 = sphi 0, %s115
      %s130 = sphi 0, %s116
      %s134 = sphi 0, %s134
      %s136 = sphi 0, %s134
      %s137 = sphi 0, %s136
      %s151 = sphi 0, %s137
      %s155 = sphi 0, %s155
      %s157 = sphi 0, %s155
      %s158 = sphi 0, %s157
      %s172 = sphi 0, %s158
      %s176 = sphi 0, %s176
      %s178 = sphi 0, %s176
      %s179 = sphi 0, %s178
      %s193 = sphi 0, %s179
      %s199 = sphi 0, %s201
      %s202 = sphi 0, %s199
      %s203 = sphi 0, %s202
      %s219 = sphi 0, %s203
      %s223 = sphi 0, %s223
      %s225 = sphi 0, %s223
      %s226 = sphi 0, %s225
      %s240 = sphi 0, %s226
      %s246 = sphi 0, %s248
      %s249 = sphi 0, %s246
      %s250 = sphi 0, %s249
      %s266 = sphi 0, %s250
    $region4: #{tpu_custom_call.1} parent=1 // loop_header_branch
      %23 = sbr.rel (%p21) target = $region8
    $region5: #{tpu_custom_call.1} parent=1 // loop_body
      %s25 = ssub.s32 %s20, 1
      %s26 = ssub.s32 %s20, 2
      %s33 = sadd.s32 1, %s28
      %p34 = scmp.ge.s32.totalorder %s33, 2
      %s35 = scalar_select %p34, 0, %s33
      %s36 = sadd.s32 1, %s27
      %s37 = scalar_select %p34, %s36, %s27
      %p38 = scmp.ge.s32.totalorder %s37, 2
      %s39 = scalar_select %p38, 0, %s37
      %s40 = ssub.s32 %s27, %s39
      %p41 = scmp.eq.s32.totalorder %s40, 0
      %s43 = sadd.s32 %s42, 1
      %s44 = scalar_select %p41, %s42, %s43
      %p47 = pneg %p41
      %p48 = scmp.eq.s32.totalorder %s20, 3
      %p49 = por %p47, %p48
      %p50 = scmp.ne.s32.totalorder %s42, %s45
      %p51 = scmp.eq.s32.totalorder %s20, 0
      %p52 = por %p50, %p51
      %p53 = scmp.ne.s32.totalorder %s42, %s45
      %p54 = scmp.eq.s32.totalorder %s25, 3
      %p55 = por %p53, %p54
      %p56 = scmp.ne.s32.totalorder %s45, %s46
      %p57 = scmp.eq.s32.totalorder %s25, 0
      %p58 = por %p56, %p57
      %p59 = scmp.ne.s32.totalorder %s45, %s46
      %p60 = scmp.eq.s32.totalorder %s26, 3
      %p61 = por %p59, %p60
      %p63 = scmp.ne.s32.totalorder %s46, %s62
      %p64 = scmp.eq.s32.totalorder %s26, 0
      %p65 = por %p63, %p64
      %s66 = ssub.s32 %s28, %s35
      %p67 = scmp.eq.s32.totalorder %s66, 0
      %s69 = sadd.s32 %s68, 1
      %s70 = scalar_select %p67, %s68, %s69
      %p73 = pneg %p67
      %p74 = scmp.eq.s32.totalorder %s20, 3
      %p75 = por %p73, %p74
      %p76 = scmp.ne.s32.totalorder %s68, %s71
      %p77 = scmp.eq.s32.totalorder %s20, 0
      %p78 = por %p76, %p77
      %p79 = scmp.ne.s32.totalorder %s68, %s71
      %p80 = scmp.eq.s32.totalorder %s25, 3
      %p81 = por %p79, %p80
      %p82 = scmp.ne.s32.totalorder %s71, %s72
      %p83 = scmp.eq.s32.totalorder %s25, 0
      %p84 = por %p82, %p83
      %p85 = scmp.ne.s32.totalorder %s71, %s72
      %p86 = scmp.eq.s32.totalorder %s26, 3
      %p87 = por %p85, %p86
      %p89 = scmp.ne.s32.totalorder %s72, %s88
      %p90 = scmp.eq.s32.totalorder %s26, 0
      %p91 = por %p89, %p90
      %s93 = sadd.s32 %s92, 1
      %p96 = scmp.eq.s32.totalorder %s20, 3
      %p97 = scmp.ne.s32.totalorder %s92, %s94
      %p98 = scmp.eq.s32.totalorder %s20, 0
      %p99 = por %p97, %p98
      %p100 = scmp.ne.s32.totalorder %s92, %s94
      %p101 = scmp.eq.s32.totalorder %s25, 3
      %p102 = por %p100, %p101
      %p103 = scmp.ne.s32.totalorder %s94, %s95
      %p104 = scmp.eq.s32.totalorder %s25, 0
      %p105 = por %p103, %p104
      %p106 = scmp.ne.s32.totalorder %s94, %s95
      %p107 = scmp.eq.s32.totalorder %s26, 3
      %p108 = por %p106, %p107
      %p110 = scmp.ne.s32.totalorder %s95, %s109
      %p111 = scmp.eq.s32.totalorder %s26, 0
      %p112 = por %p110, %p111
      %s114 = sadd.s32 %s113, 1
      %p117 = scmp.eq.s32.totalorder %s20, 3
      %p118 = scmp.ne.s32.totalorder %s113, %s115
      %p119 = scmp.eq.s32.totalorder %s20, 0
      %p120 = por %p118, %p119
      %p121 = scmp.ne.s32.totalorder %s113, %s115
      %p122 = scmp.eq.s32.totalorder %s25, 3
      %p123 = por %p121, %p122
      %p124 = scmp.ne.s32.totalorder %s115, %s116
      %p125 = scmp.eq.s32.totalorder %s25, 0
      %p126 = por %p124, %p125
      %p127 = scmp.ne.s32.totalorder %s115, %s116
      %p128 = scmp.eq.s32.totalorder %s26, 3
      %p129 = por %p127, %p128
      %p131 = scmp.ne.s32.totalorder %s116, %s130
      %p132 = scmp.eq.s32.totalorder %s26, 0
      %p133 = por %p131, %p132
      %s135 = sadd.s32 %s134, 1
      %p138 = scmp.eq.s32.totalorder %s20, 3
      %p139 = scmp.ne.s32.totalorder %s134, %s136
      %p140 = scmp.eq.s32.totalorder %s20, 0
      %p141 = por %p139, %p140
      %p142 = scmp.ne.s32.totalorder %s134, %s136
      %p143 = scmp.eq.s32.totalorder %s25, 3
      %p144 = por %p142, %p143
      %p145 = scmp.ne.s32.totalorder %s136, %s137
      %p146 = scmp.eq.s32.totalorder %s25, 0
      %p147 = por %p145, %p146
      %p148 = scmp.ne.s32.totalorder %s136, %s137
      %p149 = scmp.eq.s32.totalorder %s26, 3
      %p150 = por %p148, %p149
      %p152 = scmp.ne.s32.totalorder %s137, %s151
      %p153 = scmp.eq.s32.totalorder %s26, 0
      %p154 = por %p152, %p153
      %s156 = sadd.s32 %s155, 1
      %p159 = scmp.eq.s32.totalorder %s20, 3
      %p160 = scmp.ne.s32.totalorder %s155, %s157
      %p161 = scmp.eq.s32.totalorder %s20, 0
      %p162 = por %p160, %p161
      %p163 = scmp.ne.s32.totalorder %s155, %s157
      %p164 = scmp.eq.s32.totalorder %s25, 3
      %p165 = por %p163, %p164
      %p166 = scmp.ne.s32.totalorder %s157, %s158
      %p167 = scmp.eq.s32.totalorder %s25, 0
      %p168 = por %p166, %p167
      %p169 = scmp.ne.s32.totalorder %s157, %s158
      %p170 = scmp.eq.s32.totalorder %s26, 3
      %p171 = por %p169, %p170
      %p173 = scmp.ne.s32.totalorder %s158, %s172
      %p174 = scmp.eq.s32.totalorder %s26, 0
      %p175 = por %p173, %p174
      %s177 = sadd.s32 %s176, 1
      %p180 = scmp.eq.s32.totalorder %s20, 3
      %p181 = scmp.ne.s32.totalorder %s176, %s178
      %p182 = scmp.eq.s32.totalorder %s20, 0
      %p183 = por %p181, %p182
      %p184 = scmp.ne.s32.totalorder %s176, %s178
      %p185 = scmp.eq.s32.totalorder %s25, 3
      %p186 = por %p184, %p185
      %p187 = scmp.ne.s32.totalorder %s178, %s179
      %p188 = scmp.eq.s32.totalorder %s25, 0
      %p189 = por %p187, %p188
      %p190 = scmp.ne.s32.totalorder %s178, %s179
      %p191 = scmp.eq.s32.totalorder %s26, 3
      %p192 = por %p190, %p191
      %p194 = scmp.ne.s32.totalorder %s179, %s193
      %p195 = scmp.eq.s32.totalorder %s26, 0
      %p196 = por %p194, %p195
      %s197 = ssub.s32 %s28, %s35
      %p198 = scmp.eq.s32.totalorder %s197, 0
      %s200 = sadd.s32 %s199, 1
      %s201 = scalar_select %p198, %s199, %s200
      %p204 = pneg %p198
      %p205 = scmp.eq.s32.totalorder %s20, 3
      %p206 = por %p204, %p205
      %p207 = scmp.ne.s32.totalorder %s199, %s202
      %p208 = scmp.eq.s32.totalorder %s20, 0
      %p209 = por %p207, %p208
      %p210 = scmp.ne.s32.totalorder %s199, %s202
      %p211 = scmp.eq.s32.totalorder %s25, 3
      %p212 = por %p210, %p211
      %p213 = scmp.ne.s32.totalorder %s202, %s203
      %p214 = scmp.eq.s32.totalorder %s25, 0
      %p215 = por %p213, %p214
      %p216 = scmp.ne.s32.totalorder %s202, %s203
      %p217 = scmp.eq.s32.totalorder %s26, 3
      %p218 = por %p216, %p217
      %p220 = scmp.ne.s32.totalorder %s203, %s219
      %p221 = scmp.eq.s32.totalorder %s26, 0
      %p222 = por %p220, %p221
      %s224 = sadd.s32 %s223, 1
      %p227 = scmp.eq.s32.totalorder %s20, 3
      %p228 = scmp.ne.s32.totalorder %s223, %s225
      %p229 = scmp.eq.s32.totalorder %s20, 0
      %p230 = por %p228, %p229
      %p231 = scmp.ne.s32.totalorder %s223, %s225
      %p232 = scmp.eq.s32.totalorder %s25, 3
      %p233 = por %p231, %p232
      %p234 = scmp.ne.s32.totalorder %s225, %s226
      %p235 = scmp.eq.s32.totalorder %s25, 0
      %p236 = por %p234, %p235
      %p237 = scmp.ne.s32.totalorder %s225, %s226
      %p238 = scmp.eq.s32.totalorder %s26, 3
      %p239 = por %p237, %p238
      %p241 = scmp.ne.s32.totalorder %s226, %s240
      %p242 = scmp.eq.s32.totalorder %s26, 0
      %p243 = por %p241, %p242
      %s244 = ssub.s32 %s27, %s39
      %p245 = scmp.eq.s32.totalorder %s244, 0
      %s247 = sadd.s32 %s246, 1
      %s248 = scalar_select %p245, %s246, %s247
      %p251 = pneg %p245
      %p252 = scmp.eq.s32.totalorder %s20, 3
      %p253 = por %p251, %p252
      %p254 = scmp.ne.s32.totalorder %s246, %s249
      %p255 = scmp.eq.s32.totalorder %s20, 0
      %p256 = por %p254, %p255
      %p257 = scmp.ne.s32.totalorder %s246, %s249
      %p258 = scmp.eq.s32.totalorder %s25, 3
      %p259 = por %p257, %p258
      %p260 = scmp.ne.s32.totalorder %s249, %s250
      %p261 = scmp.eq.s32.totalorder %s25, 0
      %p262 = por %p260, %p261
      %p263 = scmp.ne.s32.totalorder %s249, %s250
      %p264 = scmp.eq.s32.totalorder %s26, 3
      %p265 = por %p263, %p264
      %p267 = scmp.ne.s32.totalorder %s250, %s266
      %p268 = scmp.eq.s32.totalorder %s26, 0
      %p269 = por %p267, %p268
      %p270 = scmp.le.s32.totalorder 1, %s20
      %p271 = scmp.lt.s32.totalorder %s20, 5
      %p272 = pnand %p270, %p271
      %p273 = pneg %p272
      // Predicated region
      $region9: #{tpu_custom_call.1} parent=5 // pred_check
        _
      $region10: #{tpu_custom_call.1} parent=5 // pred_check_branch
        %275 = sbr.rel (%p272) target = $region12
      $region11: #{tpu_custom_call.1} parent=5 // pred_region
        %s276 = ssub.s32 %s20, 1
        // Predicated region
        $region13: #{tpu_custom_call.1} parent=11 // pred_check
          %p277 = pneg %p105
        $region14: #{tpu_custom_call.1} parent=11 // pred_check_branch
          %279 = sbr.rel (%p277) target = $region16
        $region15: #{tpu_custom_call.1} parent=11 // pred_region
          _
        $region16: #{tpu_custom_call.1} parent=11 // pred_fallthru
          _
        // Predicated region
        $region17: #{tpu_custom_call.1} parent=11 // pred_check
          %p280 = pneg %p126
        $region18: #{tpu_custom_call.1} parent=11 // pred_check_branch
          %282 = sbr.rel (%p280) target = $region20
        $region19: #{tpu_custom_call.1} parent=11 // pred_region
          _
        $region20: #{tpu_custom_call.1} parent=11 // pred_fallthru
          _
        // Predicated region
        $region21: #{tpu_custom_call.1} parent=11 // pred_check
          %p283 = pneg %p147
        $region22: #{tpu_custom_call.1} parent=11 // pred_check_branch
          %285 = sbr.rel (%p283) target = $region24
        $region23: #{tpu_custom_call.1} parent=11 // pred_region
          %s287 = ssub.s32 3072, 3072
          %288 = vsyncadd [#allocation4], %s287
          %s289 = sshll.u32 [#allocation3], 4
          %s290 = int_to_ptr.vmem [resolvable:$true] %s289
          %295 = dma.hbm_to_vmem [thread:$0]  %s4, 3072, %s290, [#allocation4], 128, 128, 8
        $region24: #{tpu_custom_call.1} parent=11 // pred_fallthru
          _
        // Predicated region
        $region25: #{tpu_custom_call.1} parent=11 // pred_check
          %p296 = pneg %p168
        $region26: #{tpu_custom_call.1} parent=11 // pred_check_branch
          %298 = sbr.rel (%p296) target = $region28
        $region27: #{tpu_custom_call.1} parent=11 // pred_region
          _
        $region28: #{tpu_custom_call.1} parent=11 // pred_fallthru
          _
        // Predicated region
        $region29: #{tpu_custom_call.1} parent=11 // pred_check
          %p299 = pneg %p189
        $region30: #{tpu_custom_call.1} parent=11 // pred_check_branch
          %301 = sbr.rel (%p299) target = $region32
        $region31: #{tpu_custom_call.1} parent=11 // pred_region
          %s303 = ssub.s32 128, 128
          %304 = vsyncadd [#allocation7], %s303
          %s306 = sshll.u32 [#allocation6], 4
          %s307 = int_to_ptr.vmem [resolvable:$true] %s306
          %309 = dma.hbm_to_vmem [thread:$0]  %s6, 128, %s307, [#allocation7]
        $region32: #{tpu_custom_call.1} parent=11 // pred_fallthru
          _
        // Predicated region
        $region33: #{tpu_custom_call.1} parent=11 // pred_check
          %p310 = pneg %p236
        $region34: #{tpu_custom_call.1} parent=11 // pred_check_branch
          %312 = sbr.rel (%p310) target = $region36
        $region35: #{tpu_custom_call.1} parent=11 // pred_region
          _
        $region36: #{tpu_custom_call.1} parent=11 // pred_fallthru
          _
      $region12: #{tpu_custom_call.1} parent=5 // pred_fallthru
        _
      %p313 = scmp.lt.s32.totalorder %s20, 4
      // Predicated region
      $region37: #{tpu_custom_call.1} parent=5 // pred_check
        %p314 = pneg %p313
      $region38: #{tpu_custom_call.1} parent=5 // pred_check_branch
        %316 = sbr.rel (%p314) target = $region40
      $region39: #{tpu_custom_call.1} parent=5 // pred_region
        // Predicated region
        $region41: #{tpu_custom_call.1} parent=39 // pred_check
          %p317 = pneg %p52
        $region42: #{tpu_custom_call.1} parent=39 // pred_check_branch
          %319 = sbr.rel (%p317) target = $region44
        $region43: #{tpu_custom_call.1} parent=39 // pred_region
          %s320 = smul.u32 12, %s27
          %p321 = scmp.lt.s32.totalorder %s320, 23
          %s322 = scalar_select %p321, %s320, 23
          %s323 = smul.addr %s322, 2
          %s324 = smul.addr %s323, 4
          %s325 = scalar_lea.vmem %s0, %s324
          %s326 = smul.u32 12, %s27
        $region44: #{tpu_custom_call.1} parent=39 // pred_fallthru
          _
        // Predicated region
        $region45: #{tpu_custom_call.1} parent=39 // pred_check
          %p327 = pneg %p78
        $region46: #{tpu_custom_call.1} parent=39 // pred_check_branch
          %329 = sbr.rel (%p327) target = $region48
        $region47: #{tpu_custom_call.1} parent=39 // pred_region
          %s330 = sand.u32 %s68, 1
          %s331 = sand.u32 %s68, 1
          %s332 = smul.addr %s331, 160
          %s333 = scalar_lea.vmem [#allocation2], %s332
          %s334 = smul.u32 2, %s28
          %s335 = smul.addr %s334, 4
          %s336 = scalar_lea.vmem %s1, %s335
          // Predicated region
          $region49: #{tpu_custom_call.1} parent=47 // pred_check
            _
          $region50: #{tpu_custom_call.1} parent=47 // pred_check_branch
            %338 = sbr.rel (0) target = $region52
          $region51: #{tpu_custom_call.1} parent=47 // pred_region
            // Predicated region
            $region53: #{tpu_custom_call.1} parent=51 // pred_check
              _
            $region54: #{tpu_custom_call.1} parent=51 // pred_check_branch
              %340 = sbr.rel (0) target = $region56
            $region55: #{tpu_custom_call.1} parent=51 // pred_region
              // Predicated region
              $region68: #{tpu_custom_call.1} parent=55 // pred_check
                _
              $region69: #{tpu_custom_call.1} parent=55 // pred_check_branch
                %394 = sbr.rel (0) target = $region71
              $region70: #{tpu_custom_call.1} parent=55 // pred_region
                loop: start=0, step=1, limit=1
                $region72: #{tpu_custom_call.1} parent=70 // loop_pre_header
                  _
                $region73: #{tpu_custom_call.1} parent=70 // loop_header
                  %s396 = sphi 0, %s400
                  %p397 = scmp.ge.s32.totalorder %s396, 1
                  %s401 = sphi %s336, %s336
                  %s402 = sphi %s333, %s333
                $region74: #{tpu_custom_call.1} parent=70 // loop_header_branch
                  %399 = sbr.rel (%p397) target = $region78
                $region75: #{tpu_custom_call.1} parent=70 // loop_body
                  %v403 = vld [vmem:[%s401] sm:$0xff]
                  %404 = vst [vmem:[%s402] sm:$0xff] %v403
                  %v405 = vld [vmem:[%s401 + $0x10] sm:$0xff]
                  %406 = vst [vmem:[%s402 + $0x8] sm:$0xff] %v405
                  %v407 = vld [vmem:[%s401 + $0x20] sm:$0xff]
                  %408 = vst [vmem:[%s402 + $0x10] sm:$0xff] %v407
                  %v409 = vld [vmem:[%s401 + $0x30] sm:$0xff]
                  %410 = vst [vmem:[%s402 + $0x18] sm:$0xff] %v409
                  %v411 = vld [vmem:[%s401 + $0x40] sm:$0xff]
                  %412 = vst [vmem:[%s402 + $0x20] sm:$0xff] %v411
                  %v413 = vld [vmem:[%s401 + $0x50] sm:$0xff]
                  %414 = vst [vmem:[%s402 + $0x28] sm:$0xff] %v413
                  %v415 = vld [vmem:[%s401 + $0x60] sm:$0xff]
                  %416 = vst [vmem:[%s402 + $0x30] sm:$0xff] %v415
                  %v417 = vld [vmem:[%s401 + $0x70] sm:$0xff]
                  %418 = vst [vmem:[%s402 + $0x38] sm:$0xff] %v417
                  %v419 = vld [vmem:[%s401 + $0x80] sm:$0xff]
                  %420 = vst [vmem:[%s402 + $0x40] sm:$0xff] %v419
                  %v421 = vld [vmem:[%s401 + $0x90] sm:$0xff]
                  %422 = vst [vmem:[%s402 + $0x48] sm:$0xff] %v421
                  %v423 = vld [vmem:[%s401 + $0xa0] sm:$0xff]
                  %424 = vst [vmem:[%s402 + $0x50] sm:$0xff] %v423
                  %v425 = vld [vmem:[%s401 + $0xb0] sm:$0xff]
                  %426 = vst [vmem:[%s402 + $0x58] sm:$0xff] %v425
                  %v427 = vld [vmem:[%s401 + $0xc0] sm:$0xff]
                  %428 = vst [vmem:[%s402 + $0x60] sm:$0xff] %v427
                  %v429 = vld [vmem:[%s401 + $0xd0] sm:$0xff]
                  %430 = vst [vmem:[%s402 + $0x68] sm:$0xff] %v429
                  %v431 = vld [vmem:[%s401 + $0xe0] sm:$0xff]
                  %432 = vst [vmem:[%s402 + $0x70] sm:$0xff] %v431
                  %v433 = vld [vmem:[%s401 + $0xf0] sm:$0xff]
                  %434 = vst [vmem:[%s402 + $0x78] sm:$0xff] %v433
                  %v435 = vld [vmem:[%s401 + $0x100] sm:$0xff]
                  %436 = vst [vmem:[%s402 + $0x80] sm:$0xff] %v435
                  %v437 = vld [vmem:[%s401 + $0x110] sm:$0xff]
                  %438 = vst [vmem:[%s402 + $0x88] sm:$0xff] %v437
                  %v439 = vld [vmem:[%s401 + $0x120] sm:$0xff]
                  %440 = vst [vmem:[%s402 + $0x90] sm:$0xff] %v439
                  %v441 = vld [vmem:[%s401 + $0x130] sm:$0xff]
                  %442 = vst [vmem:[%s402 + $0x98] sm:$0xff] %v441
                $region76: #{tpu_custom_call.1} parent=70 // loop_footer
                  %s400 = sadd.s32 1, %s396
                $region77: #{tpu_custom_call.1} parent=70 // loop_footer_branch
                  %395 = sbr.rel target = $region73
                $region78: #{tpu_custom_call.1} parent=70 // loop_exit
                  _
              $region71: #{tpu_custom_call.1} parent=55 // pred_fallthru
                _
              // Predicated region
              $region79: #{tpu_custom_call.1} parent=55 // pred_check
                _
              $region80: #{tpu_custom_call.1} parent=55 // pred_check_branch
                %444 = sbr.rel target = $region82
              $region81: #{tpu_custom_call.1} parent=55 // pred_region
                _
              $region82: #{tpu_custom_call.1} parent=55 // pred_fallthru
                _
            $region56: #{tpu_custom_call.1} parent=51 // pred_fallthru
              _
            // Predicated region
            $region57: #{tpu_custom_call.1} parent=51 // pred_check
              _
            $region58: #{tpu_custom_call.1} parent=51 // pred_check_branch
              %342 = sbr.rel target = $region60
            $region59: #{tpu_custom_call.1} parent=51 // pred_region
              %s344 = ssub.s32 256, 1
              loop: start=0, step=1, limit=1
              $region61: #{tpu_custom_call.1} parent=59 // loop_pre_header
                _
              $region62: #{tpu_custom_call.1} parent=59 // loop_header
                %s346 = sphi 0, %s350
                %p347 = scmp.ge.s32.totalorder %s346, 1
                %s351 = sphi %s336, %s336
                %s352 = sphi %s333, %s333
              $region63: #{tpu_custom_call.1} parent=59 // loop_header_branch
                %349 = sbr.rel (%p347) target = $region67
              $region64: #{tpu_custom_call.1} parent=59 // loop_body
                %v353 = vld [vmem:[%s351] sm:%s344]
                %354 = vst [vmem:[%s352] sm:%s344] %v353
                %v355 = vld [vmem:[%s351 + $0x10] sm:%s344]
                %356 = vst [vmem:[%s352 + $0x8] sm:%s344] %v355
                %v357 = vld [vmem:[%s351 + $0x20] sm:%s344]
                %358 = vst [vmem:[%s352 + $0x10] sm:%s344] %v357
                %v359 = vld [vmem:[%s351 + $0x30] sm:%s344]
                %360 = vst [vmem:[%s352 + $0x18] sm:%s344] %v359
                %v361 = vld [vmem:[%s351 + $0x40] sm:%s344]
                %362 = vst [vmem:[%s352 + $0x20] sm:%s344] %v361
                %v363 = vld [vmem:[%s351 + $0x50] sm:%s344]
                %364 = vst [vmem:[%s352 + $0x28] sm:%s344] %v363
                %v365 = vld [vmem:[%s351 + $0x60] sm:%s344]
                %366 = vst [vmem:[%s352 + $0x30] sm:%s344] %v365
                %v367 = vld [vmem:[%s351 + $0x70] sm:%s344]
                %368 = vst [vmem:[%s352 + $0x38] sm:%s344] %v367
                %v369 = vld [vmem:[%s351 + $0x80] sm:%s344]
                %370 = vst [vmem:[%s352 + $0x40] sm:%s344] %v369
                %v371 = vld [vmem:[%s351 + $0x90] sm:%s344]
                %372 = vst [vmem:[%s352 + $0x48] sm:%s344] %v371
                %v373 = vld [vmem:[%s351 + $0xa0] sm:%s344]
                %374 = vst [vmem:[%s352 + $0x50] sm:%s344] %v373
                %v375 = vld [vmem:[%s351 + $0xb0] sm:%s344]
                %376 = vst [vmem:[%s352 + $0x58] sm:%s344] %v375
                %v377 = vld [vmem:[%s351 + $0xc0] sm:%s344]
                %378 = vst [vmem:[%s352 + $0x60] sm:%s344] %v377
                %v379 = vld [vmem:[%s351 + $0xd0] sm:%s344]
                %380 = vst [vmem:[%s352 + $0x68] sm:%s344] %v379
                %v381 = vld [vmem:[%s351 + $0xe0] sm:%s344]
                %382 = vst [vmem:[%s352 + $0x70] sm:%s344] %v381
                %v383 = vld [vmem:[%s351 + $0xf0] sm:%s344]
                %384 = vst [vmem:[%s352 + $0x78] sm:%s344] %v383
                %v385 = vld [vmem:[%s351 + $0x100] sm:%s344]
                %386 = vst [vmem:[%s352 + $0x80] sm:%s344] %v385
                %v387 = vld [vmem:[%s351 + $0x110] sm:%s344]
                %388 = vst [vmem:[%s352 + $0x88] sm:%s344] %v387
                %v389 = vld [vmem:[%s351 + $0x120] sm:%s344]
                %390 = vst [vmem:[%s352 + $0x90] sm:%s344] %v389
                %v391 = vld [vmem:[%s351 + $0x130] sm:%s344]
                %392 = vst [vmem:[%s352 + $0x98] sm:%s344] %v391
              $region65: #{tpu_custom_call.1} parent=59 // loop_footer
                %s350 = sadd.s32 1, %s346
              $region66: #{tpu_custom_call.1} parent=59 // loop_footer_branch
                %345 = sbr.rel target = $region62
              $region67: #{tpu_custom_call.1} parent=59 // loop_exit
                _
            $region60: #{tpu_custom_call.1} parent=51 // pred_fallthru
              _
          $region52: #{tpu_custom_call.1} parent=47 // pred_fallthru
            _
          %445 = vnop
        $region48: #{tpu_custom_call.1} parent=39 // pred_fallthru
          _
        // Predicated region
        $region83: #{tpu_custom_call.1} parent=39 // pred_check
          %p446 = pneg %p209
        $region84: #{tpu_custom_call.1} parent=39 // pred_check_branch
          %448 = sbr.rel (%p446) target = $region86
        $region85: #{tpu_custom_call.1} parent=39 // pred_region
          %s449 = sand.u32 %s20, 1
          %s450 = scalar_lea.sflag [#allocation4], %s449
          %s451 = sand.u32 %s199, 1
          %s452 = smul.addr %s451, 512
          %s453 = scalar_lea.vmem [#allocation8], %s452
          %s454 = smul.u32 32, %s28
          %s456 = ssub.s32 8192, 8192
          %457 = vsyncadd %s450, %s456
          %s458 = smul.addr %s454, 4
          %s459 = smul.addr %s458, 64
          %s460 = scalar_lea.hbm %s7, %s459
          %s461 = sshll.u32 %s453, 4
          %s462 = int_to_ptr.vmem [resolvable:$true] %s461
          %467 = dma.hbm_to_vmem [thread:$0]  %s460, 8192, %s462, %s450, 256, 256, 16
        $region86: #{tpu_custom_call.1} parent=39 // pred_fallthru
          _
      $region40: #{tpu_custom_call.1} parent=5 // pred_fallthru
        _
      %p468 = scmp.le.s32.totalorder 1, %s20
      %p469 = scmp.lt.s32.totalorder %s20, 5
      %p470 = pnand %p468, %p469
      %p471 = pneg %p470
      // Predicated region
      $region87: #{tpu_custom_call.1} parent=5 // pred_check
        _
      $region88: #{tpu_custom_call.1} parent=5 // pred_check_branch
        %473 = sbr.rel (%p470) target = $region90
      $region89: #{tpu_custom_call.1} parent=5 // pred_region
        %s474 = ssub.s32 %s20, 1
        %s475 = sand.u32 %s71, 1
        %s476 = sand.u32 %s71, 1
        %s477 = smul.addr %s476, 160
        %s478 = scalar_lea.vmem [#allocation2], %s477
        // Predicated region
        $region91: #{tpu_custom_call.1} parent=89 // pred_check
          %p479 = pneg %p84
        $region92: #{tpu_custom_call.1} parent=89 // pred_check_branch
          %481 = sbr.rel (%p479) target = $region94
        $region93: #{tpu_custom_call.1} parent=89 // pred_region
          _
        $region94: #{tpu_custom_call.1} parent=89 // pred_fallthru
          _
        // Predicated region
        $region95: #{tpu_custom_call.1} parent=89 // pred_check
          %p482 = pneg %p147
        $region96: #{tpu_custom_call.1} parent=89 // pred_check_branch
          %484 = sbr.rel (%p482) target = $region98
        $region97: #{tpu_custom_call.1} parent=89 // pred_region
          %485 = dma.done [#allocation4], 3072
        $region98: #{tpu_custom_call.1} parent=89 // pred_fallthru
          _
        // Predicated region
        $region99: #{tpu_custom_call.1} parent=89 // pred_check
          %p486 = pneg %p189
        $region100: #{tpu_custom_call.1} parent=89 // pred_check_branch
          %488 = sbr.rel (%p486) target = $region102
        $region101: #{tpu_custom_call.1} parent=89 // pred_region
          %489 = dma.done [#allocation7], 128
        $region102: #{tpu_custom_call.1} parent=89 // pred_fallthru
          _
        %s490 = sand.u32 %s25, 1
        %s491 = scalar_lea.sflag [#allocation4], %s490
        %s492 = sand.u32 %s202, 1
        %s493 = smul.addr %s492, 512
        %s494 = scalar_lea.vmem [#allocation8], %s493
        // Predicated region
        $region103: #{tpu_custom_call.1} parent=89 // pred_check
          %p495 = pneg %p215
        $region104: #{tpu_custom_call.1} parent=89 // pred_check_branch
          %497 = sbr.rel (%p495) target = $region106
        $region105: #{tpu_custom_call.1} parent=89 // pred_region
          %498 = dma.done %s491, 8192
        $region106: #{tpu_custom_call.1} parent=89 // pred_fallthru
          _
        %s499 = smul.u32 12, %s29
        %p500 = scmp.lt.s32.totalorder %s499, 23
        %s501 = scalar_select %p500, %s499, 23
        %s502 = smul.addr %s501, 2
        %s503 = smul.addr %s502, 4
        %s504 = scalar_lea.vmem %s0, %s503
        %p505 = pneg %p58
        %p506 = pneg %p55
        %s507 = sand.u32 %s71, 1
        %s508 = sand.u32 %s71, 1
        %s509 = smul.addr %s508, 160
        %s510 = scalar_lea.vmem [#allocation2], %s509
        %p511 = pneg %p84
        %p512 = pneg %p81
        %p513 = pneg %p105
        %p514 = pneg %p102
        %p515 = pneg %p126
        %p516 = pneg %p123
        %p517 = pneg %p147
        %p518 = pneg %p144
        %p519 = pneg %p168
        %p520 = pneg %p165
        %p521 = pneg %p189
        %p522 = pneg %p186
        %s523 = sand.u32 %s25, 1
        %s524 = scalar_lea.sflag [#allocation4], %s523
        %s525 = sand.u32 %s202, 1
        %s526 = smul.addr %s525, 512
        %s527 = scalar_lea.vmem [#allocation8], %s526
        %p528 = pneg %p215
        %p529 = pneg %p212
        %p530 = pneg %p236
        %p531 = pneg %p233
        %p532 = pneg %p262
        %p533 = pneg %p259
        %s534 = sand.u32 %s249, 1
        %s535 = scalar_lea.sflag [#allocation5], %s534
        %s536 = sand.u32 %s249, 1
        %s537 = smul.addr %s536, 64
        %s538 = scalar_lea.vmem [#allocation9], %s537
        %s539 = smul.u32 12, %s29
        %p540 = scmp.lt.s32.totalorder %s539, 23
        %s541 = scalar_select %p540, %s539, 23
        %s542 = smul.addr %s541, 2
        %s543 = smul.addr %s542, 4
        %s544 = scalar_lea.vmem %s0, %s543
        %s545 = smul.u32 12, %s29
        %s546 = smul.u32 2, %s30
        %s547 = smul.u32 32, %s30
        %s548 = smul.u32 2, %s29
        %v550 = vld [vmem:[%s544] sm:$0xff]
        %v551 = vld [vmem:[%s544 + $0x8] sm:$0xff]
        %v552 = vld [vmem:[%s544 + $0x10] sm:$0xff]
        %v553 = vld [vmem:[%s544 + $0x18] sm:$0xff]
        %v554 = vld [vmem:[%s544 + $0x20] sm:$0xff]
        %v555 = vld [vmem:[%s544 + $0x28] sm:$0xff]
        %v556 = vld [vmem:[%s544 + $0x30] sm:$0xff]
        %v557 = vld [vmem:[%s544 + $0x38] sm:$0xff]
        %v558 = vld [vmem:[%s544 + $0x40] sm:$0xff]
        %v559 = vld [vmem:[%s544 + $0x48] sm:$0xff]
        %v560 = vld [vmem:[%s544 + $0x50] sm:$0xff]
        %v561 = vld [vmem:[%s544 + $0x58] sm:$0xff]
        %v562 = vld [vmem:[%s478] sm:$0xff]
        %v563 = vld [vmem:[%s478 + $0x8] sm:$0xff]
        %v564 = vld [vmem:[%s478 + $0x10] sm:$0xff]
        %v565 = vld [vmem:[%s478 + $0x18] sm:$0xff]
        %v566 = vld [vmem:[%s478 + $0x20] sm:$0xff]
        %v567 = vld [vmem:[%s478 + $0x28] sm:$0xff]
        %v568 = vld [vmem:[%s478 + $0x30] sm:$0xff]
        %v569 = vld [vmem:[%s478 + $0x38] sm:$0xff]
        %v570 = vld [vmem:[%s478 + $0x40] sm:$0xff]
        %v571 = vld [vmem:[%s478 + $0x48] sm:$0xff]
        %v572 = vld [vmem:[%s478 + $0x50] sm:$0xff]
        %v573 = vld [vmem:[%s478 + $0x58] sm:$0xff]
        %v574 = vld [vmem:[%s478 + $0x60] sm:$0xff]
        %v575 = vld [vmem:[%s478 + $0x68] sm:$0xff]
        %v576 = vld [vmem:[%s478 + $0x70] sm:$0xff]
        %v577 = vld [vmem:[%s478 + $0x78] sm:$0xff]
        %v578 = vld [vmem:[%s478 + $0x80] sm:$0xff]
        %v579 = vld [vmem:[%s478 + $0x88] sm:$0xff]
        %v580 = vld [vmem:[%s478 + $0x90] sm:$0xff]
        %v581 = vld [vmem:[%s478 + $0x98] sm:$0xff]
        %v594 = vunpack.c.l.b16 %v550
        %v595 = vunpack.c.h.b16 %v550
        %v596 = vunpack.c.l.b16 %v551
        %v597 = vunpack.c.h.b16 %v551
        %v598 = vunpack.c.l.b16 %v552
        %v599 = vunpack.c.h.b16 %v552
        %v600 = vunpack.c.l.b16 %v553
        %v601 = vunpack.c.h.b16 %v553
        %v602 = vunpack.c.l.b16 %v554
        %v603 = vunpack.c.h.b16 %v554
        %v604 = vunpack.c.l.b16 %v555
        %v605 = vunpack.c.h.b16 %v555
        %v606 = vunpack.c.l.b16 %v556
        %v607 = vunpack.c.h.b16 %v556
        %v608 = vunpack.c.l.b16 %v557
        %v609 = vunpack.c.h.b16 %v557
        %v610 = vunpack.c.l.b16 %v558
        %v611 = vunpack.c.h.b16 %v558
        %v612 = vunpack.c.l.b16 %v559
        %v613 = vunpack.c.h.b16 %v559
        %v614 = vunpack.c.l.b16 %v560
        %v615 = vunpack.c.h.b16 %v560
        %v616 = vunpack.c.l.b16 %v561
        %v617 = vunpack.c.h.b16 %v561
        %v618 = vpack.c.b16 %v596, %v594
        %v619 = vpack.c.b16 %v597, %v595
        %v620 = vpack.c.b16 %v600, %v598
        %v621 = vpack.c.b16 %v601, %v599
        %v622 = vpack.c.b16 %v604, %v602
        %v623 = vpack.c.b16 %v605, %v603
        %v624 = vpack.c.b16 %v608, %v606
        %v625 = vpack.c.b16 %v609, %v607
        %v626 = vpack.c.b16 %v612, %v610
        %v627 = vpack.c.b16 %v613, %v611
        %v628 = vpack.c.b16 %v616, %v614
        %v629 = vpack.c.b16 %v617, %v615
        %v656 = vunpack.c.l.b16 %v562
        %v657 = vunpack.c.h.b16 %v562
        %v658 = vunpack.c.l.b16 %v563
        %v659 = vunpack.c.h.b16 %v563
        %v660 = vunpack.c.l.b16 %v564
        %v661 = vunpack.c.h.b16 %v564
        %v662 = vunpack.c.l.b16 %v565
        %v663 = vunpack.c.h.b16 %v565
        %v664 = vunpack.c.l.b16 %v566
        %v665 = vunpack.c.h.b16 %v566
        %v666 = vunpack.c.l.b16 %v567
        %v667 = vunpack.c.h.b16 %v567
        %v668 = vunpack.c.l.b16 %v568
        %v669 = vunpack.c.h.b16 %v568
        %v670 = vunpack.c.l.b16 %v569
        %v671 = vunpack.c.h.b16 %v569
        %v672 = vunpack.c.l.b16 %v570
        %v673 = vunpack.c.h.b16 %v570
        %v674 = vunpack.c.l.b16 %v571
        %v675 = vunpack.c.h.b16 %v571
        %v676 = vunpack.c.l.b16 %v572
        %v677 = vunpack.c.h.b16 %v572
        %v678 = vunpack.c.l.b16 %v573
        %v679 = vunpack.c.h.b16 %v573
        %v680 = vunpack.c.l.b16 %v574
        %v681 = vunpack.c.h.b16 %v574
        %v682 = vunpack.c.l.b16 %v575
        %v683 = vunpack.c.h.b16 %v575
        %v684 = vunpack.c.l.b16 %v576
        %v685 = vunpack.c.h.b16 %v576
        %v686 = vunpack.c.l.b16 %v577
        %v687 = vunpack.c.h.b16 %v577
        %v688 = vunpack.c.l.b16 %v578
        %v689 = vunpack.c.h.b16 %v578
        %v690 = vunpack.c.l.b16 %v579
        %v691 = vunpack.c.h.b16 %v579
        %v692 = vunpack.c.l.b16 %v580
        %v693 = vunpack.c.h.b16 %v580
        %v694 = vunpack.c.l.b16 %v581
        %v695 = vunpack.c.h.b16 %v581
        %v696 = vpack.c.b16 %v658, %v656
        %v697 = vpack.c.b16 %v659, %v657
        %v698 = vpack.c.b16 %v662, %v660
        %v699 = vpack.c.b16 %v663, %v661
        %v700 = vpack.c.b16 %v666, %v664
        %v701 = vpack.c.b16 %v667, %v665
        %v702 = vpack.c.b16 %v670, %v668
        %v703 = vpack.c.b16 %v671, %v669
        %v704 = vpack.c.b16 %v674, %v672
        %v705 = vpack.c.b16 %v675, %v673
        %v706 = vpack.c.b16 %v678, %v676
        %v707 = vpack.c.b16 %v679, %v677
        %v708 = vpack.c.b16 %v682, %v680
        %v709 = vpack.c.b16 %v683, %v681
        %v710 = vpack.c.b16 %v686, %v684
        %v711 = vpack.c.b16 %v687, %v685
        %v712 = vpack.c.b16 %v690, %v688
        %v713 = vpack.c.b16 %v691, %v689
        %v714 = vpack.c.b16 %v694, %v692
        %v715 = vpack.c.b16 %v695, %v693
        %vm736 = vcmask 261120
        %v738 = vsel %vm736, %v619, 0
        %v741 = vsel %vm736, %v621, 0
        %v744 = vsel %vm736, %v623, 0
        %v747 = vsel %vm736, %v625, 0
        %v750 = vsel %vm736, %v627, 0
        %v753 = vsel %vm736, %v629, 0
        %755 = vmatprep.subr.bf16.mxu0 %v711
        %756 = vmatpush1.bf16.msra.mxu0 %v710
        %757 = vmatprep.subr.bf16.mxu0 %v709
        %758 = vmatpush1.bf16.msra.mxu0 %v708
        %759 = vmatprep.subr.bf16.mxu0 %v707
        %760 = vmatpush1.bf16.msra.mxu0 %v706
        %761 = vmatprep.subr.bf16.mxu0 %v705
        %762 = vmatpush1.bf16.msra.mxu0 %v704
        %763 = vmatprep.subr.bf16.mxu0 %v703
        %764 = vmatpush1.bf16.msra.mxu0 %v702
        %765 = vmatprep.subr.bf16.mxu0 %v701
        %766 = vmatpush1.bf16.msra.mxu0 %v700
        %767 = vmatprep.subr.bf16.mxu0 %v699
        %768 = vmatpush1.bf16.msra.mxu0 %v698
        %769 = vmatprep.subr.bf16.mxu0 %v697
        %770 = vmatpush1.bf16.msra.mxu0 %v696
        %771 = vmatprep.subr.bf16.mxu0 0
        %772 = vmatpush2.bf16.msra.mxu0 0
        %773 = vmatprep.subr.bf16.mxu0 0
        %774 = vmatpush2.bf16.msra.mxu0 0
        %775 = vmatprep.subr.bf16.mxu0 0
        %776 = vmatpush2.bf16.msra.mxu0 0
        %777 = vmatprep.subr.bf16.mxu0 0
        %778 = vmatpush2.bf16.msra.mxu0 0
        %779 = vmatprep.subr.bf16.mxu0 0
        %780 = vmatpush2.bf16.msra.mxu0 0
        %781 = vmatprep.subr.bf16.mxu0 0
        %782 = vmatpush2.bf16.msra.mxu0 0
        %783 = vmatprep.subr.bf16.mxu0 %v715
        %784 = vmatpush2.bf16.msra.mxu0 %v714
        %785 = vmatprep.subr.bf16.mxu0 %v713
        %786 = vmatpush2.bf16.msra.mxu0 %v712
        %787 = vmatprep.mubr.bf16.mxu0 %v738
        %788 = vmatmul.mubr.bf16.gmra.mxu0 %v618
        %v789 = vpop.f32.mrf.mxu0
        %v790 = vadd.f32 0.0, %v789
        %v791 = vpop.f32.mrf.mxu0
        %v792 = vadd.f32 0.0, %v791
        %v793 = vpop.f32.mrf.mxu0
        %v794 = vadd.f32 0.0, %v793
        %v795 = vpop.f32.mrf.mxu0
        %v796 = vadd.f32 0.0, %v795
        %797 = vmatprep.mubr.bf16.mxu0 %v741
        %798 = vmatmul.mubr.bf16.gmra.mxu0 %v620
        %v799 = vpop.f32.mrf.mxu0
        %v800 = vadd.f32 0.0, %v799
        %v801 = vpop.f32.mrf.mxu0
        %v802 = vadd.f32 0.0, %v801
        %v803 = vpop.f32.mrf.mxu0
        %v804 = vadd.f32 0.0, %v803
        %v805 = vpop.f32.mrf.mxu0
        %v806 = vadd.f32 0.0, %v805
        %807 = vmatprep.mubr.bf16.mxu0 %v744
        %808 = vmatmul.mubr.bf16.gmra.mxu0 %v622
        %v809 = vpop.f32.mrf.mxu0
        %v810 = vadd.f32 0.0, %v809
        %v811 = vpop.f32.mrf.mxu0
        %v812 = vadd.f32 0.0, %v811
        %v813 = vpop.f32.mrf.mxu0
        %v814 = vadd.f32 0.0, %v813
        %v815 = vpop.f32.mrf.mxu0
        %v816 = vadd.f32 0.0, %v815
        %817 = vmatprep.mubr.bf16.mxu0 %v747
        %818 = vmatmul.mubr.bf16.gmra.mxu0 %v624
        %v819 = vpop.f32.mrf.mxu0
        %v820 = vadd.f32 0.0, %v819
        %v821 = vpop.f32.mrf.mxu0
        %v822 = vadd.f32 0.0, %v821
        %v823 = vpop.f32.mrf.mxu0
        %v824 = vadd.f32 0.0, %v823
        %v825 = vpop.f32.mrf.mxu0
        %v826 = vadd.f32 0.0, %v825
        %827 = vmatprep.mubr.bf16.mxu0 %v750
        %828 = vmatmul.mubr.bf16.gmra.mxu0 %v626
        %v829 = vpop.f32.mrf.mxu0
        %v830 = vadd.f32 0.0, %v829
        %v831 = vpop.f32.mrf.mxu0
        %v832 = vadd.f32 0.0, %v831
        %v833 = vpop.f32.mrf.mxu0
        %v834 = vadd.f32 0.0, %v833
        %v835 = vpop.f32.mrf.mxu0
        %v836 = vadd.f32 0.0, %v835
        %837 = vmatprep.mubr.bf16.mxu0 %v753
        %838 = vmatmul.mubr.bf16.gmra.mxu0 %v628
        %v839 = vpop.f32.mrf.mxu0
        %v840 = vadd.f32 0.0, %v839
        %v841 = vpop.f32.mrf.mxu0
        %v842 = vadd.f32 0.0, %v841
        %v843 = vpop.f32.mrf.mxu0
        %v844 = vadd.f32 0.0, %v843
        %v845 = vpop.f32.mrf.mxu0
        %v846 = vadd.f32 0.0, %v845
        %847 = vdwg.mxu0
        %p848 = scmp.eq.s32.totalorder %s30, 0
        // Predicated region
        $region107: #{tpu_custom_call.1} parent=89 // pred_check
          %p849 = pneg %p848
        $region108: #{tpu_custom_call.1} parent=89 // pred_check_branch
          %851 = sbr.rel (%p849) target = $region110
        $region109: #{tpu_custom_call.1} parent=89 // pred_region
          %v852 = vld [vmem:[%s8] sm:$0xf]
          %v854 = vlaneseq
          %v855 = vshrl.u32 %v854, 7
          %v856 = vsub.s32 0, %v855
          %v857 = vrot.slane %v852, %v856
          %v858 = vlaneseq
          %v859 = vshrl.u32 %v858, 7
          %v860 = vsub.s32 1, %v859
          %v861 = vrot.slane %v852, %v860
          %v862 = vlaneseq
          %v863 = vshrl.u32 %v862, 7
          %v864 = vsub.s32 2, %v863
          %v865 = vrot.slane %v852, %v864
          %v866 = vlaneseq
          %v867 = vshrl.u32 %v866, 7
          %v868 = vsub.s32 3, %v867
          %v869 = vrot.slane %v852, %v868
          %874 = vst [vmem:[%s538] sm:$0xff] %v857
          %875 = vst [vmem:[%s538 + $0x8] sm:$0xff] %v861
          %876 = vst [vmem:[%s538 + $0x10] sm:$0xff] %v865
          %877 = vst [vmem:[%s538 + $0x18] sm:$0xff] %v869
          %878 = vst [vmem:[%s538 + $0x20] sm:$0xff] %v857
          %879 = vst [vmem:[%s538 + $0x28] sm:$0xff] %v861
          %880 = vst [vmem:[%s538 + $0x30] sm:$0xff] %v865
          %881 = vst [vmem:[%s538 + $0x38] sm:$0xff] %v869
        $region110: #{tpu_custom_call.1} parent=89 // pred_fallthru
          _
        %v882 = vld [vmem:[%s2] sm:$0xff]
        %v883 = vld [vmem:[%s2 + $0x8] sm:$0xff]
        %v884 = vld [vmem:[%s2 + $0x10] sm:$0xff]
        %v885 = vld [vmem:[%s2 + $0x18] sm:$0xff]
        %v886 = vld [vmem:[%s2 + $0x20] sm:$0xff]
        %v887 = vld [vmem:[%s2 + $0x28] sm:$0xff]
        %v888 = vld [vmem:[#allocation6] sm:$0xff]
        %v889 = vld [vmem:[%s5] sm:$0xff]
        %v890 = vld [vmem:[%s5 + $0x8] sm:$0xff]
        %v891 = vld [vmem:[%s5 + $0x10] sm:$0xff]
        %v892 = vld [vmem:[%s5 + $0x18] sm:$0xff]
        %v893 = vld [vmem:[%s5 + $0x20] sm:$0xff]
        %v894 = vld [vmem:[%s5 + $0x28] sm:$0xff]
        %v895 = vld [vmem:[%s5 + $0x30] sm:$0xff]
        %v896 = vld [vmem:[%s5 + $0x38] sm:$0xff]
        %v897 = vld [vmem:[%s5 + $0x40] sm:$0xff]
        %v898 = vld [vmem:[%s5 + $0x48] sm:$0xff]
        %v899 = vld [vmem:[%s5 + $0x50] sm:$0xff]
        %v900 = vld [vmem:[%s5 + $0x58] sm:$0xff]
        %v901 = vld [vmem:[%s5 + $0x60] sm:$0xff]
        %v902 = vld [vmem:[%s5 + $0x68] sm:$0xff]
        %v903 = vld [vmem:[%s5 + $0x70] sm:$0xff]
        %v904 = vld [vmem:[%s5 + $0x78] sm:$0xff]
        %v905 = vld [vmem:[%s5 + $0x80] sm:$0xff]
        %v906 = vld [vmem:[%s5 + $0x88] sm:$0xff]
        %v907 = vld [vmem:[%s5 + $0x90] sm:$0xff]
        %v908 = vld [vmem:[%s5 + $0x98] sm:$0xff]
        %v909 = vld [vmem:[%s5 + $0xa0] sm:$0xff]
        %v910 = vld [vmem:[%s5 + $0xa8] sm:$0xff]
        %v911 = vld [vmem:[%s5 + $0xb0] sm:$0xff]
        %v912 = vld [vmem:[%s5 + $0xb8] sm:$0xff]
        %v913 = vld [vmem:[%s3] sm:$0xff]
        %v914 = vld [vmem:[%s3 + $0x8] sm:$0xff]
        %v915 = vld [vmem:[%s3 + $0x10] sm:$0xff]
        %v916 = vld [vmem:[%s3 + $0x18] sm:$0xff]
        %v917 = vld [vmem:[%s3 + $0x20] sm:$0xff]
        %v918 = vld [vmem:[%s3 + $0x28] sm:$0xff]
        %s919 = scalar_lea.vmem %s3, 48
        %v920 = vld [vmem:[%s919] sm:$0xff]
        %v921 = vld [vmem:[%s919 + $0x8] sm:$0xff]
        %v922 = vld [vmem:[%s919 + $0x10] sm:$0xff]
        %v923 = vld [vmem:[%s919 + $0x18] sm:$0xff]
        %v924 = vld [vmem:[%s919 + $0x20] sm:$0xff]
        %v925 = vld [vmem:[%s919 + $0x28] sm:$0xff]
        %s926 = scalar_lea.vmem %s3, 96
        %v927 = vld [vmem:[%s926] sm:$0xff]
        %v928 = vld [vmem:[%s926 + $0x8] sm:$0xff]
        %v929 = vld [vmem:[%s926 + $0x10] sm:$0xff]
        %v930 = vld [vmem:[%s926 + $0x18] sm:$0xff]
        %v931 = vld [vmem:[%s926 + $0x20] sm:$0xff]
        %v932 = vld [vmem:[%s926 + $0x28] sm:$0xff]
        %s933 = scalar_lea.vmem %s3, 144
        %v934 = vld [vmem:[%s933] sm:$0xff]
        %v935 = vld [vmem:[%s933 + $0x8] sm:$0xff]
        %v936 = vld [vmem:[%s933 + $0x10] sm:$0xff]
        %v937 = vld [vmem:[%s933 + $0x18] sm:$0xff]
        %v938 = vld [vmem:[%s933 + $0x20] sm:$0xff]
        %v939 = vld [vmem:[%s933 + $0x28] sm:$0xff]
        %v940 = vld [vmem:[#allocation3] sm:$0xff]
        %v941 = vld [vmem:[#allocation3 + $0x8] sm:$0xff]
        %v942 = vld [vmem:[#allocation3 + $0x10] sm:$0xff]
        %v943 = vld [vmem:[#allocation3 + $0x18] sm:$0xff]
        %v944 = vld [vmem:[#allocation3 + $0x20] sm:$0xff]
        %v945 = vld [vmem:[#allocation3 + $0x28] sm:$0xff]
        %s946 = scalar_lea.vmem [#allocation3], 48
        %v947 = vld [vmem:[%s946] sm:$0xff]
        %v948 = vld [vmem:[%s946 + $0x8] sm:$0xff]
        %v949 = vld [vmem:[%s946 + $0x10] sm:$0xff]
        %v950 = vld [vmem:[%s946 + $0x18] sm:$0xff]
        %v951 = vld [vmem:[%s946 + $0x20] sm:$0xff]
        %v952 = vld [vmem:[%s946 + $0x28] sm:$0xff]
        %s953 = scalar_lea.vmem [#allocation3], 96
        %v954 = vld [vmem:[%s953] sm:$0xff]
        %v955 = vld [vmem:[%s953 + $0x8] sm:$0xff]
        %v956 = vld [vmem:[%s953 + $0x10] sm:$0xff]
        %v957 = vld [vmem:[%s953 + $0x18] sm:$0xff]
        %v958 = vld [vmem:[%s953 + $0x20] sm:$0xff]
        %v959 = vld [vmem:[%s953 + $0x28] sm:$0xff]
        %s960 = scalar_lea.vmem [#allocation3], 144
        %v961 = vld [vmem:[%s960] sm:$0xff]
        %v962 = vld [vmem:[%s960 + $0x8] sm:$0xff]
        %v963 = vld [vmem:[%s960 + $0x10] sm:$0xff]
        %v964 = vld [vmem:[%s960 + $0x18] sm:$0xff]
        %v965 = vld [vmem:[%s960 + $0x20] sm:$0xff]
        %v966 = vld [vmem:[%s960 + $0x28] sm:$0xff]
        %vm967 = vcmask 392192
        %v969 = vsel %vm967, %v882, 0
        %v972 = vsel %vm967, %v883, 0
        %v975 = vsel %vm967, %v884, 0
        %v978 = vsel %vm967, %v885, 0
        %v981 = vsel %vm967, %v886, 0
        %v984 = vsel %vm967, %v887, 0
        %986 = vmatprep.subr.mxu0 0.0
        %987 = vmatpush1.msra.mxu0 0.0
        %988 = vmatprep.subr.mxu0 0.0
        %989 = vmatpush1.msra.mxu0 0.0
        %990 = vmatprep.subr.mxu0 0.0
        %991 = vmatpush1.msra.mxu0 0.0
        %992 = vmatprep.subr.mxu0 0.0
        %993 = vmatpush1.msra.mxu0 0.0
        %994 = vmatprep.subr.mxu0 0.0
        %995 = vmatpush1.msra.mxu0 0.0
        %996 = vmatprep.subr.mxu0 0.0
        %997 = vmatpush1.msra.mxu0 0.0
        %998 = vmatprep.subr.mxu0 0.0
        %999 = vmatpush1.msra.mxu0 0.0
        %1000 = vmatprep.subr.mxu0 0.0
        %1001 = vmatpush1.msra.mxu0 0.0
        %1002 = vmatprep.subr.mxu0 0.0
        %1003 = vmatpush1.msra.mxu0 0.0
        %1004 = vmatprep.subr.mxu0 0.0
        %1005 = vmatpush1.msra.mxu0 0.0
        %1006 = vmatprep.subr.mxu0 %v816
        %1007 = vmatpush1.msra.mxu0 %v814
        %1008 = vmatprep.subr.mxu0 %v812
        %1009 = vmatpush1.msra.mxu0 %v810
        %1010 = vmatprep.subr.mxu0 %v806
        %1011 = vmatpush1.msra.mxu0 %v804
        %1012 = vmatprep.subr.mxu0 %v802
        %1013 = vmatpush1.msra.mxu0 %v800
        %1014 = vmatprep.subr.mxu0 %v796
        %1015 = vmatpush1.msra.mxu0 %v794
        %1016 = vmatprep.subr.mxu0 %v792
        %1017 = vmatpush1.msra.mxu0 %v790
        %1018 = vmatprep.subr.mxu0 0.0
        %1019 = vmatpush2.msra.mxu0 0.0
        %1020 = vmatprep.subr.mxu0 0.0
        %1021 = vmatpush2.msra.mxu0 0.0
        %1022 = vmatprep.subr.mxu0 0.0
        %1023 = vmatpush2.msra.mxu0 0.0
        %1024 = vmatprep.subr.mxu0 0.0
        %1025 = vmatpush2.msra.mxu0 0.0
        %1026 = vmatprep.subr.mxu0 0.0
        %1027 = vmatpush2.msra.mxu0 0.0
        %1028 = vmatprep.subr.mxu0 0.0
        %1029 = vmatpush2.msra.mxu0 0.0
        %1030 = vmatprep.subr.mxu0 0.0
        %1031 = vmatpush2.msra.mxu0 0.0
        %1032 = vmatprep.subr.mxu0 0.0
        %1033 = vmatpush2.msra.mxu0 0.0
        %1034 = vmatprep.subr.mxu0 0.0
        %1035 = vmatpush2.msra.mxu0 0.0
        %1036 = vmatprep.subr.mxu0 0.0
        %1037 = vmatpush2.msra.mxu0 0.0
        %1038 = vmatprep.subr.mxu0 0.0
        %1039 = vmatpush2.msra.mxu0 0.0
        %1040 = vmatprep.subr.mxu0 0.0
        %1041 = vmatpush2.msra.mxu0 0.0
        %1042 = vmatprep.subr.mxu0 0.0
        %1043 = vmatpush2.msra.mxu0 0.0
        %1044 = vmatprep.subr.mxu0 0.0
        %1045 = vmatpush2.msra.mxu0 0.0
        %1046 = vmatprep.subr.mxu0 0.0
        %1047 = vmatpush2.msra.mxu0 0.0
        %1048 = vmatprep.subr.mxu0 0.0
        %1049 = vmatpush2.msra.mxu0 0.0
        %1050 = vmatprep.mubr.f32.mxu0 0.0
        %1051 = vmatmul.mubr.f32.gmra.mxu0 %v969
        %v1052 = vpop.f32.mrf.mxu0
        %v1053 = vadd.f32 0.0, %v1052
        %v1054 = vpop.f32.mrf.mxu0
        %v1055 = vadd.f32 0.0, %v1054
        %1056 = vmatprep.mubr.f32.mxu0 0.0
        %1057 = vmatmul.mubr.f32.gmra.mxu0 %v972
        %v1058 = vpop.f32.mrf.mxu0
        %v1059 = vadd.f32 0.0, %v1058
        %v1060 = vpop.f32.mrf.mxu0
        %v1061 = vadd.f32 0.0, %v1060
        %1062 = vmatprep.mubr.f32.mxu0 0.0
        %1063 = vmatmul.mubr.f32.gmra.mxu0 %v975
        %v1064 = vpop.f32.mrf.mxu0
        %v1065 = vadd.f32 0.0, %v1064
        %v1066 = vpop.f32.mrf.mxu0
        %v1067 = vadd.f32 0.0, %v1066
        %1068 = vmatprep.mubr.f32.mxu0 0.0
        %1069 = vmatmul.mubr.f32.gmra.mxu0 %v978
        %v1070 = vpop.f32.mrf.mxu0
        %v1071 = vadd.f32 0.0, %v1070
        %v1072 = vpop.f32.mrf.mxu0
        %v1073 = vadd.f32 0.0, %v1072
        %1074 = vmatprep.mubr.f32.mxu0 0.0
        %1075 = vmatmul.mubr.f32.gmra.mxu0 %v981
        %v1076 = vpop.f32.mrf.mxu0
        %v1077 = vadd.f32 0.0, %v1076
        %v1078 = vpop.f32.mrf.mxu0
        %v1079 = vadd.f32 0.0, %v1078
        %1080 = vmatprep.mubr.f32.mxu0 0.0
        %1081 = vmatmul.mubr.f32.gmra.mxu0 %v984
        %v1082 = vpop.f32.mrf.mxu0
        %v1083 = vadd.f32 0.0, %v1082
        %v1084 = vpop.f32.mrf.mxu0
        %v1085 = vadd.f32 0.0, %v1084
        %1086 = vdwg.mxu0
        %v1087 = vsub.f32 %v790, %v1053
        %v1088 = vsub.f32 %v792, %v1055
        %v1089 = vsub.f32 %v794, %v1059
        %v1090 = vsub.f32 %v796, %v1061
        %v1091 = vsub.f32 %v800, %v1065
        %v1092 = vsub.f32 %v802, %v1067
        %v1093 = vsub.f32 %v804, %v1071
        %v1094 = vsub.f32 %v806, %v1073
        %v1095 = vsub.f32 %v810, %v1077
        %v1096 = vsub.f32 %v812, %v1079
        %v1097 = vsub.f32 %v814, %v1083
        %v1098 = vsub.f32 %v816, %v1085
        %v1099 = vmul.f32 %v1087, %v1087
        %v1100 = vmul.f32 %v1088, %v1088
        %v1101 = vmul.f32 %v1089, %v1089
        %v1102 = vmul.f32 %v1090, %v1090
        %v1103 = vmul.f32 %v1091, %v1091
        %v1104 = vmul.f32 %v1092, %v1092
        %v1105 = vmul.f32 %v1093, %v1093
        %v1106 = vmul.f32 %v1094, %v1094
        %v1107 = vmul.f32 %v1095, %v1095
        %v1108 = vmul.f32 %v1096, %v1096
        %v1109 = vmul.f32 %v1097, %v1097
        %v1110 = vmul.f32 %v1098, %v1098
        %1111 = vmatprep.subr.mxu0 0.0
        %1112 = vmatpush1.msra.mxu0 0.0
        %1113 = vmatprep.subr.mxu0 0.0
        %1114 = vmatpush1.msra.mxu0 0.0
        %1115 = vmatprep.subr.mxu0 0.0
        %1116 = vmatpush1.msra.mxu0 0.0
        %1117 = vmatprep.subr.mxu0 0.0
        %1118 = vmatpush1.msra.mxu0 0.0
        %1119 = vmatprep.subr.mxu0 0.0
        %1120 = vmatpush1.msra.mxu0 0.0
        %1121 = vmatprep.subr.mxu0 0.0
        %1122 = vmatpush1.msra.mxu0 0.0
        %1123 = vmatprep.subr.mxu0 0.0
        %1124 = vmatpush1.msra.mxu0 0.0
        %1125 = vmatprep.subr.mxu0 0.0
        %1126 = vmatpush1.msra.mxu0 0.0
        %1127 = vmatprep.subr.mxu0 0.0
        %1128 = vmatpush1.msra.mxu0 0.0
        %1129 = vmatprep.subr.mxu0 0.0
        %1130 = vmatpush1.msra.mxu0 0.0
        %1131 = vmatprep.subr.mxu0 %v1110
        %1132 = vmatpush1.msra.mxu0 %v1109
        %1133 = vmatprep.subr.mxu0 %v1108
        %1134 = vmatpush1.msra.mxu0 %v1107
        %1135 = vmatprep.subr.mxu0 %v1106
        %1136 = vmatpush1.msra.mxu0 %v1105
        %1137 = vmatprep.subr.mxu0 %v1104
        %1138 = vmatpush1.msra.mxu0 %v1103
        %1139 = vmatprep.subr.mxu0 %v1102
        %1140 = vmatpush1.msra.mxu0 %v1101
        %1141 = vmatprep.subr.mxu0 %v1100
        %1142 = vmatpush1.msra.mxu0 %v1099
        %1143 = vmatprep.subr.mxu0 0.0
        %1144 = vmatpush2.msra.mxu0 0.0
        %1145 = vmatprep.subr.mxu0 0.0
        %1146 = vmatpush2.msra.mxu0 0.0
        %1147 = vmatprep.subr.mxu0 0.0
        %1148 = vmatpush2.msra.mxu0 0.0
        %1149 = vmatprep.subr.mxu0 0.0
        %1150 = vmatpush2.msra.mxu0 0.0
        %1151 = vmatprep.subr.mxu0 0.0
        %1152 = vmatpush2.msra.mxu0 0.0
        %1153 = vmatprep.subr.mxu0 0.0
        %1154 = vmatpush2.msra.mxu0 0.0
        %1155 = vmatprep.subr.mxu0 0.0
        %1156 = vmatpush2.msra.mxu0 0.0
        %1157 = vmatprep.subr.mxu0 0.0
        %1158 = vmatpush2.msra.mxu0 0.0
        %1159 = vmatprep.subr.mxu0 0.0
        %1160 = vmatpush2.msra.mxu0 0.0
        %1161 = vmatprep.subr.mxu0 0.0
        %1162 = vmatpush2.msra.mxu0 0.0
        %1163 = vmatprep.subr.mxu0 0.0
        %1164 = vmatpush2.msra.mxu0 0.0
        %1165 = vmatprep.subr.mxu0 0.0
        %1166 = vmatpush2.msra.mxu0 0.0
        %1167 = vmatprep.subr.mxu0 0.0
        %1168 = vmatpush2.msra.mxu0 0.0
        %1169 = vmatprep.subr.mxu0 0.0
        %1170 = vmatpush2.msra.mxu0 0.0
        %1171 = vmatprep.subr.mxu0 0.0
        %1172 = vmatpush2.msra.mxu0 0.0
        %1173 = vmatprep.subr.mxu0 0.0
        %1174 = vmatpush2.msra.mxu0 0.0
        %1175 = vmatprep.mubr.f32.mxu0 0.0
        %1176 = vmatmul.mubr.f32.gmra.mxu0 %v969
        %v1177 = vpop.f32.mrf.mxu0
        %v1178 = vadd.f32 1e-05, %v1177
        %v1179 = vpop.f32.mrf.mxu0
        %v1180 = vadd.f32 1e-05, %v1179
        %1181 = vmatprep.mubr.f32.mxu0 0.0
        %1182 = vmatmul.mubr.f32.gmra.mxu0 %v972
        %v1183 = vpop.f32.mrf.mxu0
        %v1184 = vadd.f32 1e-05, %v1183
        %v1185 = vpop.f32.mrf.mxu0
        %v1186 = vadd.f32 1e-05, %v1185
        %1187 = vmatprep.mubr.f32.mxu0 0.0
        %1188 = vmatmul.mubr.f32.gmra.mxu0 %v975
        %v1189 = vpop.f32.mrf.mxu0
        %v1190 = vadd.f32 1e-05, %v1189
        %v1191 = vpop.f32.mrf.mxu0
        %v1192 = vadd.f32 1e-05, %v1191
        %1193 = vmatprep.mubr.f32.mxu0 0.0
        %1194 = vmatmul.mubr.f32.gmra.mxu0 %v978
        %v1195 = vpop.f32.mrf.mxu0
        %v1196 = vadd.f32 1e-05, %v1195
        %v1197 = vpop.f32.mrf.mxu0
        %v1198 = vadd.f32 1e-05, %v1197
        %1199 = vmatprep.mubr.f32.mxu0 0.0
        %1200 = vmatmul.mubr.f32.gmra.mxu0 %v981
        %v1201 = vpop.f32.mrf.mxu0
        %v1202 = vadd.f32 1e-05, %v1201
        %v1203 = vpop.f32.mrf.mxu0
        %v1204 = vadd.f32 1e-05, %v1203
        %1205 = vmatprep.mubr.f32.mxu0 0.0
        %1206 = vmatmul.mubr.f32.gmra.mxu0 %v984
        %v1207 = vpop.f32.mrf.mxu0
        %v1208 = vadd.f32 1e-05, %v1207
        %v1209 = vpop.f32.mrf.mxu0
        %v1210 = vadd.f32 1e-05, %v1209
        %1211 = vdwg.mxu0
        %v1212 = vrsqrt.pop %v1178
        %v1213 = vrsqrt.pop %v1180
        %v1214 = vrsqrt.pop %v1184
        %v1215 = vrsqrt.pop %v1186
        %v1216 = vrsqrt.pop %v1190
        %v1217 = vrsqrt.pop %v1192
        %v1218 = vrsqrt.pop %v1196
        %v1219 = vrsqrt.pop %v1198
        %v1220 = vrsqrt.pop %v1202
        %v1221 = vrsqrt.pop %v1204
        %v1222 = vrsqrt.pop %v1208
        %v1223 = vrsqrt.pop %v1210
        %v1224 = vmul.f32 %v1087, %v1212
        %v1225 = vmul.f32 %v1088, %v1213
        %v1226 = vmul.f32 %v1089, %v1214
        %v1227 = vmul.f32 %v1090, %v1215
        %v1228 = vmul.f32 %v1091, %v1216
        %v1229 = vmul.f32 %v1092, %v1217
        %v1230 = vmul.f32 %v1093, %v1218
        %v1231 = vmul.f32 %v1094, %v1219
        %v1232 = vmul.f32 %v1095, %v1220
        %v1233 = vmul.f32 %v1096, %v1221
        %v1234 = vmul.f32 %v1097, %v1222
        %v1235 = vmul.f32 %v1098, %v1223
        %1237 = vset.pattern.permute.xlu0 0
        %1238 = vperm.xlu0 %1237, %v889
        %v1239 = vpop.permute.xlu0 %1238
        %1242 = vset.pattern.permute.xlu0 0
        %1243 = vperm.xlu0 %1242, %v890
        %v1244 = vpop.permute.xlu0 %1243
        %1247 = vset.pattern.permute.xlu0 0
        %1248 = vperm.xlu0 %1247, %v891
        %v1249 = vpop.permute.xlu0 %1248
        %1252 = vset.pattern.permute.xlu0 0
        %1253 = vperm.xlu0 %1252, %v892
        %v1254 = vpop.permute.xlu0 %1253
        %1257 = vset.pattern.permute.xlu0 0
        %1258 = vperm.xlu0 %1257, %v893
        %v1259 = vpop.permute.xlu0 %1258
        %1262 = vset.pattern.permute.xlu0 0
        %1263 = vperm.xlu0 %1262, %v894
        %v1264 = vpop.permute.xlu0 %1263
        %v1266 = vmul.f32 %v1224, %v1239
        %v1267 = vmul.f32 %v1225, %v1239
        %v1268 = vmul.f32 %v1226, %v1244
        %v1269 = vmul.f32 %v1227, %v1244
        %v1270 = vmul.f32 %v1228, %v1249
        %v1271 = vmul.f32 %v1229, %v1249
        %v1272 = vmul.f32 %v1230, %v1254
        %v1273 = vmul.f32 %v1231, %v1254
        %v1274 = vmul.f32 %v1232, %v1259
        %v1275 = vmul.f32 %v1233, %v1259
        %v1276 = vmul.f32 %v1234, %v1264
        %v1277 = vmul.f32 %v1235, %v1264
        %1278 = vset.pattern.permute.xlu0 1
        %1279 = vperm.xlu0 %1278, %v889
        %v1280 = vpop.permute.xlu0 %1279
        %1282 = vset.pattern.permute.xlu0 1
        %1283 = vperm.xlu0 %1282, %v890
        %v1284 = vpop.permute.xlu0 %1283
        %1286 = vset.pattern.permute.xlu0 1
        %1287 = vperm.xlu0 %1286, %v891
        %v1288 = vpop.permute.xlu0 %1287
        %1290 = vset.pattern.permute.xlu0 1
        %1291 = vperm.xlu0 %1290, %v892
        %v1292 = vpop.permute.xlu0 %1291
        %1294 = vset.pattern.permute.xlu0 1
        %1295 = vperm.xlu0 %1294, %v893
        %v1296 = vpop.permute.xlu0 %1295
        %1298 = vset.pattern.permute.xlu0 1
        %1299 = vperm.xlu0 %1298, %v894
        %v1300 = vpop.permute.xlu0 %1299
        %v1302 = vadd.f32 %v1266, %v1280
        %v1303 = vadd.f32 %v1267, %v1280
        %v1304 = vadd.f32 %v1268, %v1284
        %v1305 = vadd.f32 %v1269, %v1284
        %v1306 = vadd.f32 %v1270, %v1288
        %v1307 = vadd.f32 %v1271, %v1288
        %v1308 = vadd.f32 %v1272, %v1292
        %v1309 = vadd.f32 %v1273, %v1292
        %v1310 = vadd.f32 %v1274, %v1296
        %v1311 = vadd.f32 %v1275, %v1296
        %v1312 = vadd.f32 %v1276, %v1300
        %v1313 = vadd.f32 %v1277, %v1300
        %1314 = vset.pattern.permute.xlu0 2
        %1315 = vperm.xlu0 %1314, %v889
        %v1316 = vpop.permute.xlu0 %1315
        %1318 = vset.pattern.permute.xlu0 2
        %1319 = vperm.xlu0 %1318, %v890
        %v1320 = vpop.permute.xlu0 %1319
        %1322 = vset.pattern.permute.xlu0 2
        %1323 = vperm.xlu0 %1322, %v891
        %v1324 = vpop.permute.xlu0 %1323
        %1326 = vset.pattern.permute.xlu0 2
        %1327 = vperm.xlu0 %1326, %v892
        %v1328 = vpop.permute.xlu0 %1327
        %1330 = vset.pattern.permute.xlu0 2
        %1331 = vperm.xlu0 %1330, %v893
        %v1332 = vpop.permute.xlu0 %1331
        %1334 = vset.pattern.permute.xlu0 2
        %1335 = vperm.xlu0 %1334, %v894
        %v1336 = vpop.permute.xlu0 %1335
        %v1339 = vsel %vm967, %v913, 0
        %v1342 = vsel %vm967, %v914, 0
        %v1345 = vsel %vm967, %v915, 0
        %v1348 = vsel %vm967, %v916, 0
        %v1351 = vsel %vm967, %v917, 0
        %v1354 = vsel %vm967, %v918, 0
        %1356 = vmatprep.subr.mxu0 0.0
        %1357 = vmatpush1.msra.mxu0 0.0
        %1358 = vmatprep.subr.mxu0 0.0
        %1359 = vmatpush1.msra.mxu0 0.0
        %1360 = vmatprep.subr.mxu0 0.0
        %1361 = vmatpush1.msra.mxu0 0.0
        %1362 = vmatprep.subr.mxu0 0.0
        %1363 = vmatpush1.msra.mxu0 0.0
        %1364 = vmatprep.subr.mxu0 0.0
        %1365 = vmatpush1.msra.mxu0 0.0
        %1366 = vmatprep.subr.mxu0 0.0
        %1367 = vmatpush1.msra.mxu0 0.0
        %1368 = vmatprep.subr.mxu0 0.0
        %1369 = vmatpush1.msra.mxu0 0.0
        %1370 = vmatprep.subr.mxu0 0.0
        %1371 = vmatpush1.msra.mxu0 0.0
        %1372 = vmatprep.subr.mxu0 0.0
        %1373 = vmatpush1.msra.mxu0 0.0
        %1374 = vmatprep.subr.mxu0 0.0
        %1375 = vmatpush1.msra.mxu0 0.0
        %1376 = vmatprep.subr.mxu0 %v1313
        %1377 = vmatpush1.msra.mxu0 %v1312
        %1378 = vmatprep.subr.mxu0 %v1311
        %1379 = vmatpush1.msra.mxu0 %v1310
        %1380 = vmatprep.subr.mxu0 %v1309
        %1381 = vmatpush1.msra.mxu0 %v1308
        %1382 = vmatprep.subr.mxu0 %v1307
        %1383 = vmatpush1.msra.mxu0 %v1306
        %1384 = vmatprep.subr.mxu0 %v1305
        %1385 = vmatpush1.msra.mxu0 %v1304
        %1386 = vmatprep.subr.mxu0 %v1303
        %1387 = vmatpush1.msra.mxu0 %v1302
        %1388 = vmatprep.subr.mxu0 0.0
        %1389 = vmatpush2.msra.mxu0 0.0
        %1390 = vmatprep.subr.mxu0 0.0
        %1391 = vmatpush2.msra.mxu0 0.0
        %1392 = vmatprep.subr.mxu0 0.0
        %1393 = vmatpush2.msra.mxu0 0.0
        %1394 = vmatprep.subr.mxu0 0.0
        %1395 = vmatpush2.msra.mxu0 0.0
        %1396 = vmatprep.subr.mxu0 0.0
        %1397 = vmatpush2.msra.mxu0 0.0
        %1398 = vmatprep.subr.mxu0 0.0
        %1399 = vmatpush2.msra.mxu0 0.0
        %1400 = vmatprep.subr.mxu0 0.0
        %1401 = vmatpush2.msra.mxu0 0.0
        %1402 = vmatprep.subr.mxu0 0.0
        %1403 = vmatpush2.msra.mxu0 0.0
        %1404 = vmatprep.subr.mxu0 0.0
        %1405 = vmatpush2.msra.mxu0 0.0
        %1406 = vmatprep.subr.mxu0 0.0
        %1407 = vmatpush2.msra.mxu0 0.0
        %1408 = vmatprep.subr.mxu0 0.0
        %1409 = vmatpush2.msra.mxu0 0.0
        %1410 = vmatprep.subr.mxu0 0.0
        %1411 = vmatpush2.msra.mxu0 0.0
        %1412 = vmatprep.subr.mxu0 0.0
        %1413 = vmatpush2.msra.mxu0 0.0
        %1414 = vmatprep.subr.mxu0 0.0
        %1415 = vmatpush2.msra.mxu0 0.0
        %1416 = vmatprep.subr.mxu0 0.0
        %1417 = vmatpush2.msra.mxu0 0.0
        %1418 = vmatprep.subr.mxu0 0.0
        %1419 = vmatpush2.msra.mxu0 0.0
        %1420 = vmatprep.mubr.f32.mxu0 0.0
        %1421 = vmatmul.mubr.f32.gmra.mxu0 %v1339
        %v1422 = vpop.f32.mrf.mxu0
        %v1423 = vadd.f32 %v1316, %v1422
        %v1424 = vpop.f32.mrf.mxu0
        %v1425 = vadd.f32 %v1316, %v1424
        %1426 = vmatprep.mubr.f32.mxu0 0.0
        %1427 = vmatmul.mubr.f32.gmra.mxu0 %v1342
        %v1428 = vpop.f32.mrf.mxu0
        %v1429 = vadd.f32 %v1320, %v1428
        %v1430 = vpop.f32.mrf.mxu0
        %v1431 = vadd.f32 %v1320, %v1430
        %1432 = vmatprep.mubr.f32.mxu0 0.0
        %1433 = vmatmul.mubr.f32.gmra.mxu0 %v1345
        %v1434 = vpop.f32.mrf.mxu0
        %v1435 = vadd.f32 %v1324, %v1434
        %v1436 = vpop.f32.mrf.mxu0
        %v1437 = vadd.f32 %v1324, %v1436
        %1438 = vmatprep.mubr.f32.mxu0 0.0
        %1439 = vmatmul.mubr.f32.gmra.mxu0 %v1348
        %v1440 = vpop.f32.mrf.mxu0
        %v1441 = vadd.f32 %v1328, %v1440
        %v1442 = vpop.f32.mrf.mxu0
        %v1443 = vadd.f32 %v1328, %v1442
        %1444 = vmatprep.mubr.f32.mxu0 0.0
        %1445 = vmatmul.mubr.f32.gmra.mxu0 %v1351
        %v1446 = vpop.f32.mrf.mxu0
        %v1447 = vadd.f32 %v1332, %v1446
        %v1448 = vpop.f32.mrf.mxu0
        %v1449 = vadd.f32 %v1332, %v1448
        %1450 = vmatprep.mubr.f32.mxu0 0.0
        %1451 = vmatmul.mubr.f32.gmra.mxu0 %v1354
        %v1452 = vpop.f32.mrf.mxu0
        %v1453 = vadd.f32 %v1336, %v1452
        %v1454 = vpop.f32.mrf.mxu0
        %v1455 = vadd.f32 %v1336, %v1454
        %1456 = vdwg.mxu0
        %v1457 = vmax.f32 %v1423, 0.0
        %v1458 = vmax.f32 %v1425, 0.0
        %v1459 = vmax.f32 %v1429, 0.0
        %v1460 = vmax.f32 %v1431, 0.0
        %v1461 = vmax.f32 %v1435, 0.0
        %v1462 = vmax.f32 %v1437, 0.0
        %v1463 = vmax.f32 %v1441, 0.0
        %v1464 = vmax.f32 %v1443, 0.0
        %v1465 = vmax.f32 %v1447, 0.0
        %v1466 = vmax.f32 %v1449, 0.0
        %v1467 = vmax.f32 %v1453, 0.0
        %v1468 = vmax.f32 %v1455, 0.0
        %v1470 = vsel %vm967, %v940, 0
        %v1473 = vsel %vm967, %v941, 0
        %v1476 = vsel %vm967, %v942, 0
        %v1479 = vsel %vm967, %v943, 0
        %v1482 = vsel %vm967, %v944, 0
        %v1485 = vsel %vm967, %v945, 0
        %1487 = vmatprep.subr.mxu0 0.0
        %1488 = vmatpush1.msra.mxu0 0.0
        %1489 = vmatprep.subr.mxu0 0.0
        %1490 = vmatpush1.msra.mxu0 0.0
        %1491 = vmatprep.subr.mxu0 0.0
        %1492 = vmatpush1.msra.mxu0 0.0
        %1493 = vmatprep.subr.mxu0 0.0
        %1494 = vmatpush1.msra.mxu0 0.0
        %1495 = vmatprep.subr.mxu0 0.0
        %1496 = vmatpush1.msra.mxu0 0.0
        %1497 = vmatprep.subr.mxu0 0.0
        %1498 = vmatpush1.msra.mxu0 0.0
        %1499 = vmatprep.subr.mxu0 0.0
        %1500 = vmatpush1.msra.mxu0 0.0
        %1501 = vmatprep.subr.mxu0 0.0
        %1502 = vmatpush1.msra.mxu0 0.0
        %1503 = vmatprep.subr.mxu0 0.0
        %1504 = vmatpush1.msra.mxu0 0.0
        %1505 = vmatprep.subr.mxu0 0.0
        %1506 = vmatpush1.msra.mxu0 0.0
        %1507 = vmatprep.subr.mxu0 %v1468
        %1508 = vmatpush1.msra.mxu0 %v1467
        %1509 = vmatprep.subr.mxu0 %v1466
        %1510 = vmatpush1.msra.mxu0 %v1465
        %1511 = vmatprep.subr.mxu0 %v1464
        %1512 = vmatpush1.msra.mxu0 %v1463
        %1513 = vmatprep.subr.mxu0 %v1462
        %1514 = vmatpush1.msra.mxu0 %v1461
        %1515 = vmatprep.subr.mxu0 %v1460
        %1516 = vmatpush1.msra.mxu0 %v1459
        %1517 = vmatprep.subr.mxu0 %v1458
        %1518 = vmatpush1.msra.mxu0 %v1457
        %1519 = vmatprep.subr.mxu0 0.0
        %1520 = vmatpush2.msra.mxu0 0.0
        %1521 = vmatprep.subr.mxu0 0.0
        %1522 = vmatpush2.msra.mxu0 0.0
        %1523 = vmatprep.subr.mxu0 0.0
        %1524 = vmatpush2.msra.mxu0 0.0
        %1525 = vmatprep.subr.mxu0 0.0
        %1526 = vmatpush2.msra.mxu0 0.0
        %1527 = vmatprep.subr.mxu0 0.0
        %1528 = vmatpush2.msra.mxu0 0.0
        %1529 = vmatprep.subr.mxu0 0.0
        %1530 = vmatpush2.msra.mxu0 0.0
        %1531 = vmatprep.subr.mxu0 0.0
        %1532 = vmatpush2.msra.mxu0 0.0
        %1533 = vmatprep.subr.mxu0 0.0
        %1534 = vmatpush2.msra.mxu0 0.0
        %1535 = vmatprep.subr.mxu0 0.0
        %1536 = vmatpush2.msra.mxu0 0.0
        %1537 = vmatprep.subr.mxu0 0.0
        %1538 = vmatpush2.msra.mxu0 0.0
        %1539 = vmatprep.subr.mxu0 0.0
        %1540 = vmatpush2.msra.mxu0 0.0
        %1541 = vmatprep.subr.mxu0 0.0
        %1542 = vmatpush2.msra.mxu0 0.0
        %1543 = vmatprep.subr.mxu0 0.0
        %1544 = vmatpush2.msra.mxu0 0.0
        %1545 = vmatprep.subr.mxu0 0.0
        %1546 = vmatpush2.msra.mxu0 0.0
        %1547 = vmatprep.subr.mxu0 0.0
        %1548 = vmatpush2.msra.mxu0 0.0
        %1549 = vmatprep.subr.mxu0 0.0
        %1550 = vmatpush2.msra.mxu0 0.0
        %1551 = vmatprep.mubr.f32.mxu0 0.0
        %1552 = vmatmul.mubr.f32.gmra.mxu0 %v1470
        %v1553 = vpop.f32.mrf.mxu0
        %v1554 = vadd.f32 0.0, %v1553
        %v1555 = vpop.f32.mrf.mxu0
        %v1556 = vadd.f32 0.0, %v1555
        %1557 = vmatprep.mubr.f32.mxu0 0.0
        %1558 = vmatmul.mubr.f32.gmra.mxu0 %v1473
        %v1559 = vpop.f32.mrf.mxu0
        %v1560 = vadd.f32 0.0, %v1559
        %v1561 = vpop.f32.mrf.mxu0
        %v1562 = vadd.f32 0.0, %v1561
        %1563 = vmatprep.mubr.f32.mxu0 0.0
        %1564 = vmatmul.mubr.f32.gmra.mxu0 %v1476
        %v1565 = vpop.f32.mrf.mxu0
        %v1566 = vadd.f32 0.0, %v1565
        %v1567 = vpop.f32.mrf.mxu0
        %v1568 = vadd.f32 0.0, %v1567
        %1569 = vmatprep.mubr.f32.mxu0 0.0
        %1570 = vmatmul.mubr.f32.gmra.mxu0 %v1479
        %v1571 = vpop.f32.mrf.mxu0
        %v1572 = vadd.f32 0.0, %v1571
        %v1573 = vpop.f32.mrf.mxu0
        %v1574 = vadd.f32 0.0, %v1573
        %1575 = vmatprep.mubr.f32.mxu0 0.0
        %1576 = vmatmul.mubr.f32.gmra.mxu0 %v1482
        %v1577 = vpop.f32.mrf.mxu0
        %v1578 = vadd.f32 0.0, %v1577
        %v1579 = vpop.f32.mrf.mxu0
        %v1580 = vadd.f32 0.0, %v1579
        %1581 = vmatprep.mubr.f32.mxu0 0.0
        %1582 = vmatmul.mubr.f32.gmra.mxu0 %v1485
        %v1583 = vpop.f32.mrf.mxu0
        %v1584 = vadd.f32 0.0, %v1583
        %v1585 = vpop.f32.mrf.mxu0
        %v1586 = vadd.f32 0.0, %v1585
        %1587 = vdwg.mxu0
        %v1588 = vadd.f32 %v790, %v1554
        %v1589 = vadd.f32 %v792, %v1556
        %v1590 = vadd.f32 %v794, %v1560
        %v1591 = vadd.f32 %v796, %v1562
        %v1592 = vadd.f32 %v800, %v1566
        %v1593 = vadd.f32 %v802, %v1568
        %v1594 = vadd.f32 %v804, %v1572
        %v1595 = vadd.f32 %v806, %v1574
        %v1596 = vadd.f32 %v810, %v1578
        %v1597 = vadd.f32 %v812, %v1580
        %v1598 = vadd.f32 %v814, %v1584
        %v1599 = vadd.f32 %v816, %v1586
        %1600 = vset.pattern.permute.xlu0 3
        %1601 = vperm.xlu0 %1600, %v889
        %v1602 = vpop.permute.xlu0 %1601
        %1604 = vset.pattern.permute.xlu0 3
        %1605 = vperm.xlu0 %1604, %v890
        %v1606 = vpop.permute.xlu0 %1605
        %1608 = vset.pattern.permute.xlu0 3
        %1609 = vperm.xlu0 %1608, %v891
        %v1610 = vpop.permute.xlu0 %1609
        %1612 = vset.pattern.permute.xlu0 3
        %1613 = vperm.xlu0 %1612, %v892
        %v1614 = vpop.permute.xlu0 %1613
        %1616 = vset.pattern.permute.xlu0 3
        %1617 = vperm.xlu0 %1616, %v893
        %v1618 = vpop.permute.xlu0 %1617
        %1620 = vset.pattern.permute.xlu0 3
        %1621 = vperm.xlu0 %1620, %v894
        %v1622 = vpop.permute.xlu0 %1621
        %v1624 = vadd.f32 %v1588, %v1602
        %v1625 = vadd.f32 %v1589, %v1602
        %v1626 = vadd.f32 %v1590, %v1606
        %v1627 = vadd.f32 %v1591, %v1606
        %v1628 = vadd.f32 %v1592, %v1610
        %v1629 = vadd.f32 %v1593, %v1610
        %v1630 = vadd.f32 %v1594, %v1614
        %v1631 = vadd.f32 %v1595, %v1614
        %v1632 = vadd.f32 %v1596, %v1618
        %v1633 = vadd.f32 %v1597, %v1618
        %v1634 = vadd.f32 %v1598, %v1622
        %v1635 = vadd.f32 %v1599, %v1622
        %1636 = vmatprep.subr.mxu0 0.0
        %1637 = vmatpush1.msra.mxu0 0.0
        %1638 = vmatprep.subr.mxu0 0.0
        %1639 = vmatpush1.msra.mxu0 0.0
        %1640 = vmatprep.subr.mxu0 0.0
        %1641 = vmatpush1.msra.mxu0 0.0
        %1642 = vmatprep.subr.mxu0 0.0
        %1643 = vmatpush1.msra.mxu0 0.0
        %1644 = vmatprep.subr.mxu0 0.0
        %1645 = vmatpush1.msra.mxu0 0.0
        %1646 = vmatprep.subr.mxu0 0.0
        %1647 = vmatpush1.msra.mxu0 0.0
        %1648 = vmatprep.subr.mxu0 0.0
        %1649 = vmatpush1.msra.mxu0 0.0
        %1650 = vmatprep.subr.mxu0 0.0
        %1651 = vmatpush1.msra.mxu0 0.0
        %1652 = vmatprep.subr.mxu0 0.0
        %1653 = vmatpush1.msra.mxu0 0.0
        %1654 = vmatprep.subr.mxu0 0.0
        %1655 = vmatpush1.msra.mxu0 0.0
        %1656 = vmatprep.subr.mxu0 %v1635
        %1657 = vmatpush1.msra.mxu0 %v1634
        %1658 = vmatprep.subr.mxu0 %v1633
        %1659 = vmatpush1.msra.mxu0 %v1632
        %1660 = vmatprep.subr.mxu0 %v1631
        %1661 = vmatpush1.msra.mxu0 %v1630
        %1662 = vmatprep.subr.mxu0 %v1629
        %1663 = vmatpush1.msra.mxu0 %v1628
        %1664 = vmatprep.subr.mxu0 %v1627
        %1665 = vmatpush1.msra.mxu0 %v1626
        %1666 = vmatprep.subr.mxu0 %v1625
        %1667 = vmatpush1.msra.mxu0 %v1624
        %1668 = vmatprep.subr.mxu0 0.0
        %1669 = vmatpush2.msra.mxu0 0.0
        %1670 = vmatprep.subr.mxu0 0.0
        %1671 = vmatpush2.msra.mxu0 0.0
        %1672 = vmatprep.subr.mxu0 0.0
        %1673 = vmatpush2.msra.mxu0 0.0
        %1674 = vmatprep.subr.mxu0 0.0
        %1675 = vmatpush2.msra.mxu0 0.0
        %1676 = vmatprep.subr.mxu0 0.0
        %1677 = vmatpush2.msra.mxu0 0.0
        %1678 = vmatprep.subr.mxu0 0.0
        %1679 = vmatpush2.msra.mxu0 0.0
        %1680 = vmatprep.subr.mxu0 0.0
        %1681 = vmatpush2.msra.mxu0 0.0
        %1682 = vmatprep.subr.mxu0 0.0
        %1683 = vmatpush2.msra.mxu0 0.0
        %1684 = vmatprep.subr.mxu0 0.0
        %1685 = vmatpush2.msra.mxu0 0.0
        %1686 = vmatprep.subr.mxu0 0.0
        %1687 = vmatpush2.msra.mxu0 0.0
        %1688 = vmatprep.subr.mxu0 0.0
        %1689 = vmatpush2.msra.mxu0 0.0
        %1690 = vmatprep.subr.mxu0 0.0
        %1691 = vmatpush2.msra.mxu0 0.0
        %1692 = vmatprep.subr.mxu0 0.0
        %1693 = vmatpush2.msra.mxu0 0.0
        %1694 = vmatprep.subr.mxu0 0.0
        %1695 = vmatpush2.msra.mxu0 0.0
        %1696 = vmatprep.subr.mxu0 0.0
        %1697 = vmatpush2.msra.mxu0 0.0
        %1698 = vmatprep.subr.mxu0 0.0
        %1699 = vmatpush2.msra.mxu0 0.0
        %1700 = vmatprep.mubr.f32.mxu0 0.0
        %1701 = vmatmul.mubr.f32.gmra.mxu0 %v969
        %v1702 = vpop.f32.mrf.mxu0
        %v1703 = vadd.f32 0.0, %v1702
        %v1704 = vpop.f32.mrf.mxu0
        %v1705 = vadd.f32 0.0, %v1704
        %1706 = vmatprep.mubr.f32.mxu0 0.0
        %1707 = vmatmul.mubr.f32.gmra.mxu0 %v972
        %v1708 = vpop.f32.mrf.mxu0
        %v1709 = vadd.f32 0.0, %v1708
        %v1710 = vpop.f32.mrf.mxu0
        %v1711 = vadd.f32 0.0, %v1710
        %1712 = vmatprep.mubr.f32.mxu0 0.0
        %1713 = vmatmul.mubr.f32.gmra.mxu0 %v975
        %v1714 = vpop.f32.mrf.mxu0
        %v1715 = vadd.f32 0.0, %v1714
        %v1716 = vpop.f32.mrf.mxu0
        %v1717 = vadd.f32 0.0, %v1716
        %1718 = vmatprep.mubr.f32.mxu0 0.0
        %1719 = vmatmul.mubr.f32.gmra.mxu0 %v978
        %v1720 = vpop.f32.mrf.mxu0
        %v1721 = vadd.f32 0.0, %v1720
        %v1722 = vpop.f32.mrf.mxu0
        %v1723 = vadd.f32 0.0, %v1722
        %1724 = vmatprep.mubr.f32.mxu0 0.0
        %1725 = vmatmul.mubr.f32.gmra.mxu0 %v981
        %v1726 = vpop.f32.mrf.mxu0
        %v1727 = vadd.f32 0.0, %v1726
        %v1728 = vpop.f32.mrf.mxu0
        %v1729 = vadd.f32 0.0, %v1728
        %1730 = vmatprep.mubr.f32.mxu0 0.0
        %1731 = vmatmul.mubr.f32.gmra.mxu0 %v984
        %v1732 = vpop.f32.mrf.mxu0
        %v1733 = vadd.f32 0.0, %v1732
        %v1734 = vpop.f32.mrf.mxu0
        %v1735 = vadd.f32 0.0, %v1734
        %1736 = vdwg.mxu0
        %v1737 = vsub.f32 %v1624, %v1703
        %v1738 = vsub.f32 %v1625, %v1705
        %v1739 = vsub.f32 %v1626, %v1709
        %v1740 = vsub.f32 %v1627, %v1711
        %v1741 = vsub.f32 %v1628, %v1715
        %v1742 = vsub.f32 %v1629, %v1717
        %v1743 = vsub.f32 %v1630, %v1721
        %v1744 = vsub.f32 %v1631, %v1723
        %v1745 = vsub.f32 %v1632, %v1727
        %v1746 = vsub.f32 %v1633, %v1729
        %v1747 = vsub.f32 %v1634, %v1733
        %v1748 = vsub.f32 %v1635, %v1735
        %v1749 = vmul.f32 %v1737, %v1737
        %v1750 = vmul.f32 %v1738, %v1738
        %v1751 = vmul.f32 %v1739, %v1739
        %v1752 = vmul.f32 %v1740, %v1740
        %v1753 = vmul.f32 %v1741, %v1741
        %v1754 = vmul.f32 %v1742, %v1742
        %v1755 = vmul.f32 %v1743, %v1743
        %v1756 = vmul.f32 %v1744, %v1744
        %v1757 = vmul.f32 %v1745, %v1745
        %v1758 = vmul.f32 %v1746, %v1746
        %v1759 = vmul.f32 %v1747, %v1747
        %v1760 = vmul.f32 %v1748, %v1748
        %1761 = vmatprep.subr.mxu0 0.0
        %1762 = vmatpush1.msra.mxu0 0.0
        %1763 = vmatprep.subr.mxu0 0.0
        %1764 = vmatpush1.msra.mxu0 0.0
        %1765 = vmatprep.subr.mxu0 0.0
        %1766 = vmatpush1.msra.mxu0 0.0
        %1767 = vmatprep.subr.mxu0 0.0
        %1768 = vmatpush1.msra.mxu0 0.0
        %1769 = vmatprep.subr.mxu0 0.0
        %1770 = vmatpush1.msra.mxu0 0.0
        %1771 = vmatprep.subr.mxu0 0.0
        %1772 = vmatpush1.msra.mxu0 0.0
        %1773 = vmatprep.subr.mxu0 0.0
        %1774 = vmatpush1.msra.mxu0 0.0
        %1775 = vmatprep.subr.mxu0 0.0
        %1776 = vmatpush1.msra.mxu0 0.0
        %1777 = vmatprep.subr.mxu0 0.0
        %1778 = vmatpush1.msra.mxu0 0.0
        %1779 = vmatprep.subr.mxu0 0.0
        %1780 = vmatpush1.msra.mxu0 0.0
        %1781 = vmatprep.subr.mxu0 %v1760
        %1782 = vmatpush1.msra.mxu0 %v1759
        %1783 = vmatprep.subr.mxu0 %v1758
        %1784 = vmatpush1.msra.mxu0 %v1757
        %1785 = vmatprep.subr.mxu0 %v1756
        %1786 = vmatpush1.msra.mxu0 %v1755
        %1787 = vmatprep.subr.mxu0 %v1754
        %1788 = vmatpush1.msra.mxu0 %v1753
        %1789 = vmatprep.subr.mxu0 %v1752
        %1790 = vmatpush1.msra.mxu0 %v1751
        %1791 = vmatprep.subr.mxu0 %v1750
        %1792 = vmatpush1.msra.mxu0 %v1749
        %1793 = vmatprep.subr.mxu0 0.0
        %1794 = vmatpush2.msra.mxu0 0.0
        %1795 = vmatprep.subr.mxu0 0.0
        %1796 = vmatpush2.msra.mxu0 0.0
        %1797 = vmatprep.subr.mxu0 0.0
        %1798 = vmatpush2.msra.mxu0 0.0
        %1799 = vmatprep.subr.mxu0 0.0
        %1800 = vmatpush2.msra.mxu0 0.0
        %1801 = vmatprep.subr.mxu0 0.0
        %1802 = vmatpush2.msra.mxu0 0.0
        %1803 = vmatprep.subr.mxu0 0.0
        %1804 = vmatpush2.msra.mxu0 0.0
        %1805 = vmatprep.subr.mxu0 0.0
        %1806 = vmatpush2.msra.mxu0 0.0
        %1807 = vmatprep.subr.mxu0 0.0
        %1808 = vmatpush2.msra.mxu0 0.0
        %1809 = vmatprep.subr.mxu0 0.0
        %1810 = vmatpush2.msra.mxu0 0.0
        %1811 = vmatprep.subr.mxu0 0.0
        %1812 = vmatpush2.msra.mxu0 0.0
        %1813 = vmatprep.subr.mxu0 0.0
        %1814 = vmatpush2.msra.mxu0 0.0
        %1815 = vmatprep.subr.mxu0 0.0
        %1816 = vmatpush2.msra.mxu0 0.0
        %1817 = vmatprep.subr.mxu0 0.0
        %1818 = vmatpush2.msra.mxu0 0.0
        %1819 = vmatprep.subr.mxu0 0.0
        %1820 = vmatpush2.msra.mxu0 0.0
        %1821 = vmatprep.subr.mxu0 0.0
        %1822 = vmatpush2.msra.mxu0 0.0
        %1823 = vmatprep.subr.mxu0 0.0
        %1824 = vmatpush2.msra.mxu0 0.0
        %1825 = vmatprep.mubr.f32.mxu0 0.0
        %1826 = vmatmul.mubr.f32.gmra.mxu0 %v969
        %v1827 = vpop.f32.mrf.mxu0
        %v1828 = vadd.f32 1e-05, %v1827
        %v1829 = vpop.f32.mrf.mxu0
        %v1830 = vadd.f32 1e-05, %v1829
        %1831 = vmatprep.mubr.f32.mxu0 0.0
        %1832 = vmatmul.mubr.f32.gmra.mxu0 %v972
        %v1833 = vpop.f32.mrf.mxu0
        %v1834 = vadd.f32 1e-05, %v1833
        %v1835 = vpop.f32.mrf.mxu0
        %v1836 = vadd.f32 1e-05, %v1835
        %1837 = vmatprep.mubr.f32.mxu0 0.0
        %1838 = vmatmul.mubr.f32.gmra.mxu0 %v975
        %v1839 = vpop.f32.mrf.mxu0
        %v1840 = vadd.f32 1e-05, %v1839
        %v1841 = vpop.f32.mrf.mxu0
        %v1842 = vadd.f32 1e-05, %v1841
        %1843 = vmatprep.mubr.f32.mxu0 0.0
        %1844 = vmatmul.mubr.f32.gmra.mxu0 %v978
        %v1845 = vpop.f32.mrf.mxu0
        %v1846 = vadd.f32 1e-05, %v1845
        %v1847 = vpop.f32.mrf.mxu0
        %v1848 = vadd.f32 1e-05, %v1847
        %1849 = vmatprep.mubr.f32.mxu0 0.0
        %1850 = vmatmul.mubr.f32.gmra.mxu0 %v981
        %v1851 = vpop.f32.mrf.mxu0
        %v1852 = vadd.f32 1e-05, %v1851
        %v1853 = vpop.f32.mrf.mxu0
        %v1854 = vadd.f32 1e-05, %v1853
        %1855 = vmatprep.mubr.f32.mxu0 0.0
        %1856 = vmatmul.mubr.f32.gmra.mxu0 %v984
        %v1857 = vpop.f32.mrf.mxu0
        %v1858 = vadd.f32 1e-05, %v1857
        %v1859 = vpop.f32.mrf.mxu0
        %v1860 = vadd.f32 1e-05, %v1859
        %1861 = vdwg.mxu0
        %v1862 = vrsqrt.pop %v1828
        %v1863 = vrsqrt.pop %v1830
        %v1864 = vrsqrt.pop %v1834
        %v1865 = vrsqrt.pop %v1836
        %v1866 = vrsqrt.pop %v1840
        %v1867 = vrsqrt.pop %v1842
        %v1868 = vrsqrt.pop %v1846
        %v1869 = vrsqrt.pop %v1848
        %v1870 = vrsqrt.pop %v1852
        %v1871 = vrsqrt.pop %v1854
        %v1872 = vrsqrt.pop %v1858
        %v1873 = vrsqrt.pop %v1860
        %v1874 = vmul.f32 %v1737, %v1862
        %v1875 = vmul.f32 %v1738, %v1863
        %v1876 = vmul.f32 %v1739, %v1864
        %v1877 = vmul.f32 %v1740, %v1865
        %v1878 = vmul.f32 %v1741, %v1866
        %v1879 = vmul.f32 %v1742, %v1867
        %v1880 = vmul.f32 %v1743, %v1868
        %v1881 = vmul.f32 %v1744, %v1869
        %v1882 = vmul.f32 %v1745, %v1870
        %v1883 = vmul.f32 %v1746, %v1871
        %v1884 = vmul.f32 %v1747, %v1872
        %v1885 = vmul.f32 %v1748, %v1873
        %1887 = vset.pattern.permute.xlu0 0
        %1888 = vperm.xlu0 %1887, %v895
        %v1889 = vpop.permute.xlu0 %1888
        %1892 = vset.pattern.permute.xlu0 0
        %1893 = vperm.xlu0 %1892, %v896
        %v1894 = vpop.permute.xlu0 %1893
        %1897 = vset.pattern.permute.xlu0 0
        %1898 = vperm.xlu0 %1897, %v897
        %v1899 = vpop.permute.xlu0 %1898
        %1902 = vset.pattern.permute.xlu0 0
        %1903 = vperm.xlu0 %1902, %v898
        %v1904 = vpop.permute.xlu0 %1903
        %1907 = vset.pattern.permute.xlu0 0
        %1908 = vperm.xlu0 %1907, %v899
        %v1909 = vpop.permute.xlu0 %1908
        %1912 = vset.pattern.permute.xlu0 0
        %1913 = vperm.xlu0 %1912, %v900
        %v1914 = vpop.permute.xlu0 %1913
        %v1916 = vmul.f32 %v1874, %v1889
        %v1917 = vmul.f32 %v1875, %v1889
        %v1918 = vmul.f32 %v1876, %v1894
        %v1919 = vmul.f32 %v1877, %v1894
        %v1920 = vmul.f32 %v1878, %v1899
        %v1921 = vmul.f32 %v1879, %v1899
        %v1922 = vmul.f32 %v1880, %v1904
        %v1923 = vmul.f32 %v1881, %v1904
        %v1924 = vmul.f32 %v1882, %v1909
        %v1925 = vmul.f32 %v1883, %v1909
        %v1926 = vmul.f32 %v1884, %v1914
        %v1927 = vmul.f32 %v1885, %v1914
        %1928 = vset.pattern.permute.xlu0 1
        %1929 = vperm.xlu0 %1928, %v895
        %v1930 = vpop.permute.xlu0 %1929
        %1932 = vset.pattern.permute.xlu0 1
        %1933 = vperm.xlu0 %1932, %v896
        %v1934 = vpop.permute.xlu0 %1933
        %1936 = vset.pattern.permute.xlu0 1
        %1937 = vperm.xlu0 %1936, %v897
        %v1938 = vpop.permute.xlu0 %1937
        %1940 = vset.pattern.permute.xlu0 1
        %1941 = vperm.xlu0 %1940, %v898
        %v1942 = vpop.permute.xlu0 %1941
        %1944 = vset.pattern.permute.xlu0 1
        %1945 = vperm.xlu0 %1944, %v899
        %v1946 = vpop.permute.xlu0 %1945
        %1948 = vset.pattern.permute.xlu0 1
        %1949 = vperm.xlu0 %1948, %v900
        %v1950 = vpop.permute.xlu0 %1949
        %v1952 = vadd.f32 %v1916, %v1930
        %v1953 = vadd.f32 %v1917, %v1930
        %v1954 = vadd.f32 %v1918, %v1934
        %v1955 = vadd.f32 %v1919, %v1934
        %v1956 = vadd.f32 %v1920, %v1938
        %v1957 = vadd.f32 %v1921, %v1938
        %v1958 = vadd.f32 %v1922, %v1942
        %v1959 = vadd.f32 %v1923, %v1942
        %v1960 = vadd.f32 %v1924, %v1946
        %v1961 = vadd.f32 %v1925, %v1946
        %v1962 = vadd.f32 %v1926, %v1950
        %v1963 = vadd.f32 %v1927, %v1950
        %1964 = vset.pattern.permute.xlu0 2
        %1965 = vperm.xlu0 %1964, %v895
        %v1966 = vpop.permute.xlu0 %1965
        %1968 = vset.pattern.permute.xlu0 2
        %1969 = vperm.xlu0 %1968, %v896
        %v1970 = vpop.permute.xlu0 %1969
        %1972 = vset.pattern.permute.xlu0 2
        %1973 = vperm.xlu0 %1972, %v897
        %v1974 = vpop.permute.xlu0 %1973
        %1976 = vset.pattern.permute.xlu0 2
        %1977 = vperm.xlu0 %1976, %v898
        %v1978 = vpop.permute.xlu0 %1977
        %1980 = vset.pattern.permute.xlu0 2
        %1981 = vperm.xlu0 %1980, %v899
        %v1982 = vpop.permute.xlu0 %1981
        %1984 = vset.pattern.permute.xlu0 2
        %1985 = vperm.xlu0 %1984, %v900
        %v1986 = vpop.permute.xlu0 %1985
        %v1989 = vsel %vm967, %v920, 0
        %v1992 = vsel %vm967, %v921, 0
        %v1995 = vsel %vm967, %v922, 0
        %v1998 = vsel %vm967, %v923, 0
        %v2001 = vsel %vm967, %v924, 0
        %v2004 = vsel %vm967, %v925, 0
        %2006 = vmatprep.subr.mxu0 0.0
        %2007 = vmatpush1.msra.mxu0 0.0
        %2008 = vmatprep.subr.mxu0 0.0
        %2009 = vmatpush1.msra.mxu0 0.0
        %2010 = vmatprep.subr.mxu0 0.0
        %2011 = vmatpush1.msra.mxu0 0.0
        %2012 = vmatprep.subr.mxu0 0.0
        %2013 = vmatpush1.msra.mxu0 0.0
        %2014 = vmatprep.subr.mxu0 0.0
        %2015 = vmatpush1.msra.mxu0 0.0
        %2016 = vmatprep.subr.mxu0 0.0
        %2017 = vmatpush1.msra.mxu0 0.0
        %2018 = vmatprep.subr.mxu0 0.0
        %2019 = vmatpush1.msra.mxu0 0.0
        %2020 = vmatprep.subr.mxu0 0.0
        %2021 = vmatpush1.msra.mxu0 0.0
        %2022 = vmatprep.subr.mxu0 0.0
        %2023 = vmatpush1.msra.mxu0 0.0
        %2024 = vmatprep.subr.mxu0 0.0
        %2025 = vmatpush1.msra.mxu0 0.0
        %2026 = vmatprep.subr.mxu0 %v1963
        %2027 = vmatpush1.msra.mxu0 %v1962
        %2028 = vmatprep.subr.mxu0 %v1961
        %2029 = vmatpush1.msra.mxu0 %v1960
        %2030 = vmatprep.subr.mxu0 %v1959
        %2031 = vmatpush1.msra.mxu0 %v1958
        %2032 = vmatprep.subr.mxu0 %v1957
        %2033 = vmatpush1.msra.mxu0 %v1956
        %2034 = vmatprep.subr.mxu0 %v1955
        %2035 = vmatpush1.msra.mxu0 %v1954
        %2036 = vmatprep.subr.mxu0 %v1953
        %2037 = vmatpush1.msra.mxu0 %v1952
        %2038 = vmatprep.subr.mxu0 0.0
        %2039 = vmatpush2.msra.mxu0 0.0
        %2040 = vmatprep.subr.mxu0 0.0
        %2041 = vmatpush2.msra.mxu0 0.0
        %2042 = vmatprep.subr.mxu0 0.0
        %2043 = vmatpush2.msra.mxu0 0.0
        %2044 = vmatprep.subr.mxu0 0.0
        %2045 = vmatpush2.msra.mxu0 0.0
        %2046 = vmatprep.subr.mxu0 0.0
        %2047 = vmatpush2.msra.mxu0 0.0
        %2048 = vmatprep.subr.mxu0 0.0
        %2049 = vmatpush2.msra.mxu0 0.0
        %2050 = vmatprep.subr.mxu0 0.0
        %2051 = vmatpush2.msra.mxu0 0.0
        %2052 = vmatprep.subr.mxu0 0.0
        %2053 = vmatpush2.msra.mxu0 0.0
        %2054 = vmatprep.subr.mxu0 0.0
        %2055 = vmatpush2.msra.mxu0 0.0
        %2056 = vmatprep.subr.mxu0 0.0
        %2057 = vmatpush2.msra.mxu0 0.0
        %2058 = vmatprep.subr.mxu0 0.0
        %2059 = vmatpush2.msra.mxu0 0.0
        %2060 = vmatprep.subr.mxu0 0.0
        %2061 = vmatpush2.msra.mxu0 0.0
        %2062 = vmatprep.subr.mxu0 0.0
        %2063 = vmatpush2.msra.mxu0 0.0
        %2064 = vmatprep.subr.mxu0 0.0
        %2065 = vmatpush2.msra.mxu0 0.0
        %2066 = vmatprep.subr.mxu0 0.0
        %2067 = vmatpush2.msra.mxu0 0.0
        %2068 = vmatprep.subr.mxu0 0.0
        %2069 = vmatpush2.msra.mxu0 0.0
        %2070 = vmatprep.mubr.f32.mxu0 0.0
        %2071 = vmatmul.mubr.f32.gmra.mxu0 %v1989
        %v2072 = vpop.f32.mrf.mxu0
        %v2073 = vadd.f32 %v1966, %v2072
        %v2074 = vpop.f32.mrf.mxu0
        %v2075 = vadd.f32 %v1966, %v2074
        %2076 = vmatprep.mubr.f32.mxu0 0.0
        %2077 = vmatmul.mubr.f32.gmra.mxu0 %v1992
        %v2078 = vpop.f32.mrf.mxu0
        %v2079 = vadd.f32 %v1970, %v2078
        %v2080 = vpop.f32.mrf.mxu0
        %v2081 = vadd.f32 %v1970, %v2080
        %2082 = vmatprep.mubr.f32.mxu0 0.0
        %2083 = vmatmul.mubr.f32.gmra.mxu0 %v1995
        %v2084 = vpop.f32.mrf.mxu0
        %v2085 = vadd.f32 %v1974, %v2084
        %v2086 = vpop.f32.mrf.mxu0
        %v2087 = vadd.f32 %v1974, %v2086
        %2088 = vmatprep.mubr.f32.mxu0 0.0
        %2089 = vmatmul.mubr.f32.gmra.mxu0 %v1998
        %v2090 = vpop.f32.mrf.mxu0
        %v2091 = vadd.f32 %v1978, %v2090
        %v2092 = vpop.f32.mrf.mxu0
        %v2093 = vadd.f32 %v1978, %v2092
        %2094 = vmatprep.mubr.f32.mxu0 0.0
        %2095 = vmatmul.mubr.f32.gmra.mxu0 %v2001
        %v2096 = vpop.f32.mrf.mxu0
        %v2097 = vadd.f32 %v1982, %v2096
        %v2098 = vpop.f32.mrf.mxu0
        %v2099 = vadd.f32 %v1982, %v2098
        %2100 = vmatprep.mubr.f32.mxu0 0.0
        %2101 = vmatmul.mubr.f32.gmra.mxu0 %v2004
        %v2102 = vpop.f32.mrf.mxu0
        %v2103 = vadd.f32 %v1986, %v2102
        %v2104 = vpop.f32.mrf.mxu0
        %v2105 = vadd.f32 %v1986, %v2104
        %2106 = vdwg.mxu0
        %v2107 = vmax.f32 %v2073, 0.0
        %v2108 = vmax.f32 %v2075, 0.0
        %v2109 = vmax.f32 %v2079, 0.0
        %v2110 = vmax.f32 %v2081, 0.0
        %v2111 = vmax.f32 %v2085, 0.0
        %v2112 = vmax.f32 %v2087, 0.0
        %v2113 = vmax.f32 %v2091, 0.0
        %v2114 = vmax.f32 %v2093, 0.0
        %v2115 = vmax.f32 %v2097, 0.0
        %v2116 = vmax.f32 %v2099, 0.0
        %v2117 = vmax.f32 %v2103, 0.0
        %v2118 = vmax.f32 %v2105, 0.0
        %v2120 = vsel %vm967, %v947, 0
        %v2123 = vsel %vm967, %v948, 0
        %v2126 = vsel %vm967, %v949, 0
        %v2129 = vsel %vm967, %v950, 0
        %v2132 = vsel %vm967, %v951, 0
        %v2135 = vsel %vm967, %v952, 0
        %2137 = vmatprep.subr.mxu0 0.0
        %2138 = vmatpush1.msra.mxu0 0.0
        %2139 = vmatprep.subr.mxu0 0.0
        %2140 = vmatpush1.msra.mxu0 0.0
        %2141 = vmatprep.subr.mxu0 0.0
        %2142 = vmatpush1.msra.mxu0 0.0
        %2143 = vmatprep.subr.mxu0 0.0
        %2144 = vmatpush1.msra.mxu0 0.0
        %2145 = vmatprep.subr.mxu0 0.0
        %2146 = vmatpush1.msra.mxu0 0.0
        %2147 = vmatprep.subr.mxu0 0.0
        %2148 = vmatpush1.msra.mxu0 0.0
        %2149 = vmatprep.subr.mxu0 0.0
        %2150 = vmatpush1.msra.mxu0 0.0
        %2151 = vmatprep.subr.mxu0 0.0
        %2152 = vmatpush1.msra.mxu0 0.0
        %2153 = vmatprep.subr.mxu0 0.0
        %2154 = vmatpush1.msra.mxu0 0.0
        %2155 = vmatprep.subr.mxu0 0.0
        %2156 = vmatpush1.msra.mxu0 0.0
        %2157 = vmatprep.subr.mxu0 %v2118
        %2158 = vmatpush1.msra.mxu0 %v2117
        %2159 = vmatprep.subr.mxu0 %v2116
        %2160 = vmatpush1.msra.mxu0 %v2115
        %2161 = vmatprep.subr.mxu0 %v2114
        %2162 = vmatpush1.msra.mxu0 %v2113
        %2163 = vmatprep.subr.mxu0 %v2112
        %2164 = vmatpush1.msra.mxu0 %v2111
        %2165 = vmatprep.subr.mxu0 %v2110
        %2166 = vmatpush1.msra.mxu0 %v2109
        %2167 = vmatprep.subr.mxu0 %v2108
        %2168 = vmatpush1.msra.mxu0 %v2107
        %2169 = vmatprep.subr.mxu0 0.0
        %2170 = vmatpush2.msra.mxu0 0.0
        %2171 = vmatprep.subr.mxu0 0.0
        %2172 = vmatpush2.msra.mxu0 0.0
        %2173 = vmatprep.subr.mxu0 0.0
        %2174 = vmatpush2.msra.mxu0 0.0
        %2175 = vmatprep.subr.mxu0 0.0
        %2176 = vmatpush2.msra.mxu0 0.0
        %2177 = vmatprep.subr.mxu0 0.0
        %2178 = vmatpush2.msra.mxu0 0.0
        %2179 = vmatprep.subr.mxu0 0.0
        %2180 = vmatpush2.msra.mxu0 0.0
        %2181 = vmatprep.subr.mxu0 0.0
        %2182 = vmatpush2.msra.mxu0 0.0
        %2183 = vmatprep.subr.mxu0 0.0
        %2184 = vmatpush2.msra.mxu0 0.0
        %2185 = vmatprep.subr.mxu0 0.0
        %2186 = vmatpush2.msra.mxu0 0.0
        %2187 = vmatprep.subr.mxu0 0.0
        %2188 = vmatpush2.msra.mxu0 0.0
        %2189 = vmatprep.subr.mxu0 0.0
        %2190 = vmatpush2.msra.mxu0 0.0
        %2191 = vmatprep.subr.mxu0 0.0
        %2192 = vmatpush2.msra.mxu0 0.0
        %2193 = vmatprep.subr.mxu0 0.0
        %2194 = vmatpush2.msra.mxu0 0.0
        %2195 = vmatprep.subr.mxu0 0.0
        %2196 = vmatpush2.msra.mxu0 0.0
        %2197 = vmatprep.subr.mxu0 0.0
        %2198 = vmatpush2.msra.mxu0 0.0
        %2199 = vmatprep.subr.mxu0 0.0
        %2200 = vmatpush2.msra.mxu0 0.0
        %2201 = vmatprep.mubr.f32.mxu0 0.0
        %2202 = vmatmul.mubr.f32.gmra.mxu0 %v2120
        %v2203 = vpop.f32.mrf.mxu0
        %v2204 = vadd.f32 0.0, %v2203
        %v2205 = vpop.f32.mrf.mxu0
        %v2206 = vadd.f32 0.0, %v2205
        %2207 = vmatprep.mubr.f32.mxu0 0.0
        %2208 = vmatmul.mubr.f32.gmra.mxu0 %v2123
        %v2209 = vpop.f32.mrf.mxu0
        %v2210 = vadd.f32 0.0, %v2209
        %v2211 = vpop.f32.mrf.mxu0
        %v2212 = vadd.f32 0.0, %v2211
        %2213 = vmatprep.mubr.f32.mxu0 0.0
        %2214 = vmatmul.mubr.f32.gmra.mxu0 %v2126
        %v2215 = vpop.f32.mrf.mxu0
        %v2216 = vadd.f32 0.0, %v2215
        %v2217 = vpop.f32.mrf.mxu0
        %v2218 = vadd.f32 0.0, %v2217
        %2219 = vmatprep.mubr.f32.mxu0 0.0
        %2220 = vmatmul.mubr.f32.gmra.mxu0 %v2129
        %v2221 = vpop.f32.mrf.mxu0
        %v2222 = vadd.f32 0.0, %v2221
        %v2223 = vpop.f32.mrf.mxu0
        %v2224 = vadd.f32 0.0, %v2223
        %2225 = vmatprep.mubr.f32.mxu0 0.0
        %2226 = vmatmul.mubr.f32.gmra.mxu0 %v2132
        %v2227 = vpop.f32.mrf.mxu0
        %v2228 = vadd.f32 0.0, %v2227
        %v2229 = vpop.f32.mrf.mxu0
        %v2230 = vadd.f32 0.0, %v2229
        %2231 = vmatprep.mubr.f32.mxu0 0.0
        %2232 = vmatmul.mubr.f32.gmra.mxu0 %v2135
        %v2233 = vpop.f32.mrf.mxu0
        %v2234 = vadd.f32 0.0, %v2233
        %v2235 = vpop.f32.mrf.mxu0
        %v2236 = vadd.f32 0.0, %v2235
        %2237 = vdwg.mxu0
        %v2238 = vadd.f32 %v1624, %v2204
        %v2239 = vadd.f32 %v1625, %v2206
        %v2240 = vadd.f32 %v1626, %v2210
        %v2241 = vadd.f32 %v1627, %v2212
        %v2242 = vadd.f32 %v1628, %v2216
        %v2243 = vadd.f32 %v1629, %v2218
        %v2244 = vadd.f32 %v1630, %v2222
        %v2245 = vadd.f32 %v1631, %v2224
        %v2246 = vadd.f32 %v1632, %v2228
        %v2247 = vadd.f32 %v1633, %v2230
        %v2248 = vadd.f32 %v1634, %v2234
        %v2249 = vadd.f32 %v1635, %v2236
        %2250 = vset.pattern.permute.xlu0 3
        %2251 = vperm.xlu0 %2250, %v895
        %v2252 = vpop.permute.xlu0 %2251
        %2254 = vset.pattern.permute.xlu0 3
        %2255 = vperm.xlu0 %2254, %v896
        %v2256 = vpop.permute.xlu0 %2255
        %2258 = vset.pattern.permute.xlu0 3
        %2259 = vperm.xlu0 %2258, %v897
        %v2260 = vpop.permute.xlu0 %2259
        %2262 = vset.pattern.permute.xlu0 3
        %2263 = vperm.xlu0 %2262, %v898
        %v2264 = vpop.permute.xlu0 %2263
        %2266 = vset.pattern.permute.xlu0 3
        %2267 = vperm.xlu0 %2266, %v899
        %v2268 = vpop.permute.xlu0 %2267
        %2270 = vset.pattern.permute.xlu0 3
        %2271 = vperm.xlu0 %2270, %v900
        %v2272 = vpop.permute.xlu0 %2271
        %v2274 = vadd.f32 %v2238, %v2252
        %v2275 = vadd.f32 %v2239, %v2252
        %v2276 = vadd.f32 %v2240, %v2256
        %v2277 = vadd.f32 %v2241, %v2256
        %v2278 = vadd.f32 %v2242, %v2260
        %v2279 = vadd.f32 %v2243, %v2260
        %v2280 = vadd.f32 %v2244, %v2264
        %v2281 = vadd.f32 %v2245, %v2264
        %v2282 = vadd.f32 %v2246, %v2268
        %v2283 = vadd.f32 %v2247, %v2268
        %v2284 = vadd.f32 %v2248, %v2272
        %v2285 = vadd.f32 %v2249, %v2272
        %2286 = vmatprep.subr.mxu0 0.0
        %2287 = vmatpush1.msra.mxu0 0.0
        %2288 = vmatprep.subr.mxu0 0.0
        %2289 = vmatpush1.msra.mxu0 0.0
        %2290 = vmatprep.subr.mxu0 0.0
        %2291 = vmatpush1.msra.mxu0 0.0
        %2292 = vmatprep.subr.mxu0 0.0
        %2293 = vmatpush1.msra.mxu0 0.0
        %2294 = vmatprep.subr.mxu0 0.0
        %2295 = vmatpush1.msra.mxu0 0.0
        %2296 = vmatprep.subr.mxu0 0.0
        %2297 = vmatpush1.msra.mxu0 0.0
        %2298 = vmatprep.subr.mxu0 0.0
        %2299 = vmatpush1.msra.mxu0 0.0
        %2300 = vmatprep.subr.mxu0 0.0
        %2301 = vmatpush1.msra.mxu0 0.0
        %2302 = vmatprep.subr.mxu0 0.0
        %2303 = vmatpush1.msra.mxu0 0.0
        %2304 = vmatprep.subr.mxu0 0.0
        %2305 = vmatpush1.msra.mxu0 0.0
        %2306 = vmatprep.subr.mxu0 %v2285
        %2307 = vmatpush1.msra.mxu0 %v2284
        %2308 = vmatprep.subr.mxu0 %v2283
        %2309 = vmatpush1.msra.mxu0 %v2282
        %2310 = vmatprep.subr.mxu0 %v2281
        %2311 = vmatpush1.msra.mxu0 %v2280
        %2312 = vmatprep.subr.mxu0 %v2279
        %2313 = vmatpush1.msra.mxu0 %v2278
        %2314 = vmatprep.subr.mxu0 %v2277
        %2315 = vmatpush1.msra.mxu0 %v2276
        %2316 = vmatprep.subr.mxu0 %v2275
        %2317 = vmatpush1.msra.mxu0 %v2274
        %2318 = vmatprep.subr.mxu0 0.0
        %2319 = vmatpush2.msra.mxu0 0.0
        %2320 = vmatprep.subr.mxu0 0.0
        %2321 = vmatpush2.msra.mxu0 0.0
        %2322 = vmatprep.subr.mxu0 0.0
        %2323 = vmatpush2.msra.mxu0 0.0
        %2324 = vmatprep.subr.mxu0 0.0
        %2325 = vmatpush2.msra.mxu0 0.0
        %2326 = vmatprep.subr.mxu0 0.0
        %2327 = vmatpush2.msra.mxu0 0.0
        %2328 = vmatprep.subr.mxu0 0.0
        %2329 = vmatpush2.msra.mxu0 0.0
        %2330 = vmatprep.subr.mxu0 0.0
        %2331 = vmatpush2.msra.mxu0 0.0
        %2332 = vmatprep.subr.mxu0 0.0
        %2333 = vmatpush2.msra.mxu0 0.0
        %2334 = vmatprep.subr.mxu0 0.0
        %2335 = vmatpush2.msra.mxu0 0.0
        %2336 = vmatprep.subr.mxu0 0.0
        %2337 = vmatpush2.msra.mxu0 0.0
        %2338 = vmatprep.subr.mxu0 0.0
        %2339 = vmatpush2.msra.mxu0 0.0
        %2340 = vmatprep.subr.mxu0 0.0
        %2341 = vmatpush2.msra.mxu0 0.0
        %2342 = vmatprep.subr.mxu0 0.0
        %2343 = vmatpush2.msra.mxu0 0.0
        %2344 = vmatprep.subr.mxu0 0.0
        %2345 = vmatpush2.msra.mxu0 0.0
        %2346 = vmatprep.subr.mxu0 0.0
        %2347 = vmatpush2.msra.mxu0 0.0
        %2348 = vmatprep.subr.mxu0 0.0
        %2349 = vmatpush2.msra.mxu0 0.0
        %2350 = vmatprep.mubr.f32.mxu0 0.0
        %2351 = vmatmul.mubr.f32.gmra.mxu0 %v969
        %v2352 = vpop.f32.mrf.mxu0
        %v2353 = vadd.f32 0.0, %v2352
        %v2354 = vpop.f32.mrf.mxu0
        %v2355 = vadd.f32 0.0, %v2354
        %2356 = vmatprep.mubr.f32.mxu0 0.0
        %2357 = vmatmul.mubr.f32.gmra.mxu0 %v972
        %v2358 = vpop.f32.mrf.mxu0
        %v2359 = vadd.f32 0.0, %v2358
        %v2360 = vpop.f32.mrf.mxu0
        %v2361 = vadd.f32 0.0, %v2360
        %2362 = vmatprep.mubr.f32.mxu0 0.0
        %2363 = vmatmul.mubr.f32.gmra.mxu0 %v975
        %v2364 = vpop.f32.mrf.mxu0
        %v2365 = vadd.f32 0.0, %v2364
        %v2366 = vpop.f32.mrf.mxu0
        %v2367 = vadd.f32 0.0, %v2366
        %2368 = vmatprep.mubr.f32.mxu0 0.0
        %2369 = vmatmul.mubr.f32.gmra.mxu0 %v978
        %v2370 = vpop.f32.mrf.mxu0
        %v2371 = vadd.f32 0.0, %v2370
        %v2372 = vpop.f32.mrf.mxu0
        %v2373 = vadd.f32 0.0, %v2372
        %2374 = vmatprep.mubr.f32.mxu0 0.0
        %2375 = vmatmul.mubr.f32.gmra.mxu0 %v981
        %v2376 = vpop.f32.mrf.mxu0
        %v2377 = vadd.f32 0.0, %v2376
        %v2378 = vpop.f32.mrf.mxu0
        %v2379 = vadd.f32 0.0, %v2378
        %2380 = vmatprep.mubr.f32.mxu0 0.0
        %2381 = vmatmul.mubr.f32.gmra.mxu0 %v984
        %v2382 = vpop.f32.mrf.mxu0
        %v2383 = vadd.f32 0.0, %v2382
        %v2384 = vpop.f32.mrf.mxu0
        %v2385 = vadd.f32 0.0, %v2384
        %2386 = vdwg.mxu0
        %v2387 = vsub.f32 %v2274, %v2353
        %v2388 = vsub.f32 %v2275, %v2355
        %v2389 = vsub.f32 %v2276, %v2359
        %v2390 = vsub.f32 %v2277, %v2361
        %v2391 = vsub.f32 %v2278, %v2365
        %v2392 = vsub.f32 %v2279, %v2367
        %v2393 = vsub.f32 %v2280, %v2371
        %v2394 = vsub.f32 %v2281, %v2373
        %v2395 = vsub.f32 %v2282, %v2377
        %v2396 = vsub.f32 %v2283, %v2379
        %v2397 = vsub.f32 %v2284, %v2383
        %v2398 = vsub.f32 %v2285, %v2385
        %v2399 = vmul.f32 %v2387, %v2387
        %v2400 = vmul.f32 %v2388, %v2388
        %v2401 = vmul.f32 %v2389, %v2389
        %v2402 = vmul.f32 %v2390, %v2390
        %v2403 = vmul.f32 %v2391, %v2391
        %v2404 = vmul.f32 %v2392, %v2392
        %v2405 = vmul.f32 %v2393, %v2393
        %v2406 = vmul.f32 %v2394, %v2394
        %v2407 = vmul.f32 %v2395, %v2395
        %v2408 = vmul.f32 %v2396, %v2396
        %v2409 = vmul.f32 %v2397, %v2397
        %v2410 = vmul.f32 %v2398, %v2398
        %2411 = vmatprep.subr.mxu0 0.0
        %2412 = vmatpush1.msra.mxu0 0.0
        %2413 = vmatprep.subr.mxu0 0.0
        %2414 = vmatpush1.msra.mxu0 0.0
        %2415 = vmatprep.subr.mxu0 0.0
        %2416 = vmatpush1.msra.mxu0 0.0
        %2417 = vmatprep.subr.mxu0 0.0
        %2418 = vmatpush1.msra.mxu0 0.0
        %2419 = vmatprep.subr.mxu0 0.0
        %2420 = vmatpush1.msra.mxu0 0.0
        %2421 = vmatprep.subr.mxu0 0.0
        %2422 = vmatpush1.msra.mxu0 0.0
        %2423 = vmatprep.subr.mxu0 0.0
        %2424 = vmatpush1.msra.mxu0 0.0
        %2425 = vmatprep.subr.mxu0 0.0
        %2426 = vmatpush1.msra.mxu0 0.0
        %2427 = vmatprep.subr.mxu0 0.0
        %2428 = vmatpush1.msra.mxu0 0.0
        %2429 = vmatprep.subr.mxu0 0.0
        %2430 = vmatpush1.msra.mxu0 0.0
        %2431 = vmatprep.subr.mxu0 %v2410
        %2432 = vmatpush1.msra.mxu0 %v2409
        %2433 = vmatprep.subr.mxu0 %v2408
        %2434 = vmatpush1.msra.mxu0 %v2407
        %2435 = vmatprep.subr.mxu0 %v2406
        %2436 = vmatpush1.msra.mxu0 %v2405
        %2437 = vmatprep.subr.mxu0 %v2404
        %2438 = vmatpush1.msra.mxu0 %v2403
        %2439 = vmatprep.subr.mxu0 %v2402
        %2440 = vmatpush1.msra.mxu0 %v2401
        %2441 = vmatprep.subr.mxu0 %v2400
        %2442 = vmatpush1.msra.mxu0 %v2399
        %2443 = vmatprep.subr.mxu0 0.0
        %2444 = vmatpush2.msra.mxu0 0.0
        %2445 = vmatprep.subr.mxu0 0.0
        %2446 = vmatpush2.msra.mxu0 0.0
        %2447 = vmatprep.subr.mxu0 0.0
        %2448 = vmatpush2.msra.mxu0 0.0
        %2449 = vmatprep.subr.mxu0 0.0
        %2450 = vmatpush2.msra.mxu0 0.0
        %2451 = vmatprep.subr.mxu0 0.0
        %2452 = vmatpush2.msra.mxu0 0.0
        %2453 = vmatprep.subr.mxu0 0.0
        %2454 = vmatpush2.msra.mxu0 0.0
        %2455 = vmatprep.subr.mxu0 0.0
        %2456 = vmatpush2.msra.mxu0 0.0
        %2457 = vmatprep.subr.mxu0 0.0
        %2458 = vmatpush2.msra.mxu0 0.0
        %2459 = vmatprep.subr.mxu0 0.0
        %2460 = vmatpush2.msra.mxu0 0.0
        %2461 = vmatprep.subr.mxu0 0.0
        %2462 = vmatpush2.msra.mxu0 0.0
        %2463 = vmatprep.subr.mxu0 0.0
        %2464 = vmatpush2.msra.mxu0 0.0
        %2465 = vmatprep.subr.mxu0 0.0
        %2466 = vmatpush2.msra.mxu0 0.0
        %2467 = vmatprep.subr.mxu0 0.0
        %2468 = vmatpush2.msra.mxu0 0.0
        %2469 = vmatprep.subr.mxu0 0.0
        %2470 = vmatpush2.msra.mxu0 0.0
        %2471 = vmatprep.subr.mxu0 0.0
        %2472 = vmatpush2.msra.mxu0 0.0
        %2473 = vmatprep.subr.mxu0 0.0
        %2474 = vmatpush2.msra.mxu0 0.0
        %2475 = vmatprep.mubr.f32.mxu0 0.0
        %2476 = vmatmul.mubr.f32.gmra.mxu0 %v969
        %v2477 = vpop.f32.mrf.mxu0
        %v2478 = vadd.f32 1e-05, %v2477
        %v2479 = vpop.f32.mrf.mxu0
        %v2480 = vadd.f32 1e-05, %v2479
        %2481 = vmatprep.mubr.f32.mxu0 0.0
        %2482 = vmatmul.mubr.f32.gmra.mxu0 %v972
        %v2483 = vpop.f32.mrf.mxu0
        %v2484 = vadd.f32 1e-05, %v2483
        %v2485 = vpop.f32.mrf.mxu0
        %v2486 = vadd.f32 1e-05, %v2485
        %2487 = vmatprep.mubr.f32.mxu0 0.0
        %2488 = vmatmul.mubr.f32.gmra.mxu0 %v975
        %v2489 = vpop.f32.mrf.mxu0
        %v2490 = vadd.f32 1e-05, %v2489
        %v2491 = vpop.f32.mrf.mxu0
        %v2492 = vadd.f32 1e-05, %v2491
        %2493 = vmatprep.mubr.f32.mxu0 0.0
        %2494 = vmatmul.mubr.f32.gmra.mxu0 %v978
        %v2495 = vpop.f32.mrf.mxu0
        %v2496 = vadd.f32 1e-05, %v2495
        %v2497 = vpop.f32.mrf.mxu0
        %v2498 = vadd.f32 1e-05, %v2497
        %2499 = vmatprep.mubr.f32.mxu0 0.0
        %2500 = vmatmul.mubr.f32.gmra.mxu0 %v981
        %v2501 = vpop.f32.mrf.mxu0
        %v2502 = vadd.f32 1e-05, %v2501
        %v2503 = vpop.f32.mrf.mxu0
        %v2504 = vadd.f32 1e-05, %v2503
        %2505 = vmatprep.mubr.f32.mxu0 0.0
        %2506 = vmatmul.mubr.f32.gmra.mxu0 %v984
        %v2507 = vpop.f32.mrf.mxu0
        %v2508 = vadd.f32 1e-05, %v2507
        %v2509 = vpop.f32.mrf.mxu0
        %v2510 = vadd.f32 1e-05, %v2509
        %2511 = vdwg.mxu0
        %v2512 = vrsqrt.pop %v2478
        %v2513 = vrsqrt.pop %v2480
        %v2514 = vrsqrt.pop %v2484
        %v2515 = vrsqrt.pop %v2486
        %v2516 = vrsqrt.pop %v2490
        %v2517 = vrsqrt.pop %v2492
        %v2518 = vrsqrt.pop %v2496
        %v2519 = vrsqrt.pop %v2498
        %v2520 = vrsqrt.pop %v2502
        %v2521 = vrsqrt.pop %v2504
        %v2522 = vrsqrt.pop %v2508
        %v2523 = vrsqrt.pop %v2510
        %v2524 = vmul.f32 %v2387, %v2512
        %v2525 = vmul.f32 %v2388, %v2513
        %v2526 = vmul.f32 %v2389, %v2514
        %v2527 = vmul.f32 %v2390, %v2515
        %v2528 = vmul.f32 %v2391, %v2516
        %v2529 = vmul.f32 %v2392, %v2517
        %v2530 = vmul.f32 %v2393, %v2518
        %v2531 = vmul.f32 %v2394, %v2519
        %v2532 = vmul.f32 %v2395, %v2520
        %v2533 = vmul.f32 %v2396, %v2521
        %v2534 = vmul.f32 %v2397, %v2522
        %v2535 = vmul.f32 %v2398, %v2523
        %2537 = vset.pattern.permute.xlu0 0
        %2538 = vperm.xlu0 %2537, %v901
        %v2539 = vpop.permute.xlu0 %2538
        %2542 = vset.pattern.permute.xlu0 0
        %2543 = vperm.xlu0 %2542, %v902
        %v2544 = vpop.permute.xlu0 %2543
        %2547 = vset.pattern.permute.xlu0 0
        %2548 = vperm.xlu0 %2547, %v903
        %v2549 = vpop.permute.xlu0 %2548
        %2552 = vset.pattern.permute.xlu0 0
        %2553 = vperm.xlu0 %2552, %v904
        %v2554 = vpop.permute.xlu0 %2553
        %2557 = vset.pattern.permute.xlu0 0
        %2558 = vperm.xlu0 %2557, %v905
        %v2559 = vpop.permute.xlu0 %2558
        %2562 = vset.pattern.permute.xlu0 0
        %2563 = vperm.xlu0 %2562, %v906
        %v2564 = vpop.permute.xlu0 %2563
        %v2566 = vmul.f32 %v2524, %v2539
        %v2567 = vmul.f32 %v2525, %v2539
        %v2568 = vmul.f32 %v2526, %v2544
        %v2569 = vmul.f32 %v2527, %v2544
        %v2570 = vmul.f32 %v2528, %v2549
        %v2571 = vmul.f32 %v2529, %v2549
        %v2572 = vmul.f32 %v2530, %v2554
        %v2573 = vmul.f32 %v2531, %v2554
        %v2574 = vmul.f32 %v2532, %v2559
        %v2575 = vmul.f32 %v2533, %v2559
        %v2576 = vmul.f32 %v2534, %v2564
        %v2577 = vmul.f32 %v2535, %v2564
        %2578 = vset.pattern.permute.xlu0 1
        %2579 = vperm.xlu0 %2578, %v901
        %v2580 = vpop.permute.xlu0 %2579
        %2582 = vset.pattern.permute.xlu0 1
        %2583 = vperm.xlu0 %2582, %v902
        %v2584 = vpop.permute.xlu0 %2583
        %2586 = vset.pattern.permute.xlu0 1
        %2587 = vperm.xlu0 %2586, %v903
        %v2588 = vpop.permute.xlu0 %2587
        %2590 = vset.pattern.permute.xlu0 1
        %2591 = vperm.xlu0 %2590, %v904
        %v2592 = vpop.permute.xlu0 %2591
        %2594 = vset.pattern.permute.xlu0 1
        %2595 = vperm.xlu0 %2594, %v905
        %v2596 = vpop.permute.xlu0 %2595
        %2598 = vset.pattern.permute.xlu0 1
        %2599 = vperm.xlu0 %2598, %v906
        %v2600 = vpop.permute.xlu0 %2599
        %v2602 = vadd.f32 %v2566, %v2580
        %v2603 = vadd.f32 %v2567, %v2580
        %v2604 = vadd.f32 %v2568, %v2584
        %v2605 = vadd.f32 %v2569, %v2584
        %v2606 = vadd.f32 %v2570, %v2588
        %v2607 = vadd.f32 %v2571, %v2588
        %v2608 = vadd.f32 %v2572, %v2592
        %v2609 = vadd.f32 %v2573, %v2592
        %v2610 = vadd.f32 %v2574, %v2596
        %v2611 = vadd.f32 %v2575, %v2596
        %v2612 = vadd.f32 %v2576, %v2600
        %v2613 = vadd.f32 %v2577, %v2600
        %2614 = vset.pattern.permute.xlu0 2
        %2615 = vperm.xlu0 %2614, %v901
        %v2616 = vpop.permute.xlu0 %2615
        %2618 = vset.pattern.permute.xlu0 2
        %2619 = vperm.xlu0 %2618, %v902
        %v2620 = vpop.permute.xlu0 %2619
        %2622 = vset.pattern.permute.xlu0 2
        %2623 = vperm.xlu0 %2622, %v903
        %v2624 = vpop.permute.xlu0 %2623
        %2626 = vset.pattern.permute.xlu0 2
        %2627 = vperm.xlu0 %2626, %v904
        %v2628 = vpop.permute.xlu0 %2627
        %2630 = vset.pattern.permute.xlu0 2
        %2631 = vperm.xlu0 %2630, %v905
        %v2632 = vpop.permute.xlu0 %2631
        %2634 = vset.pattern.permute.xlu0 2
        %2635 = vperm.xlu0 %2634, %v906
        %v2636 = vpop.permute.xlu0 %2635
        %v2639 = vsel %vm967, %v927, 0
        %v2642 = vsel %vm967, %v928, 0
        %v2645 = vsel %vm967, %v929, 0
        %v2648 = vsel %vm967, %v930, 0
        %v2651 = vsel %vm967, %v931, 0
        %v2654 = vsel %vm967, %v932, 0
        %2656 = vmatprep.subr.mxu0 0.0
        %2657 = vmatpush1.msra.mxu0 0.0
        %2658 = vmatprep.subr.mxu0 0.0
        %2659 = vmatpush1.msra.mxu0 0.0
        %2660 = vmatprep.subr.mxu0 0.0
        %2661 = vmatpush1.msra.mxu0 0.0
        %2662 = vmatprep.subr.mxu0 0.0
        %2663 = vmatpush1.msra.mxu0 0.0
        %2664 = vmatprep.subr.mxu0 0.0
        %2665 = vmatpush1.msra.mxu0 0.0
        %2666 = vmatprep.subr.mxu0 0.0
        %2667 = vmatpush1.msra.mxu0 0.0
        %2668 = vmatprep.subr.mxu0 0.0
        %2669 = vmatpush1.msra.mxu0 0.0
        %2670 = vmatprep.subr.mxu0 0.0
        %2671 = vmatpush1.msra.mxu0 0.0
        %2672 = vmatprep.subr.mxu0 0.0
        %2673 = vmatpush1.msra.mxu0 0.0
        %2674 = vmatprep.subr.mxu0 0.0
        %2675 = vmatpush1.msra.mxu0 0.0
        %2676 = vmatprep.subr.mxu0 %v2613
        %2677 = vmatpush1.msra.mxu0 %v2612
        %2678 = vmatprep.subr.mxu0 %v2611
        %2679 = vmatpush1.msra.mxu0 %v2610
        %2680 = vmatprep.subr.mxu0 %v2609
        %2681 = vmatpush1.msra.mxu0 %v2608
        %2682 = vmatprep.subr.mxu0 %v2607
        %2683 = vmatpush1.msra.mxu0 %v2606
        %2684 = vmatprep.subr.mxu0 %v2605
        %2685 = vmatpush1.msra.mxu0 %v2604
        %2686 = vmatprep.subr.mxu0 %v2603
        %2687 = vmatpush1.msra.mxu0 %v2602
        %2688 = vmatprep.subr.mxu0 0.0
        %2689 = vmatpush2.msra.mxu0 0.0
        %2690 = vmatprep.subr.mxu0 0.0
        %2691 = vmatpush2.msra.mxu0 0.0
        %2692 = vmatprep.subr.mxu0 0.0
        %2693 = vmatpush2.msra.mxu0 0.0
        %2694 = vmatprep.subr.mxu0 0.0
        %2695 = vmatpush2.msra.mxu0 0.0
        %2696 = vmatprep.subr.mxu0 0.0
        %2697 = vmatpush2.msra.mxu0 0.0
        %2698 = vmatprep.subr.mxu0 0.0
        %2699 = vmatpush2.msra.mxu0 0.0
        %2700 = vmatprep.subr.mxu0 0.0
        %2701 = vmatpush2.msra.mxu0 0.0
        %2702 = vmatprep.subr.mxu0 0.0
        %2703 = vmatpush2.msra.mxu0 0.0
        %2704 = vmatprep.subr.mxu0 0.0
        %2705 = vmatpush2.msra.mxu0 0.0
        %2706 = vmatprep.subr.mxu0 0.0
        %2707 = vmatpush2.msra.mxu0 0.0
        %2708 = vmatprep.subr.mxu0 0.0
        %2709 = vmatpush2.msra.mxu0 0.0
        %2710 = vmatprep.subr.mxu0 0.0
        %2711 = vmatpush2.msra.mxu0 0.0
        %2712 = vmatprep.subr.mxu0 0.0
        %2713 = vmatpush2.msra.mxu0 0.0
        %2714 = vmatprep.subr.mxu0 0.0
        %2715 = vmatpush2.msra.mxu0 0.0
        %2716 = vmatprep.subr.mxu0 0.0
        %2717 = vmatpush2.msra.mxu0 0.0
        %2718 = vmatprep.subr.mxu0 0.0
        %2719 = vmatpush2.msra.mxu0 0.0
        %2720 = vmatprep.mubr.f32.mxu0 0.0
        %2721 = vmatmul.mubr.f32.gmra.mxu0 %v2639
        %v2722 = vpop.f32.mrf.mxu0
        %v2723 = vadd.f32 %v2616, %v2722
        %v2724 = vpop.f32.mrf.mxu0
        %v2725 = vadd.f32 %v2616, %v2724
        %2726 = vmatprep.mubr.f32.mxu0 0.0
        %2727 = vmatmul.mubr.f32.gmra.mxu0 %v2642
        %v2728 = vpop.f32.mrf.mxu0
        %v2729 = vadd.f32 %v2620, %v2728
        %v2730 = vpop.f32.mrf.mxu0
        %v2731 = vadd.f32 %v2620, %v2730
        %2732 = vmatprep.mubr.f32.mxu0 0.0
        %2733 = vmatmul.mubr.f32.gmra.mxu0 %v2645
        %v2734 = vpop.f32.mrf.mxu0
        %v2735 = vadd.f32 %v2624, %v2734
        %v2736 = vpop.f32.mrf.mxu0
        %v2737 = vadd.f32 %v2624, %v2736
        %2738 = vmatprep.mubr.f32.mxu0 0.0
        %2739 = vmatmul.mubr.f32.gmra.mxu0 %v2648
        %v2740 = vpop.f32.mrf.mxu0
        %v2741 = vadd.f32 %v2628, %v2740
        %v2742 = vpop.f32.mrf.mxu0
        %v2743 = vadd.f32 %v2628, %v2742
        %2744 = vmatprep.mubr.f32.mxu0 0.0
        %2745 = vmatmul.mubr.f32.gmra.mxu0 %v2651
        %v2746 = vpop.f32.mrf.mxu0
        %v2747 = vadd.f32 %v2632, %v2746
        %v2748 = vpop.f32.mrf.mxu0
        %v2749 = vadd.f32 %v2632, %v2748
        %2750 = vmatprep.mubr.f32.mxu0 0.0
        %2751 = vmatmul.mubr.f32.gmra.mxu0 %v2654
        %v2752 = vpop.f32.mrf.mxu0
        %v2753 = vadd.f32 %v2636, %v2752
        %v2754 = vpop.f32.mrf.mxu0
        %v2755 = vadd.f32 %v2636, %v2754
        %2756 = vdwg.mxu0
        %v2757 = vmax.f32 %v2723, 0.0
        %v2758 = vmax.f32 %v2725, 0.0
        %v2759 = vmax.f32 %v2729, 0.0
        %v2760 = vmax.f32 %v2731, 0.0
        %v2761 = vmax.f32 %v2735, 0.0
        %v2762 = vmax.f32 %v2737, 0.0
        %v2763 = vmax.f32 %v2741, 0.0
        %v2764 = vmax.f32 %v2743, 0.0
        %v2765 = vmax.f32 %v2747, 0.0
        %v2766 = vmax.f32 %v2749, 0.0
        %v2767 = vmax.f32 %v2753, 0.0
        %v2768 = vmax.f32 %v2755, 0.0
        %v2770 = vsel %vm967, %v954, 0
        %v2773 = vsel %vm967, %v955, 0
        %v2776 = vsel %vm967, %v956, 0
        %v2779 = vsel %vm967, %v957, 0
        %v2782 = vsel %vm967, %v958, 0
        %v2785 = vsel %vm967, %v959, 0
        %2787 = vmatprep.subr.mxu0 0.0
        %2788 = vmatpush1.msra.mxu0 0.0
        %2789 = vmatprep.subr.mxu0 0.0
        %2790 = vmatpush1.msra.mxu0 0.0
        %2791 = vmatprep.subr.mxu0 0.0
        %2792 = vmatpush1.msra.mxu0 0.0
        %2793 = vmatprep.subr.mxu0 0.0
        %2794 = vmatpush1.msra.mxu0 0.0
        %2795 = vmatprep.subr.mxu0 0.0
        %2796 = vmatpush1.msra.mxu0 0.0
        %2797 = vmatprep.subr.mxu0 0.0
        %2798 = vmatpush1.msra.mxu0 0.0
        %2799 = vmatprep.subr.mxu0 0.0
        %2800 = vmatpush1.msra.mxu0 0.0
        %2801 = vmatprep.subr.mxu0 0.0
        %2802 = vmatpush1.msra.mxu0 0.0
        %2803 = vmatprep.subr.mxu0 0.0
        %2804 = vmatpush1.msra.mxu0 0.0
        %2805 = vmatprep.subr.mxu0 0.0
        %2806 = vmatpush1.msra.mxu0 0.0
        %2807 = vmatprep.subr.mxu0 %v2768
        %2808 = vmatpush1.msra.mxu0 %v2767
        %2809 = vmatprep.subr.mxu0 %v2766
        %2810 = vmatpush1.msra.mxu0 %v2765
        %2811 = vmatprep.subr.mxu0 %v2764
        %2812 = vmatpush1.msra.mxu0 %v2763
        %2813 = vmatprep.subr.mxu0 %v2762
        %2814 = vmatpush1.msra.mxu0 %v2761
        %2815 = vmatprep.subr.mxu0 %v2760
        %2816 = vmatpush1.msra.mxu0 %v2759
        %2817 = vmatprep.subr.mxu0 %v2758
        %2818 = vmatpush1.msra.mxu0 %v2757
        %2819 = vmatprep.subr.mxu0 0.0
        %2820 = vmatpush2.msra.mxu0 0.0
        %2821 = vmatprep.subr.mxu0 0.0
        %2822 = vmatpush2.msra.mxu0 0.0
        %2823 = vmatprep.subr.mxu0 0.0
        %2824 = vmatpush2.msra.mxu0 0.0
        %2825 = vmatprep.subr.mxu0 0.0
        %2826 = vmatpush2.msra.mxu0 0.0
        %2827 = vmatprep.subr.mxu0 0.0
        %2828 = vmatpush2.msra.mxu0 0.0
        %2829 = vmatprep.subr.mxu0 0.0
        %2830 = vmatpush2.msra.mxu0 0.0
        %2831 = vmatprep.subr.mxu0 0.0
        %2832 = vmatpush2.msra.mxu0 0.0
        %2833 = vmatprep.subr.mxu0 0.0
        %2834 = vmatpush2.msra.mxu0 0.0
        %2835 = vmatprep.subr.mxu0 0.0
        %2836 = vmatpush2.msra.mxu0 0.0
        %2837 = vmatprep.subr.mxu0 0.0
        %2838 = vmatpush2.msra.mxu0 0.0
        %2839 = vmatprep.subr.mxu0 0.0
        %2840 = vmatpush2.msra.mxu0 0.0
        %2841 = vmatprep.subr.mxu0 0.0
        %2842 = vmatpush2.msra.mxu0 0.0
        %2843 = vmatprep.subr.mxu0 0.0
        %2844 = vmatpush2.msra.mxu0 0.0
        %2845 = vmatprep.subr.mxu0 0.0
        %2846 = vmatpush2.msra.mxu0 0.0
        %2847 = vmatprep.subr.mxu0 0.0
        %2848 = vmatpush2.msra.mxu0 0.0
        %2849 = vmatprep.subr.mxu0 0.0
        %2850 = vmatpush2.msra.mxu0 0.0
        %2851 = vmatprep.mubr.f32.mxu0 0.0
        %2852 = vmatmul.mubr.f32.gmra.mxu0 %v2770
        %v2853 = vpop.f32.mrf.mxu0
        %v2854 = vadd.f32 0.0, %v2853
        %v2855 = vpop.f32.mrf.mxu0
        %v2856 = vadd.f32 0.0, %v2855
        %2857 = vmatprep.mubr.f32.mxu0 0.0
        %2858 = vmatmul.mubr.f32.gmra.mxu0 %v2773
        %v2859 = vpop.f32.mrf.mxu0
        %v2860 = vadd.f32 0.0, %v2859
        %v2861 = vpop.f32.mrf.mxu0
        %v2862 = vadd.f32 0.0, %v2861
        %2863 = vmatprep.mubr.f32.mxu0 0.0
        %2864 = vmatmul.mubr.f32.gmra.mxu0 %v2776
        %v2865 = vpop.f32.mrf.mxu0
        %v2866 = vadd.f32 0.0, %v2865
        %v2867 = vpop.f32.mrf.mxu0
        %v2868 = vadd.f32 0.0, %v2867
        %2869 = vmatprep.mubr.f32.mxu0 0.0
        %2870 = vmatmul.mubr.f32.gmra.mxu0 %v2779
        %v2871 = vpop.f32.mrf.mxu0
        %v2872 = vadd.f32 0.0, %v2871
        %v2873 = vpop.f32.mrf.mxu0
        %v2874 = vadd.f32 0.0, %v2873
        %2875 = vmatprep.mubr.f32.mxu0 0.0
        %2876 = vmatmul.mubr.f32.gmra.mxu0 %v2782
        %v2877 = vpop.f32.mrf.mxu0
        %v2878 = vadd.f32 0.0, %v2877
        %v2879 = vpop.f32.mrf.mxu0
        %v2880 = vadd.f32 0.0, %v2879
        %2881 = vmatprep.mubr.f32.mxu0 0.0
        %2882 = vmatmul.mubr.f32.gmra.mxu0 %v2785
        %v2883 = vpop.f32.mrf.mxu0
        %v2884 = vadd.f32 0.0, %v2883
        %v2885 = vpop.f32.mrf.mxu0
        %v2886 = vadd.f32 0.0, %v2885
        %2887 = vdwg.mxu0
        %v2888 = vadd.f32 %v2274, %v2854
        %v2889 = vadd.f32 %v2275, %v2856
        %v2890 = vadd.f32 %v2276, %v2860
        %v2891 = vadd.f32 %v2277, %v2862
        %v2892 = vadd.f32 %v2278, %v2866
        %v2893 = vadd.f32 %v2279, %v2868
        %v2894 = vadd.f32 %v2280, %v2872
        %v2895 = vadd.f32 %v2281, %v2874
        %v2896 = vadd.f32 %v2282, %v2878
        %v2897 = vadd.f32 %v2283, %v2880
        %v2898 = vadd.f32 %v2284, %v2884
        %v2899 = vadd.f32 %v2285, %v2886
        %2900 = vset.pattern.permute.xlu0 3
        %2901 = vperm.xlu0 %2900, %v901
        %v2902 = vpop.permute.xlu0 %2901
        %2904 = vset.pattern.permute.xlu0 3
        %2905 = vperm.xlu0 %2904, %v902
        %v2906 = vpop.permute.xlu0 %2905
        %2908 = vset.pattern.permute.xlu0 3
        %2909 = vperm.xlu0 %2908, %v903
        %v2910 = vpop.permute.xlu0 %2909
        %2912 = vset.pattern.permute.xlu0 3
        %2913 = vperm.xlu0 %2912, %v904
        %v2914 = vpop.permute.xlu0 %2913
        %2916 = vset.pattern.permute.xlu0 3
        %2917 = vperm.xlu0 %2916, %v905
        %v2918 = vpop.permute.xlu0 %2917
        %2920 = vset.pattern.permute.xlu0 3
        %2921 = vperm.xlu0 %2920, %v906
        %v2922 = vpop.permute.xlu0 %2921
        %v2924 = vadd.f32 %v2888, %v2902
        %v2925 = vadd.f32 %v2889, %v2902
        %v2926 = vadd.f32 %v2890, %v2906
        %v2927 = vadd.f32 %v2891, %v2906
        %v2928 = vadd.f32 %v2892, %v2910
        %v2929 = vadd.f32 %v2893, %v2910
        %v2930 = vadd.f32 %v2894, %v2914
        %v2931 = vadd.f32 %v2895, %v2914
        %v2932 = vadd.f32 %v2896, %v2918
        %v2933 = vadd.f32 %v2897, %v2918
        %v2934 = vadd.f32 %v2898, %v2922
        %v2935 = vadd.f32 %v2899, %v2922
        %2936 = vmatprep.subr.mxu0 0.0
        %2937 = vmatpush1.msra.mxu0 0.0
        %2938 = vmatprep.subr.mxu0 0.0
        %2939 = vmatpush1.msra.mxu0 0.0
        %2940 = vmatprep.subr.mxu0 0.0
        %2941 = vmatpush1.msra.mxu0 0.0
        %2942 = vmatprep.subr.mxu0 0.0
        %2943 = vmatpush1.msra.mxu0 0.0
        %2944 = vmatprep.subr.mxu0 0.0
        %2945 = vmatpush1.msra.mxu0 0.0
        %2946 = vmatprep.subr.mxu0 0.0
        %2947 = vmatpush1.msra.mxu0 0.0
        %2948 = vmatprep.subr.mxu0 0.0
        %2949 = vmatpush1.msra.mxu0 0.0
        %2950 = vmatprep.subr.mxu0 0.0
        %2951 = vmatpush1.msra.mxu0 0.0
        %2952 = vmatprep.subr.mxu0 0.0
        %2953 = vmatpush1.msra.mxu0 0.0
        %2954 = vmatprep.subr.mxu0 0.0
        %2955 = vmatpush1.msra.mxu0 0.0
        %2956 = vmatprep.subr.mxu0 %v2935
        %2957 = vmatpush1.msra.mxu0 %v2934
        %2958 = vmatprep.subr.mxu0 %v2933
        %2959 = vmatpush1.msra.mxu0 %v2932
        %2960 = vmatprep.subr.mxu0 %v2931
        %2961 = vmatpush1.msra.mxu0 %v2930
        %2962 = vmatprep.subr.mxu0 %v2929
        %2963 = vmatpush1.msra.mxu0 %v2928
        %2964 = vmatprep.subr.mxu0 %v2927
        %2965 = vmatpush1.msra.mxu0 %v2926
        %2966 = vmatprep.subr.mxu0 %v2925
        %2967 = vmatpush1.msra.mxu0 %v2924
        %2968 = vmatprep.subr.mxu0 0.0
        %2969 = vmatpush2.msra.mxu0 0.0
        %2970 = vmatprep.subr.mxu0 0.0
        %2971 = vmatpush2.msra.mxu0 0.0
        %2972 = vmatprep.subr.mxu0 0.0
        %2973 = vmatpush2.msra.mxu0 0.0
        %2974 = vmatprep.subr.mxu0 0.0
        %2975 = vmatpush2.msra.mxu0 0.0
        %2976 = vmatprep.subr.mxu0 0.0
        %2977 = vmatpush2.msra.mxu0 0.0
        %2978 = vmatprep.subr.mxu0 0.0
        %2979 = vmatpush2.msra.mxu0 0.0
        %2980 = vmatprep.subr.mxu0 0.0
        %2981 = vmatpush2.msra.mxu0 0.0
        %2982 = vmatprep.subr.mxu0 0.0
        %2983 = vmatpush2.msra.mxu0 0.0
        %2984 = vmatprep.subr.mxu0 0.0
        %2985 = vmatpush2.msra.mxu0 0.0
        %2986 = vmatprep.subr.mxu0 0.0
        %2987 = vmatpush2.msra.mxu0 0.0
        %2988 = vmatprep.subr.mxu0 0.0
        %2989 = vmatpush2.msra.mxu0 0.0
        %2990 = vmatprep.subr.mxu0 0.0
        %2991 = vmatpush2.msra.mxu0 0.0
        %2992 = vmatprep.subr.mxu0 0.0
        %2993 = vmatpush2.msra.mxu0 0.0
        %2994 = vmatprep.subr.mxu0 0.0
        %2995 = vmatpush2.msra.mxu0 0.0
        %2996 = vmatprep.subr.mxu0 0.0
        %2997 = vmatpush2.msra.mxu0 0.0
        %2998 = vmatprep.subr.mxu0 0.0
        %2999 = vmatpush2.msra.mxu0 0.0
        %3000 = vmatprep.mubr.f32.mxu0 0.0
        %3001 = vmatmul.mubr.f32.gmra.mxu0 %v969
        %v3002 = vpop.f32.mrf.mxu0
        %v3003 = vadd.f32 0.0, %v3002
        %v3004 = vpop.f32.mrf.mxu0
        %v3005 = vadd.f32 0.0, %v3004
        %3006 = vmatprep.mubr.f32.mxu0 0.0
        %3007 = vmatmul.mubr.f32.gmra.mxu0 %v972
        %v3008 = vpop.f32.mrf.mxu0
        %v3009 = vadd.f32 0.0, %v3008
        %v3010 = vpop.f32.mrf.mxu0
        %v3011 = vadd.f32 0.0, %v3010
        %3012 = vmatprep.mubr.f32.mxu0 0.0
        %3013 = vmatmul.mubr.f32.gmra.mxu0 %v975
        %v3014 = vpop.f32.mrf.mxu0
        %v3015 = vadd.f32 0.0, %v3014
        %v3016 = vpop.f32.mrf.mxu0
        %v3017 = vadd.f32 0.0, %v3016
        %3018 = vmatprep.mubr.f32.mxu0 0.0
        %3019 = vmatmul.mubr.f32.gmra.mxu0 %v978
        %v3020 = vpop.f32.mrf.mxu0
        %v3021 = vadd.f32 0.0, %v3020
        %v3022 = vpop.f32.mrf.mxu0
        %v3023 = vadd.f32 0.0, %v3022
        %3024 = vmatprep.mubr.f32.mxu0 0.0
        %3025 = vmatmul.mubr.f32.gmra.mxu0 %v981
        %v3026 = vpop.f32.mrf.mxu0
        %v3027 = vadd.f32 0.0, %v3026
        %v3028 = vpop.f32.mrf.mxu0
        %v3029 = vadd.f32 0.0, %v3028
        %3030 = vmatprep.mubr.f32.mxu0 0.0
        %3031 = vmatmul.mubr.f32.gmra.mxu0 %v984
        %v3032 = vpop.f32.mrf.mxu0
        %v3033 = vadd.f32 0.0, %v3032
        %v3034 = vpop.f32.mrf.mxu0
        %v3035 = vadd.f32 0.0, %v3034
        %3036 = vdwg.mxu0
        %v3037 = vsub.f32 %v2924, %v3003
        %v3038 = vsub.f32 %v2925, %v3005
        %v3039 = vsub.f32 %v2926, %v3009
        %v3040 = vsub.f32 %v2927, %v3011
        %v3041 = vsub.f32 %v2928, %v3015
        %v3042 = vsub.f32 %v2929, %v3017
        %v3043 = vsub.f32 %v2930, %v3021
        %v3044 = vsub.f32 %v2931, %v3023
        %v3045 = vsub.f32 %v2932, %v3027
        %v3046 = vsub.f32 %v2933, %v3029
        %v3047 = vsub.f32 %v2934, %v3033
        %v3048 = vsub.f32 %v2935, %v3035
        %v3049 = vmul.f32 %v3037, %v3037
        %v3050 = vmul.f32 %v3038, %v3038
        %v3051 = vmul.f32 %v3039, %v3039
        %v3052 = vmul.f32 %v3040, %v3040
        %v3053 = vmul.f32 %v3041, %v3041
        %v3054 = vmul.f32 %v3042, %v3042
        %v3055 = vmul.f32 %v3043, %v3043
        %v3056 = vmul.f32 %v3044, %v3044
        %v3057 = vmul.f32 %v3045, %v3045
        %v3058 = vmul.f32 %v3046, %v3046
        %v3059 = vmul.f32 %v3047, %v3047
        %v3060 = vmul.f32 %v3048, %v3048
        %3061 = vmatprep.subr.mxu0 0.0
        %3062 = vmatpush1.msra.mxu0 0.0
        %3063 = vmatprep.subr.mxu0 0.0
        %3064 = vmatpush1.msra.mxu0 0.0
        %3065 = vmatprep.subr.mxu0 0.0
        %3066 = vmatpush1.msra.mxu0 0.0
        %3067 = vmatprep.subr.mxu0 0.0
        %3068 = vmatpush1.msra.mxu0 0.0
        %3069 = vmatprep.subr.mxu0 0.0
        %3070 = vmatpush1.msra.mxu0 0.0
        %3071 = vmatprep.subr.mxu0 0.0
        %3072 = vmatpush1.msra.mxu0 0.0
        %3073 = vmatprep.subr.mxu0 0.0
        %3074 = vmatpush1.msra.mxu0 0.0
        %3075 = vmatprep.subr.mxu0 0.0
        %3076 = vmatpush1.msra.mxu0 0.0
        %3077 = vmatprep.subr.mxu0 0.0
        %3078 = vmatpush1.msra.mxu0 0.0
        %3079 = vmatprep.subr.mxu0 0.0
        %3080 = vmatpush1.msra.mxu0 0.0
        %3081 = vmatprep.subr.mxu0 %v3060
        %3082 = vmatpush1.msra.mxu0 %v3059
        %3083 = vmatprep.subr.mxu0 %v3058
        %3084 = vmatpush1.msra.mxu0 %v3057
        %3085 = vmatprep.subr.mxu0 %v3056
        %3086 = vmatpush1.msra.mxu0 %v3055
        %3087 = vmatprep.subr.mxu0 %v3054
        %3088 = vmatpush1.msra.mxu0 %v3053
        %3089 = vmatprep.subr.mxu0 %v3052
        %3090 = vmatpush1.msra.mxu0 %v3051
        %3091 = vmatprep.subr.mxu0 %v3050
        %3092 = vmatpush1.msra.mxu0 %v3049
        %3093 = vmatprep.subr.mxu0 0.0
        %3094 = vmatpush2.msra.mxu0 0.0
        %3095 = vmatprep.subr.mxu0 0.0
        %3096 = vmatpush2.msra.mxu0 0.0
        %3097 = vmatprep.subr.mxu0 0.0
        %3098 = vmatpush2.msra.mxu0 0.0
        %3099 = vmatprep.subr.mxu0 0.0
        %3100 = vmatpush2.msra.mxu0 0.0
        %3101 = vmatprep.subr.mxu0 0.0
        %3102 = vmatpush2.msra.mxu0 0.0
        %3103 = vmatprep.subr.mxu0 0.0
        %3104 = vmatpush2.msra.mxu0 0.0
        %3105 = vmatprep.subr.mxu0 0.0
        %3106 = vmatpush2.msra.mxu0 0.0
        %3107 = vmatprep.subr.mxu0 0.0
        %3108 = vmatpush2.msra.mxu0 0.0
        %3109 = vmatprep.subr.mxu0 0.0
        %3110 = vmatpush2.msra.mxu0 0.0
        %3111 = vmatprep.subr.mxu0 0.0
        %3112 = vmatpush2.msra.mxu0 0.0
        %3113 = vmatprep.subr.mxu0 0.0
        %3114 = vmatpush2.msra.mxu0 0.0
        %3115 = vmatprep.subr.mxu0 0.0
        %3116 = vmatpush2.msra.mxu0 0.0
        %3117 = vmatprep.subr.mxu0 0.0
        %3118 = vmatpush2.msra.mxu0 0.0
        %3119 = vmatprep.subr.mxu0 0.0
        %3120 = vmatpush2.msra.mxu0 0.0
        %3121 = vmatprep.subr.mxu0 0.0
        %3122 = vmatpush2.msra.mxu0 0.0
        %3123 = vmatprep.subr.mxu0 0.0
        %3124 = vmatpush2.msra.mxu0 0.0
        %3125 = vmatprep.mubr.f32.mxu0 0.0
        %3126 = vmatmul.mubr.f32.gmra.mxu0 %v969
        %v3127 = vpop.f32.mrf.mxu0
        %v3128 = vadd.f32 1e-05, %v3127
        %v3129 = vpop.f32.mrf.mxu0
        %v3130 = vadd.f32 1e-05, %v3129
        %3131 = vmatprep.mubr.f32.mxu0 0.0
        %3132 = vmatmul.mubr.f32.gmra.mxu0 %v972
        %v3133 = vpop.f32.mrf.mxu0
        %v3134 = vadd.f32 1e-05, %v3133
        %v3135 = vpop.f32.mrf.mxu0
        %v3136 = vadd.f32 1e-05, %v3135
        %3137 = vmatprep.mubr.f32.mxu0 0.0
        %3138 = vmatmul.mubr.f32.gmra.mxu0 %v975
        %v3139 = vpop.f32.mrf.mxu0
        %v3140 = vadd.f32 1e-05, %v3139
        %v3141 = vpop.f32.mrf.mxu0
        %v3142 = vadd.f32 1e-05, %v3141
        %3143 = vmatprep.mubr.f32.mxu0 0.0
        %3144 = vmatmul.mubr.f32.gmra.mxu0 %v978
        %v3145 = vpop.f32.mrf.mxu0
        %v3146 = vadd.f32 1e-05, %v3145
        %v3147 = vpop.f32.mrf.mxu0
        %v3148 = vadd.f32 1e-05, %v3147
        %3149 = vmatprep.mubr.f32.mxu0 0.0
        %3150 = vmatmul.mubr.f32.gmra.mxu0 %v981
        %v3151 = vpop.f32.mrf.mxu0
        %v3152 = vadd.f32 1e-05, %v3151
        %v3153 = vpop.f32.mrf.mxu0
        %v3154 = vadd.f32 1e-05, %v3153
        %3155 = vmatprep.mubr.f32.mxu0 0.0
        %3156 = vmatmul.mubr.f32.gmra.mxu0 %v984
        %v3157 = vpop.f32.mrf.mxu0
        %v3158 = vadd.f32 1e-05, %v3157
        %v3159 = vpop.f32.mrf.mxu0
        %v3160 = vadd.f32 1e-05, %v3159
        %3161 = vdwg.mxu0
        %v3162 = vrsqrt.pop %v3128
        %v3163 = vrsqrt.pop %v3130
        %v3164 = vrsqrt.pop %v3134
        %v3165 = vrsqrt.pop %v3136
        %v3166 = vrsqrt.pop %v3140
        %v3167 = vrsqrt.pop %v3142
        %v3168 = vrsqrt.pop %v3146
        %v3169 = vrsqrt.pop %v3148
        %v3170 = vrsqrt.pop %v3152
        %v3171 = vrsqrt.pop %v3154
        %v3172 = vrsqrt.pop %v3158
        %v3173 = vrsqrt.pop %v3160
        %v3174 = vmul.f32 %v3037, %v3162
        %v3175 = vmul.f32 %v3038, %v3163
        %v3176 = vmul.f32 %v3039, %v3164
        %v3177 = vmul.f32 %v3040, %v3165
        %v3178 = vmul.f32 %v3041, %v3166
        %v3179 = vmul.f32 %v3042, %v3167
        %v3180 = vmul.f32 %v3043, %v3168
        %v3181 = vmul.f32 %v3044, %v3169
        %v3182 = vmul.f32 %v3045, %v3170
        %v3183 = vmul.f32 %v3046, %v3171
        %v3184 = vmul.f32 %v3047, %v3172
        %v3185 = vmul.f32 %v3048, %v3173
        %3187 = vset.pattern.permute.xlu0 0
        %3188 = vperm.xlu0 %3187, %v907
        %v3189 = vpop.permute.xlu0 %3188
        %3192 = vset.pattern.permute.xlu0 0
        %3193 = vperm.xlu0 %3192, %v908
        %v3194 = vpop.permute.xlu0 %3193
        %3197 = vset.pattern.permute.xlu0 0
        %3198 = vperm.xlu0 %3197, %v909
        %v3199 = vpop.permute.xlu0 %3198
        %3202 = vset.pattern.permute.xlu0 0
        %3203 = vperm.xlu0 %3202, %v910
        %v3204 = vpop.permute.xlu0 %3203
        %3207 = vset.pattern.permute.xlu0 0
        %3208 = vperm.xlu0 %3207, %v911
        %v3209 = vpop.permute.xlu0 %3208
        %3212 = vset.pattern.permute.xlu0 0
        %3213 = vperm.xlu0 %3212, %v912
        %v3214 = vpop.permute.xlu0 %3213
        %v3216 = vmul.f32 %v3174, %v3189
        %v3217 = vmul.f32 %v3175, %v3189
        %v3218 = vmul.f32 %v3176, %v3194
        %v3219 = vmul.f32 %v3177, %v3194
        %v3220 = vmul.f32 %v3178, %v3199
        %v3221 = vmul.f32 %v3179, %v3199
        %v3222 = vmul.f32 %v3180, %v3204
        %v3223 = vmul.f32 %v3181, %v3204
        %v3224 = vmul.f32 %v3182, %v3209
        %v3225 = vmul.f32 %v3183, %v3209
        %v3226 = vmul.f32 %v3184, %v3214
        %v3227 = vmul.f32 %v3185, %v3214
        %3228 = vset.pattern.permute.xlu0 1
        %3229 = vperm.xlu0 %3228, %v907
        %v3230 = vpop.permute.xlu0 %3229
        %3232 = vset.pattern.permute.xlu0 1
        %3233 = vperm.xlu0 %3232, %v908
        %v3234 = vpop.permute.xlu0 %3233
        %3236 = vset.pattern.permute.xlu0 1
        %3237 = vperm.xlu0 %3236, %v909
        %v3238 = vpop.permute.xlu0 %3237
        %3240 = vset.pattern.permute.xlu0 1
        %3241 = vperm.xlu0 %3240, %v910
        %v3242 = vpop.permute.xlu0 %3241
        %3244 = vset.pattern.permute.xlu0 1
        %3245 = vperm.xlu0 %3244, %v911
        %v3246 = vpop.permute.xlu0 %3245
        %3248 = vset.pattern.permute.xlu0 1
        %3249 = vperm.xlu0 %3248, %v912
        %v3250 = vpop.permute.xlu0 %3249
        %v3252 = vadd.f32 %v3216, %v3230
        %v3253 = vadd.f32 %v3217, %v3230
        %v3254 = vadd.f32 %v3218, %v3234
        %v3255 = vadd.f32 %v3219, %v3234
        %v3256 = vadd.f32 %v3220, %v3238
        %v3257 = vadd.f32 %v3221, %v3238
        %v3258 = vadd.f32 %v3222, %v3242
        %v3259 = vadd.f32 %v3223, %v3242
        %v3260 = vadd.f32 %v3224, %v3246
        %v3261 = vadd.f32 %v3225, %v3246
        %v3262 = vadd.f32 %v3226, %v3250
        %v3263 = vadd.f32 %v3227, %v3250
        %3264 = vset.pattern.permute.xlu0 2
        %3265 = vperm.xlu0 %3264, %v907
        %v3266 = vpop.permute.xlu0 %3265
        %3268 = vset.pattern.permute.xlu0 2
        %3269 = vperm.xlu0 %3268, %v908
        %v3270 = vpop.permute.xlu0 %3269
        %3272 = vset.pattern.permute.xlu0 2
        %3273 = vperm.xlu0 %3272, %v909
        %v3274 = vpop.permute.xlu0 %3273
        %3276 = vset.pattern.permute.xlu0 2
        %3277 = vperm.xlu0 %3276, %v910
        %v3278 = vpop.permute.xlu0 %3277
        %3280 = vset.pattern.permute.xlu0 2
        %3281 = vperm.xlu0 %3280, %v911
        %v3282 = vpop.permute.xlu0 %3281
        %3284 = vset.pattern.permute.xlu0 2
        %3285 = vperm.xlu0 %3284, %v912
        %v3286 = vpop.permute.xlu0 %3285
        %v3289 = vsel %vm967, %v934, 0
        %v3292 = vsel %vm967, %v935, 0
        %v3295 = vsel %vm967, %v936, 0
        %v3298 = vsel %vm967, %v937, 0
        %v3301 = vsel %vm967, %v938, 0
        %v3304 = vsel %vm967, %v939, 0
        %3306 = vmatprep.subr.mxu0 0.0
        %3307 = vmatpush1.msra.mxu0 0.0
        %3308 = vmatprep.subr.mxu0 0.0
        %3309 = vmatpush1.msra.mxu0 0.0
        %3310 = vmatprep.subr.mxu0 0.0
        %3311 = vmatpush1.msra.mxu0 0.0
        %3312 = vmatprep.subr.mxu0 0.0
        %3313 = vmatpush1.msra.mxu0 0.0
        %3314 = vmatprep.subr.mxu0 0.0
        %3315 = vmatpush1.msra.mxu0 0.0
        %3316 = vmatprep.subr.mxu0 0.0
        %3317 = vmatpush1.msra.mxu0 0.0
        %3318 = vmatprep.subr.mxu0 0.0
        %3319 = vmatpush1.msra.mxu0 0.0
        %3320 = vmatprep.subr.mxu0 0.0
        %3321 = vmatpush1.msra.mxu0 0.0
        %3322 = vmatprep.subr.mxu0 0.0
        %3323 = vmatpush1.msra.mxu0 0.0
        %3324 = vmatprep.subr.mxu0 0.0
        %3325 = vmatpush1.msra.mxu0 0.0
        %3326 = vmatprep.subr.mxu0 %v3263
        %3327 = vmatpush1.msra.mxu0 %v3262
        %3328 = vmatprep.subr.mxu0 %v3261
        %3329 = vmatpush1.msra.mxu0 %v3260
        %3330 = vmatprep.subr.mxu0 %v3259
        %3331 = vmatpush1.msra.mxu0 %v3258
        %3332 = vmatprep.subr.mxu0 %v3257
        %3333 = vmatpush1.msra.mxu0 %v3256
        %3334 = vmatprep.subr.mxu0 %v3255
        %3335 = vmatpush1.msra.mxu0 %v3254
        %3336 = vmatprep.subr.mxu0 %v3253
        %3337 = vmatpush1.msra.mxu0 %v3252
        %3338 = vmatprep.subr.mxu0 0.0
        %3339 = vmatpush2.msra.mxu0 0.0
        %3340 = vmatprep.subr.mxu0 0.0
        %3341 = vmatpush2.msra.mxu0 0.0
        %3342 = vmatprep.subr.mxu0 0.0
        %3343 = vmatpush2.msra.mxu0 0.0
        %3344 = vmatprep.subr.mxu0 0.0
        %3345 = vmatpush2.msra.mxu0 0.0
        %3346 = vmatprep.subr.mxu0 0.0
        %3347 = vmatpush2.msra.mxu0 0.0
        %3348 = vmatprep.subr.mxu0 0.0
        %3349 = vmatpush2.msra.mxu0 0.0
        %3350 = vmatprep.subr.mxu0 0.0
        %3351 = vmatpush2.msra.mxu0 0.0
        %3352 = vmatprep.subr.mxu0 0.0
        %3353 = vmatpush2.msra.mxu0 0.0
        %3354 = vmatprep.subr.mxu0 0.0
        %3355 = vmatpush2.msra.mxu0 0.0
        %3356 = vmatprep.subr.mxu0 0.0
        %3357 = vmatpush2.msra.mxu0 0.0
        %3358 = vmatprep.subr.mxu0 0.0
        %3359 = vmatpush2.msra.mxu0 0.0
        %3360 = vmatprep.subr.mxu0 0.0
        %3361 = vmatpush2.msra.mxu0 0.0
        %3362 = vmatprep.subr.mxu0 0.0
        %3363 = vmatpush2.msra.mxu0 0.0
        %3364 = vmatprep.subr.mxu0 0.0
        %3365 = vmatpush2.msra.mxu0 0.0
        %3366 = vmatprep.subr.mxu0 0.0
        %3367 = vmatpush2.msra.mxu0 0.0
        %3368 = vmatprep.subr.mxu0 0.0
        %3369 = vmatpush2.msra.mxu0 0.0
        %3370 = vmatprep.mubr.f32.mxu0 0.0
        %3371 = vmatmul.mubr.f32.gmra.mxu0 %v3289
        %v3372 = vpop.f32.mrf.mxu0
        %v3373 = vadd.f32 %v3266, %v3372
        %v3374 = vpop.f32.mrf.mxu0
        %v3375 = vadd.f32 %v3266, %v3374
        %3376 = vmatprep.mubr.f32.mxu0 0.0
        %3377 = vmatmul.mubr.f32.gmra.mxu0 %v3292
        %v3378 = vpop.f32.mrf.mxu0
        %v3379 = vadd.f32 %v3270, %v3378
        %v3380 = vpop.f32.mrf.mxu0
        %v3381 = vadd.f32 %v3270, %v3380
        %3382 = vmatprep.mubr.f32.mxu0 0.0
        %3383 = vmatmul.mubr.f32.gmra.mxu0 %v3295
        %v3384 = vpop.f32.mrf.mxu0
        %v3385 = vadd.f32 %v3274, %v3384
        %v3386 = vpop.f32.mrf.mxu0
        %v3387 = vadd.f32 %v3274, %v3386
        %3388 = vmatprep.mubr.f32.mxu0 0.0
        %3389 = vmatmul.mubr.f32.gmra.mxu0 %v3298
        %v3390 = vpop.f32.mrf.mxu0
        %v3391 = vadd.f32 %v3278, %v3390
        %v3392 = vpop.f32.mrf.mxu0
        %v3393 = vadd.f32 %v3278, %v3392
        %3394 = vmatprep.mubr.f32.mxu0 0.0
        %3395 = vmatmul.mubr.f32.gmra.mxu0 %v3301
        %v3396 = vpop.f32.mrf.mxu0
        %v3397 = vadd.f32 %v3282, %v3396
        %v3398 = vpop.f32.mrf.mxu0
        %v3399 = vadd.f32 %v3282, %v3398
        %3400 = vmatprep.mubr.f32.mxu0 0.0
        %3401 = vmatmul.mubr.f32.gmra.mxu0 %v3304
        %v3402 = vpop.f32.mrf.mxu0
        %v3403 = vadd.f32 %v3286, %v3402
        %v3404 = vpop.f32.mrf.mxu0
        %v3405 = vadd.f32 %v3286, %v3404
        %3406 = vdwg.mxu0
        %v3407 = vmax.f32 %v3373, 0.0
        %v3408 = vmax.f32 %v3375, 0.0
        %v3409 = vmax.f32 %v3379, 0.0
        %v3410 = vmax.f32 %v3381, 0.0
        %v3411 = vmax.f32 %v3385, 0.0
        %v3412 = vmax.f32 %v3387, 0.0
        %v3413 = vmax.f32 %v3391, 0.0
        %v3414 = vmax.f32 %v3393, 0.0
        %v3415 = vmax.f32 %v3397, 0.0
        %v3416 = vmax.f32 %v3399, 0.0
        %v3417 = vmax.f32 %v3403, 0.0
        %v3418 = vmax.f32 %v3405, 0.0
        %v3420 = vsel %vm967, %v961, 0
        %v3423 = vsel %vm967, %v962, 0
        %v3426 = vsel %vm967, %v963, 0
        %v3429 = vsel %vm967, %v964, 0
        %v3432 = vsel %vm967, %v965, 0
        %v3435 = vsel %vm967, %v966, 0
        %3437 = vmatprep.subr.mxu0 0.0
        %3438 = vmatpush1.msra.mxu0 0.0
        %3439 = vmatprep.subr.mxu0 0.0
        %3440 = vmatpush1.msra.mxu0 0.0
        %3441 = vmatprep.subr.mxu0 0.0
        %3442 = vmatpush1.msra.mxu0 0.0
        %3443 = vmatprep.subr.mxu0 0.0
        %3444 = vmatpush1.msra.mxu0 0.0
        %3445 = vmatprep.subr.mxu0 0.0
        %3446 = vmatpush1.msra.mxu0 0.0
        %3447 = vmatprep.subr.mxu0 0.0
        %3448 = vmatpush1.msra.mxu0 0.0
        %3449 = vmatprep.subr.mxu0 0.0
        %3450 = vmatpush1.msra.mxu0 0.0
        %3451 = vmatprep.subr.mxu0 0.0
        %3452 = vmatpush1.msra.mxu0 0.0
        %3453 = vmatprep.subr.mxu0 0.0
        %3454 = vmatpush1.msra.mxu0 0.0
        %3455 = vmatprep.subr.mxu0 0.0
        %3456 = vmatpush1.msra.mxu0 0.0
        %3457 = vmatprep.subr.mxu0 %v3418
        %3458 = vmatpush1.msra.mxu0 %v3417
        %3459 = vmatprep.subr.mxu0 %v3416
        %3460 = vmatpush1.msra.mxu0 %v3415
        %3461 = vmatprep.subr.mxu0 %v3414
        %3462 = vmatpush1.msra.mxu0 %v3413
        %3463 = vmatprep.subr.mxu0 %v3412
        %3464 = vmatpush1.msra.mxu0 %v3411
        %3465 = vmatprep.subr.mxu0 %v3410
        %3466 = vmatpush1.msra.mxu0 %v3409
        %3467 = vmatprep.subr.mxu0 %v3408
        %3468 = vmatpush1.msra.mxu0 %v3407
        %3469 = vmatprep.subr.mxu0 0.0
        %3470 = vmatpush2.msra.mxu0 0.0
        %3471 = vmatprep.subr.mxu0 0.0
        %3472 = vmatpush2.msra.mxu0 0.0
        %3473 = vmatprep.subr.mxu0 0.0
        %3474 = vmatpush2.msra.mxu0 0.0
        %3475 = vmatprep.subr.mxu0 0.0
        %3476 = vmatpush2.msra.mxu0 0.0
        %3477 = vmatprep.subr.mxu0 0.0
        %3478 = vmatpush2.msra.mxu0 0.0
        %3479 = vmatprep.subr.mxu0 0.0
        %3480 = vmatpush2.msra.mxu0 0.0
        %3481 = vmatprep.subr.mxu0 0.0
        %3482 = vmatpush2.msra.mxu0 0.0
        %3483 = vmatprep.subr.mxu0 0.0
        %3484 = vmatpush2.msra.mxu0 0.0
        %3485 = vmatprep.subr.mxu0 0.0
        %3486 = vmatpush2.msra.mxu0 0.0
        %3487 = vmatprep.subr.mxu0 0.0
        %3488 = vmatpush2.msra.mxu0 0.0
        %3489 = vmatprep.subr.mxu0 0.0
        %3490 = vmatpush2.msra.mxu0 0.0
        %3491 = vmatprep.subr.mxu0 0.0
        %3492 = vmatpush2.msra.mxu0 0.0
        %3493 = vmatprep.subr.mxu0 0.0
        %3494 = vmatpush2.msra.mxu0 0.0
        %3495 = vmatprep.subr.mxu0 0.0
        %3496 = vmatpush2.msra.mxu0 0.0
        %3497 = vmatprep.subr.mxu0 0.0
        %3498 = vmatpush2.msra.mxu0 0.0
        %3499 = vmatprep.subr.mxu0 0.0
        %3500 = vmatpush2.msra.mxu0 0.0
        %3501 = vmatprep.mubr.f32.mxu0 0.0
        %3502 = vmatmul.mubr.f32.gmra.mxu0 %v3420
        %v3503 = vpop.f32.mrf.mxu0
        %v3504 = vadd.f32 0.0, %v3503
        %v3505 = vpop.f32.mrf.mxu0
        %v3506 = vadd.f32 0.0, %v3505
        %3507 = vmatprep.mubr.f32.mxu0 0.0
        %3508 = vmatmul.mubr.f32.gmra.mxu0 %v3423
        %v3509 = vpop.f32.mrf.mxu0
        %v3510 = vadd.f32 0.0, %v3509
        %v3511 = vpop.f32.mrf.mxu0
        %v3512 = vadd.f32 0.0, %v3511
        %3513 = vmatprep.mubr.f32.mxu0 0.0
        %3514 = vmatmul.mubr.f32.gmra.mxu0 %v3426
        %v3515 = vpop.f32.mrf.mxu0
        %v3516 = vadd.f32 0.0, %v3515
        %v3517 = vpop.f32.mrf.mxu0
        %v3518 = vadd.f32 0.0, %v3517
        %3519 = vmatprep.mubr.f32.mxu0 0.0
        %3520 = vmatmul.mubr.f32.gmra.mxu0 %v3429
        %v3521 = vpop.f32.mrf.mxu0
        %v3522 = vadd.f32 0.0, %v3521
        %v3523 = vpop.f32.mrf.mxu0
        %v3524 = vadd.f32 0.0, %v3523
        %3525 = vmatprep.mubr.f32.mxu0 0.0
        %3526 = vmatmul.mubr.f32.gmra.mxu0 %v3432
        %v3527 = vpop.f32.mrf.mxu0
        %v3528 = vadd.f32 0.0, %v3527
        %v3529 = vpop.f32.mrf.mxu0
        %v3530 = vadd.f32 0.0, %v3529
        %3531 = vmatprep.mubr.f32.mxu0 0.0
        %3532 = vmatmul.mubr.f32.gmra.mxu0 %v3435
        %v3533 = vpop.f32.mrf.mxu0
        %v3534 = vadd.f32 0.0, %v3533
        %v3535 = vpop.f32.mrf.mxu0
        %v3536 = vadd.f32 0.0, %v3535
        %3537 = vdwg.mxu0
        %v3538 = vadd.f32 %v2924, %v3504
        %v3539 = vadd.f32 %v2925, %v3506
        %v3540 = vadd.f32 %v2926, %v3510
        %v3541 = vadd.f32 %v2927, %v3512
        %v3542 = vadd.f32 %v2928, %v3516
        %v3543 = vadd.f32 %v2929, %v3518
        %v3544 = vadd.f32 %v2930, %v3522
        %v3545 = vadd.f32 %v2931, %v3524
        %v3546 = vadd.f32 %v2932, %v3528
        %v3547 = vadd.f32 %v2933, %v3530
        %v3548 = vadd.f32 %v2934, %v3534
        %v3549 = vadd.f32 %v2935, %v3536
        %3550 = vset.pattern.permute.xlu0 3
        %3551 = vperm.xlu0 %3550, %v907
        %v3552 = vpop.permute.xlu0 %3551
        %3554 = vset.pattern.permute.xlu0 3
        %3555 = vperm.xlu0 %3554, %v908
        %v3556 = vpop.permute.xlu0 %3555
        %3558 = vset.pattern.permute.xlu0 3
        %3559 = vperm.xlu0 %3558, %v909
        %v3560 = vpop.permute.xlu0 %3559
        %3562 = vset.pattern.permute.xlu0 3
        %3563 = vperm.xlu0 %3562, %v910
        %v3564 = vpop.permute.xlu0 %3563
        %3566 = vset.pattern.permute.xlu0 3
        %3567 = vperm.xlu0 %3566, %v911
        %v3568 = vpop.permute.xlu0 %3567
        %3570 = vset.pattern.permute.xlu0 3
        %3571 = vperm.xlu0 %3570, %v912
        %v3572 = vpop.permute.xlu0 %3571
        %v3574 = vadd.f32 %v3538, %v3552
        %v3575 = vadd.f32 %v3539, %v3552
        %v3576 = vadd.f32 %v3540, %v3556
        %v3577 = vadd.f32 %v3541, %v3556
        %v3578 = vadd.f32 %v3542, %v3560
        %v3579 = vadd.f32 %v3543, %v3560
        %v3580 = vadd.f32 %v3544, %v3564
        %v3581 = vadd.f32 %v3545, %v3564
        %v3582 = vadd.f32 %v3546, %v3568
        %v3583 = vadd.f32 %v3547, %v3568
        %v3584 = vadd.f32 %v3548, %v3572
        %v3585 = vadd.f32 %v3549, %v3572
        %v3587 = vsel %vm967, %v888, 0
        %3589 = vmatprep.subr.mxu0 0.0
        %3590 = vmatpush1.msra.mxu0 0.0
        %3591 = vmatprep.subr.mxu0 0.0
        %3592 = vmatpush1.msra.mxu0 0.0
        %3593 = vmatprep.subr.mxu0 0.0
        %3594 = vmatpush1.msra.mxu0 0.0
        %3595 = vmatprep.subr.mxu0 0.0
        %3596 = vmatpush1.msra.mxu0 0.0
        %3597 = vmatprep.subr.mxu0 0.0
        %3598 = vmatpush1.msra.mxu0 0.0
        %3599 = vmatprep.subr.mxu0 0.0
        %3600 = vmatpush1.msra.mxu0 0.0
        %3601 = vmatprep.subr.mxu0 0.0
        %3602 = vmatpush1.msra.mxu0 0.0
        %3603 = vmatprep.subr.mxu0 0.0
        %3604 = vmatpush1.msra.mxu0 0.0
        %3605 = vmatprep.subr.mxu0 0.0
        %3606 = vmatpush1.msra.mxu0 0.0
        %3607 = vmatprep.subr.mxu0 0.0
        %3608 = vmatpush1.msra.mxu0 0.0
        %3609 = vmatprep.subr.mxu0 %v3585
        %3610 = vmatpush1.msra.mxu0 %v3584
        %3611 = vmatprep.subr.mxu0 %v3583
        %3612 = vmatpush1.msra.mxu0 %v3582
        %3613 = vmatprep.subr.mxu0 %v3581
        %3614 = vmatpush1.msra.mxu0 %v3580
        %3615 = vmatprep.subr.mxu0 %v3579
        %3616 = vmatpush1.msra.mxu0 %v3578
        %3617 = vmatprep.subr.mxu0 %v3577
        %3618 = vmatpush1.msra.mxu0 %v3576
        %3619 = vmatprep.subr.mxu0 %v3575
        %3620 = vmatpush1.msra.mxu0 %v3574
        %3621 = vmatprep.subr.mxu0 0.0
        %3622 = vmatpush2.msra.mxu0 0.0
        %3623 = vmatprep.subr.mxu0 0.0
        %3624 = vmatpush2.msra.mxu0 0.0
        %3625 = vmatprep.subr.mxu0 0.0
        %3626 = vmatpush2.msra.mxu0 0.0
        %3627 = vmatprep.subr.mxu0 0.0
        %3628 = vmatpush2.msra.mxu0 0.0
        %3629 = vmatprep.subr.mxu0 0.0
        %3630 = vmatpush2.msra.mxu0 0.0
        %3631 = vmatprep.subr.mxu0 0.0
        %3632 = vmatpush2.msra.mxu0 0.0
        %3633 = vmatprep.subr.mxu0 0.0
        %3634 = vmatpush2.msra.mxu0 0.0
        %3635 = vmatprep.subr.mxu0 0.0
        %3636 = vmatpush2.msra.mxu0 0.0
        %3637 = vmatprep.subr.mxu0 0.0
        %3638 = vmatpush2.msra.mxu0 0.0
        %3639 = vmatprep.subr.mxu0 0.0
        %3640 = vmatpush2.msra.mxu0 0.0
        %3641 = vmatprep.subr.mxu0 0.0
        %3642 = vmatpush2.msra.mxu0 0.0
        %3643 = vmatprep.subr.mxu0 0.0
        %3644 = vmatpush2.msra.mxu0 0.0
        %3645 = vmatprep.subr.mxu0 0.0
        %3646 = vmatpush2.msra.mxu0 0.0
        %3647 = vmatprep.subr.mxu0 0.0
        %3648 = vmatpush2.msra.mxu0 0.0
        %3649 = vmatprep.subr.mxu0 0.0
        %3650 = vmatpush2.msra.mxu0 0.0
        %3651 = vmatprep.subr.mxu0 0.0
        %3652 = vmatpush2.msra.mxu0 0.0
        %3653 = vmatprep.mubr.f32.mxu0 0.0
        %3654 = vmatmul.mubr.f32.gmra.mxu0 %v3587
        %v3655 = vpop.f32.mrf.mxu0
        %v3656 = vadd.f32 0.0, %v3655
        %v3657 = vpop.f32.mrf.mxu0
        %v3658 = vadd.f32 0.0, %v3657
        %3659 = vdwg.mxu0
        %v3660 = vpack.c.bf16 %v3656, %v3656
        %v3661 = vpack.c.bf16 %v3658, %v3658
        %v3662 = vld [vmem:[%s494] sm:$0xff]
        %v3663 = vld [vmem:[%s494 + $0x8] sm:$0xff]
        %v3664 = vld [vmem:[%s494 + $0x10] sm:$0xff]
        %v3665 = vld [vmem:[%s494 + $0x18] sm:$0xff]
        %v3666 = vld [vmem:[%s494 + $0x20] sm:$0xff]
        %v3667 = vld [vmem:[%s494 + $0x28] sm:$0xff]
        %v3668 = vld [vmem:[%s494 + $0x30] sm:$0xff]
        %v3669 = vld [vmem:[%s494 + $0x38] sm:$0xff]
        %v3670 = vld [vmem:[%s494 + $0x40] sm:$0xff]
        %v3671 = vld [vmem:[%s494 + $0x48] sm:$0xff]
        %v3672 = vld [vmem:[%s494 + $0x50] sm:$0xff]
        %v3673 = vld [vmem:[%s494 + $0x58] sm:$0xff]
        %v3674 = vld [vmem:[%s494 + $0x60] sm:$0xff]
        %v3675 = vld [vmem:[%s494 + $0x68] sm:$0xff]
        %v3676 = vld [vmem:[%s494 + $0x70] sm:$0xff]
        %v3677 = vld [vmem:[%s494 + $0x78] sm:$0xff]
        %v3678 = vld [vmem:[%s494 + $0x80] sm:$0xff]
        %v3679 = vld [vmem:[%s494 + $0x88] sm:$0xff]
        %v3680 = vld [vmem:[%s494 + $0x90] sm:$0xff]
        %v3681 = vld [vmem:[%s494 + $0x98] sm:$0xff]
        %v3682 = vld [vmem:[%s494 + $0xa0] sm:$0xff]
        %v3683 = vld [vmem:[%s494 + $0xa8] sm:$0xff]
        %v3684 = vld [vmem:[%s494 + $0xb0] sm:$0xff]
        %v3685 = vld [vmem:[%s494 + $0xb8] sm:$0xff]
        %v3686 = vld [vmem:[%s494 + $0xc0] sm:$0xff]
        %v3687 = vld [vmem:[%s494 + $0xc8] sm:$0xff]
        %v3688 = vld [vmem:[%s494 + $0xd0] sm:$0xff]
        %v3689 = vld [vmem:[%s494 + $0xd8] sm:$0xff]
        %v3690 = vld [vmem:[%s494 + $0xe0] sm:$0xff]
        %v3691 = vld [vmem:[%s494 + $0xe8] sm:$0xff]
        %v3692 = vld [vmem:[%s494 + $0xf0] sm:$0xff]
        %v3693 = vld [vmem:[%s494 + $0xf8] sm:$0xff]
        %v3694 = vld [vmem:[%s494 + $0x100] sm:$0xff]
        %v3695 = vld [vmem:[%s494 + $0x108] sm:$0xff]
        %v3696 = vld [vmem:[%s494 + $0x110] sm:$0xff]
        %v3697 = vld [vmem:[%s494 + $0x118] sm:$0xff]
        %v3698 = vld [vmem:[%s494 + $0x120] sm:$0xff]
        %v3699 = vld [vmem:[%s494 + $0x128] sm:$0xff]
        %v3700 = vld [vmem:[%s494 + $0x130] sm:$0xff]
        %v3701 = vld [vmem:[%s494 + $0x138] sm:$0xff]
        %v3702 = vld [vmem:[%s494 + $0x140] sm:$0xff]
        %v3703 = vld [vmem:[%s494 + $0x148] sm:$0xff]
        %v3704 = vld [vmem:[%s494 + $0x150] sm:$0xff]
        %v3705 = vld [vmem:[%s494 + $0x158] sm:$0xff]
        %v3706 = vld [vmem:[%s494 + $0x160] sm:$0xff]
        %v3707 = vld [vmem:[%s494 + $0x168] sm:$0xff]
        %v3708 = vld [vmem:[%s494 + $0x170] sm:$0xff]
        %v3709 = vld [vmem:[%s494 + $0x178] sm:$0xff]
        %v3710 = vld [vmem:[%s494 + $0x180] sm:$0xff]
        %v3711 = vld [vmem:[%s494 + $0x188] sm:$0xff]
        %v3712 = vld [vmem:[%s494 + $0x190] sm:$0xff]
        %v3713 = vld [vmem:[%s494 + $0x198] sm:$0xff]
        %v3714 = vld [vmem:[%s494 + $0x1a0] sm:$0xff]
        %v3715 = vld [vmem:[%s494 + $0x1a8] sm:$0xff]
        %v3716 = vld [vmem:[%s494 + $0x1b0] sm:$0xff]
        %v3717 = vld [vmem:[%s494 + $0x1b8] sm:$0xff]
        %v3718 = vld [vmem:[%s494 + $0x1c0] sm:$0xff]
        %v3719 = vld [vmem:[%s494 + $0x1c8] sm:$0xff]
        %v3720 = vld [vmem:[%s494 + $0x1d0] sm:$0xff]
        %v3721 = vld [vmem:[%s494 + $0x1d8] sm:$0xff]
        %v3722 = vld [vmem:[%s494 + $0x1e0] sm:$0xff]
        %v3723 = vld [vmem:[%s494 + $0x1e8] sm:$0xff]
        %v3724 = vld [vmem:[%s494 + $0x1f0] sm:$0xff]
        %v3725 = vld [vmem:[%s494 + $0x1f8] sm:$0xff]
        %v3790 = vunpack.c.l.b16 %v3662
        %v3791 = vunpack.c.h.b16 %v3662
        %v3792 = vunpack.c.l.b16 %v3663
        %v3793 = vunpack.c.h.b16 %v3663
        %v3794 = vunpack.c.l.b16 %v3664
        %v3795 = vunpack.c.h.b16 %v3664
        %v3796 = vunpack.c.l.b16 %v3665
        %v3797 = vunpack.c.h.b16 %v3665
        %v3798 = vunpack.c.l.b16 %v3666
        %v3799 = vunpack.c.h.b16 %v3666
        %v3800 = vunpack.c.l.b16 %v3667
        %v3801 = vunpack.c.h.b16 %v3667
        %v3802 = vunpack.c.l.b16 %v3668
        %v3803 = vunpack.c.h.b16 %v3668
        %v3804 = vunpack.c.l.b16 %v3669
        %v3805 = vunpack.c.h.b16 %v3669
        %v3806 = vunpack.c.l.b16 %v3670
        %v3807 = vunpack.c.h.b16 %v3670
        %v3808 = vunpack.c.l.b16 %v3671
        %v3809 = vunpack.c.h.b16 %v3671
        %v3810 = vunpack.c.l.b16 %v3672
        %v3811 = vunpack.c.h.b16 %v3672
        %v3812 = vunpack.c.l.b16 %v3673
        %v3813 = vunpack.c.h.b16 %v3673
        %v3814 = vunpack.c.l.b16 %v3674
        %v3815 = vunpack.c.h.b16 %v3674
        %v3816 = vunpack.c.l.b16 %v3675
        %v3817 = vunpack.c.h.b16 %v3675
        %v3818 = vunpack.c.l.b16 %v3676
        %v3819 = vunpack.c.h.b16 %v3676
        %v3820 = vunpack.c.l.b16 %v3677
        %v3821 = vunpack.c.h.b16 %v3677
        %v3822 = vunpack.c.l.b16 %v3678
        %v3823 = vunpack.c.h.b16 %v3678
        %v3824 = vunpack.c.l.b16 %v3679
        %v3825 = vunpack.c.h.b16 %v3679
        %v3826 = vunpack.c.l.b16 %v3680
        %v3827 = vunpack.c.h.b16 %v3680
        %v3828 = vunpack.c.l.b16 %v3681
        %v3829 = vunpack.c.h.b16 %v3681
        %v3830 = vunpack.c.l.b16 %v3682
        %v3831 = vunpack.c.h.b16 %v3682
        %v3832 = vunpack.c.l.b16 %v3683
        %v3833 = vunpack.c.h.b16 %v3683
        %v3834 = vunpack.c.l.b16 %v3684
        %v3835 = vunpack.c.h.b16 %v3684
        %v3836 = vunpack.c.l.b16 %v3685
        %v3837 = vunpack.c.h.b16 %v3685
        %v3838 = vunpack.c.l.b16 %v3686
        %v3839 = vunpack.c.h.b16 %v3686
        %v3840 = vunpack.c.l.b16 %v3687
        %v3841 = vunpack.c.h.b16 %v3687
        %v3842 = vunpack.c.l.b16 %v3688
        %v3843 = vunpack.c.h.b16 %v3688
        %v3844 = vunpack.c.l.b16 %v3689
        %v3845 = vunpack.c.h.b16 %v3689
        %v3846 = vunpack.c.l.b16 %v3690
        %v3847 = vunpack.c.h.b16 %v3690
        %v3848 = vunpack.c.l.b16 %v3691
        %v3849 = vunpack.c.h.b16 %v3691
        %v3850 = vunpack.c.l.b16 %v3692
        %v3851 = vunpack.c.h.b16 %v3692
        %v3852 = vunpack.c.l.b16 %v3693
        %v3853 = vunpack.c.h.b16 %v3693
        %v3854 = vunpack.c.l.b16 %v3694
        %v3855 = vunpack.c.h.b16 %v3694
        %v3856 = vunpack.c.l.b16 %v3695
        %v3857 = vunpack.c.h.b16 %v3695
        %v3858 = vunpack.c.l.b16 %v3696
        %v3859 = vunpack.c.h.b16 %v3696
        %v3860 = vunpack.c.l.b16 %v3697
        %v3861 = vunpack.c.h.b16 %v3697
        %v3862 = vunpack.c.l.b16 %v3698
        %v3863 = vunpack.c.h.b16 %v3698
        %v3864 = vunpack.c.l.b16 %v3699
        %v3865 = vunpack.c.h.b16 %v3699
        %v3866 = vunpack.c.l.b16 %v3700
        %v3867 = vunpack.c.h.b16 %v3700
        %v3868 = vunpack.c.l.b16 %v3701
        %v3869 = vunpack.c.h.b16 %v3701
        %v3870 = vunpack.c.l.b16 %v3702
        %v3871 = vunpack.c.h.b16 %v3702
        %v3872 = vunpack.c.l.b16 %v3703
        %v3873 = vunpack.c.h.b16 %v3703
        %v3874 = vunpack.c.l.b16 %v3704
        %v3875 = vunpack.c.h.b16 %v3704
        %v3876 = vunpack.c.l.b16 %v3705
        %v3877 = vunpack.c.h.b16 %v3705
        %v3878 = vunpack.c.l.b16 %v3706
        %v3879 = vunpack.c.h.b16 %v3706
        %v3880 = vunpack.c.l.b16 %v3707
        %v3881 = vunpack.c.h.b16 %v3707
        %v3882 = vunpack.c.l.b16 %v3708
        %v3883 = vunpack.c.h.b16 %v3708
        %v3884 = vunpack.c.l.b16 %v3709
        %v3885 = vunpack.c.h.b16 %v3709
        %v3886 = vunpack.c.l.b16 %v3710
        %v3887 = vunpack.c.h.b16 %v3710
        %v3888 = vunpack.c.l.b16 %v3711
        %v3889 = vunpack.c.h.b16 %v3711
        %v3890 = vunpack.c.l.b16 %v3712
        %v3891 = vunpack.c.h.b16 %v3712
        %v3892 = vunpack.c.l.b16 %v3713
        %v3893 = vunpack.c.h.b16 %v3713
        %v3894 = vunpack.c.l.b16 %v3714
        %v3895 = vunpack.c.h.b16 %v3714
        %v3896 = vunpack.c.l.b16 %v3715
        %v3897 = vunpack.c.h.b16 %v3715
        %v3898 = vunpack.c.l.b16 %v3716
        %v3899 = vunpack.c.h.b16 %v3716
        %v3900 = vunpack.c.l.b16 %v3717
        %v3901 = vunpack.c.h.b16 %v3717
        %v3902 = vunpack.c.l.b16 %v3718
        %v3903 = vunpack.c.h.b16 %v3718
        %v3904 = vunpack.c.l.b16 %v3719
        %v3905 = vunpack.c.h.b16 %v3719
        %v3906 = vunpack.c.l.b16 %v3720
        %v3907 = vunpack.c.h.b16 %v3720
        %v3908 = vunpack.c.l.b16 %v3721
        %v3909 = vunpack.c.h.b16 %v3721
        %v3910 = vunpack.c.l.b16 %v3722
        %v3911 = vunpack.c.h.b16 %v3722
        %v3912 = vunpack.c.l.b16 %v3723
        %v3913 = vunpack.c.h.b16 %v3723
        %v3914 = vunpack.c.l.b16 %v3724
        %v3915 = vunpack.c.h.b16 %v3724
        %v3916 = vunpack.c.l.b16 %v3725
        %v3917 = vunpack.c.h.b16 %v3725
        %v3918 = vpack.c.b16 %v3794, %v3790
        %v3919 = vpack.c.b16 %v3795, %v3791
        %v3920 = vpack.c.b16 %v3796, %v3792
        %v3921 = vpack.c.b16 %v3797, %v3793
        %v3922 = vpack.c.b16 %v3802, %v3798
        %v3923 = vpack.c.b16 %v3803, %v3799
        %v3924 = vpack.c.b16 %v3804, %v3800
        %v3925 = vpack.c.b16 %v3805, %v3801
        %v3926 = vpack.c.b16 %v3810, %v3806
        %v3927 = vpack.c.b16 %v3811, %v3807
        %v3928 = vpack.c.b16 %v3812, %v3808
        %v3929 = vpack.c.b16 %v3813, %v3809
        %v3930 = vpack.c.b16 %v3818, %v3814
        %v3931 = vpack.c.b16 %v3819, %v3815
        %v3932 = vpack.c.b16 %v3820, %v3816
        %v3933 = vpack.c.b16 %v3821, %v3817
        %v3934 = vpack.c.b16 %v3826, %v3822
        %v3935 = vpack.c.b16 %v3827, %v3823
        %v3936 = vpack.c.b16 %v3828, %v3824
        %v3937 = vpack.c.b16 %v3829, %v3825
        %v3938 = vpack.c.b16 %v3834, %v3830
        %v3939 = vpack.c.b16 %v3835, %v3831
        %v3940 = vpack.c.b16 %v3836, %v3832
        %v3941 = vpack.c.b16 %v3837, %v3833
        %v3942 = vpack.c.b16 %v3842, %v3838
        %v3943 = vpack.c.b16 %v3843, %v3839
        %v3944 = vpack.c.b16 %v3844, %v3840
        %v3945 = vpack.c.b16 %v3845, %v3841
        %v3946 = vpack.c.b16 %v3850, %v3846
        %v3947 = vpack.c.b16 %v3851, %v3847
        %v3948 = vpack.c.b16 %v3852, %v3848
        %v3949 = vpack.c.b16 %v3853, %v3849
        %v3950 = vpack.c.b16 %v3858, %v3854
        %v3951 = vpack.c.b16 %v3859, %v3855
        %v3952 = vpack.c.b16 %v3860, %v3856
        %v3953 = vpack.c.b16 %v3861, %v3857
        %v3954 = vpack.c.b16 %v3866, %v3862
        %v3955 = vpack.c.b16 %v3867, %v3863
        %v3956 = vpack.c.b16 %v3868, %v3864
        %v3957 = vpack.c.b16 %v3869, %v3865
        %v3958 = vpack.c.b16 %v3874, %v3870
        %v3959 = vpack.c.b16 %v3875, %v3871
        %v3960 = vpack.c.b16 %v3876, %v3872
        %v3961 = vpack.c.b16 %v3877, %v3873
        %v3962 = vpack.c.b16 %v3882, %v3878
        %v3963 = vpack.c.b16 %v3883, %v3879
        %v3964 = vpack.c.b16 %v3884, %v3880
        %v3965 = vpack.c.b16 %v3885, %v3881
        %v3966 = vpack.c.b16 %v3890, %v3886
        %v3967 = vpack.c.b16 %v3891, %v3887
        %v3968 = vpack.c.b16 %v3892, %v3888
        %v3969 = vpack.c.b16 %v3893, %v3889
        %v3970 = vpack.c.b16 %v3898, %v3894
        %v3971 = vpack.c.b16 %v3899, %v3895
        %v3972 = vpack.c.b16 %v3900, %v3896
        %v3973 = vpack.c.b16 %v3901, %v3897
        %v3974 = vpack.c.b16 %v3906, %v3902
        %v3975 = vpack.c.b16 %v3907, %v3903
        %v3976 = vpack.c.b16 %v3908, %v3904
        %v3977 = vpack.c.b16 %v3909, %v3905
        %v3978 = vpack.c.b16 %v3914, %v3910
        %v3979 = vpack.c.b16 %v3915, %v3911
        %v3980 = vpack.c.b16 %v3916, %v3912
        %v3981 = vpack.c.b16 %v3917, %v3913
        %4046 = vmatprep.subr.bf16.mxu0 %v3947
        %4047 = vmatpush1.bf16.msra.mxu0 %v3946
        %4048 = vmatprep.subr.bf16.mxu0 %v3943
        %4049 = vmatpush1.bf16.msra.mxu0 %v3942
        %4050 = vmatprep.subr.bf16.mxu0 %v3939
        %4051 = vmatpush1.bf16.msra.mxu0 %v3938
        %4052 = vmatprep.subr.bf16.mxu0 %v3935
        %4053 = vmatpush1.bf16.msra.mxu0 %v3934
        %4054 = vmatprep.subr.bf16.mxu0 %v3931
        %4055 = vmatpush1.bf16.msra.mxu0 %v3930
        %4056 = vmatprep.subr.bf16.mxu0 %v3927
        %4057 = vmatpush1.bf16.msra.mxu0 %v3926
        %4058 = vmatprep.subr.bf16.mxu0 %v3923
        %4059 = vmatpush1.bf16.msra.mxu0 %v3922
        %4060 = vmatprep.subr.bf16.mxu0 %v3919
        %4061 = vmatpush1.bf16.msra.mxu0 %v3918
        %4062 = vmatprep.subr.bf16.mxu0 %v3979
        %4063 = vmatpush2.bf16.msra.mxu0 %v3978
        %4064 = vmatprep.subr.bf16.mxu0 %v3975
        %4065 = vmatpush2.bf16.msra.mxu0 %v3974
        %4066 = vmatprep.subr.bf16.mxu0 %v3971
        %4067 = vmatpush2.bf16.msra.mxu0 %v3970
        %4068 = vmatprep.subr.bf16.mxu0 %v3967
        %4069 = vmatpush2.bf16.msra.mxu0 %v3966
        %4070 = vmatprep.subr.bf16.mxu0 %v3963
        %4071 = vmatpush2.bf16.msra.mxu0 %v3962
        %4072 = vmatprep.subr.bf16.mxu0 %v3959
        %4073 = vmatpush2.bf16.msra.mxu0 %v3958
        %4074 = vmatprep.subr.bf16.mxu0 %v3955
        %4075 = vmatpush2.bf16.msra.mxu0 %v3954
        %4076 = vmatprep.subr.bf16.mxu0 %v3951
        %4077 = vmatpush2.bf16.msra.mxu0 %v3950
        %4078 = vmatprep.mubr.bf16.mxu0 %v3661
        %4079 = vmatmul.mubr.bf16.gmra.mxu0 %v3660
        %v4080 = vpop.f32.mrf.mxu0
        %v4081 = vadd.f32 0.0, %v4080
        %v4082 = vpop.f32.mrf.mxu0
        %v4083 = vadd.f32 0.0, %v4082
        %v4084 = vpop.f32.mrf.mxu0
        %v4085 = vpop.f32.mrf.mxu0
        %4086 = vdwg.mxu0
        %4087 = vmatprep.subr.bf16.mxu0 %v3949
        %4088 = vmatpush1.bf16.msra.mxu0 %v3948
        %4089 = vmatprep.subr.bf16.mxu0 %v3945
        %4090 = vmatpush1.bf16.msra.mxu0 %v3944
        %4091 = vmatprep.subr.bf16.mxu0 %v3941
        %4092 = vmatpush1.bf16.msra.mxu0 %v3940
        %4093 = vmatprep.subr.bf16.mxu0 %v3937
        %4094 = vmatpush1.bf16.msra.mxu0 %v3936
        %4095 = vmatprep.subr.bf16.mxu0 %v3933
        %4096 = vmatpush1.bf16.msra.mxu0 %v3932
        %4097 = vmatprep.subr.bf16.mxu0 %v3929
        %4098 = vmatpush1.bf16.msra.mxu0 %v3928
        %4099 = vmatprep.subr.bf16.mxu0 %v3925
        %4100 = vmatpush1.bf16.msra.mxu0 %v3924
        %4101 = vmatprep.subr.bf16.mxu0 %v3921
        %4102 = vmatpush1.bf16.msra.mxu0 %v3920
        %4103 = vmatprep.subr.bf16.mxu0 %v3981
        %4104 = vmatpush2.bf16.msra.mxu0 %v3980
        %4105 = vmatprep.subr.bf16.mxu0 %v3977
        %4106 = vmatpush2.bf16.msra.mxu0 %v3976
        %4107 = vmatprep.subr.bf16.mxu0 %v3973
        %4108 = vmatpush2.bf16.msra.mxu0 %v3972
        %4109 = vmatprep.subr.bf16.mxu0 %v3969
        %4110 = vmatpush2.bf16.msra.mxu0 %v3968
        %4111 = vmatprep.subr.bf16.mxu0 %v3965
        %4112 = vmatpush2.bf16.msra.mxu0 %v3964
        %4113 = vmatprep.subr.bf16.mxu0 %v3961
        %4114 = vmatpush2.bf16.msra.mxu0 %v3960
        %4115 = vmatprep.subr.bf16.mxu0 %v3957
        %4116 = vmatpush2.bf16.msra.mxu0 %v3956
        %4117 = vmatprep.subr.bf16.mxu0 %v3953
        %4118 = vmatpush2.bf16.msra.mxu0 %v3952
        %4119 = vmatprep.mubr.bf16.mxu0 %v3661
        %4120 = vmatmul.mubr.bf16.gmra.mxu0 %v3660
        %v4121 = vpop.f32.mrf.mxu0
        %v4122 = vadd.f32 0.0, %v4121
        %v4123 = vpop.f32.mrf.mxu0
        %v4124 = vadd.f32 0.0, %v4123
        %v4125 = vpop.f32.mrf.mxu0
        %v4126 = vpop.f32.mrf.mxu0
        %4127 = vdwg.mxu0
        %v4128 = vld [vmem:[%s538] sm:$0xff]
        %v4129 = vld [vmem:[%s538 + $0x8] sm:$0xff]
        %v4130 = vld [vmem:[%s538 + $0x10] sm:$0xff]
        %v4131 = vld [vmem:[%s538 + $0x18] sm:$0xff]
        %v4132 = vadd.f32 %v4128, %v4081
        %v4133 = vadd.f32 %v4129, %v4083
        %v4134 = vadd.f32 %v4130, %v4122
        %v4135 = vadd.f32 %v4131, %v4124
        %4136 = vst [vmem:[%s538] sm:$0xff] %v4132
        %4137 = vst [vmem:[%s538 + $0x8] sm:$0xff] %v4133
        %4138 = vst [vmem:[%s538 + $0x10] sm:$0xff] %v4134
        %4139 = vst [vmem:[%s538 + $0x18] sm:$0xff] %v4135
        %4140 = vmatprep.subr.mxu0 0.0
        %4141 = vmatpush1.msra.mxu0 0.0
        %4142 = vmatprep.subr.mxu0 0.0
        %4143 = vmatpush1.msra.mxu0 0.0
        %4144 = vmatprep.subr.mxu0 0.0
        %4145 = vmatpush1.msra.mxu0 0.0
        %4146 = vmatprep.subr.mxu0 0.0
        %4147 = vmatpush1.msra.mxu0 0.0
        %4148 = vmatprep.subr.mxu0 0.0
        %4149 = vmatpush1.msra.mxu0 0.0
        %4150 = vmatprep.subr.mxu0 0.0
        %4151 = vmatpush1.msra.mxu0 0.0
        %4152 = vmatprep.subr.mxu0 0.0
        %4153 = vmatpush1.msra.mxu0 0.0
        %4154 = vmatprep.subr.mxu0 0.0
        %4155 = vmatpush1.msra.mxu0 0.0
        %4156 = vmatprep.subr.mxu0 0.0
        %4157 = vmatpush1.msra.mxu0 0.0
        %4158 = vmatprep.subr.mxu0 0.0
        %4159 = vmatpush1.msra.mxu0 0.0
        %4160 = vmatprep.subr.mxu0 %v846
        %4161 = vmatpush1.msra.mxu0 %v844
        %4162 = vmatprep.subr.mxu0 %v842
        %4163 = vmatpush1.msra.mxu0 %v840
        %4164 = vmatprep.subr.mxu0 %v836
        %4165 = vmatpush1.msra.mxu0 %v834
        %4166 = vmatprep.subr.mxu0 %v832
        %4167 = vmatpush1.msra.mxu0 %v830
        %4168 = vmatprep.subr.mxu0 %v826
        %4169 = vmatpush1.msra.mxu0 %v824
        %4170 = vmatprep.subr.mxu0 %v822
        %4171 = vmatpush1.msra.mxu0 %v820
        %4172 = vmatprep.subr.mxu0 0.0
        %4173 = vmatpush2.msra.mxu0 0.0
        %4174 = vmatprep.subr.mxu0 0.0
        %4175 = vmatpush2.msra.mxu0 0.0
        %4176 = vmatprep.subr.mxu0 0.0
        %4177 = vmatpush2.msra.mxu0 0.0
        %4178 = vmatprep.subr.mxu0 0.0
        %4179 = vmatpush2.msra.mxu0 0.0
        %4180 = vmatprep.subr.mxu0 0.0
        %4181 = vmatpush2.msra.mxu0 0.0
        %4182 = vmatprep.subr.mxu0 0.0
        %4183 = vmatpush2.msra.mxu0 0.0
        %4184 = vmatprep.subr.mxu0 0.0
        %4185 = vmatpush2.msra.mxu0 0.0
        %4186 = vmatprep.subr.mxu0 0.0
        %4187 = vmatpush2.msra.mxu0 0.0
        %4188 = vmatprep.subr.mxu0 0.0
        %4189 = vmatpush2.msra.mxu0 0.0
        %4190 = vmatprep.subr.mxu0 0.0
        %4191 = vmatpush2.msra.mxu0 0.0
        %4192 = vmatprep.subr.mxu0 0.0
        %4193 = vmatpush2.msra.mxu0 0.0
        %4194 = vmatprep.subr.mxu0 0.0
        %4195 = vmatpush2.msra.mxu0 0.0
        %4196 = vmatprep.subr.mxu0 0.0
        %4197 = vmatpush2.msra.mxu0 0.0
        %4198 = vmatprep.subr.mxu0 0.0
        %4199 = vmatpush2.msra.mxu0 0.0
        %4200 = vmatprep.subr.mxu0 0.0
        %4201 = vmatpush2.msra.mxu0 0.0
        %4202 = vmatprep.subr.mxu0 0.0
        %4203 = vmatpush2.msra.mxu0 0.0
        %4204 = vmatprep.mubr.f32.mxu0 0.0
        %4205 = vmatmul.mubr.f32.gmra.mxu0 %v969
        %v4206 = vpop.f32.mrf.mxu0
        %v4207 = vadd.f32 0.0, %v4206
        %v4208 = vpop.f32.mrf.mxu0
        %v4209 = vadd.f32 0.0, %v4208
        %4210 = vmatprep.mubr.f32.mxu0 0.0
        %4211 = vmatmul.mubr.f32.gmra.mxu0 %v972
        %v4212 = vpop.f32.mrf.mxu0
        %v4213 = vadd.f32 0.0, %v4212
        %v4214 = vpop.f32.mrf.mxu0
        %v4215 = vadd.f32 0.0, %v4214
        %4216 = vmatprep.mubr.f32.mxu0 0.0
        %4217 = vmatmul.mubr.f32.gmra.mxu0 %v975
        %v4218 = vpop.f32.mrf.mxu0
        %v4219 = vadd.f32 0.0, %v4218
        %v4220 = vpop.f32.mrf.mxu0
        %v4221 = vadd.f32 0.0, %v4220
        %4222 = vmatprep.mubr.f32.mxu0 0.0
        %4223 = vmatmul.mubr.f32.gmra.mxu0 %v978
        %v4224 = vpop.f32.mrf.mxu0
        %v4225 = vadd.f32 0.0, %v4224
        %v4226 = vpop.f32.mrf.mxu0
        %v4227 = vadd.f32 0.0, %v4226
        %4228 = vmatprep.mubr.f32.mxu0 0.0
        %4229 = vmatmul.mubr.f32.gmra.mxu0 %v981
        %v4230 = vpop.f32.mrf.mxu0
        %v4231 = vadd.f32 0.0, %v4230
        %v4232 = vpop.f32.mrf.mxu0
        %v4233 = vadd.f32 0.0, %v4232
        %4234 = vmatprep.mubr.f32.mxu0 0.0
        %4235 = vmatmul.mubr.f32.gmra.mxu0 %v984
        %v4236 = vpop.f32.mrf.mxu0
        %v4237 = vadd.f32 0.0, %v4236
        %v4238 = vpop.f32.mrf.mxu0
        %v4239 = vadd.f32 0.0, %v4238
        %4240 = vdwg.mxu0
        %v4241 = vsub.f32 %v820, %v4207
        %v4242 = vsub.f32 %v822, %v4209
        %v4243 = vsub.f32 %v824, %v4213
        %v4244 = vsub.f32 %v826, %v4215
        %v4245 = vsub.f32 %v830, %v4219
        %v4246 = vsub.f32 %v832, %v4221
        %v4247 = vsub.f32 %v834, %v4225
        %v4248 = vsub.f32 %v836, %v4227
        %v4249 = vsub.f32 %v840, %v4231
        %v4250 = vsub.f32 %v842, %v4233
        %v4251 = vsub.f32 %v844, %v4237
        %v4252 = vsub.f32 %v846, %v4239
        %v4253 = vmul.f32 %v4241, %v4241
        %v4254 = vmul.f32 %v4242, %v4242
        %v4255 = vmul.f32 %v4243, %v4243
        %v4256 = vmul.f32 %v4244, %v4244
        %v4257 = vmul.f32 %v4245, %v4245
        %v4258 = vmul.f32 %v4246, %v4246
        %v4259 = vmul.f32 %v4247, %v4247
        %v4260 = vmul.f32 %v4248, %v4248
        %v4261 = vmul.f32 %v4249, %v4249
        %v4262 = vmul.f32 %v4250, %v4250
        %v4263 = vmul.f32 %v4251, %v4251
        %v4264 = vmul.f32 %v4252, %v4252
        %4265 = vmatprep.subr.mxu0 0.0
        %4266 = vmatpush1.msra.mxu0 0.0
        %4267 = vmatprep.subr.mxu0 0.0
        %4268 = vmatpush1.msra.mxu0 0.0
        %4269 = vmatprep.subr.mxu0 0.0
        %4270 = vmatpush1.msra.mxu0 0.0
        %4271 = vmatprep.subr.mxu0 0.0
        %4272 = vmatpush1.msra.mxu0 0.0
        %4273 = vmatprep.subr.mxu0 0.0
        %4274 = vmatpush1.msra.mxu0 0.0
        %4275 = vmatprep.subr.mxu0 0.0
        %4276 = vmatpush1.msra.mxu0 0.0
        %4277 = vmatprep.subr.mxu0 0.0
        %4278 = vmatpush1.msra.mxu0 0.0
        %4279 = vmatprep.subr.mxu0 0.0
        %4280 = vmatpush1.msra.mxu0 0.0
        %4281 = vmatprep.subr.mxu0 0.0
        %4282 = vmatpush1.msra.mxu0 0.0
        %4283 = vmatprep.subr.mxu0 0.0
        %4284 = vmatpush1.msra.mxu0 0.0
        %4285 = vmatprep.subr.mxu0 %v4264
        %4286 = vmatpush1.msra.mxu0 %v4263
        %4287 = vmatprep.subr.mxu0 %v4262
        %4288 = vmatpush1.msra.mxu0 %v4261
        %4289 = vmatprep.subr.mxu0 %v4260
        %4290 = vmatpush1.msra.mxu0 %v4259
        %4291 = vmatprep.subr.mxu0 %v4258
        %4292 = vmatpush1.msra.mxu0 %v4257
        %4293 = vmatprep.subr.mxu0 %v4256
        %4294 = vmatpush1.msra.mxu0 %v4255
        %4295 = vmatprep.subr.mxu0 %v4254
        %4296 = vmatpush1.msra.mxu0 %v4253
        %4297 = vmatprep.subr.mxu0 0.0
        %4298 = vmatpush2.msra.mxu0 0.0
        %4299 = vmatprep.subr.mxu0 0.0
        %4300 = vmatpush2.msra.mxu0 0.0
        %4301 = vmatprep.subr.mxu0 0.0
        %4302 = vmatpush2.msra.mxu0 0.0
        %4303 = vmatprep.subr.mxu0 0.0
        %4304 = vmatpush2.msra.mxu0 0.0
        %4305 = vmatprep.subr.mxu0 0.0
        %4306 = vmatpush2.msra.mxu0 0.0
        %4307 = vmatprep.subr.mxu0 0.0
        %4308 = vmatpush2.msra.mxu0 0.0
        %4309 = vmatprep.subr.mxu0 0.0
        %4310 = vmatpush2.msra.mxu0 0.0
        %4311 = vmatprep.subr.mxu0 0.0
        %4312 = vmatpush2.msra.mxu0 0.0
        %4313 = vmatprep.subr.mxu0 0.0
        %4314 = vmatpush2.msra.mxu0 0.0
        %4315 = vmatprep.subr.mxu0 0.0
        %4316 = vmatpush2.msra.mxu0 0.0
        %4317 = vmatprep.subr.mxu0 0.0
        %4318 = vmatpush2.msra.mxu0 0.0
        %4319 = vmatprep.subr.mxu0 0.0
        %4320 = vmatpush2.msra.mxu0 0.0
        %4321 = vmatprep.subr.mxu0 0.0
        %4322 = vmatpush2.msra.mxu0 0.0
        %4323 = vmatprep.subr.mxu0 0.0
        %4324 = vmatpush2.msra.mxu0 0.0
        %4325 = vmatprep.subr.mxu0 0.0
        %4326 = vmatpush2.msra.mxu0 0.0
        %4327 = vmatprep.subr.mxu0 0.0
        %4328 = vmatpush2.msra.mxu0 0.0
        %4329 = vmatprep.mubr.f32.mxu0 0.0
        %4330 = vmatmul.mubr.f32.gmra.mxu0 %v969
        %v4331 = vpop.f32.mrf.mxu0
        %v4332 = vadd.f32 1e-05, %v4331
        %v4333 = vpop.f32.mrf.mxu0
        %v4334 = vadd.f32 1e-05, %v4333
        %4335 = vmatprep.mubr.f32.mxu0 0.0
        %4336 = vmatmul.mubr.f32.gmra.mxu0 %v972
        %v4337 = vpop.f32.mrf.mxu0
        %v4338 = vadd.f32 1e-05, %v4337
        %v4339 = vpop.f32.mrf.mxu0
        %v4340 = vadd.f32 1e-05, %v4339
        %4341 = vmatprep.mubr.f32.mxu0 0.0
        %4342 = vmatmul.mubr.f32.gmra.mxu0 %v975
        %v4343 = vpop.f32.mrf.mxu0
        %v4344 = vadd.f32 1e-05, %v4343
        %v4345 = vpop.f32.mrf.mxu0
        %v4346 = vadd.f32 1e-05, %v4345
        %4347 = vmatprep.mubr.f32.mxu0 0.0
        %4348 = vmatmul.mubr.f32.gmra.mxu0 %v978
        %v4349 = vpop.f32.mrf.mxu0
        %v4350 = vadd.f32 1e-05, %v4349
        %v4351 = vpop.f32.mrf.mxu0
        %v4352 = vadd.f32 1e-05, %v4351
        %4353 = vmatprep.mubr.f32.mxu0 0.0
        %4354 = vmatmul.mubr.f32.gmra.mxu0 %v981
        %v4355 = vpop.f32.mrf.mxu0
        %v4356 = vadd.f32 1e-05, %v4355
        %v4357 = vpop.f32.mrf.mxu0
        %v4358 = vadd.f32 1e-05, %v4357
        %4359 = vmatprep.mubr.f32.mxu0 0.0
        %4360 = vmatmul.mubr.f32.gmra.mxu0 %v984
        %v4361 = vpop.f32.mrf.mxu0
        %v4362 = vadd.f32 1e-05, %v4361
        %v4363 = vpop.f32.mrf.mxu0
        %v4364 = vadd.f32 1e-05, %v4363
        %4365 = vdwg.mxu0
        %v4366 = vrsqrt.pop %v4332
        %v4367 = vrsqrt.pop %v4334
        %v4368 = vrsqrt.pop %v4338
        %v4369 = vrsqrt.pop %v4340
        %v4370 = vrsqrt.pop %v4344
        %v4371 = vrsqrt.pop %v4346
        %v4372 = vrsqrt.pop %v4350
        %v4373 = vrsqrt.pop %v4352
        %v4374 = vrsqrt.pop %v4356
        %v4375 = vrsqrt.pop %v4358
        %v4376 = vrsqrt.pop %v4362
        %v4377 = vrsqrt.pop %v4364
        %v4378 = vmul.f32 %v4241, %v4366
        %v4379 = vmul.f32 %v4242, %v4367
        %v4380 = vmul.f32 %v4243, %v4368
        %v4381 = vmul.f32 %v4244, %v4369
        %v4382 = vmul.f32 %v4245, %v4370
        %v4383 = vmul.f32 %v4246, %v4371
        %v4384 = vmul.f32 %v4247, %v4372
        %v4385 = vmul.f32 %v4248, %v4373
        %v4386 = vmul.f32 %v4249, %v4374
        %v4387 = vmul.f32 %v4250, %v4375
        %v4388 = vmul.f32 %v4251, %v4376
        %v4389 = vmul.f32 %v4252, %v4377
        %v4390 = vmul.f32 %v4378, %v1239
        %v4391 = vmul.f32 %v4379, %v1239
        %v4392 = vmul.f32 %v4380, %v1244
        %v4393 = vmul.f32 %v4381, %v1244
        %v4394 = vmul.f32 %v4382, %v1249
        %v4395 = vmul.f32 %v4383, %v1249
        %v4396 = vmul.f32 %v4384, %v1254
        %v4397 = vmul.f32 %v4385, %v1254
        %v4398 = vmul.f32 %v4386, %v1259
        %v4399 = vmul.f32 %v4387, %v1259
        %v4400 = vmul.f32 %v4388, %v1264
        %v4401 = vmul.f32 %v4389, %v1264
        %v4402 = vadd.f32 %v4390, %v1280
        %v4403 = vadd.f32 %v4391, %v1280
        %v4404 = vadd.f32 %v4392, %v1284
        %v4405 = vadd.f32 %v4393, %v1284
        %v4406 = vadd.f32 %v4394, %v1288
        %v4407 = vadd.f32 %v4395, %v1288
        %v4408 = vadd.f32 %v4396, %v1292
        %v4409 = vadd.f32 %v4397, %v1292
        %v4410 = vadd.f32 %v4398, %v1296
        %v4411 = vadd.f32 %v4399, %v1296
        %v4412 = vadd.f32 %v4400, %v1300
        %v4413 = vadd.f32 %v4401, %v1300
        %4414 = vmatprep.subr.mxu0 0.0
        %4415 = vmatpush1.msra.mxu0 0.0
        %4416 = vmatprep.subr.mxu0 0.0
        %4417 = vmatpush1.msra.mxu0 0.0
        %4418 = vmatprep.subr.mxu0 0.0
        %4419 = vmatpush1.msra.mxu0 0.0
        %4420 = vmatprep.subr.mxu0 0.0
        %4421 = vmatpush1.msra.mxu0 0.0
        %4422 = vmatprep.subr.mxu0 0.0
        %4423 = vmatpush1.msra.mxu0 0.0
        %4424 = vmatprep.subr.mxu0 0.0
        %4425 = vmatpush1.msra.mxu0 0.0
        %4426 = vmatprep.subr.mxu0 0.0
        %4427 = vmatpush1.msra.mxu0 0.0
        %4428 = vmatprep.subr.mxu0 0.0
        %4429 = vmatpush1.msra.mxu0 0.0
        %4430 = vmatprep.subr.mxu0 0.0
        %4431 = vmatpush1.msra.mxu0 0.0
        %4432 = vmatprep.subr.mxu0 0.0
        %4433 = vmatpush1.msra.mxu0 0.0
        %4434 = vmatprep.subr.mxu0 %v4413
        %4435 = vmatpush1.msra.mxu0 %v4412
        %4436 = vmatprep.subr.mxu0 %v4411
        %4437 = vmatpush1.msra.mxu0 %v4410
        %4438 = vmatprep.subr.mxu0 %v4409
        %4439 = vmatpush1.msra.mxu0 %v4408
        %4440 = vmatprep.subr.mxu0 %v4407
        %4441 = vmatpush1.msra.mxu0 %v4406
        %4442 = vmatprep.subr.mxu0 %v4405
        %4443 = vmatpush1.msra.mxu0 %v4404
        %4444 = vmatprep.subr.mxu0 %v4403
        %4445 = vmatpush1.msra.mxu0 %v4402
        %4446 = vmatprep.subr.mxu0 0.0
        %4447 = vmatpush2.msra.mxu0 0.0
        %4448 = vmatprep.subr.mxu0 0.0
        %4449 = vmatpush2.msra.mxu0 0.0
        %4450 = vmatprep.subr.mxu0 0.0
        %4451 = vmatpush2.msra.mxu0 0.0
        %4452 = vmatprep.subr.mxu0 0.0
        %4453 = vmatpush2.msra.mxu0 0.0
        %4454 = vmatprep.subr.mxu0 0.0
        %4455 = vmatpush2.msra.mxu0 0.0
        %4456 = vmatprep.subr.mxu0 0.0
        %4457 = vmatpush2.msra.mxu0 0.0
        %4458 = vmatprep.subr.mxu0 0.0
        %4459 = vmatpush2.msra.mxu0 0.0
        %4460 = vmatprep.subr.mxu0 0.0
        %4461 = vmatpush2.msra.mxu0 0.0
        %4462 = vmatprep.subr.mxu0 0.0
        %4463 = vmatpush2.msra.mxu0 0.0
        %4464 = vmatprep.subr.mxu0 0.0
        %4465 = vmatpush2.msra.mxu0 0.0
        %4466 = vmatprep.subr.mxu0 0.0
        %4467 = vmatpush2.msra.mxu0 0.0
        %4468 = vmatprep.subr.mxu0 0.0
        %4469 = vmatpush2.msra.mxu0 0.0
        %4470 = vmatprep.subr.mxu0 0.0
        %4471 = vmatpush2.msra.mxu0 0.0
        %4472 = vmatprep.subr.mxu0 0.0
        %4473 = vmatpush2.msra.mxu0 0.0
        %4474 = vmatprep.subr.mxu0 0.0
        %4475 = vmatpush2.msra.mxu0 0.0
        %4476 = vmatprep.subr.mxu0 0.0
        %4477 = vmatpush2.msra.mxu0 0.0
        %4478 = vmatprep.mubr.f32.mxu0 0.0
        %4479 = vmatmul.mubr.f32.gmra.mxu0 %v1339
        %v4480 = vpop.f32.mrf.mxu0
        %v4481 = vadd.f32 %v1316, %v4480
        %v4482 = vpop.f32.mrf.mxu0
        %v4483 = vadd.f32 %v1316, %v4482
        %4484 = vmatprep.mubr.f32.mxu0 0.0
        %4485 = vmatmul.mubr.f32.gmra.mxu0 %v1342
        %v4486 = vpop.f32.mrf.mxu0
        %v4487 = vadd.f32 %v1320, %v4486
        %v4488 = vpop.f32.mrf.mxu0
        %v4489 = vadd.f32 %v1320, %v4488
        %4490 = vmatprep.mubr.f32.mxu0 0.0
        %4491 = vmatmul.mubr.f32.gmra.mxu0 %v1345
        %v4492 = vpop.f32.mrf.mxu0
        %v4493 = vadd.f32 %v1324, %v4492
        %v4494 = vpop.f32.mrf.mxu0
        %v4495 = vadd.f32 %v1324, %v4494
        %4496 = vmatprep.mubr.f32.mxu0 0.0
        %4497 = vmatmul.mubr.f32.gmra.mxu0 %v1348
        %v4498 = vpop.f32.mrf.mxu0
        %v4499 = vadd.f32 %v1328, %v4498
        %v4500 = vpop.f32.mrf.mxu0
        %v4501 = vadd.f32 %v1328, %v4500
        %4502 = vmatprep.mubr.f32.mxu0 0.0
        %4503 = vmatmul.mubr.f32.gmra.mxu0 %v1351
        %v4504 = vpop.f32.mrf.mxu0
        %v4505 = vadd.f32 %v1332, %v4504
        %v4506 = vpop.f32.mrf.mxu0
        %v4507 = vadd.f32 %v1332, %v4506
        %4508 = vmatprep.mubr.f32.mxu0 0.0
        %4509 = vmatmul.mubr.f32.gmra.mxu0 %v1354
        %v4510 = vpop.f32.mrf.mxu0
        %v4511 = vadd.f32 %v1336, %v4510
        %v4512 = vpop.f32.mrf.mxu0
        %v4513 = vadd.f32 %v1336, %v4512
        %4514 = vdwg.mxu0
        %v4515 = vmax.f32 %v4481, 0.0
        %v4516 = vmax.f32 %v4483, 0.0
        %v4517 = vmax.f32 %v4487, 0.0
        %v4518 = vmax.f32 %v4489, 0.0
        %v4519 = vmax.f32 %v4493, 0.0
        %v4520 = vmax.f32 %v4495, 0.0
        %v4521 = vmax.f32 %v4499, 0.0
        %v4522 = vmax.f32 %v4501, 0.0
        %v4523 = vmax.f32 %v4505, 0.0
        %v4524 = vmax.f32 %v4507, 0.0
        %v4525 = vmax.f32 %v4511, 0.0
        %v4526 = vmax.f32 %v4513, 0.0
        %4527 = vmatprep.subr.mxu0 0.0
        %4528 = vmatpush1.msra.mxu0 0.0
        %4529 = vmatprep.subr.mxu0 0.0
        %4530 = vmatpush1.msra.mxu0 0.0
        %4531 = vmatprep.subr.mxu0 0.0
        %4532 = vmatpush1.msra.mxu0 0.0
        %4533 = vmatprep.subr.mxu0 0.0
        %4534 = vmatpush1.msra.mxu0 0.0
        %4535 = vmatprep.subr.mxu0 0.0
        %4536 = vmatpush1.msra.mxu0 0.0
        %4537 = vmatprep.subr.mxu0 0.0
        %4538 = vmatpush1.msra.mxu0 0.0
        %4539 = vmatprep.subr.mxu0 0.0
        %4540 = vmatpush1.msra.mxu0 0.0
        %4541 = vmatprep.subr.mxu0 0.0
        %4542 = vmatpush1.msra.mxu0 0.0
        %4543 = vmatprep.subr.mxu0 0.0
        %4544 = vmatpush1.msra.mxu0 0.0
        %4545 = vmatprep.subr.mxu0 0.0
        %4546 = vmatpush1.msra.mxu0 0.0
        %4547 = vmatprep.subr.mxu0 %v4526
        %4548 = vmatpush1.msra.mxu0 %v4525
        %4549 = vmatprep.subr.mxu0 %v4524
        %4550 = vmatpush1.msra.mxu0 %v4523
        %4551 = vmatprep.subr.mxu0 %v4522
        %4552 = vmatpush1.msra.mxu0 %v4521
        %4553 = vmatprep.subr.mxu0 %v4520
        %4554 = vmatpush1.msra.mxu0 %v4519
        %4555 = vmatprep.subr.mxu0 %v4518
        %4556 = vmatpush1.msra.mxu0 %v4517
        %4557 = vmatprep.subr.mxu0 %v4516
        %4558 = vmatpush1.msra.mxu0 %v4515
        %4559 = vmatprep.subr.mxu0 0.0
        %4560 = vmatpush2.msra.mxu0 0.0
        %4561 = vmatprep.subr.mxu0 0.0
        %4562 = vmatpush2.msra.mxu0 0.0
        %4563 = vmatprep.subr.mxu0 0.0
        %4564 = vmatpush2.msra.mxu0 0.0
        %4565 = vmatprep.subr.mxu0 0.0
        %4566 = vmatpush2.msra.mxu0 0.0
        %4567 = vmatprep.subr.mxu0 0.0
        %4568 = vmatpush2.msra.mxu0 0.0
        %4569 = vmatprep.subr.mxu0 0.0
        %4570 = vmatpush2.msra.mxu0 0.0
        %4571 = vmatprep.subr.mxu0 0.0
        %4572 = vmatpush2.msra.mxu0 0.0
        %4573 = vmatprep.subr.mxu0 0.0
        %4574 = vmatpush2.msra.mxu0 0.0
        %4575 = vmatprep.subr.mxu0 0.0
        %4576 = vmatpush2.msra.mxu0 0.0
        %4577 = vmatprep.subr.mxu0 0.0
        %4578 = vmatpush2.msra.mxu0 0.0
        %4579 = vmatprep.subr.mxu0 0.0
        %4580 = vmatpush2.msra.mxu0 0.0
        %4581 = vmatprep.subr.mxu0 0.0
        %4582 = vmatpush2.msra.mxu0 0.0
        %4583 = vmatprep.subr.mxu0 0.0
        %4584 = vmatpush2.msra.mxu0 0.0
        %4585 = vmatprep.subr.mxu0 0.0
        %4586 = vmatpush2.msra.mxu0 0.0
        %4587 = vmatprep.subr.mxu0 0.0
        %4588 = vmatpush2.msra.mxu0 0.0
        %4589 = vmatprep.subr.mxu0 0.0
        %4590 = vmatpush2.msra.mxu0 0.0
        %4591 = vmatprep.mubr.f32.mxu0 0.0
        %4592 = vmatmul.mubr.f32.gmra.mxu0 %v1470
        %v4593 = vpop.f32.mrf.mxu0
        %v4594 = vadd.f32 0.0, %v4593
        %v4595 = vpop.f32.mrf.mxu0
        %v4596 = vadd.f32 0.0, %v4595
        %4597 = vmatprep.mubr.f32.mxu0 0.0
        %4598 = vmatmul.mubr.f32.gmra.mxu0 %v1473
        %v4599 = vpop.f32.mrf.mxu0
        %v4600 = vadd.f32 0.0, %v4599
        %v4601 = vpop.f32.mrf.mxu0
        %v4602 = vadd.f32 0.0, %v4601
        %4603 = vmatprep.mubr.f32.mxu0 0.0
        %4604 = vmatmul.mubr.f32.gmra.mxu0 %v1476
        %v4605 = vpop.f32.mrf.mxu0
        %v4606 = vadd.f32 0.0, %v4605
        %v4607 = vpop.f32.mrf.mxu0
        %v4608 = vadd.f32 0.0, %v4607
        %4609 = vmatprep.mubr.f32.mxu0 0.0
        %4610 = vmatmul.mubr.f32.gmra.mxu0 %v1479
        %v4611 = vpop.f32.mrf.mxu0
        %v4612 = vadd.f32 0.0, %v4611
        %v4613 = vpop.f32.mrf.mxu0
        %v4614 = vadd.f32 0.0, %v4613
        %4615 = vmatprep.mubr.f32.mxu0 0.0
        %4616 = vmatmul.mubr.f32.gmra.mxu0 %v1482
        %v4617 = vpop.f32.mrf.mxu0
        %v4618 = vadd.f32 0.0, %v4617
        %v4619 = vpop.f32.mrf.mxu0
        %v4620 = vadd.f32 0.0, %v4619
        %4621 = vmatprep.mubr.f32.mxu0 0.0
        %4622 = vmatmul.mubr.f32.gmra.mxu0 %v1485
        %v4623 = vpop.f32.mrf.mxu0
        %v4624 = vadd.f32 0.0, %v4623
        %v4625 = vpop.f32.mrf.mxu0
        %v4626 = vadd.f32 0.0, %v4625
        %4627 = vdwg.mxu0
        %v4628 = vadd.f32 %v820, %v4594
        %v4629 = vadd.f32 %v822, %v4596
        %v4630 = vadd.f32 %v824, %v4600
        %v4631 = vadd.f32 %v826, %v4602
        %v4632 = vadd.f32 %v830, %v4606
        %v4633 = vadd.f32 %v832, %v4608
        %v4634 = vadd.f32 %v834, %v4612
        %v4635 = vadd.f32 %v836, %v4614
        %v4636 = vadd.f32 %v840, %v4618
        %v4637 = vadd.f32 %v842, %v4620
        %v4638 = vadd.f32 %v844, %v4624
        %v4639 = vadd.f32 %v846, %v4626
        %v4640 = vadd.f32 %v4628, %v1602
        %v4641 = vadd.f32 %v4629, %v1602
        %v4642 = vadd.f32 %v4630, %v1606
        %v4643 = vadd.f32 %v4631, %v1606
        %v4644 = vadd.f32 %v4632, %v1610
        %v4645 = vadd.f32 %v4633, %v1610
        %v4646 = vadd.f32 %v4634, %v1614
        %v4647 = vadd.f32 %v4635, %v1614
        %v4648 = vadd.f32 %v4636, %v1618
        %v4649 = vadd.f32 %v4637, %v1618
        %v4650 = vadd.f32 %v4638, %v1622
        %v4651 = vadd.f32 %v4639, %v1622
        %4652 = vmatprep.subr.mxu0 0.0
        %4653 = vmatpush1.msra.mxu0 0.0
        %4654 = vmatprep.subr.mxu0 0.0
        %4655 = vmatpush1.msra.mxu0 0.0
        %4656 = vmatprep.subr.mxu0 0.0
        %4657 = vmatpush1.msra.mxu0 0.0
        %4658 = vmatprep.subr.mxu0 0.0
        %4659 = vmatpush1.msra.mxu0 0.0
        %4660 = vmatprep.subr.mxu0 0.0
        %4661 = vmatpush1.msra.mxu0 0.0
        %4662 = vmatprep.subr.mxu0 0.0
        %4663 = vmatpush1.msra.mxu0 0.0
        %4664 = vmatprep.subr.mxu0 0.0
        %4665 = vmatpush1.msra.mxu0 0.0
        %4666 = vmatprep.subr.mxu0 0.0
        %4667 = vmatpush1.msra.mxu0 0.0
        %4668 = vmatprep.subr.mxu0 0.0
        %4669 = vmatpush1.msra.mxu0 0.0
        %4670 = vmatprep.subr.mxu0 0.0
        %4671 = vmatpush1.msra.mxu0 0.0
        %4672 = vmatprep.subr.mxu0 %v4651
        %4673 = vmatpush1.msra.mxu0 %v4650
        %4674 = vmatprep.subr.mxu0 %v4649
        %4675 = vmatpush1.msra.mxu0 %v4648
        %4676 = vmatprep.subr.mxu0 %v4647
        %4677 = vmatpush1.msra.mxu0 %v4646
        %4678 = vmatprep.subr.mxu0 %v4645
        %4679 = vmatpush1.msra.mxu0 %v4644
        %4680 = vmatprep.subr.mxu0 %v4643
        %4681 = vmatpush1.msra.mxu0 %v4642
        %4682 = vmatprep.subr.mxu0 %v4641
        %4683 = vmatpush1.msra.mxu0 %v4640
        %4684 = vmatprep.subr.mxu0 0.0
        %4685 = vmatpush2.msra.mxu0 0.0
        %4686 = vmatprep.subr.mxu0 0.0
        %4687 = vmatpush2.msra.mxu0 0.0
        %4688 = vmatprep.subr.mxu0 0.0
        %4689 = vmatpush2.msra.mxu0 0.0
        %4690 = vmatprep.subr.mxu0 0.0
        %4691 = vmatpush2.msra.mxu0 0.0
        %4692 = vmatprep.subr.mxu0 0.0
        %4693 = vmatpush2.msra.mxu0 0.0
        %4694 = vmatprep.subr.mxu0 0.0
        %4695 = vmatpush2.msra.mxu0 0.0
        %4696 = vmatprep.subr.mxu0 0.0
        %4697 = vmatpush2.msra.mxu0 0.0
        %4698 = vmatprep.subr.mxu0 0.0
        %4699 = vmatpush2.msra.mxu0 0.0
        %4700 = vmatprep.subr.mxu0 0.0
        %4701 = vmatpush2.msra.mxu0 0.0
        %4702 = vmatprep.subr.mxu0 0.0
        %4703 = vmatpush2.msra.mxu0 0.0
        %4704 = vmatprep.subr.mxu0 0.0
        %4705 = vmatpush2.msra.mxu0 0.0
        %4706 = vmatprep.subr.mxu0 0.0
        %4707 = vmatpush2.msra.mxu0 0.0
        %4708 = vmatprep.subr.mxu0 0.0
        %4709 = vmatpush2.msra.mxu0 0.0
        %4710 = vmatprep.subr.mxu0 0.0
        %4711 = vmatpush2.msra.mxu0 0.0
        %4712 = vmatprep.subr.mxu0 0.0
        %4713 = vmatpush2.msra.mxu0 0.0
        %4714 = vmatprep.subr.mxu0 0.0
        %4715 = vmatpush2.msra.mxu0 0.0
        %4716 = vmatprep.mubr.f32.mxu0 0.0
        %4717 = vmatmul.mubr.f32.gmra.mxu0 %v969
        %v4718 = vpop.f32.mrf.mxu0
        %v4719 = vadd.f32 0.0, %v4718
        %v4720 = vpop.f32.mrf.mxu0
        %v4721 = vadd.f32 0.0, %v4720
        %4722 = vmatprep.mubr.f32.mxu0 0.0
        %4723 = vmatmul.mubr.f32.gmra.mxu0 %v972
        %v4724 = vpop.f32.mrf.mxu0
        %v4725 = vadd.f32 0.0, %v4724
        %v4726 = vpop.f32.mrf.mxu0
        %v4727 = vadd.f32 0.0, %v4726
        %4728 = vmatprep.mubr.f32.mxu0 0.0
        %4729 = vmatmul.mubr.f32.gmra.mxu0 %v975
        %v4730 = vpop.f32.mrf.mxu0
        %v4731 = vadd.f32 0.0, %v4730
        %v4732 = vpop.f32.mrf.mxu0
        %v4733 = vadd.f32 0.0, %v4732
        %4734 = vmatprep.mubr.f32.mxu0 0.0
        %4735 = vmatmul.mubr.f32.gmra.mxu0 %v978
        %v4736 = vpop.f32.mrf.mxu0
        %v4737 = vadd.f32 0.0, %v4736
        %v4738 = vpop.f32.mrf.mxu0
        %v4739 = vadd.f32 0.0, %v4738
        %4740 = vmatprep.mubr.f32.mxu0 0.0
        %4741 = vmatmul.mubr.f32.gmra.mxu0 %v981
        %v4742 = vpop.f32.mrf.mxu0
        %v4743 = vadd.f32 0.0, %v4742
        %v4744 = vpop.f32.mrf.mxu0
        %v4745 = vadd.f32 0.0, %v4744
        %4746 = vmatprep.mubr.f32.mxu0 0.0
        %4747 = vmatmul.mubr.f32.gmra.mxu0 %v984
        %v4748 = vpop.f32.mrf.mxu0
        %v4749 = vadd.f32 0.0, %v4748
        %v4750 = vpop.f32.mrf.mxu0
        %v4751 = vadd.f32 0.0, %v4750
        %4752 = vdwg.mxu0
        %v4753 = vsub.f32 %v4640, %v4719
        %v4754 = vsub.f32 %v4641, %v4721
        %v4755 = vsub.f32 %v4642, %v4725
        %v4756 = vsub.f32 %v4643, %v4727
        %v4757 = vsub.f32 %v4644, %v4731
        %v4758 = vsub.f32 %v4645, %v4733
        %v4759 = vsub.f32 %v4646, %v4737
        %v4760 = vsub.f32 %v4647, %v4739
        %v4761 = vsub.f32 %v4648, %v4743
        %v4762 = vsub.f32 %v4649, %v4745
        %v4763 = vsub.f32 %v4650, %v4749
        %v4764 = vsub.f32 %v4651, %v4751
        %v4765 = vmul.f32 %v4753, %v4753
        %v4766 = vmul.f32 %v4754, %v4754
        %v4767 = vmul.f32 %v4755, %v4755
        %v4768 = vmul.f32 %v4756, %v4756
        %v4769 = vmul.f32 %v4757, %v4757
        %v4770 = vmul.f32 %v4758, %v4758
        %v4771 = vmul.f32 %v4759, %v4759
        %v4772 = vmul.f32 %v4760, %v4760
        %v4773 = vmul.f32 %v4761, %v4761
        %v4774 = vmul.f32 %v4762, %v4762
        %v4775 = vmul.f32 %v4763, %v4763
        %v4776 = vmul.f32 %v4764, %v4764
        %4777 = vmatprep.subr.mxu0 0.0
        %4778 = vmatpush1.msra.mxu0 0.0
        %4779 = vmatprep.subr.mxu0 0.0
        %4780 = vmatpush1.msra.mxu0 0.0
        %4781 = vmatprep.subr.mxu0 0.0
        %4782 = vmatpush1.msra.mxu0 0.0
        %4783 = vmatprep.subr.mxu0 0.0
        %4784 = vmatpush1.msra.mxu0 0.0
        %4785 = vmatprep.subr.mxu0 0.0
        %4786 = vmatpush1.msra.mxu0 0.0
        %4787 = vmatprep.subr.mxu0 0.0
        %4788 = vmatpush1.msra.mxu0 0.0
        %4789 = vmatprep.subr.mxu0 0.0
        %4790 = vmatpush1.msra.mxu0 0.0
        %4791 = vmatprep.subr.mxu0 0.0
        %4792 = vmatpush1.msra.mxu0 0.0
        %4793 = vmatprep.subr.mxu0 0.0
        %4794 = vmatpush1.msra.mxu0 0.0
        %4795 = vmatprep.subr.mxu0 0.0
        %4796 = vmatpush1.msra.mxu0 0.0
        %4797 = vmatprep.subr.mxu0 %v4776
        %4798 = vmatpush1.msra.mxu0 %v4775
        %4799 = vmatprep.subr.mxu0 %v4774
        %4800 = vmatpush1.msra.mxu0 %v4773
        %4801 = vmatprep.subr.mxu0 %v4772
        %4802 = vmatpush1.msra.mxu0 %v4771
        %4803 = vmatprep.subr.mxu0 %v4770
        %4804 = vmatpush1.msra.mxu0 %v4769
        %4805 = vmatprep.subr.mxu0 %v4768
        %4806 = vmatpush1.msra.mxu0 %v4767
        %4807 = vmatprep.subr.mxu0 %v4766
        %4808 = vmatpush1.msra.mxu0 %v4765
        %4809 = vmatprep.subr.mxu0 0.0
        %4810 = vmatpush2.msra.mxu0 0.0
        %4811 = vmatprep.subr.mxu0 0.0
        %4812 = vmatpush2.msra.mxu0 0.0
        %4813 = vmatprep.subr.mxu0 0.0
        %4814 = vmatpush2.msra.mxu0 0.0
        %4815 = vmatprep.subr.mxu0 0.0
        %4816 = vmatpush2.msra.mxu0 0.0
        %4817 = vmatprep.subr.mxu0 0.0
        %4818 = vmatpush2.msra.mxu0 0.0
        %4819 = vmatprep.subr.mxu0 0.0
        %4820 = vmatpush2.msra.mxu0 0.0
        %4821 = vmatprep.subr.mxu0 0.0
        %4822 = vmatpush2.msra.mxu0 0.0
        %4823 = vmatprep.subr.mxu0 0.0
        %4824 = vmatpush2.msra.mxu0 0.0
        %4825 = vmatprep.subr.mxu0 0.0
        %4826 = vmatpush2.msra.mxu0 0.0
        %4827 = vmatprep.subr.mxu0 0.0
        %4828 = vmatpush2.msra.mxu0 0.0
        %4829 = vmatprep.subr.mxu0 0.0
        %4830 = vmatpush2.msra.mxu0 0.0
        %4831 = vmatprep.subr.mxu0 0.0
        %4832 = vmatpush2.msra.mxu0 0.0
        %4833 = vmatprep.subr.mxu0 0.0
        %4834 = vmatpush2.msra.mxu0 0.0
        %4835 = vmatprep.subr.mxu0 0.0
        %4836 = vmatpush2.msra.mxu0 0.0
        %4837 = vmatprep.subr.mxu0 0.0
        %4838 = vmatpush2.msra.mxu0 0.0
        %4839 = vmatprep.subr.mxu0 0.0
        %4840 = vmatpush2.msra.mxu0 0.0
        %4841 = vmatprep.mubr.f32.mxu0 0.0
        %4842 = vmatmul.mubr.f32.gmra.mxu0 %v969
        %v4843 = vpop.f32.mrf.mxu0
        %v4844 = vadd.f32 1e-05, %v4843
        %v4845 = vpop.f32.mrf.mxu0
        %v4846 = vadd.f32 1e-05, %v4845
        %4847 = vmatprep.mubr.f32.mxu0 0.0
        %4848 = vmatmul.mubr.f32.gmra.mxu0 %v972
        %v4849 = vpop.f32.mrf.mxu0
        %v4850 = vadd.f32 1e-05, %v4849
        %v4851 = vpop.f32.mrf.mxu0
        %v4852 = vadd.f32 1e-05, %v4851
        %4853 = vmatprep.mubr.f32.mxu0 0.0
        %4854 = vmatmul.mubr.f32.gmra.mxu0 %v975
        %v4855 = vpop.f32.mrf.mxu0
        %v4856 = vadd.f32 1e-05, %v4855
        %v4857 = vpop.f32.mrf.mxu0
        %v4858 = vadd.f32 1e-05, %v4857
        %4859 = vmatprep.mubr.f32.mxu0 0.0
        %4860 = vmatmul.mubr.f32.gmra.mxu0 %v978
        %v4861 = vpop.f32.mrf.mxu0
        %v4862 = vadd.f32 1e-05, %v4861
        %v4863 = vpop.f32.mrf.mxu0
        %v4864 = vadd.f32 1e-05, %v4863
        %4865 = vmatprep.mubr.f32.mxu0 0.0
        %4866 = vmatmul.mubr.f32.gmra.mxu0 %v981
        %v4867 = vpop.f32.mrf.mxu0
        %v4868 = vadd.f32 1e-05, %v4867
        %v4869 = vpop.f32.mrf.mxu0
        %v4870 = vadd.f32 1e-05, %v4869
        %4871 = vmatprep.mubr.f32.mxu0 0.0
        %4872 = vmatmul.mubr.f32.gmra.mxu0 %v984
        %v4873 = vpop.f32.mrf.mxu0
        %v4874 = vadd.f32 1e-05, %v4873
        %v4875 = vpop.f32.mrf.mxu0
        %v4876 = vadd.f32 1e-05, %v4875
        %4877 = vdwg.mxu0
        %v4878 = vrsqrt.pop %v4844
        %v4879 = vrsqrt.pop %v4846
        %v4880 = vrsqrt.pop %v4850
        %v4881 = vrsqrt.pop %v4852
        %v4882 = vrsqrt.pop %v4856
        %v4883 = vrsqrt.pop %v4858
        %v4884 = vrsqrt.pop %v4862
        %v4885 = vrsqrt.pop %v4864
        %v4886 = vrsqrt.pop %v4868
        %v4887 = vrsqrt.pop %v4870
        %v4888 = vrsqrt.pop %v4874
        %v4889 = vrsqrt.pop %v4876
        %v4890 = vmul.f32 %v4753, %v4878
        %v4891 = vmul.f32 %v4754, %v4879
        %v4892 = vmul.f32 %v4755, %v4880
        %v4893 = vmul.f32 %v4756, %v4881
        %v4894 = vmul.f32 %v4757, %v4882
        %v4895 = vmul.f32 %v4758, %v4883
        %v4896 = vmul.f32 %v4759, %v4884
        %v4897 = vmul.f32 %v4760, %v4885
        %v4898 = vmul.f32 %v4761, %v4886
        %v4899 = vmul.f32 %v4762, %v4887
        %v4900 = vmul.f32 %v4763, %v4888
        %v4901 = vmul.f32 %v4764, %v4889
        %v4902 = vmul.f32 %v4890, %v1889
        %v4903 = vmul.f32 %v4891, %v1889
        %v4904 = vmul.f32 %v4892, %v1894
        %v4905 = vmul.f32 %v4893, %v1894
        %v4906 = vmul.f32 %v4894, %v1899
        %v4907 = vmul.f32 %v4895, %v1899
        %v4908 = vmul.f32 %v4896, %v1904
        %v4909 = vmul.f32 %v4897, %v1904
        %v4910 = vmul.f32 %v4898, %v1909
        %v4911 = vmul.f32 %v4899, %v1909
        %v4912 = vmul.f32 %v4900, %v1914
        %v4913 = vmul.f32 %v4901, %v1914
        %v4914 = vadd.f32 %v4902, %v1930
        %v4915 = vadd.f32 %v4903, %v1930
        %v4916 = vadd.f32 %v4904, %v1934
        %v4917 = vadd.f32 %v4905, %v1934
        %v4918 = vadd.f32 %v4906, %v1938
        %v4919 = vadd.f32 %v4907, %v1938
        %v4920 = vadd.f32 %v4908, %v1942
        %v4921 = vadd.f32 %v4909, %v1942
        %v4922 = vadd.f32 %v4910, %v1946
        %v4923 = vadd.f32 %v4911, %v1946
        %v4924 = vadd.f32 %v4912, %v1950
        %v4925 = vadd.f32 %v4913, %v1950
        %4926 = vmatprep.subr.mxu0 0.0
        %4927 = vmatpush1.msra.mxu0 0.0
        %4928 = vmatprep.subr.mxu0 0.0
        %4929 = vmatpush1.msra.mxu0 0.0
        %4930 = vmatprep.subr.mxu0 0.0
        %4931 = vmatpush1.msra.mxu0 0.0
        %4932 = vmatprep.subr.mxu0 0.0
        %4933 = vmatpush1.msra.mxu0 0.0
        %4934 = vmatprep.subr.mxu0 0.0
        %4935 = vmatpush1.msra.mxu0 0.0
        %4936 = vmatprep.subr.mxu0 0.0
        %4937 = vmatpush1.msra.mxu0 0.0
        %4938 = vmatprep.subr.mxu0 0.0
        %4939 = vmatpush1.msra.mxu0 0.0
        %4940 = vmatprep.subr.mxu0 0.0
        %4941 = vmatpush1.msra.mxu0 0.0
        %4942 = vmatprep.subr.mxu0 0.0
        %4943 = vmatpush1.msra.mxu0 0.0
        %4944 = vmatprep.subr.mxu0 0.0
        %4945 = vmatpush1.msra.mxu0 0.0
        %4946 = vmatprep.subr.mxu0 %v4925
        %4947 = vmatpush1.msra.mxu0 %v4924
        %4948 = vmatprep.subr.mxu0 %v4923
        %4949 = vmatpush1.msra.mxu0 %v4922
        %4950 = vmatprep.subr.mxu0 %v4921
        %4951 = vmatpush1.msra.mxu0 %v4920
        %4952 = vmatprep.subr.mxu0 %v4919
        %4953 = vmatpush1.msra.mxu0 %v4918
        %4954 = vmatprep.subr.mxu0 %v4917
        %4955 = vmatpush1.msra.mxu0 %v4916
        %4956 = vmatprep.subr.mxu0 %v4915
        %4957 = vmatpush1.msra.mxu0 %v4914
        %4958 = vmatprep.subr.mxu0 0.0
        %4959 = vmatpush2.msra.mxu0 0.0
        %4960 = vmatprep.subr.mxu0 0.0
        %4961 = vmatpush2.msra.mxu0 0.0
        %4962 = vmatprep.subr.mxu0 0.0
        %4963 = vmatpush2.msra.mxu0 0.0
        %4964 = vmatprep.subr.mxu0 0.0
        %4965 = vmatpush2.msra.mxu0 0.0
        %4966 = vmatprep.subr.mxu0 0.0
        %4967 = vmatpush2.msra.mxu0 0.0
        %4968 = vmatprep.subr.mxu0 0.0
        %4969 = vmatpush2.msra.mxu0 0.0
        %4970 = vmatprep.subr.mxu0 0.0
        %4971 = vmatpush2.msra.mxu0 0.0
        %4972 = vmatprep.subr.mxu0 0.0
        %4973 = vmatpush2.msra.mxu0 0.0
        %4974 = vmatprep.subr.mxu0 0.0
        %4975 = vmatpush2.msra.mxu0 0.0
        %4976 = vmatprep.subr.mxu0 0.0
        %4977 = vmatpush2.msra.mxu0 0.0
        %4978 = vmatprep.subr.mxu0 0.0
        %4979 = vmatpush2.msra.mxu0 0.0
        %4980 = vmatprep.subr.mxu0 0.0
        %4981 = vmatpush2.msra.mxu0 0.0
        %4982 = vmatprep.subr.mxu0 0.0
        %4983 = vmatpush2.msra.mxu0 0.0
        %4984 = vmatprep.subr.mxu0 0.0
        %4985 = vmatpush2.msra.mxu0 0.0
        %4986 = vmatprep.subr.mxu0 0.0
        %4987 = vmatpush2.msra.mxu0 0.0
        %4988 = vmatprep.subr.mxu0 0.0
        %4989 = vmatpush2.msra.mxu0 0.0
        %4990 = vmatprep.mubr.f32.mxu0 0.0
        %4991 = vmatmul.mubr.f32.gmra.mxu0 %v1989
        %v4992 = vpop.f32.mrf.mxu0
        %v4993 = vadd.f32 %v1966, %v4992
        %v4994 = vpop.f32.mrf.mxu0
        %v4995 = vadd.f32 %v1966, %v4994
        %4996 = vmatprep.mubr.f32.mxu0 0.0
        %4997 = vmatmul.mubr.f32.gmra.mxu0 %v1992
        %v4998 = vpop.f32.mrf.mxu0
        %v4999 = vadd.f32 %v1970, %v4998
        %v5000 = vpop.f32.mrf.mxu0
        %v5001 = vadd.f32 %v1970, %v5000
        %5002 = vmatprep.mubr.f32.mxu0 0.0
        %5003 = vmatmul.mubr.f32.gmra.mxu0 %v1995
        %v5004 = vpop.f32.mrf.mxu0
        %v5005 = vadd.f32 %v1974, %v5004
        %v5006 = vpop.f32.mrf.mxu0
        %v5007 = vadd.f32 %v1974, %v5006
        %5008 = vmatprep.mubr.f32.mxu0 0.0
        %5009 = vmatmul.mubr.f32.gmra.mxu0 %v1998
        %v5010 = vpop.f32.mrf.mxu0
        %v5011 = vadd.f32 %v1978, %v5010
        %v5012 = vpop.f32.mrf.mxu0
        %v5013 = vadd.f32 %v1978, %v5012
        %5014 = vmatprep.mubr.f32.mxu0 0.0
        %5015 = vmatmul.mubr.f32.gmra.mxu0 %v2001
        %v5016 = vpop.f32.mrf.mxu0
        %v5017 = vadd.f32 %v1982, %v5016
        %v5018 = vpop.f32.mrf.mxu0
        %v5019 = vadd.f32 %v1982, %v5018
        %5020 = vmatprep.mubr.f32.mxu0 0.0
        %5021 = vmatmul.mubr.f32.gmra.mxu0 %v2004
        %v5022 = vpop.f32.mrf.mxu0
        %v5023 = vadd.f32 %v1986, %v5022
        %v5024 = vpop.f32.mrf.mxu0
        %v5025 = vadd.f32 %v1986, %v5024
        %5026 = vdwg.mxu0
        %v5027 = vmax.f32 %v4993, 0.0
        %v5028 = vmax.f32 %v4995, 0.0
        %v5029 = vmax.f32 %v4999, 0.0
        %v5030 = vmax.f32 %v5001, 0.0
        %v5031 = vmax.f32 %v5005, 0.0
        %v5032 = vmax.f32 %v5007, 0.0
        %v5033 = vmax.f32 %v5011, 0.0
        %v5034 = vmax.f32 %v5013, 0.0
        %v5035 = vmax.f32 %v5017, 0.0
        %v5036 = vmax.f32 %v5019, 0.0
        %v5037 = vmax.f32 %v5023, 0.0
        %v5038 = vmax.f32 %v5025, 0.0
        %5039 = vmatprep.subr.mxu0 0.0
        %5040 = vmatpush1.msra.mxu0 0.0
        %5041 = vmatprep.subr.mxu0 0.0
        %5042 = vmatpush1.msra.mxu0 0.0
        %5043 = vmatprep.subr.mxu0 0.0
        %5044 = vmatpush1.msra.mxu0 0.0
        %5045 = vmatprep.subr.mxu0 0.0
        %5046 = vmatpush1.msra.mxu0 0.0
        %5047 = vmatprep.subr.mxu0 0.0
        %5048 = vmatpush1.msra.mxu0 0.0
        %5049 = vmatprep.subr.mxu0 0.0
        %5050 = vmatpush1.msra.mxu0 0.0
        %5051 = vmatprep.subr.mxu0 0.0
        %5052 = vmatpush1.msra.mxu0 0.0
        %5053 = vmatprep.subr.mxu0 0.0
        %5054 = vmatpush1.msra.mxu0 0.0
        %5055 = vmatprep.subr.mxu0 0.0
        %5056 = vmatpush1.msra.mxu0 0.0
        %5057 = vmatprep.subr.mxu0 0.0
        %5058 = vmatpush1.msra.mxu0 0.0
        %5059 = vmatprep.subr.mxu0 %v5038
        %5060 = vmatpush1.msra.mxu0 %v5037
        %5061 = vmatprep.subr.mxu0 %v5036
        %5062 = vmatpush1.msra.mxu0 %v5035
        %5063 = vmatprep.subr.mxu0 %v5034
        %5064 = vmatpush1.msra.mxu0 %v5033
        %5065 = vmatprep.subr.mxu0 %v5032
        %5066 = vmatpush1.msra.mxu0 %v5031
        %5067 = vmatprep.subr.mxu0 %v5030
        %5068 = vmatpush1.msra.mxu0 %v5029
        %5069 = vmatprep.subr.mxu0 %v5028
        %5070 = vmatpush1.msra.mxu0 %v5027
        %5071 = vmatprep.subr.mxu0 0.0
        %5072 = vmatpush2.msra.mxu0 0.0
        %5073 = vmatprep.subr.mxu0 0.0
        %5074 = vmatpush2.msra.mxu0 0.0
        %5075 = vmatprep.subr.mxu0 0.0
        %5076 = vmatpush2.msra.mxu0 0.0
        %5077 = vmatprep.subr.mxu0 0.0
        %5078 = vmatpush2.msra.mxu0 0.0
        %5079 = vmatprep.subr.mxu0 0.0
        %5080 = vmatpush2.msra.mxu0 0.0
        %5081 = vmatprep.subr.mxu0 0.0
        %5082 = vmatpush2.msra.mxu0 0.0
        %5083 = vmatprep.subr.mxu0 0.0
        %5084 = vmatpush2.msra.mxu0 0.0
        %5085 = vmatprep.subr.mxu0 0.0
        %5086 = vmatpush2.msra.mxu0 0.0
        %5087 = vmatprep.subr.mxu0 0.0
        %5088 = vmatpush2.msra.mxu0 0.0
        %5089 = vmatprep.subr.mxu0 0.0
        %5090 = vmatpush2.msra.mxu0 0.0
        %5091 = vmatprep.subr.mxu0 0.0
        %5092 = vmatpush2.msra.mxu0 0.0
        %5093 = vmatprep.subr.mxu0 0.0
        %5094 = vmatpush2.msra.mxu0 0.0
        %5095 = vmatprep.subr.mxu0 0.0
        %5096 = vmatpush2.msra.mxu0 0.0
        %5097 = vmatprep.subr.mxu0 0.0
        %5098 = vmatpush2.msra.mxu0 0.0
        %5099 = vmatprep.subr.mxu0 0.0
        %5100 = vmatpush2.msra.mxu0 0.0
        %5101 = vmatprep.subr.mxu0 0.0
        %5102 = vmatpush2.msra.mxu0 0.0
        %5103 = vmatprep.mubr.f32.mxu0 0.0
        %5104 = vmatmul.mubr.f32.gmra.mxu0 %v2120
        %v5105 = vpop.f32.mrf.mxu0
        %v5106 = vadd.f32 0.0, %v5105
        %v5107 = vpop.f32.mrf.mxu0
        %v5108 = vadd.f32 0.0, %v5107
        %5109 = vmatprep.mubr.f32.mxu0 0.0
        %5110 = vmatmul.mubr.f32.gmra.mxu0 %v2123
        %v5111 = vpop.f32.mrf.mxu0
        %v5112 = vadd.f32 0.0, %v5111
        %v5113 = vpop.f32.mrf.mxu0
        %v5114 = vadd.f32 0.0, %v5113
        %5115 = vmatprep.mubr.f32.mxu0 0.0
        %5116 = vmatmul.mubr.f32.gmra.mxu0 %v2126
        %v5117 = vpop.f32.mrf.mxu0
        %v5118 = vadd.f32 0.0, %v5117
        %v5119 = vpop.f32.mrf.mxu0
        %v5120 = vadd.f32 0.0, %v5119
        %5121 = vmatprep.mubr.f32.mxu0 0.0
        %5122 = vmatmul.mubr.f32.gmra.mxu0 %v2129
        %v5123 = vpop.f32.mrf.mxu0
        %v5124 = vadd.f32 0.0, %v5123
        %v5125 = vpop.f32.mrf.mxu0
        %v5126 = vadd.f32 0.0, %v5125
        %5127 = vmatprep.mubr.f32.mxu0 0.0
        %5128 = vmatmul.mubr.f32.gmra.mxu0 %v2132
        %v5129 = vpop.f32.mrf.mxu0
        %v5130 = vadd.f32 0.0, %v5129
        %v5131 = vpop.f32.mrf.mxu0
        %v5132 = vadd.f32 0.0, %v5131
        %5133 = vmatprep.mubr.f32.mxu0 0.0
        %5134 = vmatmul.mubr.f32.gmra.mxu0 %v2135
        %v5135 = vpop.f32.mrf.mxu0
        %v5136 = vadd.f32 0.0, %v5135
        %v5137 = vpop.f32.mrf.mxu0
        %v5138 = vadd.f32 0.0, %v5137
        %5139 = vdwg.mxu0
        %v5140 = vadd.f32 %v4640, %v5106
        %v5141 = vadd.f32 %v4641, %v5108
        %v5142 = vadd.f32 %v4642, %v5112
        %v5143 = vadd.f32 %v4643, %v5114
        %v5144 = vadd.f32 %v4644, %v5118
        %v5145 = vadd.f32 %v4645, %v5120
        %v5146 = vadd.f32 %v4646, %v5124
        %v5147 = vadd.f32 %v4647, %v5126
        %v5148 = vadd.f32 %v4648, %v5130
        %v5149 = vadd.f32 %v4649, %v5132
        %v5150 = vadd.f32 %v4650, %v5136
        %v5151 = vadd.f32 %v4651, %v5138
        %v5152 = vadd.f32 %v5140, %v2252
        %v5153 = vadd.f32 %v5141, %v2252
        %v5154 = vadd.f32 %v5142, %v2256
        %v5155 = vadd.f32 %v5143, %v2256
        %v5156 = vadd.f32 %v5144, %v2260
        %v5157 = vadd.f32 %v5145, %v2260
        %v5158 = vadd.f32 %v5146, %v2264
        %v5159 = vadd.f32 %v5147, %v2264
        %v5160 = vadd.f32 %v5148, %v2268
        %v5161 = vadd.f32 %v5149, %v2268
        %v5162 = vadd.f32 %v5150, %v2272
        %v5163 = vadd.f32 %v5151, %v2272
        %5164 = vmatprep.subr.mxu0 0.0
        %5165 = vmatpush1.msra.mxu0 0.0
        %5166 = vmatprep.subr.mxu0 0.0
        %5167 = vmatpush1.msra.mxu0 0.0
        %5168 = vmatprep.subr.mxu0 0.0
        %5169 = vmatpush1.msra.mxu0 0.0
        %5170 = vmatprep.subr.mxu0 0.0
        %5171 = vmatpush1.msra.mxu0 0.0
        %5172 = vmatprep.subr.mxu0 0.0
        %5173 = vmatpush1.msra.mxu0 0.0
        %5174 = vmatprep.subr.mxu0 0.0
        %5175 = vmatpush1.msra.mxu0 0.0
        %5176 = vmatprep.subr.mxu0 0.0
        %5177 = vmatpush1.msra.mxu0 0.0
        %5178 = vmatprep.subr.mxu0 0.0
        %5179 = vmatpush1.msra.mxu0 0.0
        %5180 = vmatprep.subr.mxu0 0.0
        %5181 = vmatpush1.msra.mxu0 0.0
        %5182 = vmatprep.subr.mxu0 0.0
        %5183 = vmatpush1.msra.mxu0 0.0
        %5184 = vmatprep.subr.mxu0 %v5163
        %5185 = vmatpush1.msra.mxu0 %v5162
        %5186 = vmatprep.subr.mxu0 %v5161
        %5187 = vmatpush1.msra.mxu0 %v5160
        %5188 = vmatprep.subr.mxu0 %v5159
        %5189 = vmatpush1.msra.mxu0 %v5158
        %5190 = vmatprep.subr.mxu0 %v5157
        %5191 = vmatpush1.msra.mxu0 %v5156
        %5192 = vmatprep.subr.mxu0 %v5155
        %5193 = vmatpush1.msra.mxu0 %v5154
        %5194 = vmatprep.subr.mxu0 %v5153
        %5195 = vmatpush1.msra.mxu0 %v5152
        %5196 = vmatprep.subr.mxu0 0.0
        %5197 = vmatpush2.msra.mxu0 0.0
        %5198 = vmatprep.subr.mxu0 0.0
        %5199 = vmatpush2.msra.mxu0 0.0
        %5200 = vmatprep.subr.mxu0 0.0
        %5201 = vmatpush2.msra.mxu0 0.0
        %5202 = vmatprep.subr.mxu0 0.0
        %5203 = vmatpush2.msra.mxu0 0.0
        %5204 = vmatprep.subr.mxu0 0.0
        %5205 = vmatpush2.msra.mxu0 0.0
        %5206 = vmatprep.subr.mxu0 0.0
        %5207 = vmatpush2.msra.mxu0 0.0
        %5208 = vmatprep.subr.mxu0 0.0
        %5209 = vmatpush2.msra.mxu0 0.0
        %5210 = vmatprep.subr.mxu0 0.0
        %5211 = vmatpush2.msra.mxu0 0.0
        %5212 = vmatprep.subr.mxu0 0.0
        %5213 = vmatpush2.msra.mxu0 0.0
        %5214 = vmatprep.subr.mxu0 0.0
        %5215 = vmatpush2.msra.mxu0 0.0
        %5216 = vmatprep.subr.mxu0 0.0
        %5217 = vmatpush2.msra.mxu0 0.0
        %5218 = vmatprep.subr.mxu0 0.0
        %5219 = vmatpush2.msra.mxu0 0.0
        %5220 = vmatprep.subr.mxu0 0.0
        %5221 = vmatpush2.msra.mxu0 0.0
        %5222 = vmatprep.subr.mxu0 0.0
        %5223 = vmatpush2.msra.mxu0 0.0
        %5224 = vmatprep.subr.mxu0 0.0
        %5225 = vmatpush2.msra.mxu0 0.0
        %5226 = vmatprep.subr.mxu0 0.0
        %5227 = vmatpush2.msra.mxu0 0.0
        %5228 = vmatprep.mubr.f32.mxu0 0.0
        %5229 = vmatmul.mubr.f32.gmra.mxu0 %v969
        %v5230 = vpop.f32.mrf.mxu0
        %v5231 = vadd.f32 0.0, %v5230
        %v5232 = vpop.f32.mrf.mxu0
        %v5233 = vadd.f32 0.0, %v5232
        %5234 = vmatprep.mubr.f32.mxu0 0.0
        %5235 = vmatmul.mubr.f32.gmra.mxu0 %v972
        %v5236 = vpop.f32.mrf.mxu0
        %v5237 = vadd.f32 0.0, %v5236
        %v5238 = vpop.f32.mrf.mxu0
        %v5239 = vadd.f32 0.0, %v5238
        %5240 = vmatprep.mubr.f32.mxu0 0.0
        %5241 = vmatmul.mubr.f32.gmra.mxu0 %v975
        %v5242 = vpop.f32.mrf.mxu0
        %v5243 = vadd.f32 0.0, %v5242
        %v5244 = vpop.f32.mrf.mxu0
        %v5245 = vadd.f32 0.0, %v5244
        %5246 = vmatprep.mubr.f32.mxu0 0.0
        %5247 = vmatmul.mubr.f32.gmra.mxu0 %v978
        %v5248 = vpop.f32.mrf.mxu0
        %v5249 = vadd.f32 0.0, %v5248
        %v5250 = vpop.f32.mrf.mxu0
        %v5251 = vadd.f32 0.0, %v5250
        %5252 = vmatprep.mubr.f32.mxu0 0.0
        %5253 = vmatmul.mubr.f32.gmra.mxu0 %v981
        %v5254 = vpop.f32.mrf.mxu0
        %v5255 = vadd.f32 0.0, %v5254
        %v5256 = vpop.f32.mrf.mxu0
        %v5257 = vadd.f32 0.0, %v5256
        %5258 = vmatprep.mubr.f32.mxu0 0.0
        %5259 = vmatmul.mubr.f32.gmra.mxu0 %v984
        %v5260 = vpop.f32.mrf.mxu0
        %v5261 = vadd.f32 0.0, %v5260
        %v5262 = vpop.f32.mrf.mxu0
        %v5263 = vadd.f32 0.0, %v5262
        %5264 = vdwg.mxu0
        %v5265 = vsub.f32 %v5152, %v5231
        %v5266 = vsub.f32 %v5153, %v5233
        %v5267 = vsub.f32 %v5154, %v5237
        %v5268 = vsub.f32 %v5155, %v5239
        %v5269 = vsub.f32 %v5156, %v5243
        %v5270 = vsub.f32 %v5157, %v5245
        %v5271 = vsub.f32 %v5158, %v5249
        %v5272 = vsub.f32 %v5159, %v5251
        %v5273 = vsub.f32 %v5160, %v5255
        %v5274 = vsub.f32 %v5161, %v5257
        %v5275 = vsub.f32 %v5162, %v5261
        %v5276 = vsub.f32 %v5163, %v5263
        %v5277 = vmul.f32 %v5265, %v5265
        %v5278 = vmul.f32 %v5266, %v5266
        %v5279 = vmul.f32 %v5267, %v5267
        %v5280 = vmul.f32 %v5268, %v5268
        %v5281 = vmul.f32 %v5269, %v5269
        %v5282 = vmul.f32 %v5270, %v5270
        %v5283 = vmul.f32 %v5271, %v5271
        %v5284 = vmul.f32 %v5272, %v5272
        %v5285 = vmul.f32 %v5273, %v5273
        %v5286 = vmul.f32 %v5274, %v5274
        %v5287 = vmul.f32 %v5275, %v5275
        %v5288 = vmul.f32 %v5276, %v5276
        %5289 = vmatprep.subr.mxu0 0.0
        %5290 = vmatpush1.msra.mxu0 0.0
        %5291 = vmatprep.subr.mxu0 0.0
        %5292 = vmatpush1.msra.mxu0 0.0
        %5293 = vmatprep.subr.mxu0 0.0
        %5294 = vmatpush1.msra.mxu0 0.0
        %5295 = vmatprep.subr.mxu0 0.0
        %5296 = vmatpush1.msra.mxu0 0.0
        %5297 = vmatprep.subr.mxu0 0.0
        %5298 = vmatpush1.msra.mxu0 0.0
        %5299 = vmatprep.subr.mxu0 0.0
        %5300 = vmatpush1.msra.mxu0 0.0
        %5301 = vmatprep.subr.mxu0 0.0
        %5302 = vmatpush1.msra.mxu0 0.0
        %5303 = vmatprep.subr.mxu0 0.0
        %5304 = vmatpush1.msra.mxu0 0.0
        %5305 = vmatprep.subr.mxu0 0.0
        %5306 = vmatpush1.msra.mxu0 0.0
        %5307 = vmatprep.subr.mxu0 0.0
        %5308 = vmatpush1.msra.mxu0 0.0
        %5309 = vmatprep.subr.mxu0 %v5288
        %5310 = vmatpush1.msra.mxu0 %v5287
        %5311 = vmatprep.subr.mxu0 %v5286
        %5312 = vmatpush1.msra.mxu0 %v5285
        %5313 = vmatprep.subr.mxu0 %v5284
        %5314 = vmatpush1.msra.mxu0 %v5283
        %5315 = vmatprep.subr.mxu0 %v5282
        %5316 = vmatpush1.msra.mxu0 %v5281
        %5317 = vmatprep.subr.mxu0 %v5280
        %5318 = vmatpush1.msra.mxu0 %v5279
        %5319 = vmatprep.subr.mxu0 %v5278
        %5320 = vmatpush1.msra.mxu0 %v5277
        %5321 = vmatprep.subr.mxu0 0.0
        %5322 = vmatpush2.msra.mxu0 0.0
        %5323 = vmatprep.subr.mxu0 0.0
        %5324 = vmatpush2.msra.mxu0 0.0
        %5325 = vmatprep.subr.mxu0 0.0
        %5326 = vmatpush2.msra.mxu0 0.0
        %5327 = vmatprep.subr.mxu0 0.0
        %5328 = vmatpush2.msra.mxu0 0.0
        %5329 = vmatprep.subr.mxu0 0.0
        %5330 = vmatpush2.msra.mxu0 0.0
        %5331 = vmatprep.subr.mxu0 0.0
        %5332 = vmatpush2.msra.mxu0 0.0
        %5333 = vmatprep.subr.mxu0 0.0
        %5334 = vmatpush2.msra.mxu0 0.0
        %5335 = vmatprep.subr.mxu0 0.0
        %5336 = vmatpush2.msra.mxu0 0.0
        %5337 = vmatprep.subr.mxu0 0.0
        %5338 = vmatpush2.msra.mxu0 0.0
        %5339 = vmatprep.subr.mxu0 0.0
        %5340 = vmatpush2.msra.mxu0 0.0
        %5341 = vmatprep.subr.mxu0 0.0
        %5342 = vmatpush2.msra.mxu0 0.0
        %5343 = vmatprep.subr.mxu0 0.0
        %5344 = vmatpush2.msra.mxu0 0.0
        %5345 = vmatprep.subr.mxu0 0.0
        %5346 = vmatpush2.msra.mxu0 0.0
        %5347 = vmatprep.subr.mxu0 0.0
        %5348 = vmatpush2.msra.mxu0 0.0
        %5349 = vmatprep.subr.mxu0 0.0
        %5350 = vmatpush2.msra.mxu0 0.0
        %5351 = vmatprep.subr.mxu0 0.0
        %5352 = vmatpush2.msra.mxu0 0.0
        %5353 = vmatprep.mubr.f32.mxu0 0.0
        %5354 = vmatmul.mubr.f32.gmra.mxu0 %v969
        %v5355 = vpop.f32.mrf.mxu0
        %v5356 = vadd.f32 1e-05, %v5355
        %v5357 = vpop.f32.mrf.mxu0
        %v5358 = vadd.f32 1e-05, %v5357
        %5359 = vmatprep.mubr.f32.mxu0 0.0
        %5360 = vmatmul.mubr.f32.gmra.mxu0 %v972
        %v5361 = vpop.f32.mrf.mxu0
        %v5362 = vadd.f32 1e-05, %v5361
        %v5363 = vpop.f32.mrf.mxu0
        %v5364 = vadd.f32 1e-05, %v5363
        %5365 = vmatprep.mubr.f32.mxu0 0.0
        %5366 = vmatmul.mubr.f32.gmra.mxu0 %v975
        %v5367 = vpop.f32.mrf.mxu0
        %v5368 = vadd.f32 1e-05, %v5367
        %v5369 = vpop.f32.mrf.mxu0
        %v5370 = vadd.f32 1e-05, %v5369
        %5371 = vmatprep.mubr.f32.mxu0 0.0
        %5372 = vmatmul.mubr.f32.gmra.mxu0 %v978
        %v5373 = vpop.f32.mrf.mxu0
        %v5374 = vadd.f32 1e-05, %v5373
        %v5375 = vpop.f32.mrf.mxu0
        %v5376 = vadd.f32 1e-05, %v5375
        %5377 = vmatprep.mubr.f32.mxu0 0.0
        %5378 = vmatmul.mubr.f32.gmra.mxu0 %v981
        %v5379 = vpop.f32.mrf.mxu0
        %v5380 = vadd.f32 1e-05, %v5379
        %v5381 = vpop.f32.mrf.mxu0
        %v5382 = vadd.f32 1e-05, %v5381
        %5383 = vmatprep.mubr.f32.mxu0 0.0
        %5384 = vmatmul.mubr.f32.gmra.mxu0 %v984
        %v5385 = vpop.f32.mrf.mxu0
        %v5386 = vadd.f32 1e-05, %v5385
        %v5387 = vpop.f32.mrf.mxu0
        %v5388 = vadd.f32 1e-05, %v5387
        %5389 = vdwg.mxu0
        %v5390 = vrsqrt.pop %v5356
        %v5391 = vrsqrt.pop %v5358
        %v5392 = vrsqrt.pop %v5362
        %v5393 = vrsqrt.pop %v5364
        %v5394 = vrsqrt.pop %v5368
        %v5395 = vrsqrt.pop %v5370
        %v5396 = vrsqrt.pop %v5374
        %v5397 = vrsqrt.pop %v5376
        %v5398 = vrsqrt.pop %v5380
        %v5399 = vrsqrt.pop %v5382
        %v5400 = vrsqrt.pop %v5386
        %v5401 = vrsqrt.pop %v5388
        %v5402 = vmul.f32 %v5265, %v5390
        %v5403 = vmul.f32 %v5266, %v5391
        %v5404 = vmul.f32 %v5267, %v5392
        %v5405 = vmul.f32 %v5268, %v5393
        %v5406 = vmul.f32 %v5269, %v5394
        %v5407 = vmul.f32 %v5270, %v5395
        %v5408 = vmul.f32 %v5271, %v5396
        %v5409 = vmul.f32 %v5272, %v5397
        %v5410 = vmul.f32 %v5273, %v5398
        %v5411 = vmul.f32 %v5274, %v5399
        %v5412 = vmul.f32 %v5275, %v5400
        %v5413 = vmul.f32 %v5276, %v5401
        %v5414 = vmul.f32 %v5402, %v2539
        %v5415 = vmul.f32 %v5403, %v2539
        %v5416 = vmul.f32 %v5404, %v2544
        %v5417 = vmul.f32 %v5405, %v2544
        %v5418 = vmul.f32 %v5406, %v2549
        %v5419 = vmul.f32 %v5407, %v2549
        %v5420 = vmul.f32 %v5408, %v2554
        %v5421 = vmul.f32 %v5409, %v2554
        %v5422 = vmul.f32 %v5410, %v2559
        %v5423 = vmul.f32 %v5411, %v2559
        %v5424 = vmul.f32 %v5412, %v2564
        %v5425 = vmul.f32 %v5413, %v2564
        %v5426 = vadd.f32 %v5414, %v2580
        %v5427 = vadd.f32 %v5415, %v2580
        %v5428 = vadd.f32 %v5416, %v2584
        %v5429 = vadd.f32 %v5417, %v2584
        %v5430 = vadd.f32 %v5418, %v2588
        %v5431 = vadd.f32 %v5419, %v2588
        %v5432 = vadd.f32 %v5420, %v2592
        %v5433 = vadd.f32 %v5421, %v2592
        %v5434 = vadd.f32 %v5422, %v2596
        %v5435 = vadd.f32 %v5423, %v2596
        %v5436 = vadd.f32 %v5424, %v2600
        %v5437 = vadd.f32 %v5425, %v2600
        %5438 = vmatprep.subr.mxu0 0.0
        %5439 = vmatpush1.msra.mxu0 0.0
        %5440 = vmatprep.subr.mxu0 0.0
        %5441 = vmatpush1.msra.mxu0 0.0
        %5442 = vmatprep.subr.mxu0 0.0
        %5443 = vmatpush1.msra.mxu0 0.0
        %5444 = vmatprep.subr.mxu0 0.0
        %5445 = vmatpush1.msra.mxu0 0.0
        %5446 = vmatprep.subr.mxu0 0.0
        %5447 = vmatpush1.msra.mxu0 0.0
        %5448 = vmatprep.subr.mxu0 0.0
        %5449 = vmatpush1.msra.mxu0 0.0
        %5450 = vmatprep.subr.mxu0 0.0
        %5451 = vmatpush1.msra.mxu0 0.0
        %5452 = vmatprep.subr.mxu0 0.0
        %5453 = vmatpush1.msra.mxu0 0.0
        %5454 = vmatprep.subr.mxu0 0.0
        %5455 = vmatpush1.msra.mxu0 0.0
        %5456 = vmatprep.subr.mxu0 0.0
        %5457 = vmatpush1.msra.mxu0 0.0
        %5458 = vmatprep.subr.mxu0 %v5437
        %5459 = vmatpush1.msra.mxu0 %v5436
        %5460 = vmatprep.subr.mxu0 %v5435
        %5461 = vmatpush1.msra.mxu0 %v5434
        %5462 = vmatprep.subr.mxu0 %v5433
        %5463 = vmatpush1.msra.mxu0 %v5432
        %5464 = vmatprep.subr.mxu0 %v5431
        %5465 = vmatpush1.msra.mxu0 %v5430
        %5466 = vmatprep.subr.mxu0 %v5429
        %5467 = vmatpush1.msra.mxu0 %v5428
        %5468 = vmatprep.subr.mxu0 %v5427
        %5469 = vmatpush1.msra.mxu0 %v5426
        %5470 = vmatprep.subr.mxu0 0.0
        %5471 = vmatpush2.msra.mxu0 0.0
        %5472 = vmatprep.subr.mxu0 0.0
        %5473 = vmatpush2.msra.mxu0 0.0
        %5474 = vmatprep.subr.mxu0 0.0
        %5475 = vmatpush2.msra.mxu0 0.0
        %5476 = vmatprep.subr.mxu0 0.0
        %5477 = vmatpush2.msra.mxu0 0.0
        %5478 = vmatprep.subr.mxu0 0.0
        %5479 = vmatpush2.msra.mxu0 0.0
        %5480 = vmatprep.subr.mxu0 0.0
        %5481 = vmatpush2.msra.mxu0 0.0
        %5482 = vmatprep.subr.mxu0 0.0
        %5483 = vmatpush2.msra.mxu0 0.0
        %5484 = vmatprep.subr.mxu0 0.0
        %5485 = vmatpush2.msra.mxu0 0.0
        %5486 = vmatprep.subr.mxu0 0.0
        %5487 = vmatpush2.msra.mxu0 0.0
        %5488 = vmatprep.subr.mxu0 0.0
        %5489 = vmatpush2.msra.mxu0 0.0
        %5490 = vmatprep.subr.mxu0 0.0
        %5491 = vmatpush2.msra.mxu0 0.0
        %5492 = vmatprep.subr.mxu0 0.0
        %5493 = vmatpush2.msra.mxu0 0.0
        %5494 = vmatprep.subr.mxu0 0.0
        %5495 = vmatpush2.msra.mxu0 0.0
        %5496 = vmatprep.subr.mxu0 0.0
        %5497 = vmatpush2.msra.mxu0 0.0
        %5498 = vmatprep.subr.mxu0 0.0
        %5499 = vmatpush2.msra.mxu0 0.0
        %5500 = vmatprep.subr.mxu0 0.0
        %5501 = vmatpush2.msra.mxu0 0.0
        %5502 = vmatprep.mubr.f32.mxu0 0.0
        %5503 = vmatmul.mubr.f32.gmra.mxu0 %v2639
        %v5504 = vpop.f32.mrf.mxu0
        %v5505 = vadd.f32 %v2616, %v5504
        %v5506 = vpop.f32.mrf.mxu0
        %v5507 = vadd.f32 %v2616, %v5506
        %5508 = vmatprep.mubr.f32.mxu0 0.0
        %5509 = vmatmul.mubr.f32.gmra.mxu0 %v2642
        %v5510 = vpop.f32.mrf.mxu0
        %v5511 = vadd.f32 %v2620, %v5510
        %v5512 = vpop.f32.mrf.mxu0
        %v5513 = vadd.f32 %v2620, %v5512
        %5514 = vmatprep.mubr.f32.mxu0 0.0
        %5515 = vmatmul.mubr.f32.gmra.mxu0 %v2645
        %v5516 = vpop.f32.mrf.mxu0
        %v5517 = vadd.f32 %v2624, %v5516
        %v5518 = vpop.f32.mrf.mxu0
        %v5519 = vadd.f32 %v2624, %v5518
        %5520 = vmatprep.mubr.f32.mxu0 0.0
        %5521 = vmatmul.mubr.f32.gmra.mxu0 %v2648
        %v5522 = vpop.f32.mrf.mxu0
        %v5523 = vadd.f32 %v2628, %v5522
        %v5524 = vpop.f32.mrf.mxu0
        %v5525 = vadd.f32 %v2628, %v5524
        %5526 = vmatprep.mubr.f32.mxu0 0.0
        %5527 = vmatmul.mubr.f32.gmra.mxu0 %v2651
        %v5528 = vpop.f32.mrf.mxu0
        %v5529 = vadd.f32 %v2632, %v5528
        %v5530 = vpop.f32.mrf.mxu0
        %v5531 = vadd.f32 %v2632, %v5530
        %5532 = vmatprep.mubr.f32.mxu0 0.0
        %5533 = vmatmul.mubr.f32.gmra.mxu0 %v2654
        %v5534 = vpop.f32.mrf.mxu0
        %v5535 = vadd.f32 %v2636, %v5534
        %v5536 = vpop.f32.mrf.mxu0
        %v5537 = vadd.f32 %v2636, %v5536
        %5538 = vdwg.mxu0
        %v5539 = vmax.f32 %v5505, 0.0
        %v5540 = vmax.f32 %v5507, 0.0
        %v5541 = vmax.f32 %v5511, 0.0
        %v5542 = vmax.f32 %v5513, 0.0
        %v5543 = vmax.f32 %v5517, 0.0
        %v5544 = vmax.f32 %v5519, 0.0
        %v5545 = vmax.f32 %v5523, 0.0
        %v5546 = vmax.f32 %v5525, 0.0
        %v5547 = vmax.f32 %v5529, 0.0
        %v5548 = vmax.f32 %v5531, 0.0
        %v5549 = vmax.f32 %v5535, 0.0
        %v5550 = vmax.f32 %v5537, 0.0
        %5551 = vmatprep.subr.mxu0 0.0
        %5552 = vmatpush1.msra.mxu0 0.0
        %5553 = vmatprep.subr.mxu0 0.0
        %5554 = vmatpush1.msra.mxu0 0.0
        %5555 = vmatprep.subr.mxu0 0.0
        %5556 = vmatpush1.msra.mxu0 0.0
        %5557 = vmatprep.subr.mxu0 0.0
        %5558 = vmatpush1.msra.mxu0 0.0
        %5559 = vmatprep.subr.mxu0 0.0
        %5560 = vmatpush1.msra.mxu0 0.0
        %5561 = vmatprep.subr.mxu0 0.0
        %5562 = vmatpush1.msra.mxu0 0.0
        %5563 = vmatprep.subr.mxu0 0.0
        %5564 = vmatpush1.msra.mxu0 0.0
        %5565 = vmatprep.subr.mxu0 0.0
        %5566 = vmatpush1.msra.mxu0 0.0
        %5567 = vmatprep.subr.mxu0 0.0
        %5568 = vmatpush1.msra.mxu0 0.0
        %5569 = vmatprep.subr.mxu0 0.0
        %5570 = vmatpush1.msra.mxu0 0.0
        %5571 = vmatprep.subr.mxu0 %v5550
        %5572 = vmatpush1.msra.mxu0 %v5549
        %5573 = vmatprep.subr.mxu0 %v5548
        %5574 = vmatpush1.msra.mxu0 %v5547
        %5575 = vmatprep.subr.mxu0 %v5546
        %5576 = vmatpush1.msra.mxu0 %v5545
        %5577 = vmatprep.subr.mxu0 %v5544
        %5578 = vmatpush1.msra.mxu0 %v5543
        %5579 = vmatprep.subr.mxu0 %v5542
        %5580 = vmatpush1.msra.mxu0 %v5541
        %5581 = vmatprep.subr.mxu0 %v5540
        %5582 = vmatpush1.msra.mxu0 %v5539
        %5583 = vmatprep.subr.mxu0 0.0
        %5584 = vmatpush2.msra.mxu0 0.0
        %5585 = vmatprep.subr.mxu0 0.0
        %5586 = vmatpush2.msra.mxu0 0.0
        %5587 = vmatprep.subr.mxu0 0.0
        %5588 = vmatpush2.msra.mxu0 0.0
        %5589 = vmatprep.subr.mxu0 0.0
        %5590 = vmatpush2.msra.mxu0 0.0
        %5591 = vmatprep.subr.mxu0 0.0
        %5592 = vmatpush2.msra.mxu0 0.0
        %5593 = vmatprep.subr.mxu0 0.0
        %5594 = vmatpush2.msra.mxu0 0.0
        %5595 = vmatprep.subr.mxu0 0.0
        %5596 = vmatpush2.msra.mxu0 0.0
        %5597 = vmatprep.subr.mxu0 0.0
        %5598 = vmatpush2.msra.mxu0 0.0
        %5599 = vmatprep.subr.mxu0 0.0
        %5600 = vmatpush2.msra.mxu0 0.0
        %5601 = vmatprep.subr.mxu0 0.0
        %5602 = vmatpush2.msra.mxu0 0.0
        %5603 = vmatprep.subr.mxu0 0.0
        %5604 = vmatpush2.msra.mxu0 0.0
        %5605 = vmatprep.subr.mxu0 0.0
        %5606 = vmatpush2.msra.mxu0 0.0
        %5607 = vmatprep.subr.mxu0 0.0
        %5608 = vmatpush2.msra.mxu0 0.0
        %5609 = vmatprep.subr.mxu0 0.0
        %5610 = vmatpush2.msra.mxu0 0.0
        %5611 = vmatprep.subr.mxu0 0.0
        %5612 = vmatpush2.msra.mxu0 0.0
        %5613 = vmatprep.subr.mxu0 0.0
        %5614 = vmatpush2.msra.mxu0 0.0
        %5615 = vmatprep.mubr.f32.mxu0 0.0
        %5616 = vmatmul.mubr.f32.gmra.mxu0 %v2770
        %v5617 = vpop.f32.mrf.mxu0
        %v5618 = vadd.f32 0.0, %v5617
        %v5619 = vpop.f32.mrf.mxu0
        %v5620 = vadd.f32 0.0, %v5619
        %5621 = vmatprep.mubr.f32.mxu0 0.0
        %5622 = vmatmul.mubr.f32.gmra.mxu0 %v2773
        %v5623 = vpop.f32.mrf.mxu0
        %v5624 = vadd.f32 0.0, %v5623
        %v5625 = vpop.f32.mrf.mxu0
        %v5626 = vadd.f32 0.0, %v5625
        %5627 = vmatprep.mubr.f32.mxu0 0.0
        %5628 = vmatmul.mubr.f32.gmra.mxu0 %v2776
        %v5629 = vpop.f32.mrf.mxu0
        %v5630 = vadd.f32 0.0, %v5629
        %v5631 = vpop.f32.mrf.mxu0
        %v5632 = vadd.f32 0.0, %v5631
        %5633 = vmatprep.mubr.f32.mxu0 0.0
        %5634 = vmatmul.mubr.f32.gmra.mxu0 %v2779
        %v5635 = vpop.f32.mrf.mxu0
        %v5636 = vadd.f32 0.0, %v5635
        %v5637 = vpop.f32.mrf.mxu0
        %v5638 = vadd.f32 0.0, %v5637
        %5639 = vmatprep.mubr.f32.mxu0 0.0
        %5640 = vmatmul.mubr.f32.gmra.mxu0 %v2782
        %v5641 = vpop.f32.mrf.mxu0
        %v5642 = vadd.f32 0.0, %v5641
        %v5643 = vpop.f32.mrf.mxu0
        %v5644 = vadd.f32 0.0, %v5643
        %5645 = vmatprep.mubr.f32.mxu0 0.0
        %5646 = vmatmul.mubr.f32.gmra.mxu0 %v2785
        %v5647 = vpop.f32.mrf.mxu0
        %v5648 = vadd.f32 0.0, %v5647
        %v5649 = vpop.f32.mrf.mxu0
        %v5650 = vadd.f32 0.0, %v5649
        %5651 = vdwg.mxu0
        %v5652 = vadd.f32 %v5152, %v5618
        %v5653 = vadd.f32 %v5153, %v5620
        %v5654 = vadd.f32 %v5154, %v5624
        %v5655 = vadd.f32 %v5155, %v5626
        %v5656 = vadd.f32 %v5156, %v5630
        %v5657 = vadd.f32 %v5157, %v5632
        %v5658 = vadd.f32 %v5158, %v5636
        %v5659 = vadd.f32 %v5159, %v5638
        %v5660 = vadd.f32 %v5160, %v5642
        %v5661 = vadd.f32 %v5161, %v5644
        %v5662 = vadd.f32 %v5162, %v5648
        %v5663 = vadd.f32 %v5163, %v5650
        %v5664 = vadd.f32 %v5652, %v2902
        %v5665 = vadd.f32 %v5653, %v2902
        %v5666 = vadd.f32 %v5654, %v2906
        %v5667 = vadd.f32 %v5655, %v2906
        %v5668 = vadd.f32 %v5656, %v2910
        %v5669 = vadd.f32 %v5657, %v2910
        %v5670 = vadd.f32 %v5658, %v2914
        %v5671 = vadd.f32 %v5659, %v2914
        %v5672 = vadd.f32 %v5660, %v2918
        %v5673 = vadd.f32 %v5661, %v2918
        %v5674 = vadd.f32 %v5662, %v2922
        %v5675 = vadd.f32 %v5663, %v2922
        %5676 = vmatprep.subr.mxu0 0.0
        %5677 = vmatpush1.msra.mxu0 0.0
        %5678 = vmatprep.subr.mxu0 0.0
        %5679 = vmatpush1.msra.mxu0 0.0
        %5680 = vmatprep.subr.mxu0 0.0
        %5681 = vmatpush1.msra.mxu0 0.0
        %5682 = vmatprep.subr.mxu0 0.0
        %5683 = vmatpush1.msra.mxu0 0.0
        %5684 = vmatprep.subr.mxu0 0.0
        %5685 = vmatpush1.msra.mxu0 0.0
        %5686 = vmatprep.subr.mxu0 0.0
        %5687 = vmatpush1.msra.mxu0 0.0
        %5688 = vmatprep.subr.mxu0 0.0
        %5689 = vmatpush1.msra.mxu0 0.0
        %5690 = vmatprep.subr.mxu0 0.0
        %5691 = vmatpush1.msra.mxu0 0.0
        %5692 = vmatprep.subr.mxu0 0.0
        %5693 = vmatpush1.msra.mxu0 0.0
        %5694 = vmatprep.subr.mxu0 0.0
        %5695 = vmatpush1.msra.mxu0 0.0
        %5696 = vmatprep.subr.mxu0 %v5675
        %5697 = vmatpush1.msra.mxu0 %v5674
        %5698 = vmatprep.subr.mxu0 %v5673
        %5699 = vmatpush1.msra.mxu0 %v5672
        %5700 = vmatprep.subr.mxu0 %v5671
        %5701 = vmatpush1.msra.mxu0 %v5670
        %5702 = vmatprep.subr.mxu0 %v5669
        %5703 = vmatpush1.msra.mxu0 %v5668
        %5704 = vmatprep.subr.mxu0 %v5667
        %5705 = vmatpush1.msra.mxu0 %v5666
        %5706 = vmatprep.subr.mxu0 %v5665
        %5707 = vmatpush1.msra.mxu0 %v5664
        %5708 = vmatprep.subr.mxu0 0.0
        %5709 = vmatpush2.msra.mxu0 0.0
        %5710 = vmatprep.subr.mxu0 0.0
        %5711 = vmatpush2.msra.mxu0 0.0
        %5712 = vmatprep.subr.mxu0 0.0
        %5713 = vmatpush2.msra.mxu0 0.0
        %5714 = vmatprep.subr.mxu0 0.0
        %5715 = vmatpush2.msra.mxu0 0.0
        %5716 = vmatprep.subr.mxu0 0.0
        %5717 = vmatpush2.msra.mxu0 0.0
        %5718 = vmatprep.subr.mxu0 0.0
        %5719 = vmatpush2.msra.mxu0 0.0
        %5720 = vmatprep.subr.mxu0 0.0
        %5721 = vmatpush2.msra.mxu0 0.0
        %5722 = vmatprep.subr.mxu0 0.0
        %5723 = vmatpush2.msra.mxu0 0.0
        %5724 = vmatprep.subr.mxu0 0.0
        %5725 = vmatpush2.msra.mxu0 0.0
        %5726 = vmatprep.subr.mxu0 0.0
        %5727 = vmatpush2.msra.mxu0 0.0
        %5728 = vmatprep.subr.mxu0 0.0
        %5729 = vmatpush2.msra.mxu0 0.0
        %5730 = vmatprep.subr.mxu0 0.0
        %5731 = vmatpush2.msra.mxu0 0.0
        %5732 = vmatprep.subr.mxu0 0.0
        %5733 = vmatpush2.msra.mxu0 0.0
        %5734 = vmatprep.subr.mxu0 0.0
        %5735 = vmatpush2.msra.mxu0 0.0
        %5736 = vmatprep.subr.mxu0 0.0
        %5737 = vmatpush2.msra.mxu0 0.0
        %5738 = vmatprep.subr.mxu0 0.0
        %5739 = vmatpush2.msra.mxu0 0.0
        %5740 = vmatprep.mubr.f32.mxu0 0.0
        %5741 = vmatmul.mubr.f32.gmra.mxu0 %v969
        %v5742 = vpop.f32.mrf.mxu0
        %v5743 = vadd.f32 0.0, %v5742
        %v5744 = vpop.f32.mrf.mxu0
        %v5745 = vadd.f32 0.0, %v5744
        %5746 = vmatprep.mubr.f32.mxu0 0.0
        %5747 = vmatmul.mubr.f32.gmra.mxu0 %v972
        %v5748 = vpop.f32.mrf.mxu0
        %v5749 = vadd.f32 0.0, %v5748
        %v5750 = vpop.f32.mrf.mxu0
        %v5751 = vadd.f32 0.0, %v5750
        %5752 = vmatprep.mubr.f32.mxu0 0.0
        %5753 = vmatmul.mubr.f32.gmra.mxu0 %v975
        %v5754 = vpop.f32.mrf.mxu0
        %v5755 = vadd.f32 0.0, %v5754
        %v5756 = vpop.f32.mrf.mxu0
        %v5757 = vadd.f32 0.0, %v5756
        %5758 = vmatprep.mubr.f32.mxu0 0.0
        %5759 = vmatmul.mubr.f32.gmra.mxu0 %v978
        %v5760 = vpop.f32.mrf.mxu0
        %v5761 = vadd.f32 0.0, %v5760
        %v5762 = vpop.f32.mrf.mxu0
        %v5763 = vadd.f32 0.0, %v5762
        %5764 = vmatprep.mubr.f32.mxu0 0.0
        %5765 = vmatmul.mubr.f32.gmra.mxu0 %v981
        %v5766 = vpop.f32.mrf.mxu0
        %v5767 = vadd.f32 0.0, %v5766
        %v5768 = vpop.f32.mrf.mxu0
        %v5769 = vadd.f32 0.0, %v5768
        %5770 = vmatprep.mubr.f32.mxu0 0.0
        %5771 = vmatmul.mubr.f32.gmra.mxu0 %v984
        %v5772 = vpop.f32.mrf.mxu0
        %v5773 = vadd.f32 0.0, %v5772
        %v5774 = vpop.f32.mrf.mxu0
        %v5775 = vadd.f32 0.0, %v5774
        %5776 = vdwg.mxu0
        %v5777 = vsub.f32 %v5664, %v5743
        %v5778 = vsub.f32 %v5665, %v5745
        %v5779 = vsub.f32 %v5666, %v5749
        %v5780 = vsub.f32 %v5667, %v5751
        %v5781 = vsub.f32 %v5668, %v5755
        %v5782 = vsub.f32 %v5669, %v5757
        %v5783 = vsub.f32 %v5670, %v5761
        %v5784 = vsub.f32 %v5671, %v5763
        %v5785 = vsub.f32 %v5672, %v5767
        %v5786 = vsub.f32 %v5673, %v5769
        %v5787 = vsub.f32 %v5674, %v5773
        %v5788 = vsub.f32 %v5675, %v5775
        %v5789 = vmul.f32 %v5777, %v5777
        %v5790 = vmul.f32 %v5778, %v5778
        %v5791 = vmul.f32 %v5779, %v5779
        %v5792 = vmul.f32 %v5780, %v5780
        %v5793 = vmul.f32 %v5781, %v5781
        %v5794 = vmul.f32 %v5782, %v5782
        %v5795 = vmul.f32 %v5783, %v5783
        %v5796 = vmul.f32 %v5784, %v5784
        %v5797 = vmul.f32 %v5785, %v5785
        %v5798 = vmul.f32 %v5786, %v5786
        %v5799 = vmul.f32 %v5787, %v5787
        %v5800 = vmul.f32 %v5788, %v5788
        %5801 = vmatprep.subr.mxu0 0.0
        %5802 = vmatpush1.msra.mxu0 0.0
        %5803 = vmatprep.subr.mxu0 0.0
        %5804 = vmatpush1.msra.mxu0 0.0
        %5805 = vmatprep.subr.mxu0 0.0
        %5806 = vmatpush1.msra.mxu0 0.0
        %5807 = vmatprep.subr.mxu0 0.0
        %5808 = vmatpush1.msra.mxu0 0.0
        %5809 = vmatprep.subr.mxu0 0.0
        %5810 = vmatpush1.msra.mxu0 0.0
        %5811 = vmatprep.subr.mxu0 0.0
        %5812 = vmatpush1.msra.mxu0 0.0
        %5813 = vmatprep.subr.mxu0 0.0
        %5814 = vmatpush1.msra.mxu0 0.0
        %5815 = vmatprep.subr.mxu0 0.0
        %5816 = vmatpush1.msra.mxu0 0.0
        %5817 = vmatprep.subr.mxu0 0.0
        %5818 = vmatpush1.msra.mxu0 0.0
        %5819 = vmatprep.subr.mxu0 0.0
        %5820 = vmatpush1.msra.mxu0 0.0
        %5821 = vmatprep.subr.mxu0 %v5800
        %5822 = vmatpush1.msra.mxu0 %v5799
        %5823 = vmatprep.subr.mxu0 %v5798
        %5824 = vmatpush1.msra.mxu0 %v5797
        %5825 = vmatprep.subr.mxu0 %v5796
        %5826 = vmatpush1.msra.mxu0 %v5795
        %5827 = vmatprep.subr.mxu0 %v5794
        %5828 = vmatpush1.msra.mxu0 %v5793
        %5829 = vmatprep.subr.mxu0 %v5792
        %5830 = vmatpush1.msra.mxu0 %v5791
        %5831 = vmatprep.subr.mxu0 %v5790
        %5832 = vmatpush1.msra.mxu0 %v5789
        %5833 = vmatprep.subr.mxu0 0.0
        %5834 = vmatpush2.msra.mxu0 0.0
        %5835 = vmatprep.subr.mxu0 0.0
        %5836 = vmatpush2.msra.mxu0 0.0
        %5837 = vmatprep.subr.mxu0 0.0
        %5838 = vmatpush2.msra.mxu0 0.0
        %5839 = vmatprep.subr.mxu0 0.0
        %5840 = vmatpush2.msra.mxu0 0.0
        %5841 = vmatprep.subr.mxu0 0.0
        %5842 = vmatpush2.msra.mxu0 0.0
        %5843 = vmatprep.subr.mxu0 0.0
        %5844 = vmatpush2.msra.mxu0 0.0
        %5845 = vmatprep.subr.mxu0 0.0
        %5846 = vmatpush2.msra.mxu0 0.0
        %5847 = vmatprep.subr.mxu0 0.0
        %5848 = vmatpush2.msra.mxu0 0.0
        %5849 = vmatprep.subr.mxu0 0.0
        %5850 = vmatpush2.msra.mxu0 0.0
        %5851 = vmatprep.subr.mxu0 0.0
        %5852 = vmatpush2.msra.mxu0 0.0
        %5853 = vmatprep.subr.mxu0 0.0
        %5854 = vmatpush2.msra.mxu0 0.0
        %5855 = vmatprep.subr.mxu0 0.0
        %5856 = vmatpush2.msra.mxu0 0.0
        %5857 = vmatprep.subr.mxu0 0.0
        %5858 = vmatpush2.msra.mxu0 0.0
        %5859 = vmatprep.subr.mxu0 0.0
        %5860 = vmatpush2.msra.mxu0 0.0
        %5861 = vmatprep.subr.mxu0 0.0
        %5862 = vmatpush2.msra.mxu0 0.0
        %5863 = vmatprep.subr.mxu0 0.0
        %5864 = vmatpush2.msra.mxu0 0.0
        %5865 = vmatprep.mubr.f32.mxu0 0.0
        %5866 = vmatmul.mubr.f32.gmra.mxu0 %v969
        %v5867 = vpop.f32.mrf.mxu0
        %v5868 = vadd.f32 1e-05, %v5867
        %v5869 = vpop.f32.mrf.mxu0
        %v5870 = vadd.f32 1e-05, %v5869
        %5871 = vmatprep.mubr.f32.mxu0 0.0
        %5872 = vmatmul.mubr.f32.gmra.mxu0 %v972
        %v5873 = vpop.f32.mrf.mxu0
        %v5874 = vadd.f32 1e-05, %v5873
        %v5875 = vpop.f32.mrf.mxu0
        %v5876 = vadd.f32 1e-05, %v5875
        %5877 = vmatprep.mubr.f32.mxu0 0.0
        %5878 = vmatmul.mubr.f32.gmra.mxu0 %v975
        %v5879 = vpop.f32.mrf.mxu0
        %v5880 = vadd.f32 1e-05, %v5879
        %v5881 = vpop.f32.mrf.mxu0
        %v5882 = vadd.f32 1e-05, %v5881
        %5883 = vmatprep.mubr.f32.mxu0 0.0
        %5884 = vmatmul.mubr.f32.gmra.mxu0 %v978
        %v5885 = vpop.f32.mrf.mxu0
        %v5886 = vadd.f32 1e-05, %v5885
        %v5887 = vpop.f32.mrf.mxu0
        %v5888 = vadd.f32 1e-05, %v5887
        %5889 = vmatprep.mubr.f32.mxu0 0.0
        %5890 = vmatmul.mubr.f32.gmra.mxu0 %v981
        %v5891 = vpop.f32.mrf.mxu0
        %v5892 = vadd.f32 1e-05, %v5891
        %v5893 = vpop.f32.mrf.mxu0
        %v5894 = vadd.f32 1e-05, %v5893
        %5895 = vmatprep.mubr.f32.mxu0 0.0
        %5896 = vmatmul.mubr.f32.gmra.mxu0 %v984
        %v5897 = vpop.f32.mrf.mxu0
        %v5898 = vadd.f32 1e-05, %v5897
        %v5899 = vpop.f32.mrf.mxu0
        %v5900 = vadd.f32 1e-05, %v5899
        %5901 = vdwg.mxu0
        %v5902 = vrsqrt.pop %v5868
        %v5903 = vrsqrt.pop %v5870
        %v5904 = vrsqrt.pop %v5874
        %v5905 = vrsqrt.pop %v5876
        %v5906 = vrsqrt.pop %v5880
        %v5907 = vrsqrt.pop %v5882
        %v5908 = vrsqrt.pop %v5886
        %v5909 = vrsqrt.pop %v5888
        %v5910 = vrsqrt.pop %v5892
        %v5911 = vrsqrt.pop %v5894
        %v5912 = vrsqrt.pop %v5898
        %v5913 = vrsqrt.pop %v5900
        %v5914 = vmul.f32 %v5777, %v5902
        %v5915 = vmul.f32 %v5778, %v5903
        %v5916 = vmul.f32 %v5779, %v5904
        %v5917 = vmul.f32 %v5780, %v5905
        %v5918 = vmul.f32 %v5781, %v5906
        %v5919 = vmul.f32 %v5782, %v5907
        %v5920 = vmul.f32 %v5783, %v5908
        %v5921 = vmul.f32 %v5784, %v5909
        %v5922 = vmul.f32 %v5785, %v5910
        %v5923 = vmul.f32 %v5786, %v5911
        %v5924 = vmul.f32 %v5787, %v5912
        %v5925 = vmul.f32 %v5788, %v5913
        %v5926 = vmul.f32 %v5914, %v3189
        %v5927 = vmul.f32 %v5915, %v3189
        %v5928 = vmul.f32 %v5916, %v3194
        %v5929 = vmul.f32 %v5917, %v3194
        %v5930 = vmul.f32 %v5918, %v3199
        %v5931 = vmul.f32 %v5919, %v3199
        %v5932 = vmul.f32 %v5920, %v3204
        %v5933 = vmul.f32 %v5921, %v3204
        %v5934 = vmul.f32 %v5922, %v3209
        %v5935 = vmul.f32 %v5923, %v3209
        %v5936 = vmul.f32 %v5924, %v3214
        %v5937 = vmul.f32 %v5925, %v3214
        %v5938 = vadd.f32 %v5926, %v3230
        %v5939 = vadd.f32 %v5927, %v3230
        %v5940 = vadd.f32 %v5928, %v3234
        %v5941 = vadd.f32 %v5929, %v3234
        %v5942 = vadd.f32 %v5930, %v3238
        %v5943 = vadd.f32 %v5931, %v3238
        %v5944 = vadd.f32 %v5932, %v3242
        %v5945 = vadd.f32 %v5933, %v3242
        %v5946 = vadd.f32 %v5934, %v3246
        %v5947 = vadd.f32 %v5935, %v3246
        %v5948 = vadd.f32 %v5936, %v3250
        %v5949 = vadd.f32 %v5937, %v3250
        %5950 = vmatprep.subr.mxu0 0.0
        %5951 = vmatpush1.msra.mxu0 0.0
        %5952 = vmatprep.subr.mxu0 0.0
        %5953 = vmatpush1.msra.mxu0 0.0
        %5954 = vmatprep.subr.mxu0 0.0
        %5955 = vmatpush1.msra.mxu0 0.0
        %5956 = vmatprep.subr.mxu0 0.0
        %5957 = vmatpush1.msra.mxu0 0.0
        %5958 = vmatprep.subr.mxu0 0.0
        %5959 = vmatpush1.msra.mxu0 0.0
        %5960 = vmatprep.subr.mxu0 0.0
        %5961 = vmatpush1.msra.mxu0 0.0
        %5962 = vmatprep.subr.mxu0 0.0
        %5963 = vmatpush1.msra.mxu0 0.0
        %5964 = vmatprep.subr.mxu0 0.0
        %5965 = vmatpush1.msra.mxu0 0.0
        %5966 = vmatprep.subr.mxu0 0.0
        %5967 = vmatpush1.msra.mxu0 0.0
        %5968 = vmatprep.subr.mxu0 0.0
        %5969 = vmatpush1.msra.mxu0 0.0
        %5970 = vmatprep.subr.mxu0 %v5949
        %5971 = vmatpush1.msra.mxu0 %v5948
        %5972 = vmatprep.subr.mxu0 %v5947
        %5973 = vmatpush1.msra.mxu0 %v5946
        %5974 = vmatprep.subr.mxu0 %v5945
        %5975 = vmatpush1.msra.mxu0 %v5944
        %5976 = vmatprep.subr.mxu0 %v5943
        %5977 = vmatpush1.msra.mxu0 %v5942
        %5978 = vmatprep.subr.mxu0 %v5941
        %5979 = vmatpush1.msra.mxu0 %v5940
        %5980 = vmatprep.subr.mxu0 %v5939
        %5981 = vmatpush1.msra.mxu0 %v5938
        %5982 = vmatprep.subr.mxu0 0.0
        %5983 = vmatpush2.msra.mxu0 0.0
        %5984 = vmatprep.subr.mxu0 0.0
        %5985 = vmatpush2.msra.mxu0 0.0
        %5986 = vmatprep.subr.mxu0 0.0
        %5987 = vmatpush2.msra.mxu0 0.0
        %5988 = vmatprep.subr.mxu0 0.0
        %5989 = vmatpush2.msra.mxu0 0.0
        %5990 = vmatprep.subr.mxu0 0.0
        %5991 = vmatpush2.msra.mxu0 0.0
        %5992 = vmatprep.subr.mxu0 0.0
        %5993 = vmatpush2.msra.mxu0 0.0
        %5994 = vmatprep.subr.mxu0 0.0
        %5995 = vmatpush2.msra.mxu0 0.0
        %5996 = vmatprep.subr.mxu0 0.0
        %5997 = vmatpush2.msra.mxu0 0.0
        %5998 = vmatprep.subr.mxu0 0.0
        %5999 = vmatpush2.msra.mxu0 0.0
        %6000 = vmatprep.subr.mxu0 0.0
        %6001 = vmatpush2.msra.mxu0 0.0
        %6002 = vmatprep.subr.mxu0 0.0
        %6003 = vmatpush2.msra.mxu0 0.0
        %6004 = vmatprep.subr.mxu0 0.0
        %6005 = vmatpush2.msra.mxu0 0.0
        %6006 = vmatprep.subr.mxu0 0.0
        %6007 = vmatpush2.msra.mxu0 0.0
        %6008 = vmatprep.subr.mxu0 0.0
        %6009 = vmatpush2.msra.mxu0 0.0
        %6010 = vmatprep.subr.mxu0 0.0
        %6011 = vmatpush2.msra.mxu0 0.0
        %6012 = vmatprep.subr.mxu0 0.0
        %6013 = vmatpush2.msra.mxu0 0.0
        %6014 = vmatprep.mubr.f32.mxu0 0.0
        %6015 = vmatmul.mubr.f32.gmra.mxu0 %v3289
        %v6016 = vpop.f32.mrf.mxu0
        %v6017 = vadd.f32 %v3266, %v6016
        %v6018 = vpop.f32.mrf.mxu0
        %v6019 = vadd.f32 %v3266, %v6018
        %6020 = vmatprep.mubr.f32.mxu0 0.0
        %6021 = vmatmul.mubr.f32.gmra.mxu0 %v3292
        %v6022 = vpop.f32.mrf.mxu0
        %v6023 = vadd.f32 %v3270, %v6022
        %v6024 = vpop.f32.mrf.mxu0
        %v6025 = vadd.f32 %v3270, %v6024
        %6026 = vmatprep.mubr.f32.mxu0 0.0
        %6027 = vmatmul.mubr.f32.gmra.mxu0 %v3295
        %v6028 = vpop.f32.mrf.mxu0
        %v6029 = vadd.f32 %v3274, %v6028
        %v6030 = vpop.f32.mrf.mxu0
        %v6031 = vadd.f32 %v3274, %v6030
        %6032 = vmatprep.mubr.f32.mxu0 0.0
        %6033 = vmatmul.mubr.f32.gmra.mxu0 %v3298
        %v6034 = vpop.f32.mrf.mxu0
        %v6035 = vadd.f32 %v3278, %v6034
        %v6036 = vpop.f32.mrf.mxu0
        %v6037 = vadd.f32 %v3278, %v6036
        %6038 = vmatprep.mubr.f32.mxu0 0.0
        %6039 = vmatmul.mubr.f32.gmra.mxu0 %v3301
        %v6040 = vpop.f32.mrf.mxu0
        %v6041 = vadd.f32 %v3282, %v6040
        %v6042 = vpop.f32.mrf.mxu0
        %v6043 = vadd.f32 %v3282, %v6042
        %6044 = vmatprep.mubr.f32.mxu0 0.0
        %6045 = vmatmul.mubr.f32.gmra.mxu0 %v3304
        %v6046 = vpop.f32.mrf.mxu0
        %v6047 = vadd.f32 %v3286, %v6046
        %v6048 = vpop.f32.mrf.mxu0
        %v6049 = vadd.f32 %v3286, %v6048
        %6050 = vdwg.mxu0
        %v6051 = vmax.f32 %v6017, 0.0
        %v6052 = vmax.f32 %v6019, 0.0
        %v6053 = vmax.f32 %v6023, 0.0
        %v6054 = vmax.f32 %v6025, 0.0
        %v6055 = vmax.f32 %v6029, 0.0
        %v6056 = vmax.f32 %v6031, 0.0
        %v6057 = vmax.f32 %v6035, 0.0
        %v6058 = vmax.f32 %v6037, 0.0
        %v6059 = vmax.f32 %v6041, 0.0
        %v6060 = vmax.f32 %v6043, 0.0
        %v6061 = vmax.f32 %v6047, 0.0
        %v6062 = vmax.f32 %v6049, 0.0
        %6063 = vmatprep.subr.mxu0 0.0
        %6064 = vmatpush1.msra.mxu0 0.0
        %6065 = vmatprep.subr.mxu0 0.0
        %6066 = vmatpush1.msra.mxu0 0.0
        %6067 = vmatprep.subr.mxu0 0.0
        %6068 = vmatpush1.msra.mxu0 0.0
        %6069 = vmatprep.subr.mxu0 0.0
        %6070 = vmatpush1.msra.mxu0 0.0
        %6071 = vmatprep.subr.mxu0 0.0
        %6072 = vmatpush1.msra.mxu0 0.0
        %6073 = vmatprep.subr.mxu0 0.0
        %6074 = vmatpush1.msra.mxu0 0.0
        %6075 = vmatprep.subr.mxu0 0.0
        %6076 = vmatpush1.msra.mxu0 0.0
        %6077 = vmatprep.subr.mxu0 0.0
        %6078 = vmatpush1.msra.mxu0 0.0
        %6079 = vmatprep.subr.mxu0 0.0
        %6080 = vmatpush1.msra.mxu0 0.0
        %6081 = vmatprep.subr.mxu0 0.0
        %6082 = vmatpush1.msra.mxu0 0.0
        %6083 = vmatprep.subr.mxu0 %v6062
        %6084 = vmatpush1.msra.mxu0 %v6061
        %6085 = vmatprep.subr.mxu0 %v6060
        %6086 = vmatpush1.msra.mxu0 %v6059
        %6087 = vmatprep.subr.mxu0 %v6058
        %6088 = vmatpush1.msra.mxu0 %v6057
        %6089 = vmatprep.subr.mxu0 %v6056
        %6090 = vmatpush1.msra.mxu0 %v6055
        %6091 = vmatprep.subr.mxu0 %v6054
        %6092 = vmatpush1.msra.mxu0 %v6053
        %6093 = vmatprep.subr.mxu0 %v6052
        %6094 = vmatpush1.msra.mxu0 %v6051
        %6095 = vmatprep.subr.mxu0 0.0
        %6096 = vmatpush2.msra.mxu0 0.0
        %6097 = vmatprep.subr.mxu0 0.0
        %6098 = vmatpush2.msra.mxu0 0.0
        %6099 = vmatprep.subr.mxu0 0.0
        %6100 = vmatpush2.msra.mxu0 0.0
        %6101 = vmatprep.subr.mxu0 0.0
        %6102 = vmatpush2.msra.mxu0 0.0
        %6103 = vmatprep.subr.mxu0 0.0
        %6104 = vmatpush2.msra.mxu0 0.0
        %6105 = vmatprep.subr.mxu0 0.0
        %6106 = vmatpush2.msra.mxu0 0.0
        %6107 = vmatprep.subr.mxu0 0.0
        %6108 = vmatpush2.msra.mxu0 0.0
        %6109 = vmatprep.subr.mxu0 0.0
        %6110 = vmatpush2.msra.mxu0 0.0
        %6111 = vmatprep.subr.mxu0 0.0
        %6112 = vmatpush2.msra.mxu0 0.0
        %6113 = vmatprep.subr.mxu0 0.0
        %6114 = vmatpush2.msra.mxu0 0.0
        %6115 = vmatprep.subr.mxu0 0.0
        %6116 = vmatpush2.msra.mxu0 0.0
        %6117 = vmatprep.subr.mxu0 0.0
        %6118 = vmatpush2.msra.mxu0 0.0
        %6119 = vmatprep.subr.mxu0 0.0
        %6120 = vmatpush2.msra.mxu0 0.0
        %6121 = vmatprep.subr.mxu0 0.0
        %6122 = vmatpush2.msra.mxu0 0.0
        %6123 = vmatprep.subr.mxu0 0.0
        %6124 = vmatpush2.msra.mxu0 0.0
        %6125 = vmatprep.subr.mxu0 0.0
        %6126 = vmatpush2.msra.mxu0 0.0
        %6127 = vmatprep.mubr.f32.mxu0 0.0
        %6128 = vmatmul.mubr.f32.gmra.mxu0 %v3420
        %v6129 = vpop.f32.mrf.mxu0
        %v6130 = vadd.f32 0.0, %v6129
        %v6131 = vpop.f32.mrf.mxu0
        %v6132 = vadd.f32 0.0, %v6131
        %6133 = vmatprep.mubr.f32.mxu0 0.0
        %6134 = vmatmul.mubr.f32.gmra.mxu0 %v3423
        %v6135 = vpop.f32.mrf.mxu0
        %v6136 = vadd.f32 0.0, %v6135
        %v6137 = vpop.f32.mrf.mxu0
        %v6138 = vadd.f32 0.0, %v6137
        %6139 = vmatprep.mubr.f32.mxu0 0.0
        %6140 = vmatmul.mubr.f32.gmra.mxu0 %v3426
        %v6141 = vpop.f32.mrf.mxu0
        %v6142 = vadd.f32 0.0, %v6141
        %v6143 = vpop.f32.mrf.mxu0
        %v6144 = vadd.f32 0.0, %v6143
        %6145 = vmatprep.mubr.f32.mxu0 0.0
        %6146 = vmatmul.mubr.f32.gmra.mxu0 %v3429
        %v6147 = vpop.f32.mrf.mxu0
        %v6148 = vadd.f32 0.0, %v6147
        %v6149 = vpop.f32.mrf.mxu0
        %v6150 = vadd.f32 0.0, %v6149
        %6151 = vmatprep.mubr.f32.mxu0 0.0
        %6152 = vmatmul.mubr.f32.gmra.mxu0 %v3432
        %v6153 = vpop.f32.mrf.mxu0
        %v6154 = vadd.f32 0.0, %v6153
        %v6155 = vpop.f32.mrf.mxu0
        %v6156 = vadd.f32 0.0, %v6155
        %6157 = vmatprep.mubr.f32.mxu0 0.0
        %6158 = vmatmul.mubr.f32.gmra.mxu0 %v3435
        %v6159 = vpop.f32.mrf.mxu0
        %v6160 = vadd.f32 0.0, %v6159
        %v6161 = vpop.f32.mrf.mxu0
        %v6162 = vadd.f32 0.0, %v6161
        %6163 = vdwg.mxu0
        %v6164 = vadd.f32 %v5664, %v6130
        %v6165 = vadd.f32 %v5665, %v6132
        %v6166 = vadd.f32 %v5666, %v6136
        %v6167 = vadd.f32 %v5667, %v6138
        %v6168 = vadd.f32 %v5668, %v6142
        %v6169 = vadd.f32 %v5669, %v6144
        %v6170 = vadd.f32 %v5670, %v6148
        %v6171 = vadd.f32 %v5671, %v6150
        %v6172 = vadd.f32 %v5672, %v6154
        %v6173 = vadd.f32 %v5673, %v6156
        %v6174 = vadd.f32 %v5674, %v6160
        %v6175 = vadd.f32 %v5675, %v6162
        %v6176 = vadd.f32 %v6164, %v3552
        %v6177 = vadd.f32 %v6165, %v3552
        %v6178 = vadd.f32 %v6166, %v3556
        %v6179 = vadd.f32 %v6167, %v3556
        %v6180 = vadd.f32 %v6168, %v3560
        %v6181 = vadd.f32 %v6169, %v3560
        %v6182 = vadd.f32 %v6170, %v3564
        %v6183 = vadd.f32 %v6171, %v3564
        %v6184 = vadd.f32 %v6172, %v3568
        %v6185 = vadd.f32 %v6173, %v3568
        %v6186 = vadd.f32 %v6174, %v3572
        %v6187 = vadd.f32 %v6175, %v3572
        %6188 = vmatprep.subr.mxu0 0.0
        %6189 = vmatpush1.msra.mxu0 0.0
        %6190 = vmatprep.subr.mxu0 0.0
        %6191 = vmatpush1.msra.mxu0 0.0
        %6192 = vmatprep.subr.mxu0 0.0
        %6193 = vmatpush1.msra.mxu0 0.0
        %6194 = vmatprep.subr.mxu0 0.0
        %6195 = vmatpush1.msra.mxu0 0.0
        %6196 = vmatprep.subr.mxu0 0.0
        %6197 = vmatpush1.msra.mxu0 0.0
        %6198 = vmatprep.subr.mxu0 0.0
        %6199 = vmatpush1.msra.mxu0 0.0
        %6200 = vmatprep.subr.mxu0 0.0
        %6201 = vmatpush1.msra.mxu0 0.0
        %6202 = vmatprep.subr.mxu0 0.0
        %6203 = vmatpush1.msra.mxu0 0.0
        %6204 = vmatprep.subr.mxu0 0.0
        %6205 = vmatpush1.msra.mxu0 0.0
        %6206 = vmatprep.subr.mxu0 0.0
        %6207 = vmatpush1.msra.mxu0 0.0
        %6208 = vmatprep.subr.mxu0 %v6187
        %6209 = vmatpush1.msra.mxu0 %v6186
        %6210 = vmatprep.subr.mxu0 %v6185
        %6211 = vmatpush1.msra.mxu0 %v6184
        %6212 = vmatprep.subr.mxu0 %v6183
        %6213 = vmatpush1.msra.mxu0 %v6182
        %6214 = vmatprep.subr.mxu0 %v6181
        %6215 = vmatpush1.msra.mxu0 %v6180
        %6216 = vmatprep.subr.mxu0 %v6179
        %6217 = vmatpush1.msra.mxu0 %v6178
        %6218 = vmatprep.subr.mxu0 %v6177
        %6219 = vmatpush1.msra.mxu0 %v6176
        %6220 = vmatprep.subr.mxu0 0.0
        %6221 = vmatpush2.msra.mxu0 0.0
        %6222 = vmatprep.subr.mxu0 0.0
        %6223 = vmatpush2.msra.mxu0 0.0
        %6224 = vmatprep.subr.mxu0 0.0
        %6225 = vmatpush2.msra.mxu0 0.0
        %6226 = vmatprep.subr.mxu0 0.0
        %6227 = vmatpush2.msra.mxu0 0.0
        %6228 = vmatprep.subr.mxu0 0.0
        %6229 = vmatpush2.msra.mxu0 0.0
        %6230 = vmatprep.subr.mxu0 0.0
        %6231 = vmatpush2.msra.mxu0 0.0
        %6232 = vmatprep.subr.mxu0 0.0
        %6233 = vmatpush2.msra.mxu0 0.0
        %6234 = vmatprep.subr.mxu0 0.0
        %6235 = vmatpush2.msra.mxu0 0.0
        %6236 = vmatprep.subr.mxu0 0.0
        %6237 = vmatpush2.msra.mxu0 0.0
        %6238 = vmatprep.subr.mxu0 0.0
        %6239 = vmatpush2.msra.mxu0 0.0
        %6240 = vmatprep.subr.mxu0 0.0
        %6241 = vmatpush2.msra.mxu0 0.0
        %6242 = vmatprep.subr.mxu0 0.0
        %6243 = vmatpush2.msra.mxu0 0.0
        %6244 = vmatprep.subr.mxu0 0.0
        %6245 = vmatpush2.msra.mxu0 0.0
        %6246 = vmatprep.subr.mxu0 0.0
        %6247 = vmatpush2.msra.mxu0 0.0
        %6248 = vmatprep.subr.mxu0 0.0
        %6249 = vmatpush2.msra.mxu0 0.0
        %6250 = vmatprep.subr.mxu0 0.0
        %6251 = vmatpush2.msra.mxu0 0.0
        %6252 = vmatprep.mubr.f32.mxu0 0.0
        %6253 = vmatmul.mubr.f32.gmra.mxu0 %v3587
        %v6254 = vpop.f32.mrf.mxu0
        %v6255 = vadd.f32 0.0, %v6254
        %v6256 = vpop.f32.mrf.mxu0
        %v6257 = vadd.f32 0.0, %v6256
        %6258 = vdwg.mxu0
        %v6259 = vpack.c.bf16 %v6255, %v6255
        %v6260 = vpack.c.bf16 %v6257, %v6257
        %v6261 = vld [vmem:[%s494] sm:$0xff]
        %v6262 = vld [vmem:[%s494 + $0x8] sm:$0xff]
        %v6263 = vld [vmem:[%s494 + $0x10] sm:$0xff]
        %v6264 = vld [vmem:[%s494 + $0x18] sm:$0xff]
        %v6265 = vld [vmem:[%s494 + $0x20] sm:$0xff]
        %v6266 = vld [vmem:[%s494 + $0x28] sm:$0xff]
        %v6267 = vld [vmem:[%s494 + $0x30] sm:$0xff]
        %v6268 = vld [vmem:[%s494 + $0x38] sm:$0xff]
        %v6269 = vld [vmem:[%s494 + $0x40] sm:$0xff]
        %v6270 = vld [vmem:[%s494 + $0x48] sm:$0xff]
        %v6271 = vld [vmem:[%s494 + $0x50] sm:$0xff]
        %v6272 = vld [vmem:[%s494 + $0x58] sm:$0xff]
        %v6273 = vld [vmem:[%s494 + $0x60] sm:$0xff]
        %v6274 = vld [vmem:[%s494 + $0x68] sm:$0xff]
        %v6275 = vld [vmem:[%s494 + $0x70] sm:$0xff]
        %v6276 = vld [vmem:[%s494 + $0x78] sm:$0xff]
        %v6277 = vld [vmem:[%s494 + $0x80] sm:$0xff]
        %v6278 = vld [vmem:[%s494 + $0x88] sm:$0xff]
        %v6279 = vld [vmem:[%s494 + $0x90] sm:$0xff]
        %v6280 = vld [vmem:[%s494 + $0x98] sm:$0xff]
        %v6281 = vld [vmem:[%s494 + $0xa0] sm:$0xff]
        %v6282 = vld [vmem:[%s494 + $0xa8] sm:$0xff]
        %v6283 = vld [vmem:[%s494 + $0xb0] sm:$0xff]
        %v6284 = vld [vmem:[%s494 + $0xb8] sm:$0xff]
        %v6285 = vld [vmem:[%s494 + $0xc0] sm:$0xff]
        %v6286 = vld [vmem:[%s494 + $0xc8] sm:$0xff]
        %v6287 = vld [vmem:[%s494 + $0xd0] sm:$0xff]
        %v6288 = vld [vmem:[%s494 + $0xd8] sm:$0xff]
        %v6289 = vld [vmem:[%s494 + $0xe0] sm:$0xff]
        %v6290 = vld [vmem:[%s494 + $0xe8] sm:$0xff]
        %v6291 = vld [vmem:[%s494 + $0xf0] sm:$0xff]
        %v6292 = vld [vmem:[%s494 + $0xf8] sm:$0xff]
        %v6293 = vld [vmem:[%s494 + $0x100] sm:$0xff]
        %v6294 = vld [vmem:[%s494 + $0x108] sm:$0xff]
        %v6295 = vld [vmem:[%s494 + $0x110] sm:$0xff]
        %v6296 = vld [vmem:[%s494 + $0x118] sm:$0xff]
        %v6297 = vld [vmem:[%s494 + $0x120] sm:$0xff]
        %v6298 = vld [vmem:[%s494 + $0x128] sm:$0xff]
        %v6299 = vld [vmem:[%s494 + $0x130] sm:$0xff]
        %v6300 = vld [vmem:[%s494 + $0x138] sm:$0xff]
        %v6301 = vld [vmem:[%s494 + $0x140] sm:$0xff]
        %v6302 = vld [vmem:[%s494 + $0x148] sm:$0xff]
        %v6303 = vld [vmem:[%s494 + $0x150] sm:$0xff]
        %v6304 = vld [vmem:[%s494 + $0x158] sm:$0xff]
        %v6305 = vld [vmem:[%s494 + $0x160] sm:$0xff]
        %v6306 = vld [vmem:[%s494 + $0x168] sm:$0xff]
        %v6307 = vld [vmem:[%s494 + $0x170] sm:$0xff]
        %v6308 = vld [vmem:[%s494 + $0x178] sm:$0xff]
        %v6309 = vld [vmem:[%s494 + $0x180] sm:$0xff]
        %v6310 = vld [vmem:[%s494 + $0x188] sm:$0xff]
        %v6311 = vld [vmem:[%s494 + $0x190] sm:$0xff]
        %v6312 = vld [vmem:[%s494 + $0x198] sm:$0xff]
        %v6313 = vld [vmem:[%s494 + $0x1a0] sm:$0xff]
        %v6314 = vld [vmem:[%s494 + $0x1a8] sm:$0xff]
        %v6315 = vld [vmem:[%s494 + $0x1b0] sm:$0xff]
        %v6316 = vld [vmem:[%s494 + $0x1b8] sm:$0xff]
        %v6317 = vld [vmem:[%s494 + $0x1c0] sm:$0xff]
        %v6318 = vld [vmem:[%s494 + $0x1c8] sm:$0xff]
        %v6319 = vld [vmem:[%s494 + $0x1d0] sm:$0xff]
        %v6320 = vld [vmem:[%s494 + $0x1d8] sm:$0xff]
        %v6321 = vld [vmem:[%s494 + $0x1e0] sm:$0xff]
        %v6322 = vld [vmem:[%s494 + $0x1e8] sm:$0xff]
        %v6323 = vld [vmem:[%s494 + $0x1f0] sm:$0xff]
        %v6324 = vld [vmem:[%s494 + $0x1f8] sm:$0xff]
        %v6389 = vunpack.c.l.b16 %v6261
        %v6390 = vunpack.c.h.b16 %v6261
        %v6391 = vunpack.c.l.b16 %v6262
        %v6392 = vunpack.c.h.b16 %v6262
        %v6393 = vunpack.c.l.b16 %v6263
        %v6394 = vunpack.c.h.b16 %v6263
        %v6395 = vunpack.c.l.b16 %v6264
        %v6396 = vunpack.c.h.b16 %v6264
        %v6397 = vunpack.c.l.b16 %v6265
        %v6398 = vunpack.c.h.b16 %v6265
        %v6399 = vunpack.c.l.b16 %v6266
        %v6400 = vunpack.c.h.b16 %v6266
        %v6401 = vunpack.c.l.b16 %v6267
        %v6402 = vunpack.c.h.b16 %v6267
        %v6403 = vunpack.c.l.b16 %v6268
        %v6404 = vunpack.c.h.b16 %v6268
        %v6405 = vunpack.c.l.b16 %v6269
        %v6406 = vunpack.c.h.b16 %v6269
        %v6407 = vunpack.c.l.b16 %v6270
        %v6408 = vunpack.c.h.b16 %v6270
        %v6409 = vunpack.c.l.b16 %v6271
        %v6410 = vunpack.c.h.b16 %v6271
        %v6411 = vunpack.c.l.b16 %v6272
        %v6412 = vunpack.c.h.b16 %v6272
        %v6413 = vunpack.c.l.b16 %v6273
        %v6414 = vunpack.c.h.b16 %v6273
        %v6415 = vunpack.c.l.b16 %v6274
        %v6416 = vunpack.c.h.b16 %v6274
        %v6417 = vunpack.c.l.b16 %v6275
        %v6418 = vunpack.c.h.b16 %v6275
        %v6419 = vunpack.c.l.b16 %v6276
        %v6420 = vunpack.c.h.b16 %v6276
        %v6421 = vunpack.c.l.b16 %v6277
        %v6422 = vunpack.c.h.b16 %v6277
        %v6423 = vunpack.c.l.b16 %v6278
        %v6424 = vunpack.c.h.b16 %v6278
        %v6425 = vunpack.c.l.b16 %v6279
        %v6426 = vunpack.c.h.b16 %v6279
        %v6427 = vunpack.c.l.b16 %v6280
        %v6428 = vunpack.c.h.b16 %v6280
        %v6429 = vunpack.c.l.b16 %v6281
        %v6430 = vunpack.c.h.b16 %v6281
        %v6431 = vunpack.c.l.b16 %v6282
        %v6432 = vunpack.c.h.b16 %v6282
        %v6433 = vunpack.c.l.b16 %v6283
        %v6434 = vunpack.c.h.b16 %v6283
        %v6435 = vunpack.c.l.b16 %v6284
        %v6436 = vunpack.c.h.b16 %v6284
        %v6437 = vunpack.c.l.b16 %v6285
        %v6438 = vunpack.c.h.b16 %v6285
        %v6439 = vunpack.c.l.b16 %v6286
        %v6440 = vunpack.c.h.b16 %v6286
        %v6441 = vunpack.c.l.b16 %v6287
        %v6442 = vunpack.c.h.b16 %v6287
        %v6443 = vunpack.c.l.b16 %v6288
        %v6444 = vunpack.c.h.b16 %v6288
        %v6445 = vunpack.c.l.b16 %v6289
        %v6446 = vunpack.c.h.b16 %v6289
        %v6447 = vunpack.c.l.b16 %v6290
        %v6448 = vunpack.c.h.b16 %v6290
        %v6449 = vunpack.c.l.b16 %v6291
        %v6450 = vunpack.c.h.b16 %v6291
        %v6451 = vunpack.c.l.b16 %v6292
        %v6452 = vunpack.c.h.b16 %v6292
        %v6453 = vunpack.c.l.b16 %v6293
        %v6454 = vunpack.c.h.b16 %v6293
        %v6455 = vunpack.c.l.b16 %v6294
        %v6456 = vunpack.c.h.b16 %v6294
        %v6457 = vunpack.c.l.b16 %v6295
        %v6458 = vunpack.c.h.b16 %v6295
        %v6459 = vunpack.c.l.b16 %v6296
        %v6460 = vunpack.c.h.b16 %v6296
        %v6461 = vunpack.c.l.b16 %v6297
        %v6462 = vunpack.c.h.b16 %v6297
        %v6463 = vunpack.c.l.b16 %v6298
        %v6464 = vunpack.c.h.b16 %v6298
        %v6465 = vunpack.c.l.b16 %v6299
        %v6466 = vunpack.c.h.b16 %v6299
        %v6467 = vunpack.c.l.b16 %v6300
        %v6468 = vunpack.c.h.b16 %v6300
        %v6469 = vunpack.c.l.b16 %v6301
        %v6470 = vunpack.c.h.b16 %v6301
        %v6471 = vunpack.c.l.b16 %v6302
        %v6472 = vunpack.c.h.b16 %v6302
        %v6473 = vunpack.c.l.b16 %v6303
        %v6474 = vunpack.c.h.b16 %v6303
        %v6475 = vunpack.c.l.b16 %v6304
        %v6476 = vunpack.c.h.b16 %v6304
        %v6477 = vunpack.c.l.b16 %v6305
        %v6478 = vunpack.c.h.b16 %v6305
        %v6479 = vunpack.c.l.b16 %v6306
        %v6480 = vunpack.c.h.b16 %v6306
        %v6481 = vunpack.c.l.b16 %v6307
        %v6482 = vunpack.c.h.b16 %v6307
        %v6483 = vunpack.c.l.b16 %v6308
        %v6484 = vunpack.c.h.b16 %v6308
        %v6485 = vunpack.c.l.b16 %v6309
        %v6486 = vunpack.c.h.b16 %v6309
        %v6487 = vunpack.c.l.b16 %v6310
        %v6488 = vunpack.c.h.b16 %v6310
        %v6489 = vunpack.c.l.b16 %v6311
        %v6490 = vunpack.c.h.b16 %v6311
        %v6491 = vunpack.c.l.b16 %v6312
        %v6492 = vunpack.c.h.b16 %v6312
        %v6493 = vunpack.c.l.b16 %v6313
        %v6494 = vunpack.c.h.b16 %v6313
        %v6495 = vunpack.c.l.b16 %v6314
        %v6496 = vunpack.c.h.b16 %v6314
        %v6497 = vunpack.c.l.b16 %v6315
        %v6498 = vunpack.c.h.b16 %v6315
        %v6499 = vunpack.c.l.b16 %v6316
        %v6500 = vunpack.c.h.b16 %v6316
        %v6501 = vunpack.c.l.b16 %v6317
        %v6502 = vunpack.c.h.b16 %v6317
        %v6503 = vunpack.c.l.b16 %v6318
        %v6504 = vunpack.c.h.b16 %v6318
        %v6505 = vunpack.c.l.b16 %v6319
        %v6506 = vunpack.c.h.b16 %v6319
        %v6507 = vunpack.c.l.b16 %v6320
        %v6508 = vunpack.c.h.b16 %v6320
        %v6509 = vunpack.c.l.b16 %v6321
        %v6510 = vunpack.c.h.b16 %v6321
        %v6511 = vunpack.c.l.b16 %v6322
        %v6512 = vunpack.c.h.b16 %v6322
        %v6513 = vunpack.c.l.b16 %v6323
        %v6514 = vunpack.c.h.b16 %v6323
        %v6515 = vunpack.c.l.b16 %v6324
        %v6516 = vunpack.c.h.b16 %v6324
        %v6517 = vpack.c.b16 %v6393, %v6389
        %v6518 = vpack.c.b16 %v6394, %v6390
        %v6519 = vpack.c.b16 %v6395, %v6391
        %v6520 = vpack.c.b16 %v6396, %v6392
        %v6521 = vpack.c.b16 %v6401, %v6397
        %v6522 = vpack.c.b16 %v6402, %v6398
        %v6523 = vpack.c.b16 %v6403, %v6399
        %v6524 = vpack.c.b16 %v6404, %v6400
        %v6525 = vpack.c.b16 %v6409, %v6405
        %v6526 = vpack.c.b16 %v6410, %v6406
        %v6527 = vpack.c.b16 %v6411, %v6407
        %v6528 = vpack.c.b16 %v6412, %v6408
        %v6529 = vpack.c.b16 %v6417, %v6413
        %v6530 = vpack.c.b16 %v6418, %v6414
        %v6531 = vpack.c.b16 %v6419, %v6415
        %v6532 = vpack.c.b16 %v6420, %v6416
        %v6533 = vpack.c.b16 %v6425, %v6421
        %v6534 = vpack.c.b16 %v6426, %v6422
        %v6535 = vpack.c.b16 %v6427, %v6423
        %v6536 = vpack.c.b16 %v6428, %v6424
        %v6537 = vpack.c.b16 %v6433, %v6429
        %v6538 = vpack.c.b16 %v6434, %v6430
        %v6539 = vpack.c.b16 %v6435, %v6431
        %v6540 = vpack.c.b16 %v6436, %v6432
        %v6541 = vpack.c.b16 %v6441, %v6437
        %v6542 = vpack.c.b16 %v6442, %v6438
        %v6543 = vpack.c.b16 %v6443, %v6439
        %v6544 = vpack.c.b16 %v6444, %v6440
        %v6545 = vpack.c.b16 %v6449, %v6445
        %v6546 = vpack.c.b16 %v6450, %v6446
        %v6547 = vpack.c.b16 %v6451, %v6447
        %v6548 = vpack.c.b16 %v6452, %v6448
        %v6549 = vpack.c.b16 %v6457, %v6453
        %v6550 = vpack.c.b16 %v6458, %v6454
        %v6551 = vpack.c.b16 %v6459, %v6455
        %v6552 = vpack.c.b16 %v6460, %v6456
        %v6553 = vpack.c.b16 %v6465, %v6461
        %v6554 = vpack.c.b16 %v6466, %v6462
        %v6555 = vpack.c.b16 %v6467, %v6463
        %v6556 = vpack.c.b16 %v6468, %v6464
        %v6557 = vpack.c.b16 %v6473, %v6469
        %v6558 = vpack.c.b16 %v6474, %v6470
        %v6559 = vpack.c.b16 %v6475, %v6471
        %v6560 = vpack.c.b16 %v6476, %v6472
        %v6561 = vpack.c.b16 %v6481, %v6477
        %v6562 = vpack.c.b16 %v6482, %v6478
        %v6563 = vpack.c.b16 %v6483, %v6479
        %v6564 = vpack.c.b16 %v6484, %v6480
        %v6565 = vpack.c.b16 %v6489, %v6485
        %v6566 = vpack.c.b16 %v6490, %v6486
        %v6567 = vpack.c.b16 %v6491, %v6487
        %v6568 = vpack.c.b16 %v6492, %v6488
        %v6569 = vpack.c.b16 %v6497, %v6493
        %v6570 = vpack.c.b16 %v6498, %v6494
        %v6571 = vpack.c.b16 %v6499, %v6495
        %v6572 = vpack.c.b16 %v6500, %v6496
        %v6573 = vpack.c.b16 %v6505, %v6501
        %v6574 = vpack.c.b16 %v6506, %v6502
        %v6575 = vpack.c.b16 %v6507, %v6503
        %v6576 = vpack.c.b16 %v6508, %v6504
        %v6577 = vpack.c.b16 %v6513, %v6509
        %v6578 = vpack.c.b16 %v6514, %v6510
        %v6579 = vpack.c.b16 %v6515, %v6511
        %v6580 = vpack.c.b16 %v6516, %v6512
        %6645 = vmatprep.subr.bf16.mxu0 %v6546
        %6646 = vmatpush1.bf16.msra.mxu0 %v6545
        %6647 = vmatprep.subr.bf16.mxu0 %v6542
        %6648 = vmatpush1.bf16.msra.mxu0 %v6541
        %6649 = vmatprep.subr.bf16.mxu0 %v6538
        %6650 = vmatpush1.bf16.msra.mxu0 %v6537
        %6651 = vmatprep.subr.bf16.mxu0 %v6534
        %6652 = vmatpush1.bf16.msra.mxu0 %v6533
        %6653 = vmatprep.subr.bf16.mxu0 %v6530
        %6654 = vmatpush1.bf16.msra.mxu0 %v6529
        %6655 = vmatprep.subr.bf16.mxu0 %v6526
        %6656 = vmatpush1.bf16.msra.mxu0 %v6525
        %6657 = vmatprep.subr.bf16.mxu0 %v6522
        %6658 = vmatpush1.bf16.msra.mxu0 %v6521
        %6659 = vmatprep.subr.bf16.mxu0 %v6518
        %6660 = vmatpush1.bf16.msra.mxu0 %v6517
        %6661 = vmatprep.subr.bf16.mxu0 %v6578
        %6662 = vmatpush2.bf16.msra.mxu0 %v6577
        %6663 = vmatprep.subr.bf16.mxu0 %v6574
        %6664 = vmatpush2.bf16.msra.mxu0 %v6573
        %6665 = vmatprep.subr.bf16.mxu0 %v6570
        %6666 = vmatpush2.bf16.msra.mxu0 %v6569
        %6667 = vmatprep.subr.bf16.mxu0 %v6566
        %6668 = vmatpush2.bf16.msra.mxu0 %v6565
        %6669 = vmatprep.subr.bf16.mxu0 %v6562
        %6670 = vmatpush2.bf16.msra.mxu0 %v6561
        %6671 = vmatprep.subr.bf16.mxu0 %v6558
        %6672 = vmatpush2.bf16.msra.mxu0 %v6557
        %6673 = vmatprep.subr.bf16.mxu0 %v6554
        %6674 = vmatpush2.bf16.msra.mxu0 %v6553
        %6675 = vmatprep.subr.bf16.mxu0 %v6550
        %6676 = vmatpush2.bf16.msra.mxu0 %v6549
        %6677 = vmatprep.mubr.bf16.mxu0 %v6260
        %6678 = vmatmul.mubr.bf16.gmra.mxu0 %v6259
        %v6679 = vpop.f32.mrf.mxu0
        %v6680 = vadd.f32 0.0, %v6679
        %v6681 = vpop.f32.mrf.mxu0
        %v6682 = vadd.f32 0.0, %v6681
        %v6683 = vpop.f32.mrf.mxu0
        %v6684 = vpop.f32.mrf.mxu0
        %6685 = vdwg.mxu0
        %6686 = vmatprep.subr.bf16.mxu0 %v6548
        %6687 = vmatpush1.bf16.msra.mxu0 %v6547
        %6688 = vmatprep.subr.bf16.mxu0 %v6544
        %6689 = vmatpush1.bf16.msra.mxu0 %v6543
        %6690 = vmatprep.subr.bf16.mxu0 %v6540
        %6691 = vmatpush1.bf16.msra.mxu0 %v6539
        %6692 = vmatprep.subr.bf16.mxu0 %v6536
        %6693 = vmatpush1.bf16.msra.mxu0 %v6535
        %6694 = vmatprep.subr.bf16.mxu0 %v6532
        %6695 = vmatpush1.bf16.msra.mxu0 %v6531
        %6696 = vmatprep.subr.bf16.mxu0 %v6528
        %6697 = vmatpush1.bf16.msra.mxu0 %v6527
        %6698 = vmatprep.subr.bf16.mxu0 %v6524
        %6699 = vmatpush1.bf16.msra.mxu0 %v6523
        %6700 = vmatprep.subr.bf16.mxu0 %v6520
        %6701 = vmatpush1.bf16.msra.mxu0 %v6519
        %6702 = vmatprep.subr.bf16.mxu0 %v6580
        %6703 = vmatpush2.bf16.msra.mxu0 %v6579
        %6704 = vmatprep.subr.bf16.mxu0 %v6576
        %6705 = vmatpush2.bf16.msra.mxu0 %v6575
        %6706 = vmatprep.subr.bf16.mxu0 %v6572
        %6707 = vmatpush2.bf16.msra.mxu0 %v6571
        %6708 = vmatprep.subr.bf16.mxu0 %v6568
        %6709 = vmatpush2.bf16.msra.mxu0 %v6567
        %6710 = vmatprep.subr.bf16.mxu0 %v6564
        %6711 = vmatpush2.bf16.msra.mxu0 %v6563
        %6712 = vmatprep.subr.bf16.mxu0 %v6560
        %6713 = vmatpush2.bf16.msra.mxu0 %v6559
        %6714 = vmatprep.subr.bf16.mxu0 %v6556
        %6715 = vmatpush2.bf16.msra.mxu0 %v6555
        %6716 = vmatprep.subr.bf16.mxu0 %v6552
        %6717 = vmatpush2.bf16.msra.mxu0 %v6551
        %6718 = vmatprep.mubr.bf16.mxu0 %v6260
        %6719 = vmatmul.mubr.bf16.gmra.mxu0 %v6259
        %v6720 = vpop.f32.mrf.mxu0
        %v6721 = vadd.f32 0.0, %v6720
        %v6722 = vpop.f32.mrf.mxu0
        %v6723 = vadd.f32 0.0, %v6722
        %v6724 = vpop.f32.mrf.mxu0
        %v6725 = vpop.f32.mrf.mxu0
        %6726 = vdwg.mxu0
        %v6727 = vld [vmem:[%s538 + $0x20] sm:$0xff]
        %v6728 = vld [vmem:[%s538 + $0x28] sm:$0xff]
        %v6729 = vld [vmem:[%s538 + $0x30] sm:$0xff]
        %v6730 = vld [vmem:[%s538 + $0x38] sm:$0xff]
        %v6731 = vadd.f32 %v6727, %v6680
        %v6732 = vadd.f32 %v6728, %v6682
        %v6733 = vadd.f32 %v6729, %v6721
        %v6734 = vadd.f32 %v6730, %v6723
        %6735 = vst [vmem:[%s538 + $0x20] sm:$0xff] %v6731
        %6736 = vst [vmem:[%s538 + $0x28] sm:$0xff] %v6732
        %6737 = vst [vmem:[%s538 + $0x30] sm:$0xff] %v6733
        %6738 = vst [vmem:[%s538 + $0x38] sm:$0xff] %v6734
        %s6739 = sand.u32 %s249, 1
        %s6740 = scalar_lea.sflag [#allocation5], %s6739
        %s6741 = sand.u32 %s249, 1
        %s6742 = smul.addr %s6741, 64
        %s6743 = scalar_lea.vmem [#allocation9], %s6742
        // Predicated region
        $region111: #{tpu_custom_call.1} parent=89 // pred_check
          %p6744 = pneg %p259
        $region112: #{tpu_custom_call.1} parent=89 // pred_check_branch
          %6746 = sbr.rel (%p6744) target = $region114
        $region113: #{tpu_custom_call.1} parent=89 // pred_region
          %s6747 = smul.u32 2, %s29
          %s6749 = ssub.s32 1024, 1024
          %6750 = vsyncadd %s6740, %s6749
          %s6751 = smul.addr %s6747, 4
          %s6752 = smul.addr %s6751, 128
          %s6753 = scalar_lea.hbm %s9, %s6752
          %s6754 = sshll.u32 %s6743, 4
          %s6755 = int_to_ptr.vmem [resolvable:$true] %s6754
          %6760 = dma.vmem_to_hbm [thread:$0]  %s6755, 1024, %s6753, %s6740, 512, 512, 32
        $region114: #{tpu_custom_call.1} parent=89 // pred_fallthru
          _
      $region90: #{tpu_custom_call.1} parent=5 // pred_fallthru
        _
      %p6761 = scmp.le.s32.totalorder 2, %s20
      // Predicated region
      $region115: #{tpu_custom_call.1} parent=5 // pred_check
        %p6762 = pneg %p6761
      $region116: #{tpu_custom_call.1} parent=5 // pred_check_branch
        %6764 = sbr.rel (%p6762) target = $region118
      $region117: #{tpu_custom_call.1} parent=5 // pred_region
        %s6765 = ssub.s32 %s20, 2
        // Predicated region
        $region119: #{tpu_custom_call.1} parent=117 // pred_check
          %p6766 = pneg %p265
        $region120: #{tpu_custom_call.1} parent=117 // pred_check_branch
          %6768 = sbr.rel (%p6766) target = $region122
        $region121: #{tpu_custom_call.1} parent=117 // pred_region
          %s6769 = sand.u32 %s250, 1
          %s6770 = scalar_lea.sflag [#allocation5], %s6769
          %s6771 = sand.u32 %s250, 1
          %s6772 = smul.addr %s6771, 64
          %s6773 = scalar_lea.vmem [#allocation9], %s6772
          %6774 = dma.done %s6770, 1024
        $region122: #{tpu_custom_call.1} parent=117 // pred_fallthru
          _
      $region118: #{tpu_custom_call.1} parent=5 // pred_fallthru
        _
    $region6: #{tpu_custom_call.1} parent=1 // loop_footer
      %s24 = sadd.s32 1, %s20
    $region7: #{tpu_custom_call.1} parent=1 // loop_footer_branch
      %19 = sbr.rel target = $region3
    $region8: #{tpu_custom_call.1} parent=1 // loop_exit
      _
    %6775 = vsyncpa [#allocation4], 1
    %s6776 = scalar_lea.sflag [#allocation4], 1
    %6777 = vsyncpa %s6776, 1
    %6778 = vsyncpa [#allocation7], 1
    %6779 = vsyncpa [#allocation5], 1
    %s6780 = scalar_lea.sflag [#allocation5], 1
    %6781 = vsyncpa %s6780, 1

</llo_original>
